<compile_context>
chip_gen: v7x
topology: tpu7x:2x2x1
jax: 0.10.0
libtpu: 0.0.40
codegen_flags: <defaults>
</compile_context>

<pallas_src>
import math

import jax
import jax.numpy as jnp
import numpy as np
from jax.experimental import pallas as pl
from jax.experimental.pallas import tpu as pltpu

# ---------------- synthetic config (mirrors cfg.* used by StackGAN) -----------
TEXT_DIM = 32        # cfg.TEXT.DIMENSION
COND_DIM = 16        # cfg.GAN.CONDITION_DIM
Z_DIM = 16           # cfg.Z_DIM
GF_DIM = 8           # cfg.GAN.GF_DIM
NGF = GF_DIM * 8     # self.gf_dim = cfg.GAN.GF_DIM * 8  (= 64)
BN_EPS = 1e-5

_UP_COUTS = (NGF // 2, NGF // 4, NGF // 8, NGF // 16)    # (32, 16, 8, 4)
_UP_WIN = (4, 8, 16, 32)                                 # input spatial size per upBlock
_IMG_W = 2 * _UP_WIN[-1]                                 # 64
_K = 4 * NGF                                             # 256 = W*C lanes of every activation
_CH_PAD = NGF // 2                                       # 32: BN channel padding

_VMEM = pl.BlockSpec(memory_space=pltpu.MemorySpace.VMEM)


# ------------------------------ fused kernel ----------------------------------
def _stage1_g_kernel(text_ref, noise_ref, eps_ref, ca_w_ref, ca_b_ref,
                     fc_w_ref, fc_gb_ref, q_ref, p_ref, pt_ref, bn_gb_ref,
                     img_ref, mulv_ref, pad_ref):
    # ---- CA_NET: Linear(+bias) + ReLU + reparametrize -------------------------
    x = jnp.dot(text_ref[...], ca_w_ref[...], preferred_element_type=jnp.float32)
    x = jnp.maximum(x + ca_b_ref[...], 0.0)
    mulv_ref[...] = x                                    # (B, 2*COND_DIM) = [mu | logvar]
    mu = x[:, :COND_DIM]
    logvar = x[:, COND_DIM:]
    c_code = eps_ref[...] * jnp.exp(0.5 * logvar) + mu

    # ---- fc: Linear(no bias) + BatchNorm1d (batch stats) + ReLU ----------------
    # One (B,48)x(48,1024) matmul; fc columns are pre-permuted to (h, w, c)
    # lane-dense order so the (B, 4, 256) view below is a no-op.
    z = jnp.concatenate([noise_ref[...], c_code], axis=1).astype(jnp.bfloat16)
    h = jnp.dot(z, fc_w_ref[...], preferred_element_type=jnp.float32)   # (B, 1024)
    m = jnp.mean(h, axis=0, keepdims=True)
    d = h - m
    v = jnp.mean(d * d, axis=0, keepdims=True)           # biased var (torch train mode)
    h = d * jax.lax.rsqrt(v + BN_EPS) * fc_gb_ref[0:1, :] + fc_gb_ref[1:2, :]
    h = jnp.maximum(h, 0.0)
    Bb = h.shape[0]
    x3 = h.reshape(Bb, 4, _K)                            # (B, H=4, W*C=256), f32

    # ---- 4 x upBlock: nearest-2x upsample + conv3x3(pad 1) + BN2d + ReLU -------
    for blk in range(4):
        cout = _UP_COUTS[blk]
        w2 = _K // cout                                  # output width of this block
        H = x3.shape[1]
        H2 = 2 * H
        zrow = jnp.zeros((Bb, 1, _K), jnp.float32)

        # nearest 2x along H, written into the persistent padded scratch
        xr = jnp.concatenate([x3[:, :, None, :], x3[:, :, None, :]],
                             axis=2).reshape(Bb, H2, _K)
        pad_ref[:, 0:1, :] = zrow
        pad_ref[:, 1:H2 + 1, :] = xr
        pad_ref[:, H2 + 1:H2 + 2, :] = zrow

        # im2col of the 3 height taps along the lane axis; single bf16 cast;
        # width upsample/pad + horizontal taps live inside Q -> ONE matmul.
        slab = jnp.concatenate(
            [pad_ref[:, 0:H2, :], pad_ref[:, 1:H2 + 1, :], pad_ref[:, 2:H2 + 2, :]],
            axis=2).reshape(Bb * H2, 3 * _K).astype(jnp.bfloat16)
        acc = jnp.dot(slab, q_ref[blk], preferred_element_type=jnp.float32)  # (B*H2, 256)

        # BatchNorm2d, training-mode batch statistics, then ReLU.
        inv_cnt = 1.0 / float(Bb * H2 * w2)
        s12 = jnp.concatenate([jnp.sum(acc, axis=0, keepdims=True),
                               jnp.sum(acc * acc, axis=0, keepdims=True)], axis=0)
        st = jnp.dot(s12, p_ref[blk], preferred_element_type=jnp.float32) * inv_cnt
        ch_m = st[0:1, :]                                # (1, 32) per-channel mean
        var = jnp.maximum(st[1:2, :] - ch_m * ch_m, 0.0)
        gb = bn_gb_ref[blk]                              # (2, 32): gamma, beta
        s = gb[0:1, :] * jax.lax.rsqrt(var + BN_EPS)     # folded scale
        b = gb[1:2, :] - ch_m * s                        # folded bias
        sb = jnp.dot(jnp.concatenate([s, b], axis=0), pt_ref[blk],
                     preferred_element_type=jnp.float32)  # (2, 256) scattered to lanes
        y = jnp.maximum(acc * sb[0:1, :] + sb[1:2, :], 0.0)
        x3 = y.reshape(Bb, H2, _K)

    # ---- img: conv3x3(pad 1) + Tanh, lane-dense (c, w) output ------------------
    H = x3.shape[1]                                      # 64
    zrow = jnp.zeros((Bb, 1, _K), jnp.float32)
    pad_ref[:, 0:1, :] = zrow
    pad_ref[:, 1:H + 1, :] = x3
    pad_ref[:, H + 1:H + 2, :] = zrow
    slab = jnp.concatenate(
        [pad_ref[:, 0:H, :], pad_ref[:, 1:H + 1, :], pad_ref[:, 2:H + 2, :]],
        axis=2).reshape(Bb * H, 3 * _K).astype(jnp.bfloat16)
    img = jnp.tanh(jnp.dot(slab, q_ref[4], preferred_element_type=jnp.float32))
    img_ref[...] = img.reshape(Bb, H, _K)                # one lane-dense 256-wide store


# ------------------------------ forward wrapper --------------------------------
def stage1_g_forward(params, text_embedding, noise, eps):
    B = text_embedding.shape[0]
    args = (text_embedding, noise, eps) + tuple(params)
    img_lane, mulv = pl.pallas_call(
        _stage1_g_kernel,
        out_shape=(jax.ShapeDtypeStruct((B, _IMG_W, 4 * _IMG_W), jnp.float32),
                   jax.ShapeDtypeStruct((B, 2 * COND_DIM), jnp.float32)),
        in_specs=[_VMEM] * len(args),
        out_specs=(_VMEM, _VMEM),
        scratch_shapes=[pltpu.VMEM((B, _IMG_W + 2, _K), jnp.float32)],
    )(*args)
    # (B, H, 4*W) with lane order (c, w); channel 3 is zero padding -> NCHW in XLA
    fake_img = jnp.transpose(
        img_lane.reshape(B, _IMG_W, 4, _IMG_W)[:, :, :3, :], (0, 2, 1, 3))
    mu = mulv[:, :COND_DIM]
    logvar = mulv[:, COND_DIM:]
    return None, fake_img, mu, logvar


# ------------------------- structured weight builders --------------------------
def _build_up_q(w_hwio, win):
    """Fold width-upsample(2x) + pad(1) + 3 horizontal taps into a (3*win*cin,
    2*win*cout) matrix.  Row = dy*(win*cin) + w_in*cin + ci, col = jo*cout + co."""
    w = np.asarray(w_hwio, np.float32)                   # (3, 3, cin, cout)
    cin, cout = w.shape[2], w.shape[3]
    w2 = 2 * win
    q = np.zeros((3, win * cin, w2 * cout), np.float32)
    for dy in range(3):
        for dx in range(3):
            for jo in range(w2):
                j = jo + dx - 1                          # unpadded upsampled column
                if 0 <= j < w2:
                    wi = j // 2                          # nearest-neighbour source column
                    q[dy, wi * cin:(wi + 1) * cin, jo * cout:(jo + 1) * cout] += w[dy, dx]
    return q.reshape(3 * win * cin, w2 * cout)


def _build_img_q(w_hwio, win, n_pad):
    """Fold pad(1) + 3 horizontal taps; output cols ordered (c, w) = co*win + jo,
    padded with zero columns up to n_pad so the kernel output stays 256-wide."""
    w = np.asarray(w_hwio, np.float32)                   # (3, 3, cin, 3)
    cin, cout = w.shape[2], w.shape[3]
    q = np.zeros((3, win * cin, n_pad), np.float32)
    for dy in range(3):
        for dx in range(3):
            for jo in range(win):
                j = jo + dx - 1
                if 0 <= j < win:
                    for co in range(cout):
                        q[dy, j * cin:(j + 1) * cin, co * win + jo] += w[dy, dx, :, co]
    return q.reshape(3 * win * cin, n_pad)


# --------------------------- deterministic params ------------------------------
def init_params(key):
    ks = jax.random.split(key, 8)
    ninput = Z_DIM + COND_DIM
    params = []

    # CA_NET linear (+bias)
    params.append(jax.random.normal(ks[0], (TEXT_DIM, 2 * COND_DIM), jnp.float32) * 0.05)
    params.append(jax.random.normal(ks[1], (1, 2 * COND_DIM), jnp.float32) * 0.05)

    # fc (no bias): permute columns from torch flat (c, h, w) to (h, w, c)
    fc_w = np.asarray(jax.random.normal(ks[2], (ninput, NGF * 16), jnp.float32)) * 0.05
    fc_w = fc_w.reshape(ninput, NGF, 4, 4).transpose(0, 2, 3, 1).reshape(ninput, 16 * NGF)
    params.append(jnp.asarray(fc_w, jnp.bfloat16))
    # BN1d affine (gamma row 0, beta row 1) in the same permuted order (defaults)
    fc_gb = np.stack([np.ones((16 * NGF,), np.float32),
                      np.zeros((16 * NGF,), np.float32)], axis=0)
    params.append(jnp.asarray(fc_gb))

    # upBlocks + img conv: structured weights stacked, BN gather/scatter packed.
    chans = [NGF, NGF // 2, NGF // 4, NGF // 8, NGF // 16]
    q_all, p_all, gb_all = [], [], []
    for i in range(4):
        cin, cout, win = chans[i], chans[i + 1], _UP_WIN[i]
        scale = 1.0 / math.sqrt(9.0 * cin)
        w = jax.random.normal(ks[3 + i], (3, 3, cin, cout), jnp.float32) * scale
        q_all.append(_build_up_q(w, win))                # (768, 256)
        p = np.zeros((_K, _CH_PAD), np.float32)          # lane -> channel gather
        for jo in range(2 * win):
            for co in range(cout):
                p[jo * cout + co, co] = 1.0
        p_all.append(p)
        gb = np.zeros((2, _CH_PAD), np.float32)
        gb[0, :] = 1.0                                   # gamma (pad channels harmless)
        gb_all.append(gb)

    cin = NGF // 16
    scale = 1.0 / math.sqrt(9.0 * cin)
    w_img = jax.random.normal(ks[7], (3, 3, cin, 3), jnp.float32) * scale
    q_all.append(_build_img_q(w_img, _IMG_W, _K))        # (768, 256), cols >=192 zero

    q_stack = np.stack(q_all, axis=0)                    # (5, 768, 256)
    p_stack = np.stack(p_all, axis=0)                    # (4, 256, 32)
    pt_stack = np.ascontiguousarray(p_stack.transpose(0, 2, 1))   # (4, 32, 256)
    gb_stack = np.stack(gb_all, axis=0)                  # (4, 2, 32)

    params.append(jnp.asarray(q_stack, jnp.bfloat16))
    params.append(jnp.asarray(p_stack))
    params.append(jnp.asarray(pt_stack))
    params.append(jnp.asarray(gb_stack))
    return tuple(params)


if __name__ == "__main__":
    key = jax.random.PRNGKey(0)
    k_param, k_text, k_noise, k_eps = jax.random.split(key, 4)
    B = 2
    params = init_params(k_param)
    text_embedding = jax.random.normal(k_text, (B, TEXT_DIM), jnp.float32)
    noise = jax.random.normal(k_noise, (B, Z_DIM), jnp.float32)
    # eps replaces torch.FloatTensor(std.size()).normal_() (deterministic input here)
    eps = jax.random.normal(k_eps, (B, COND_DIM), jnp.float32)

    fwd = jax.jit(stage1_g_forward)
    _, fake_img, mu, logvar = fwd(params, text_embedding, noise, eps)
    jax.block_until_ready(fake_img)

    assert fake_img.shape == (B, 3, 64, 64)
    assert mu.shape == (B, COND_DIM) and logvar.shape == (B, COND_DIM)
    assert bool(jnp.all(jnp.isfinite(fake_img)))
    print("KERNEL_OK")
</pallas_src>

<mosaic_0001>
module attributes {stable_mosaic.version = 11 : i64} {
  func.func @_stage1_g_kernel(%arg0: memref<2x32xf32, #tpu.memory_space<vmem>>, %arg1: memref<2x16xf32, #tpu.memory_space<vmem>>, %arg2: memref<2x16xf32, #tpu.memory_space<vmem>>, %arg3: memref<32x32xf32, #tpu.memory_space<vmem>>, %arg4: memref<1x32xf32, #tpu.memory_space<vmem>>, %arg5: memref<32x1024xbf16, #tpu.memory_space<vmem>>, %arg6: memref<2x1024xf32, #tpu.memory_space<vmem>>, %arg7: memref<5x768x256xbf16, #tpu.memory_space<vmem>>, %arg8: memref<4x256x32xf32, #tpu.memory_space<vmem>>, %arg9: memref<4x32x256xf32, #tpu.memory_space<vmem>>, %arg10: memref<4x2x32xf32, #tpu.memory_space<vmem>>, %arg11: memref<2x64x256xf32, #tpu.memory_space<vmem>>, %arg12: memref<2x32xf32, #tpu.memory_space<vmem>>, %arg13: memref<2x66x256xf32, #tpu.memory_space<vmem>>) attributes {dimension_semantics = [], scalar_prefetch = 0 : i64, scratch_operands = 1 : i64, tpu.core_type = #tpu.core_type<tc>} {
    %c0 = arith.constant 0 : index
    %c0_0 = arith.constant 0 : index
    %0 = vector.load %arg0[%c0, %c0_0] : memref<2x32xf32, #tpu.memory_space<vmem>>, vector<2x32xf32>
    %c0_1 = arith.constant 0 : index
    %c0_2 = arith.constant 0 : index
    %1 = vector.load %arg3[%c0_1, %c0_2] : memref<32x32xf32, #tpu.memory_space<vmem>>, vector<32x32xf32>
    %cst = arith.constant dense<0.000000e+00> : vector<2x32xf32>
    %2 = tpu.matmul %0, %1, %cst {dimension_numbers = #tpu.dot_dimension_numbers<[1], [0], [0], [1], [0, 0, 1, 1], [], []>} : vector<2x32xf32>, vector<32x32xf32>, vector<2x32xf32> -> vector<2x32xf32>
    %c0_3 = arith.constant 0 : index
    %c0_4 = arith.constant 0 : index
    %3 = vector.load %arg4[%c0_3, %c0_4] : memref<1x32xf32, #tpu.memory_space<vmem>>, vector<1x32xf32>
    %4 = vector.broadcast %3 : vector<1x32xf32> to vector<2x32xf32>
    %5 = arith.addf %2, %4 : vector<2x32xf32>
    %cst_5 = arith.constant 0.000000e+00 : f32
    %6 = vector.broadcast %cst_5 : f32 to vector<2x32xf32>
    %7 = arith.maximumf %5, %6 : vector<2x32xf32>
    %c0_6 = arith.constant 0 : index
    %c0_7 = arith.constant 0 : index
    %8 = vector.load %arg12[%c0_6, %c0_7] : memref<2x32xf32, #tpu.memory_space<vmem>>, vector<2x32xf32>
    tpu.vector_store %arg12[%c0_6, %c0_7], %7 {strides = array<i32>} : memref<2x32xf32, #tpu.memory_space<vmem>>, vector<2x32xf32>,
    %9 = vector.extract_strided_slice %7 {offsets = [0, 0], sizes = [2, 16], strides = [1, 1]} : vector<2x32xf32> to vector<2x16xf32>
    %10 = vector.extract_strided_slice %7 {offsets = [0, 16], sizes = [2, 16], strides = [1, 1]} : vector<2x32xf32> to vector<2x16xf32>
    %c0_8 = arith.constant 0 : index
    %c0_9 = arith.constant 0 : index
    %11 = vector.load %arg2[%c0_8, %c0_9] : memref<2x16xf32, #tpu.memory_space<vmem>>, vector<2x16xf32>
    %cst_10 = arith.constant 5.000000e-01 : f32
    %12 = vector.broadcast %cst_10 : f32 to vector<2x16xf32>
    %13 = arith.mulf %12, %10 : vector<2x16xf32>
    %14 = math.exp %13 : vector<2x16xf32>
    %15 = arith.mulf %11, %14 : vector<2x16xf32>
    %16 = arith.addf %15, %9 : vector<2x16xf32>
    %c0_11 = arith.constant 0 : index
    %c0_12 = arith.constant 0 : index
    %17 = vector.load %arg1[%c0_11, %c0_12] : memref<2x16xf32, #tpu.memory_space<vmem>>, vector<2x16xf32>
    %18 = tpu.concatenate %17, %16 in 1 : vector<2x16xf32>, vector<2x16xf32> -> vector<2x32xf32>
    %19 = arith.truncf %18 : vector<2x32xf32> to vector<2x32xbf16>
    %c0_13 = arith.constant 0 : index
    %c0_14 = arith.constant 0 : index
    %20 = vector.load %arg5[%c0_13, %c0_14] : memref<32x1024xbf16, #tpu.memory_space<vmem>>, vector<32x1024xbf16>
    %cst_15 = arith.constant dense<0.000000e+00> : vector<2x1024xf32>
    %21 = tpu.matmul %19, %20, %cst_15 {dimension_numbers = #tpu.dot_dimension_numbers<[1], [0], [0], [1], [0, 0, 1, 1], [], []>} : vector<2x32xbf16>, vector<32x1024xbf16>, vector<2x1024xf32> -> vector<2x1024xf32>
    %cst_16 = arith.constant dense<0.000000e+00> : vector<1024xf32>
    %22 = vector.multi_reduction <add>, %21, %cst_16 [0] : vector<2x1024xf32> to vector<1024xf32>
    %23 = vector.shape_cast %22 : vector<1024xf32> to vector<1x1024xf32>
    %cst_17 = arith.constant 2.000000e+00 : f32
    %24 = vector.broadcast %cst_17 : f32 to vector<1x1024xf32>
    %25 = arith.divf %23, %24 : vector<1x1024xf32>
    %26 = vector.broadcast %25 : vector<1x1024xf32> to vector<2x1024xf32>
    %27 = arith.subf %21, %26 : vector<2x1024xf32>
    %28 = arith.mulf %27, %27 : vector<2x1024xf32>
    %cst_18 = arith.constant dense<0.000000e+00> : vector<1024xf32>
    %29 = vector.multi_reduction <add>, %28, %cst_18 [0] : vector<2x1024xf32> to vector<1024xf32>
    %30 = vector.shape_cast %29 : vector<1024xf32> to vector<1x1024xf32>
    %cst_19 = arith.constant 2.000000e+00 : f32
    %31 = vector.broadcast %cst_19 : f32 to vector<1x1024xf32>
    %32 = arith.divf %30, %31 : vector<1x1024xf32>
    %cst_20 = arith.constant 9.99999974E-6 : f32
    %33 = vector.broadcast %cst_20 : f32 to vector<1x1024xf32>
    %34 = arith.addf %32, %33 : vector<1x1024xf32>
    %35 = math.rsqrt %34 : vector<1x1024xf32>
    %36 = vector.broadcast %35 : vector<1x1024xf32> to vector<2x1024xf32>
    %37 = arith.mulf %27, %36 : vector<2x1024xf32>
    %c0_21 = arith.constant 0 : index
    %c0_22 = arith.constant 0 : index
    %38 = vector.load %arg6[%c0_21, %c0_22] : memref<2x1024xf32, #tpu.memory_space<vmem>>, vector<1x1024xf32>
    %39 = vector.broadcast %38 : vector<1x1024xf32> to vector<2x1024xf32>
    %40 = arith.mulf %37, %39 : vector<2x1024xf32>
    %c1 = arith.constant 1 : index
    %c0_23 = arith.constant 0 : index
    %41 = vector.load %arg6[%c1, %c0_23] : memref<2x1024xf32, #tpu.memory_space<vmem>>, vector<1x1024xf32>
    %42 = vector.broadcast %41 : vector<1x1024xf32> to vector<2x1024xf32>
    %43 = arith.addf %40, %42 : vector<2x1024xf32>
    %cst_24 = arith.constant 0.000000e+00 : f32
    %44 = vector.broadcast %cst_24 : f32 to vector<2x1024xf32>
    %45 = arith.maximumf %43, %44 : vector<2x1024xf32>
    %46 = vector.shape_cast %45 : vector<2x1024xf32> to vector<2x4x256xf32>
    %cst_25 = arith.constant 0.000000e+00 : f32
    %47 = vector.broadcast %cst_25 : f32 to vector<2x1x256xf32>
    %48 = vector.shape_cast %46 : vector<2x4x256xf32> to vector<2x4x1x256xf32>
    %49 = vector.shape_cast %46 : vector<2x4x256xf32> to vector<2x4x1x256xf32>
    %50 = tpu.concatenate %48, %49 in 2 : vector<2x4x1x256xf32>, vector<2x4x1x256xf32> -> vector<2x4x2x256xf32>
    %51 = vector.shape_cast %50 : vector<2x4x2x256xf32> to vector<2x8x256xf32>
    %c0_26 = arith.constant 0 : index
    %c0_27 = arith.constant 0 : index
    %c0_28 = arith.constant 0 : index
    %52 = vector.load %arg13[%c0_26, %c0_27, %c0_28] : memref<2x66x256xf32, #tpu.memory_space<vmem>>, vector<2x1x256xf32>
    tpu.vector_store %arg13[%c0_26, %c0_27, %c0_28], %47 {strides = array<i32>} : memref<2x66x256xf32, #tpu.memory_space<vmem>>, vector<2x1x256xf32>,
    %c0_29 = arith.constant 0 : index
    %c1_30 = arith.constant 1 : index
    %c0_31 = arith.constant 0 : index
    %53 = vector.load %arg13[%c0_29, %c1_30, %c0_31] : memref<2x66x256xf32, #tpu.memory_space<vmem>>, vector<2x8x256xf32>
    tpu.vector_store %arg13[%c0_29, %c1_30, %c0_31], %51 {strides = array<i32>} : memref<2x66x256xf32, #tpu.memory_space<vmem>>, vector<2x8x256xf32>,
    %c0_32 = arith.constant 0 : index
    %c9 = arith.constant 9 : index
    %c0_33 = arith.constant 0 : index
    %54 = vector.load %arg13[%c0_32, %c9, %c0_33] : memref<2x66x256xf32, #tpu.memory_space<vmem>>, vector<2x1x256xf32>
    tpu.vector_store %arg13[%c0_32, %c9, %c0_33], %47 {strides = array<i32>} : memref<2x66x256xf32, #tpu.memory_space<vmem>>, vector<2x1x256xf32>,
    %c0_34 = arith.constant 0 : index
    %c0_35 = arith.constant 0 : index
    %c0_36 = arith.constant 0 : index
    %55 = vector.load %arg13[%c0_34, %c0_35, %c0_36] : memref<2x66x256xf32, #tpu.memory_space<vmem>>, vector<2x8x256xf32>
    %c0_37 = arith.constant 0 : index
    %c1_38 = arith.constant 1 : index
    %c0_39 = arith.constant 0 : index
    %56 = vector.load %arg13[%c0_37, %c1_38, %c0_39] : memref<2x66x256xf32, #tpu.memory_space<vmem>>, vector<2x8x256xf32>
    %c0_40 = arith.constant 0 : index
    %c2 = arith.constant 2 : index
    %c0_41 = arith.constant 0 : index
    %57 = vector.load %arg13[%c0_40, %c2, %c0_41] : memref<2x66x256xf32, #tpu.memory_space<vmem>>, vector<2x8x256xf32>
    %58 = tpu.concatenate %55, %56, %57 in 2 : vector<2x8x256xf32>, vector<2x8x256xf32>, vector<2x8x256xf32> -> vector<2x8x768xf32>
    %59 = vector.shape_cast %58 : vector<2x8x768xf32> to vector<16x768xf32>
    %60 = arith.truncf %59 : vector<16x768xf32> to vector<16x768xbf16>
    %c0_42 = arith.constant 0 : index
    %c0_43 = arith.constant 0 : index
    %c0_44 = arith.constant 0 : index
    %61 = vector.load %arg7[%c0_42, %c0_43, %c0_44] : memref<5x768x256xbf16, #tpu.memory_space<vmem>>, vector<1x768x256xbf16>
    %62 = vector.shape_cast %61 : vector<1x768x256xbf16> to vector<768x256xbf16>
    %cst_45 = arith.constant dense<0.000000e+00> : vector<16x256xf32>
    %63 = tpu.matmul %60, %62, %cst_45 {dimension_numbers = #tpu.dot_dimension_numbers<[1], [0], [0], [1], [0, 0, 1, 1], [], []>} : vector<16x768xbf16>, vector<768x256xbf16>, vector<16x256xf32> -> vector<16x256xf32>
    %cst_46 = arith.constant dense<0.000000e+00> : vector<256xf32>
    %64 = vector.multi_reduction <add>, %63, %cst_46 [0] : vector<16x256xf32> to vector<256xf32>
    %65 = vector.shape_cast %64 : vector<256xf32> to vector<1x256xf32>
    %66 = arith.mulf %63, %63 : vector<16x256xf32>
    %cst_47 = arith.constant dense<0.000000e+00> : vector<256xf32>
    %67 = vector.multi_reduction <add>, %66, %cst_47 [0] : vector<16x256xf32> to vector<256xf32>
    %68 = vector.shape_cast %67 : vector<256xf32> to vector<1x256xf32>
    %69 = tpu.concatenate %65, %68 in 0 : vector<1x256xf32>, vector<1x256xf32> -> vector<2x256xf32>
    %c0_48 = arith.constant 0 : index
    %c0_49 = arith.constant 0 : index
    %c0_50 = arith.constant 0 : index
    %70 = vector.load %arg8[%c0_48, %c0_49, %c0_50] : memref<4x256x32xf32, #tpu.memory_space<vmem>>, vector<1x256x32xf32>
    %71 = vector.shape_cast %70 : vector<1x256x32xf32> to vector<256x32xf32>
    %cst_51 = arith.constant dense<0.000000e+00> : vector<2x32xf32>
    %72 = tpu.matmul %69, %71, %cst_51 {dimension_numbers = #tpu.dot_dimension_numbers<[1], [0], [0], [1], [0, 0, 1, 1], [], []>} : vector<2x256xf32>, vector<256x32xf32>, vector<2x32xf32> -> vector<2x32xf32>
    %cst_52 = arith.constant 7.812500e-03 : f32
    %73 = vector.broadcast %cst_52 : f32 to vector<2x32xf32>
    %74 = arith.mulf %72, %73 : vector<2x32xf32>
    %75 = vector.extract_strided_slice %74 {offsets = [0, 0], sizes = [1, 32], strides = [1, 1]} : vector<2x32xf32> to vector<1x32xf32>
    %76 = vector.extract_strided_slice %74 {offsets = [1, 0], sizes = [1, 32], strides = [1, 1]} : vector<2x32xf32> to vector<1x32xf32>
    %77 = arith.mulf %75, %75 : vector<1x32xf32>
    %78 = arith.subf %76, %77 : vector<1x32xf32>
    %cst_53 = arith.constant 0.000000e+00 : f32
    %79 = vector.broadcast %cst_53 : f32 to vector<1x32xf32>
    %80 = arith.maximumf %78, %79 : vector<1x32xf32>
    %c0_54 = arith.constant 0 : index
    %c0_55 = arith.constant 0 : index
    %c0_56 = arith.constant 0 : index
    %81 = vector.load %arg10[%c0_54, %c0_55, %c0_56] : memref<4x2x32xf32, #tpu.memory_space<vmem>>, vector<1x2x32xf32>
    %82 = vector.shape_cast %81 : vector<1x2x32xf32> to vector<2x32xf32>
    %83 = vector.extract_strided_slice %82 {offsets = [0, 0], sizes = [1, 32], strides = [1, 1]} : vector<2x32xf32> to vector<1x32xf32>
    %cst_57 = arith.constant 9.99999974E-6 : f32
    %84 = vector.broadcast %cst_57 : f32 to vector<1x32xf32>
    %85 = arith.addf %80, %84 : vector<1x32xf32>
    %86 = math.rsqrt %85 : vector<1x32xf32>
    %87 = arith.mulf %83, %86 : vector<1x32xf32>
    %88 = vector.extract_strided_slice %82 {offsets = [1, 0], sizes = [1, 32], strides = [1, 1]} : vector<2x32xf32> to vector<1x32xf32>
    %89 = arith.mulf %75, %87 : vector<1x32xf32>
    %90 = arith.subf %88, %89 : vector<1x32xf32>
    %91 = tpu.concatenate %87, %90 in 0 : vector<1x32xf32>, vector<1x32xf32> -> vector<2x32xf32>
    %c0_58 = arith.constant 0 : index
    %c0_59 = arith.constant 0 : index
    %c0_60 = arith.constant 0 : index
    %92 = vector.load %arg9[%c0_58, %c0_59, %c0_60] : memref<4x32x256xf32, #tpu.memory_space<vmem>>, vector<1x32x256xf32>
    %93 = vector.shape_cast %92 : vector<1x32x256xf32> to vector<32x256xf32>
    %cst_61 = arith.constant dense<0.000000e+00> : vector<2x256xf32>
    %94 = tpu.matmul %91, %93, %cst_61 {dimension_numbers = #tpu.dot_dimension_numbers<[1], [0], [0], [1], [0, 0, 1, 1], [], []>} : vector<2x32xf32>, vector<32x256xf32>, vector<2x256xf32> -> vector<2x256xf32>
    %95 = vector.extract_strided_slice %94 {offsets = [0, 0], sizes = [1, 256], strides = [1, 1]} : vector<2x256xf32> to vector<1x256xf32>
    %96 = vector.broadcast %95 : vector<1x256xf32> to vector<16x256xf32>
    %97 = arith.mulf %63, %96 : vector<16x256xf32>
    %98 = vector.extract_strided_slice %94 {offsets = [1, 0], sizes = [1, 256], strides = [1, 1]} : vector<2x256xf32> to vector<1x256xf32>
    %99 = vector.broadcast %98 : vector<1x256xf32> to vector<16x256xf32>
    %100 = arith.addf %97, %99 : vector<16x256xf32>
    %cst_62 = arith.constant 0.000000e+00 : f32
    %101 = vector.broadcast %cst_62 : f32 to vector<16x256xf32>
    %102 = arith.maximumf %100, %101 : vector<16x256xf32>
    %103 = vector.shape_cast %102 : vector<16x256xf32> to vector<2x8x256xf32>
    %cst_63 = arith.constant 0.000000e+00 : f32
    %104 = vector.broadcast %cst_63 : f32 to vector<2x1x256xf32>
    %105 = vector.shape_cast %103 : vector<2x8x256xf32> to vector<2x8x1x256xf32>
    %106 = vector.shape_cast %103 : vector<2x8x256xf32> to vector<2x8x1x256xf32>
    %107 = tpu.concatenate %105, %106 in 2 : vector<2x8x1x256xf32>, vector<2x8x1x256xf32> -> vector<2x8x2x256xf32>
    %108 = vector.shape_cast %107 : vector<2x8x2x256xf32> to vector<2x16x256xf32>
    %c0_64 = arith.constant 0 : index
    %c0_65 = arith.constant 0 : index
    %c0_66 = arith.constant 0 : index
    %109 = vector.load %arg13[%c0_64, %c0_65, %c0_66] : memref<2x66x256xf32, #tpu.memory_space<vmem>>, vector<2x1x256xf32>
    tpu.vector_store %arg13[%c0_64, %c0_65, %c0_66], %104 {strides = array<i32>} : memref<2x66x256xf32, #tpu.memory_space<vmem>>, vector<2x1x256xf32>,
    %c0_67 = arith.constant 0 : index
    %c1_68 = arith.constant 1 : index
    %c0_69 = arith.constant 0 : index
    %110 = vector.load %arg13[%c0_67, %c1_68, %c0_69] : memref<2x66x256xf32, #tpu.memory_space<vmem>>, vector<2x16x256xf32>
    tpu.vector_store %arg13[%c0_67, %c1_68, %c0_69], %108 {strides = array<i32>} : memref<2x66x256xf32, #tpu.memory_space<vmem>>, vector<2x16x256xf32>,
    %c0_70 = arith.constant 0 : index
    %c17 = arith.constant 17 : index
    %c0_71 = arith.constant 0 : index
    %111 = vector.load %arg13[%c0_70, %c17, %c0_71] : memref<2x66x256xf32, #tpu.memory_space<vmem>>, vector<2x1x256xf32>
    tpu.vector_store %arg13[%c0_70, %c17, %c0_71], %104 {strides = array<i32>} : memref<2x66x256xf32, #tpu.memory_space<vmem>>, vector<2x1x256xf32>,
    %c0_72 = arith.constant 0 : index
    %c0_73 = arith.constant 0 : index
    %c0_74 = arith.constant 0 : index
    %112 = vector.load %arg13[%c0_72, %c0_73, %c0_74] : memref<2x66x256xf32, #tpu.memory_space<vmem>>, vector<2x16x256xf32>
    %c0_75 = arith.constant 0 : index
    %c1_76 = arith.constant 1 : index
    %c0_77 = arith.constant 0 : index
    %113 = vector.load %arg13[%c0_75, %c1_76, %c0_77] : memref<2x66x256xf32, #tpu.memory_space<vmem>>, vector<2x16x256xf32>
    %c0_78 = arith.constant 0 : index
    %c2_79 = arith.constant 2 : index
    %c0_80 = arith.constant 0 : index
    %114 = vector.load %arg13[%c0_78, %c2_79, %c0_80] : memref<2x66x256xf32, #tpu.memory_space<vmem>>, vector<2x16x256xf32>
    %115 = tpu.concatenate %112, %113, %114 in 2 : vector<2x16x256xf32>, vector<2x16x256xf32>, vector<2x16x256xf32> -> vector<2x16x768xf32>
    %116 = vector.shape_cast %115 : vector<2x16x768xf32> to vector<32x768xf32>
    %117 = arith.truncf %116 : vector<32x768xf32> to vector<32x768xbf16>
    %c1_81 = arith.constant 1 : index
    %c0_82 = arith.constant 0 : index
    %c0_83 = arith.constant 0 : index
    %118 = vector.load %arg7[%c1_81, %c0_82, %c0_83] : memref<5x768x256xbf16, #tpu.memory_space<vmem>>, vector<1x768x256xbf16>
    %119 = vector.shape_cast %118 : vector<1x768x256xbf16> to vector<768x256xbf16>
    %cst_84 = arith.constant dense<0.000000e+00> : vector<32x256xf32>
    %120 = tpu.matmul %117, %119, %cst_84 {dimension_numbers = #tpu.dot_dimension_numbers<[1], [0], [0], [1], [0, 0, 1, 1], [], []>} : vector<32x768xbf16>, vector<768x256xbf16>, vector<32x256xf32> -> vector<32x256xf32>
    %cst_85 = arith.constant dense<0.000000e+00> : vector<256xf32>
    %121 = vector.multi_reduction <add>, %120, %cst_85 [0] : vector<32x256xf32> to vector<256xf32>
    %122 = vector.shape_cast %121 : vector<256xf32> to vector<1x256xf32>
    %123 = arith.mulf %120, %120 : vector<32x256xf32>
    %cst_86 = arith.constant dense<0.000000e+00> : vector<256xf32>
    %124 = vector.multi_reduction <add>, %123, %cst_86 [0] : vector<32x256xf32> to vector<256xf32>
    %125 = vector.shape_cast %124 : vector<256xf32> to vector<1x256xf32>
    %126 = tpu.concatenate %122, %125 in 0 : vector<1x256xf32>, vector<1x256xf32> -> vector<2x256xf32>
    %c1_87 = arith.constant 1 : index
    %c0_88 = arith.constant 0 : index
    %c0_89 = arith.constant 0 : index
    %127 = vector.load %arg8[%c1_87, %c0_88, %c0_89] : memref<4x256x32xf32, #tpu.memory_space<vmem>>, vector<1x256x32xf32>
    %128 = vector.shape_cast %127 : vector<1x256x32xf32> to vector<256x32xf32>
    %cst_90 = arith.constant dense<0.000000e+00> : vector<2x32xf32>
    %129 = tpu.matmul %126, %128, %cst_90 {dimension_numbers = #tpu.dot_dimension_numbers<[1], [0], [0], [1], [0, 0, 1, 1], [], []>} : vector<2x256xf32>, vector<256x32xf32>, vector<2x32xf32> -> vector<2x32xf32>
    %cst_91 = arith.constant 0.001953125 : f32
    %130 = vector.broadcast %cst_91 : f32 to vector<2x32xf32>
    %131 = arith.mulf %129, %130 : vector<2x32xf32>
    %132 = vector.extract_strided_slice %131 {offsets = [0, 0], sizes = [1, 32], strides = [1, 1]} : vector<2x32xf32> to vector<1x32xf32>
    %133 = vector.extract_strided_slice %131 {offsets = [1, 0], sizes = [1, 32], strides = [1, 1]} : vector<2x32xf32> to vector<1x32xf32>
    %134 = arith.mulf %132, %132 : vector<1x32xf32>
    %135 = arith.subf %133, %134 : vector<1x32xf32>
    %cst_92 = arith.constant 0.000000e+00 : f32
    %136 = vector.broadcast %cst_92 : f32 to vector<1x32xf32>
    %137 = arith.maximumf %135, %136 : vector<1x32xf32>
    %c1_93 = arith.constant 1 : index
    %c0_94 = arith.constant 0 : index
    %c0_95 = arith.constant 0 : index
    %138 = vector.load %arg10[%c1_93, %c0_94, %c0_95] : memref<4x2x32xf32, #tpu.memory_space<vmem>>, vector<1x2x32xf32>
    %139 = vector.shape_cast %138 : vector<1x2x32xf32> to vector<2x32xf32>
    %140 = vector.extract_strided_slice %139 {offsets = [0, 0], sizes = [1, 32], strides = [1, 1]} : vector<2x32xf32> to vector<1x32xf32>
    %cst_96 = arith.constant 9.99999974E-6 : f32
    %141 = vector.broadcast %cst_96 : f32 to vector<1x32xf32>
    %142 = arith.addf %137, %141 : vector<1x32xf32>
    %143 = math.rsqrt %142 : vector<1x32xf32>
    %144 = arith.mulf %140, %143 : vector<1x32xf32>
    %145 = vector.extract_strided_slice %139 {offsets = [1, 0], sizes = [1, 32], strides = [1, 1]} : vector<2x32xf32> to vector<1x32xf32>
    %146 = arith.mulf %132, %144 : vector<1x32xf32>
    %147 = arith.subf %145, %146 : vector<1x32xf32>
    %148 = tpu.concatenate %144, %147 in 0 : vector<1x32xf32>, vector<1x32xf32> -> vector<2x32xf32>
    %c1_97 = arith.constant 1 : index
    %c0_98 = arith.constant 0 : index
    %c0_99 = arith.constant 0 : index
    %149 = vector.load %arg9[%c1_97, %c0_98, %c0_99] : memref<4x32x256xf32, #tpu.memory_space<vmem>>, vector<1x32x256xf32>
    %150 = vector.shape_cast %149 : vector<1x32x256xf32> to vector<32x256xf32>
    %cst_100 = arith.constant dense<0.000000e+00> : vector<2x256xf32>
    %151 = tpu.matmul %148, %150, %cst_100 {dimension_numbers = #tpu.dot_dimension_numbers<[1], [0], [0], [1], [0, 0, 1, 1], [], []>} : vector<2x32xf32>, vector<32x256xf32>, vector<2x256xf32> -> vector<2x256xf32>
    %152 = vector.extract_strided_slice %151 {offsets = [0, 0], sizes = [1, 256], strides = [1, 1]} : vector<2x256xf32> to vector<1x256xf32>
    %153 = vector.broadcast %152 : vector<1x256xf32> to vector<32x256xf32>
    %154 = arith.mulf %120, %153 : vector<32x256xf32>
    %155 = vector.extract_strided_slice %151 {offsets = [1, 0], sizes = [1, 256], strides = [1, 1]} : vector<2x256xf32> to vector<1x256xf32>
    %156 = vector.broadcast %155 : vector<1x256xf32> to vector<32x256xf32>
    %157 = arith.addf %154, %156 : vector<32x256xf32>
    %cst_101 = arith.constant 0.000000e+00 : f32
    %158 = vector.broadcast %cst_101 : f32 to vector<32x256xf32>
    %159 = arith.maximumf %157, %158 : vector<32x256xf32>
    %160 = vector.shape_cast %159 : vector<32x256xf32> to vector<2x16x256xf32>
    %cst_102 = arith.constant 0.000000e+00 : f32
    %161 = vector.broadcast %cst_102 : f32 to vector<2x1x256xf32>
    %162 = vector.shape_cast %160 : vector<2x16x256xf32> to vector<2x16x1x256xf32>
    %163 = vector.shape_cast %160 : vector<2x16x256xf32> to vector<2x16x1x256xf32>
    %164 = tpu.concatenate %162, %163 in 2 : vector<2x16x1x256xf32>, vector<2x16x1x256xf32> -> vector<2x16x2x256xf32>
    %165 = vector.shape_cast %164 : vector<2x16x2x256xf32> to vector<2x32x256xf32>
    %c0_103 = arith.constant 0 : index
    %c0_104 = arith.constant 0 : index
    %c0_105 = arith.constant 0 : index
    %166 = vector.load %arg13[%c0_103, %c0_104, %c0_105] : memref<2x66x256xf32, #tpu.memory_space<vmem>>, vector<2x1x256xf32>
    tpu.vector_store %arg13[%c0_103, %c0_104, %c0_105], %161 {strides = array<i32>} : memref<2x66x256xf32, #tpu.memory_space<vmem>>, vector<2x1x256xf32>,
    %c0_106 = arith.constant 0 : index
    %c1_107 = arith.constant 1 : index
    %c0_108 = arith.constant 0 : index
    %167 = vector.load %arg13[%c0_106, %c1_107, %c0_108] : memref<2x66x256xf32, #tpu.memory_space<vmem>>, vector<2x32x256xf32>
    tpu.vector_store %arg13[%c0_106, %c1_107, %c0_108], %165 {strides = array<i32>} : memref<2x66x256xf32, #tpu.memory_space<vmem>>, vector<2x32x256xf32>,
    %c0_109 = arith.constant 0 : index
    %c33 = arith.constant 33 : index
    %c0_110 = arith.constant 0 : index
    %168 = vector.load %arg13[%c0_109, %c33, %c0_110] : memref<2x66x256xf32, #tpu.memory_space<vmem>>, vector<2x1x256xf32>
    tpu.vector_store %arg13[%c0_109, %c33, %c0_110], %161 {strides = array<i32>} : memref<2x66x256xf32, #tpu.memory_space<vmem>>, vector<2x1x256xf32>,
    %c0_111 = arith.constant 0 : index
    %c0_112 = arith.constant 0 : index
    %c0_113 = arith.constant 0 : index
    %169 = vector.load %arg13[%c0_111, %c0_112, %c0_113] : memref<2x66x256xf32, #tpu.memory_space<vmem>>, vector<2x32x256xf32>
    %c0_114 = arith.constant 0 : index
    %c1_115 = arith.constant 1 : index
    %c0_116 = arith.constant 0 : index
    %170 = vector.load %arg13[%c0_114, %c1_115, %c0_116] : memref<2x66x256xf32, #tpu.memory_space<vmem>>, vector<2x32x256xf32>
    %c0_117 = arith.constant 0 : index
    %c2_118 = arith.constant 2 : index
    %c0_119 = arith.constant 0 : index
    %171 = vector.load %arg13[%c0_117, %c2_118, %c0_119] : memref<2x66x256xf32, #tpu.memory_space<vmem>>, vector<2x32x256xf32>
    %172 = tpu.concatenate %169, %170, %171 in 2 : vector<2x32x256xf32>, vector<2x32x256xf32>, vector<2x32x256xf32> -> vector<2x32x768xf32>
    %173 = vector.shape_cast %172 : vector<2x32x768xf32> to vector<64x768xf32>
    %174 = arith.truncf %173 : vector<64x768xf32> to vector<64x768xbf16>
    %c2_120 = arith.constant 2 : index
    %c0_121 = arith.constant 0 : index
    %c0_122 = arith.constant 0 : index
    %175 = vector.load %arg7[%c2_120, %c0_121, %c0_122] : memref<5x768x256xbf16, #tpu.memory_space<vmem>>, vector<1x768x256xbf16>
    %176 = vector.shape_cast %175 : vector<1x768x256xbf16> to vector<768x256xbf16>
    %cst_123 = arith.constant dense<0.000000e+00> : vector<64x256xf32>
    %177 = tpu.matmul %174, %176, %cst_123 {dimension_numbers = #tpu.dot_dimension_numbers<[1], [0], [0], [1], [0, 0, 1, 1], [], []>} : vector<64x768xbf16>, vector<768x256xbf16>, vector<64x256xf32> -> vector<64x256xf32>
    %cst_124 = arith.constant dense<0.000000e+00> : vector<256xf32>
    %178 = vector.multi_reduction <add>, %177, %cst_124 [0] : vector<64x256xf32> to vector<256xf32>
    %179 = vector.shape_cast %178 : vector<256xf32> to vector<1x256xf32>
    %180 = arith.mulf %177, %177 : vector<64x256xf32>
    %cst_125 = arith.constant dense<0.000000e+00> : vector<256xf32>
    %181 = vector.multi_reduction <add>, %180, %cst_125 [0] : vector<64x256xf32> to vector<256xf32>
    %182 = vector.shape_cast %181 : vector<256xf32> to vector<1x256xf32>
    %183 = tpu.concatenate %179, %182 in 0 : vector<1x256xf32>, vector<1x256xf32> -> vector<2x256xf32>
    %c2_126 = arith.constant 2 : index
    %c0_127 = arith.constant 0 : index
    %c0_128 = arith.constant 0 : index
    %184 = vector.load %arg8[%c2_126, %c0_127, %c0_128] : memref<4x256x32xf32, #tpu.memory_space<vmem>>, vector<1x256x32xf32>
    %185 = vector.shape_cast %184 : vector<1x256x32xf32> to vector<256x32xf32>
    %cst_129 = arith.constant dense<0.000000e+00> : vector<2x32xf32>
    %186 = tpu.matmul %183, %185, %cst_129 {dimension_numbers = #tpu.dot_dimension_numbers<[1], [0], [0], [1], [0, 0, 1, 1], [], []>} : vector<2x256xf32>, vector<256x32xf32>, vector<2x32xf32> -> vector<2x32xf32>
    %cst_130 = arith.constant 4.8828125E-4 : f32
    %187 = vector.broadcast %cst_130 : f32 to vector<2x32xf32>
    %188 = arith.mulf %186, %187 : vector<2x32xf32>
    %189 = vector.extract_strided_slice %188 {offsets = [0, 0], sizes = [1, 32], strides = [1, 1]} : vector<2x32xf32> to vector<1x32xf32>
    %190 = vector.extract_strided_slice %188 {offsets = [1, 0], sizes = [1, 32], strides = [1, 1]} : vector<2x32xf32> to vector<1x32xf32>
    %191 = arith.mulf %189, %189 : vector<1x32xf32>
    %192 = arith.subf %190, %191 : vector<1x32xf32>
    %cst_131 = arith.constant 0.000000e+00 : f32
    %193 = vector.broadcast %cst_131 : f32 to vector<1x32xf32>
    %194 = arith.maximumf %192, %193 : vector<1x32xf32>
    %c2_132 = arith.constant 2 : index
    %c0_133 = arith.constant 0 : index
    %c0_134 = arith.constant 0 : index
    %195 = vector.load %arg10[%c2_132, %c0_133, %c0_134] : memref<4x2x32xf32, #tpu.memory_space<vmem>>, vector<1x2x32xf32>
    %196 = vector.shape_cast %195 : vector<1x2x32xf32> to vector<2x32xf32>
    %197 = vector.extract_strided_slice %196 {offsets = [0, 0], sizes = [1, 32], strides = [1, 1]} : vector<2x32xf32> to vector<1x32xf32>
    %cst_135 = arith.constant 9.99999974E-6 : f32
    %198 = vector.broadcast %cst_135 : f32 to vector<1x32xf32>
    %199 = arith.addf %194, %198 : vector<1x32xf32>
    %200 = math.rsqrt %199 : vector<1x32xf32>
    %201 = arith.mulf %197, %200 : vector<1x32xf32>
    %202 = vector.extract_strided_slice %196 {offsets = [1, 0], sizes = [1, 32], strides = [1, 1]} : vector<2x32xf32> to vector<1x32xf32>
    %203 = arith.mulf %189, %201 : vector<1x32xf32>
    %204 = arith.subf %202, %203 : vector<1x32xf32>
    %205 = tpu.concatenate %201, %204 in 0 : vector<1x32xf32>, vector<1x32xf32> -> vector<2x32xf32>
    %c2_136 = arith.constant 2 : index
    %c0_137 = arith.constant 0 : index
    %c0_138 = arith.constant 0 : index
    %206 = vector.load %arg9[%c2_136, %c0_137, %c0_138] : memref<4x32x256xf32, #tpu.memory_space<vmem>>, vector<1x32x256xf32>
    %207 = vector.shape_cast %206 : vector<1x32x256xf32> to vector<32x256xf32>
    %cst_139 = arith.constant dense<0.000000e+00> : vector<2x256xf32>
    %208 = tpu.matmul %205, %207, %cst_139 {dimension_numbers = #tpu.dot_dimension_numbers<[1], [0], [0], [1], [0, 0, 1, 1], [], []>} : vector<2x32xf32>, vector<32x256xf32>, vector<2x256xf32> -> vector<2x256xf32>
    %209 = vector.extract_strided_slice %208 {offsets = [0, 0], sizes = [1, 256], strides = [1, 1]} : vector<2x256xf32> to vector<1x256xf32>
    %210 = vector.broadcast %209 : vector<1x256xf32> to vector<64x256xf32>
    %211 = arith.mulf %177, %210 : vector<64x256xf32>
    %212 = vector.extract_strided_slice %208 {offsets = [1, 0], sizes = [1, 256], strides = [1, 1]} : vector<2x256xf32> to vector<1x256xf32>
    %213 = vector.broadcast %212 : vector<1x256xf32> to vector<64x256xf32>
    %214 = arith.addf %211, %213 : vector<64x256xf32>
    %cst_140 = arith.constant 0.000000e+00 : f32
    %215 = vector.broadcast %cst_140 : f32 to vector<64x256xf32>
    %216 = arith.maximumf %214, %215 : vector<64x256xf32>
    %217 = vector.shape_cast %216 : vector<64x256xf32> to vector<2x32x256xf32>
    %cst_141 = arith.constant 0.000000e+00 : f32
    %218 = vector.broadcast %cst_141 : f32 to vector<2x1x256xf32>
    %219 = vector.shape_cast %217 : vector<2x32x256xf32> to vector<2x32x1x256xf32>
    %220 = vector.shape_cast %217 : vector<2x32x256xf32> to vector<2x32x1x256xf32>
    %221 = tpu.concatenate %219, %220 in 2 : vector<2x32x1x256xf32>, vector<2x32x1x256xf32> -> vector<2x32x2x256xf32>
    %222 = vector.shape_cast %221 : vector<2x32x2x256xf32> to vector<2x64x256xf32>
    %c0_142 = arith.constant 0 : index
    %c0_143 = arith.constant 0 : index
    %c0_144 = arith.constant 0 : index
    %223 = vector.load %arg13[%c0_142, %c0_143, %c0_144] : memref<2x66x256xf32, #tpu.memory_space<vmem>>, vector<2x1x256xf32>
    tpu.vector_store %arg13[%c0_142, %c0_143, %c0_144], %218 {strides = array<i32>} : memref<2x66x256xf32, #tpu.memory_space<vmem>>, vector<2x1x256xf32>,
    %c0_145 = arith.constant 0 : index
    %c1_146 = arith.constant 1 : index
    %c0_147 = arith.constant 0 : index
    %224 = vector.load %arg13[%c0_145, %c1_146, %c0_147] : memref<2x66x256xf32, #tpu.memory_space<vmem>>, vector<2x64x256xf32>
    tpu.vector_store %arg13[%c0_145, %c1_146, %c0_147], %222 {strides = array<i32>} : memref<2x66x256xf32, #tpu.memory_space<vmem>>, vector<2x64x256xf32>,
    %c0_148 = arith.constant 0 : index
    %c65 = arith.constant 65 : index
    %c0_149 = arith.constant 0 : index
    %225 = vector.load %arg13[%c0_148, %c65, %c0_149] : memref<2x66x256xf32, #tpu.memory_space<vmem>>, vector<2x1x256xf32>
    tpu.vector_store %arg13[%c0_148, %c65, %c0_149], %218 {strides = array<i32>} : memref<2x66x256xf32, #tpu.memory_space<vmem>>, vector<2x1x256xf32>,
    %c0_150 = arith.constant 0 : index
    %c0_151 = arith.constant 0 : index
    %c0_152 = arith.constant 0 : index
    %226 = vector.load %arg13[%c0_150, %c0_151, %c0_152] : memref<2x66x256xf32, #tpu.memory_space<vmem>>, vector<2x64x256xf32>
    %c0_153 = arith.constant 0 : index
    %c1_154 = arith.constant 1 : index
    %c0_155 = arith.constant 0 : index
    %227 = vector.load %arg13[%c0_153, %c1_154, %c0_155] : memref<2x66x256xf32, #tpu.memory_space<vmem>>, vector<2x64x256xf32>
    %c0_156 = arith.constant 0 : index
    %c2_157 = arith.constant 2 : index
    %c0_158 = arith.constant 0 : index
    %228 = vector.load %arg13[%c0_156, %c2_157, %c0_158] : memref<2x66x256xf32, #tpu.memory_space<vmem>>, vector<2x64x256xf32>
    %229 = tpu.concatenate %226, %227, %228 in 2 : vector<2x64x256xf32>, vector<2x64x256xf32>, vector<2x64x256xf32> -> vector<2x64x768xf32>
    %230 = vector.shape_cast %229 : vector<2x64x768xf32> to vector<128x768xf32>
    %231 = arith.truncf %230 : vector<128x768xf32> to vector<128x768xbf16>
    %c3 = arith.constant 3 : index
    %c0_159 = arith.constant 0 : index
    %c0_160 = arith.constant 0 : index
    %232 = vector.load %arg7[%c3, %c0_159, %c0_160] : memref<5x768x256xbf16, #tpu.memory_space<vmem>>, vector<1x768x256xbf16>
    %233 = vector.shape_cast %232 : vector<1x768x256xbf16> to vector<768x256xbf16>
    %cst_161 = arith.constant dense<0.000000e+00> : vector<128x256xf32>
    %234 = tpu.matmul %231, %233, %cst_161 {dimension_numbers = #tpu.dot_dimension_numbers<[1], [0], [0], [1], [0, 0, 1, 1], [], []>} : vector<128x768xbf16>, vector<768x256xbf16>, vector<128x256xf32> -> vector<128x256xf32>
    %cst_162 = arith.constant dense<0.000000e+00> : vector<256xf32>
    %235 = vector.multi_reduction <add>, %234, %cst_162 [0] : vector<128x256xf32> to vector<256xf32>
    %236 = vector.shape_cast %235 : vector<256xf32> to vector<1x256xf32>
    %237 = arith.mulf %234, %234 : vector<128x256xf32>
    %cst_163 = arith.constant dense<0.000000e+00> : vector<256xf32>
    %238 = vector.multi_reduction <add>, %237, %cst_163 [0] : vector<128x256xf32> to vector<256xf32>
    %239 = vector.shape_cast %238 : vector<256xf32> to vector<1x256xf32>
    %240 = tpu.concatenate %236, %239 in 0 : vector<1x256xf32>, vector<1x256xf32> -> vector<2x256xf32>
    %c3_164 = arith.constant 3 : index
    %c0_165 = arith.constant 0 : index
    %c0_166 = arith.constant 0 : index
    %241 = vector.load %arg8[%c3_164, %c0_165, %c0_166] : memref<4x256x32xf32, #tpu.memory_space<vmem>>, vector<1x256x32xf32>
    %242 = vector.shape_cast %241 : vector<1x256x32xf32> to vector<256x32xf32>
    %cst_167 = arith.constant dense<0.000000e+00> : vector<2x32xf32>
    %243 = tpu.matmul %240, %242, %cst_167 {dimension_numbers = #tpu.dot_dimension_numbers<[1], [0], [0], [1], [0, 0, 1, 1], [], []>} : vector<2x256xf32>, vector<256x32xf32>, vector<2x32xf32> -> vector<2x32xf32>
    %cst_168 = arith.constant 1.22070313E-4 : f32
    %244 = vector.broadcast %cst_168 : f32 to vector<2x32xf32>
    %245 = arith.mulf %243, %244 : vector<2x32xf32>
    %246 = vector.extract_strided_slice %245 {offsets = [0, 0], sizes = [1, 32], strides = [1, 1]} : vector<2x32xf32> to vector<1x32xf32>
    %247 = vector.extract_strided_slice %245 {offsets = [1, 0], sizes = [1, 32], strides = [1, 1]} : vector<2x32xf32> to vector<1x32xf32>
    %248 = arith.mulf %246, %246 : vector<1x32xf32>
    %249 = arith.subf %247, %248 : vector<1x32xf32>
    %cst_169 = arith.constant 0.000000e+00 : f32
    %250 = vector.broadcast %cst_169 : f32 to vector<1x32xf32>
    %251 = arith.maximumf %249, %250 : vector<1x32xf32>
    %c3_170 = arith.constant 3 : index
    %c0_171 = arith.constant 0 : index
    %c0_172 = arith.constant 0 : index
    %252 = vector.load %arg10[%c3_170, %c0_171, %c0_172] : memref<4x2x32xf32, #tpu.memory_space<vmem>>, vector<1x2x32xf32>
    %253 = vector.shape_cast %252 : vector<1x2x32xf32> to vector<2x32xf32>
    %254 = vector.extract_strided_slice %253 {offsets = [0, 0], sizes = [1, 32], strides = [1, 1]} : vector<2x32xf32> to vector<1x32xf32>
    %cst_173 = arith.constant 9.99999974E-6 : f32
    %255 = vector.broadcast %cst_173 : f32 to vector<1x32xf32>
    %256 = arith.addf %251, %255 : vector<1x32xf32>
    %257 = math.rsqrt %256 : vector<1x32xf32>
    %258 = arith.mulf %254, %257 : vector<1x32xf32>
    %259 = vector.extract_strided_slice %253 {offsets = [1, 0], sizes = [1, 32], strides = [1, 1]} : vector<2x32xf32> to vector<1x32xf32>
    %260 = arith.mulf %246, %258 : vector<1x32xf32>
    %261 = arith.subf %259, %260 : vector<1x32xf32>
    %262 = tpu.concatenate %258, %261 in 0 : vector<1x32xf32>, vector<1x32xf32> -> vector<2x32xf32>
    %c3_174 = arith.constant 3 : index
    %c0_175 = arith.constant 0 : index
    %c0_176 = arith.constant 0 : index
    %263 = vector.load %arg9[%c3_174, %c0_175, %c0_176] : memref<4x32x256xf32, #tpu.memory_space<vmem>>, vector<1x32x256xf32>
    %264 = vector.shape_cast %263 : vector<1x32x256xf32> to vector<32x256xf32>
    %cst_177 = arith.constant dense<0.000000e+00> : vector<2x256xf32>
    %265 = tpu.matmul %262, %264, %cst_177 {dimension_numbers = #tpu.dot_dimension_numbers<[1], [0], [0], [1], [0, 0, 1, 1], [], []>} : vector<2x32xf32>, vector<32x256xf32>, vector<2x256xf32> -> vector<2x256xf32>
    %266 = vector.extract_strided_slice %265 {offsets = [0, 0], sizes = [1, 256], strides = [1, 1]} : vector<2x256xf32> to vector<1x256xf32>
    %267 = vector.broadcast %266 : vector<1x256xf32> to vector<128x256xf32>
    %268 = arith.mulf %234, %267 : vector<128x256xf32>
    %269 = vector.extract_strided_slice %265 {offsets = [1, 0], sizes = [1, 256], strides = [1, 1]} : vector<2x256xf32> to vector<1x256xf32>
    %270 = vector.broadcast %269 : vector<1x256xf32> to vector<128x256xf32>
    %271 = arith.addf %268, %270 : vector<128x256xf32>
    %cst_178 = arith.constant 0.000000e+00 : f32
    %272 = vector.broadcast %cst_178 : f32 to vector<128x256xf32>
    %273 = arith.maximumf %271, %272 : vector<128x256xf32>
    %274 = vector.shape_cast %273 : vector<128x256xf32> to vector<2x64x256xf32>
    %cst_179 = arith.constant 0.000000e+00 : f32
    %275 = vector.broadcast %cst_179 : f32 to vector<2x1x256xf32>
    %c0_180 = arith.constant 0 : index
    %c0_181 = arith.constant 0 : index
    %c0_182 = arith.constant 0 : index
    %276 = vector.load %arg13[%c0_180, %c0_181, %c0_182] : memref<2x66x256xf32, #tpu.memory_space<vmem>>, vector<2x1x256xf32>
    tpu.vector_store %arg13[%c0_180, %c0_181, %c0_182], %275 {strides = array<i32>} : memref<2x66x256xf32, #tpu.memory_space<vmem>>, vector<2x1x256xf32>,
    %c0_183 = arith.constant 0 : index
    %c1_184 = arith.constant 1 : index
    %c0_185 = arith.constant 0 : index
    %277 = vector.load %arg13[%c0_183, %c1_184, %c0_185] : memref<2x66x256xf32, #tpu.memory_space<vmem>>, vector<2x64x256xf32>
    tpu.vector_store %arg13[%c0_183, %c1_184, %c0_185], %274 {strides = array<i32>} : memref<2x66x256xf32, #tpu.memory_space<vmem>>, vector<2x64x256xf32>,
    %c0_186 = arith.constant 0 : index
    %c65_187 = arith.constant 65 : index
    %c0_188 = arith.constant 0 : index
    %278 = vector.load %arg13[%c0_186, %c65_187, %c0_188] : memref<2x66x256xf32, #tpu.memory_space<vmem>>, vector<2x1x256xf32>
    tpu.vector_store %arg13[%c0_186, %c65_187, %c0_188], %275 {strides = array<i32>} : memref<2x66x256xf32, #tpu.memory_space<vmem>>, vector<2x1x256xf32>,
    %c0_189 = arith.constant 0 : index
    %c0_190 = arith.constant 0 : index
    %c0_191 = arith.constant 0 : index
    %279 = vector.load %arg13[%c0_189, %c0_190, %c0_191] : memref<2x66x256xf32, #tpu.memory_space<vmem>>, vector<2x64x256xf32>
    %c0_192 = arith.constant 0 : index
    %c1_193 = arith.constant 1 : index
    %c0_194 = arith.constant 0 : index
    %280 = vector.load %arg13[%c0_192, %c1_193, %c0_194] : memref<2x66x256xf32, #tpu.memory_space<vmem>>, vector<2x64x256xf32>
    %c0_195 = arith.constant 0 : index
    %c2_196 = arith.constant 2 : index
    %c0_197 = arith.constant 0 : index
    %281 = vector.load %arg13[%c0_195, %c2_196, %c0_197] : memref<2x66x256xf32, #tpu.memory_space<vmem>>, vector<2x64x256xf32>
    %282 = tpu.concatenate %279, %280, %281 in 2 : vector<2x64x256xf32>, vector<2x64x256xf32>, vector<2x64x256xf32> -> vector<2x64x768xf32>
    %283 = vector.shape_cast %282 : vector<2x64x768xf32> to vector<128x768xf32>
    %284 = arith.truncf %283 : vector<128x768xf32> to vector<128x768xbf16>
    %c4 = arith.constant 4 : index
    %c0_198 = arith.constant 0 : index
    %c0_199 = arith.constant 0 : index
    %285 = vector.load %arg7[%c4, %c0_198, %c0_199] : memref<5x768x256xbf16, #tpu.memory_space<vmem>>, vector<1x768x256xbf16>
    %286 = vector.shape_cast %285 : vector<1x768x256xbf16> to vector<768x256xbf16>
    %cst_200 = arith.constant dense<0.000000e+00> : vector<128x256xf32>
    %287 = tpu.matmul %284, %286, %cst_200 {dimension_numbers = #tpu.dot_dimension_numbers<[1], [0], [0], [1], [0, 0, 1, 1], [], []>} : vector<128x768xbf16>, vector<768x256xbf16>, vector<128x256xf32> -> vector<128x256xf32>
    %288 = math.tanh %287 : vector<128x256xf32>
    %289 = vector.shape_cast %288 : vector<128x256xf32> to vector<2x64x256xf32>
    %c0_201 = arith.constant 0 : index
    %c0_202 = arith.constant 0 : index
    %c0_203 = arith.constant 0 : index
    %290 = vector.load %arg11[%c0_201, %c0_202, %c0_203] : memref<2x64x256xf32, #tpu.memory_space<vmem>>, vector<2x64x256xf32>
    tpu.vector_store %arg11[%c0_201, %c0_202, %c0_203], %289 {strides = array<i32>} : memref<2x64x256xf32, #tpu.memory_space<vmem>>, vector<2x64x256xf32>,
    return
  }
}

</mosaic_0001>

<llo_original>
// kernel: stage1_g_forward.1
$region0: #{stage1_g_forward.1}
  #allocation0 [shape = 'u32[]', space=smem, size = 0x4, offset = 0x4, fixed_abs, tag = 'smem constant byte address 0x4 - core index']
  #allocation1 [shape = 'u32[144,128]{1,0:T(1,128)}', space=vmem, size = 0x12000, scoped, tag = 'internal scratch']
  #allocation2 [shape = 'f32[2,66,256]{2,1,0:T(8,128)}', space=vmem, size = 0x24000, scoped, tag = 'scratch operand']
  %s0 = inlined_call_operand.hbm [shape: f32[2,32], index: 0, kind: input, shape index: {}]
  %s1 = inlined_call_operand.hbm [shape: f32[2,16], index: 1, kind: input, shape index: {}]
  %s2 = inlined_call_operand.hbm [shape: f32[2,16], index: 2, kind: input, shape index: {}]
  %s3 = inlined_call_operand.hbm [shape: f32[32,32], index: 3, kind: input, shape index: {}]
  %s4 = inlined_call_operand.hbm [shape: f32[1,32], index: 4, kind: input, shape index: {}]
  %s5 = inlined_call_operand.hbm [shape: bf16[32,1024], index: 5, kind: input, shape index: {}]
  %s6 = inlined_call_operand.hbm [shape: f32[2,1024], index: 6, kind: input, shape index: {}]
  %s7 = inlined_call_operand.hbm [shape: bf16[5,768,256], index: 7, kind: input, shape index: {}]
  %s8 = inlined_call_operand.vmem [shape: f32[4,256,32], index: 8, kind: input, shape index: {}]
  %s9 = inlined_call_operand.hbm [shape: f32[4,32,256], index: 9, kind: input, shape index: {}]
  %s10 = inlined_call_operand.hbm [shape: f32[4,2,32], index: 10, kind: input, shape index: {}]
  %s11 = inlined_call_operand.vmem [shape: f32[2,64,256], index: 11, kind: output, shape index: {0}]
  %s12 = inlined_call_operand.vmem [shape: f32[2,32], index: 12, kind: output, shape index: {1}]
  %13 = xla_tuple %s11, %s12
  %s14 = sld [smem:[#allocation0]]
  $region102: #{stage1_g_forward.1} parent=0
    _
  %s16 = ssub.s32 1, %s14
  %s17 = scalar_select 0, %s16, %s14
  $region1: #{stage1_g_forward.1} parent=0
    #allocation3 [shape = 'u8[1024]{0}', space=vmem, size = 0x400, scoped, tag = 'input window, operand 0, single buffered']
    #allocation4 [shape = 's32[1]{0}', space=sflag, size = 0x4, scoped, tag = 'scoped memory for stage1_g_forward.1']
    #allocation5 [shape = 'u8[1024]{0}', space=vmem, size = 0x400, scoped, tag = 'input window, operand 1, single buffered']
    #allocation6 [shape = 's32[1]{0}', space=sflag, size = 0x4, scoped, tag = 'scoped memory for stage1_g_forward.1']
    #allocation7 [shape = 'u8[1024]{0}', space=vmem, size = 0x400, scoped, tag = 'input window, operand 2, single buffered']
    #allocation8 [shape = 'u8[16384]{0}', space=vmem, size = 0x4000, scoped, tag = 'input window, operand 3, single buffered']
    #allocation9 [shape = 's32[1]{0}', space=sflag, size = 0x4, scoped, tag = 'scoped memory for stage1_g_forward.1']
    #allocation10 [shape = 'u8[512]{0}', space=vmem, size = 0x400, scoped, tag = 'input window, operand 4, single buffered']
    #allocation11 [shape = 'u8[65536]{0}', space=vmem, size = 0x10000, scoped, tag = 'input window, operand 5, single buffered']
    #allocation12 [shape = 's32[1]{0}', space=sflag, size = 0x4, scoped, tag = 'scoped memory for stage1_g_forward.1']
    #allocation13 [shape = 'u8[8192]{0}', space=vmem, size = 0x2000, scoped, tag = 'input window, operand 6, single buffered']
    #allocation14 [shape = 'u8[1966080]{0}', space=vmem, size = 0x1e0000, scoped, tag = 'input window, operand 7, single buffered']
    #allocation15 [shape = 's32[1]{0}', space=sflag, size = 0x4, scoped, tag = 'scoped memory for stage1_g_forward.1']
    #allocation16 [shape = 'u8[131072]{0}', space=vmem, size = 0x20000, scoped, tag = 'input window, operand 9, single buffered']
    #allocation17 [shape = 'u8[4096]{0}', space=vmem, size = 0x1000, scoped, tag = 'input window, operand 10, single buffered']
    #allocation18 [shape = 's32[1]{0}', space=sflag, size = 0x4, scoped, tag = 'scoped memory for stage1_g_forward.1']
    %18 = vsyncpa [#allocation4], 0
    %19 = vsyncpa [#allocation6], 0
    %20 = vsyncpa [#allocation9], 0
    %21 = vsyncpa [#allocation12], 0
    %22 = vsyncpa [#allocation15], 0
    %23 = vsyncpa [#allocation18], 0
    // Predicated region
    $region2: #{stage1_g_forward.1} parent=1 // pred_check
      _
    $region3: #{stage1_g_forward.1} parent=1 // pred_check_branch
      %25 = sbr.rel (0) target = $region5
    $region4: #{stage1_g_forward.1} parent=1 // pred_region
      %s27 = ssub.s32 32, 32
      %28 = vsyncadd [#allocation4], %s27
      %s30 = sshll.u32 [#allocation3], 4
      %s31 = int_to_ptr.vmem [resolvable:$true] %s30
      %33 = dma.hbm_to_vmem [thread:$0]  %s0, 32, %s31, [#allocation4]
    $region5: #{stage1_g_forward.1} parent=1 // pred_fallthru
      _
    // Predicated region
    $region6: #{stage1_g_forward.1} parent=1 // pred_check
      _
    $region7: #{stage1_g_forward.1} parent=1 // pred_check_branch
      %35 = sbr.rel (0) target = $region9
    $region8: #{stage1_g_forward.1} parent=1 // pred_region
      %s37 = ssub.s32 32, 32
      %38 = vsyncadd [#allocation6], %s37
      %s40 = sshll.u32 [#allocation5], 4
      %s41 = int_to_ptr.vmem [resolvable:$true] %s40
      %43 = dma.hbm_to_vmem [thread:$0]  %s1, 32, %s41, [#allocation6]
    $region9: #{stage1_g_forward.1} parent=1 // pred_fallthru
      _
    // Predicated region
    $region10: #{stage1_g_forward.1} parent=1 // pred_check
      _
    $region11: #{stage1_g_forward.1} parent=1 // pred_check_branch
      %45 = sbr.rel (0) target = $region13
    $region12: #{stage1_g_forward.1} parent=1 // pred_region
      %s47 = ssub.s32 32, 32
      %48 = vsyncadd [#allocation6], %s47
      %s50 = sshll.u32 [#allocation7], 4
      %s51 = int_to_ptr.vmem [resolvable:$true] %s50
      %53 = dma.hbm_to_vmem [thread:$0]  %s2, 32, %s51, [#allocation6]
    $region13: #{stage1_g_forward.1} parent=1 // pred_fallthru
      _
    // Predicated region
    $region14: #{stage1_g_forward.1} parent=1 // pred_check
      _
    $region15: #{stage1_g_forward.1} parent=1 // pred_check_branch
      %55 = sbr.rel (0) target = $region17
    $region16: #{stage1_g_forward.1} parent=1 // pred_region
      %s57 = ssub.s32 512, 512
      %58 = vsyncadd [#allocation9], %s57
      %s59 = sshll.u32 [#allocation8], 4
      %s60 = int_to_ptr.vmem [resolvable:$true] %s59
      %65 = dma.hbm_to_vmem [thread:$0]  %s3, 512, %s60, [#allocation9], 128, 128, 8
    $region17: #{stage1_g_forward.1} parent=1 // pred_fallthru
      _
    // Predicated region
    $region18: #{stage1_g_forward.1} parent=1 // pred_check
      _
    $region19: #{stage1_g_forward.1} parent=1 // pred_check_branch
      %67 = sbr.rel (0) target = $region21
    $region20: #{stage1_g_forward.1} parent=1 // pred_region
      %s69 = ssub.s32 16, 16
      %70 = vsyncadd [#allocation9], %s69
      %s72 = sshll.u32 [#allocation10], 4
      %s73 = int_to_ptr.vmem [resolvable:$true] %s72
      %75 = dma.hbm_to_vmem [thread:$0]  %s4, 16, %s73, [#allocation9]
    $region21: #{stage1_g_forward.1} parent=1 // pred_fallthru
      _
    // Predicated region
    $region22: #{stage1_g_forward.1} parent=1 // pred_check
      _
    $region23: #{stage1_g_forward.1} parent=1 // pred_check_branch
      %77 = sbr.rel (0) target = $region25
    $region24: #{stage1_g_forward.1} parent=1 // pred_region
      %s79 = ssub.s32 2048, 2048
      %80 = vsyncadd [#allocation12], %s79
      %s81 = sshll.u32 [#allocation11], 4
      %s82 = int_to_ptr.vmem [resolvable:$true] %s81
      %87 = dma.hbm_to_vmem [thread:$0]  %s5, 2048, %s82, [#allocation12], 512, 512, 32
    $region25: #{stage1_g_forward.1} parent=1 // pred_fallthru
      _
    // Predicated region
    $region26: #{stage1_g_forward.1} parent=1 // pred_check
      _
    $region27: #{stage1_g_forward.1} parent=1 // pred_check_branch
      %89 = sbr.rel (0) target = $region29
    $region28: #{stage1_g_forward.1} parent=1 // pred_region
      %s91 = ssub.s32 256, 256
      %92 = vsyncadd [#allocation12], %s91
      %s94 = sshll.u32 [#allocation13], 4
      %s95 = int_to_ptr.vmem [resolvable:$true] %s94
      %97 = dma.hbm_to_vmem [thread:$0]  %s6, 256, %s95, [#allocation12]
    $region29: #{stage1_g_forward.1} parent=1 // pred_fallthru
      _
    // Predicated region
    $region30: #{stage1_g_forward.1} parent=1 // pred_check
      _
    $region31: #{stage1_g_forward.1} parent=1 // pred_check_branch
      %99 = sbr.rel (0) target = $region33
    $region32: #{stage1_g_forward.1} parent=1 // pred_region
      %s101 = ssub.s32 61440, 61440
      %102 = vsyncadd [#allocation15], %s101
      %s103 = sshll.u32 [#allocation14], 4
      %s104 = int_to_ptr.vmem [resolvable:$true] %s103
      %109 = dma.hbm_to_vmem [thread:$0]  %s7, 61440, %s104, [#allocation15], 128, 128, 8
    $region33: #{stage1_g_forward.1} parent=1 // pred_fallthru
      _
    // Predicated region
    $region34: #{stage1_g_forward.1} parent=1 // pred_check
      _
    $region35: #{stage1_g_forward.1} parent=1 // pred_check_branch
      %111 = sbr.rel (0) target = $region37
    $region36: #{stage1_g_forward.1} parent=1 // pred_region
      _
    $region37: #{stage1_g_forward.1} parent=1 // pred_fallthru
      _
    // Predicated region
    $region38: #{stage1_g_forward.1} parent=1 // pred_check
      _
    $region39: #{stage1_g_forward.1} parent=1 // pred_check_branch
      %113 = sbr.rel (0) target = $region41
    $region40: #{stage1_g_forward.1} parent=1 // pred_region
      %s115 = ssub.s32 4096, 4096
      %116 = vsyncadd [#allocation15], %s115
      %s117 = sshll.u32 [#allocation16], 4
      %s118 = int_to_ptr.vmem [resolvable:$true] %s117
      %123 = dma.hbm_to_vmem [thread:$0]  %s9, 4096, %s118, [#allocation15], 256, 256, 16
    $region41: #{stage1_g_forward.1} parent=1 // pred_fallthru
      _
    // Predicated region
    $region42: #{stage1_g_forward.1} parent=1 // pred_check
      _
    $region43: #{stage1_g_forward.1} parent=1 // pred_check_branch
      %125 = sbr.rel (0) target = $region45
    $region44: #{stage1_g_forward.1} parent=1 // pred_region
      %s127 = ssub.s32 128, 128
      %128 = vsyncadd [#allocation18], %s127
      %s129 = sshll.u32 [#allocation17], 4
      %s130 = int_to_ptr.vmem [resolvable:$true] %s129
      %135 = dma.hbm_to_vmem [thread:$0]  %s10, 128, %s130, [#allocation18], 32, 32, 2
    $region45: #{stage1_g_forward.1} parent=1 // pred_fallthru
      _
    // Predicated region
    $region46: #{stage1_g_forward.1} parent=1 // pred_check
      _
    $region47: #{stage1_g_forward.1} parent=1 // pred_check_branch
      %137 = sbr.rel (0) target = $region49
    $region48: #{stage1_g_forward.1} parent=1 // pred_region
      %138 = dma.done [#allocation4], 32
    $region49: #{stage1_g_forward.1} parent=1 // pred_fallthru
      _
    // Predicated region
    $region50: #{stage1_g_forward.1} parent=1 // pred_check
      _
    $region51: #{stage1_g_forward.1} parent=1 // pred_check_branch
      %140 = sbr.rel (0) target = $region53
    $region52: #{stage1_g_forward.1} parent=1 // pred_region
      %141 = dma.done [#allocation6], 32
    $region53: #{stage1_g_forward.1} parent=1 // pred_fallthru
      _
    // Predicated region
    $region54: #{stage1_g_forward.1} parent=1 // pred_check
      _
    $region55: #{stage1_g_forward.1} parent=1 // pred_check_branch
      %143 = sbr.rel (0) target = $region57
    $region56: #{stage1_g_forward.1} parent=1 // pred_region
      %144 = dma.done [#allocation6], 32
    $region57: #{stage1_g_forward.1} parent=1 // pred_fallthru
      _
    // Predicated region
    $region58: #{stage1_g_forward.1} parent=1 // pred_check
      _
    $region59: #{stage1_g_forward.1} parent=1 // pred_check_branch
      %146 = sbr.rel (0) target = $region61
    $region60: #{stage1_g_forward.1} parent=1 // pred_region
      %147 = dma.done [#allocation9], 512
    $region61: #{stage1_g_forward.1} parent=1 // pred_fallthru
      _
    // Predicated region
    $region62: #{stage1_g_forward.1} parent=1 // pred_check
      _
    $region63: #{stage1_g_forward.1} parent=1 // pred_check_branch
      %149 = sbr.rel (0) target = $region65
    $region64: #{stage1_g_forward.1} parent=1 // pred_region
      %150 = dma.done [#allocation9], 16
    $region65: #{stage1_g_forward.1} parent=1 // pred_fallthru
      _
    // Predicated region
    $region66: #{stage1_g_forward.1} parent=1 // pred_check
      _
    $region67: #{stage1_g_forward.1} parent=1 // pred_check_branch
      %152 = sbr.rel (0) target = $region69
    $region68: #{stage1_g_forward.1} parent=1 // pred_region
      %153 = dma.done [#allocation12], 2048
    $region69: #{stage1_g_forward.1} parent=1 // pred_fallthru
      _
    // Predicated region
    $region70: #{stage1_g_forward.1} parent=1 // pred_check
      _
    $region71: #{stage1_g_forward.1} parent=1 // pred_check_branch
      %155 = sbr.rel (0) target = $region73
    $region72: #{stage1_g_forward.1} parent=1 // pred_region
      %156 = dma.done [#allocation12], 256
    $region73: #{stage1_g_forward.1} parent=1 // pred_fallthru
      _
    // Predicated region
    $region74: #{stage1_g_forward.1} parent=1 // pred_check
      _
    $region75: #{stage1_g_forward.1} parent=1 // pred_check_branch
      %158 = sbr.rel (0) target = $region77
    $region76: #{stage1_g_forward.1} parent=1 // pred_region
      %159 = dma.done [#allocation15], 61440
    $region77: #{stage1_g_forward.1} parent=1 // pred_fallthru
      _
    // Predicated region
    $region78: #{stage1_g_forward.1} parent=1 // pred_check
      _
    $region79: #{stage1_g_forward.1} parent=1 // pred_check_branch
      %161 = sbr.rel (0) target = $region81
    $region80: #{stage1_g_forward.1} parent=1 // pred_region
      %162 = dma.done [#allocation15], 4096
    $region81: #{stage1_g_forward.1} parent=1 // pred_fallthru
      _
    // Predicated region
    $region82: #{stage1_g_forward.1} parent=1 // pred_check
      _
    $region83: #{stage1_g_forward.1} parent=1 // pred_check_branch
      %164 = sbr.rel (0) target = $region85
    $region84: #{stage1_g_forward.1} parent=1 // pred_region
      %165 = dma.done [#allocation18], 128
    $region85: #{stage1_g_forward.1} parent=1 // pred_fallthru
      _
    %v167 = vld [vmem:[#allocation3] sm:$0x3]
    %v168 = vld [vmem:[#allocation8] sm:$0xff]
    %v169 = vld [vmem:[#allocation8 + $0x8] sm:$0xff]
    %v170 = vld [vmem:[#allocation8 + $0x10] sm:$0xff]
    %v171 = vld [vmem:[#allocation8 + $0x18] sm:$0xff]
    %v172 = vld [vmem:[#allocation10] sm:$0x1]
    %v174 = vlaneseq
    %v175 = vshrl.u32 %v174, 7
    %v176 = vsub.s32 0, %v175
    %v177 = vrot.slane %v172, %v176
    %vm179 = vcmask 261120
    %v181 = vsel %vm179, %v167, 0
    %183 = vmatprep.subr.mxu0 0.0
    %184 = vmatpush1.msra.mxu0 %v168
    %185 = vmatprep.subr.mxu0 0.0
    %186 = vmatpush1.msra.mxu0 %v169
    %187 = vmatprep.subr.mxu0 0.0
    %188 = vmatpush1.msra.mxu0 %v170
    %189 = vmatprep.subr.mxu0 0.0
    %190 = vmatpush1.msra.mxu0 %v171
    %191 = vmatprep.subr.mxu0 0.0
    %192 = vmatpush1.msra.mxu0 0.0
    %193 = vmatprep.subr.mxu0 0.0
    %194 = vmatpush1.msra.mxu0 0.0
    %195 = vmatprep.subr.mxu0 0.0
    %196 = vmatpush1.msra.mxu0 0.0
    %197 = vmatprep.subr.mxu0 0.0
    %198 = vmatpush1.msra.mxu0 0.0
    %199 = vmatprep.subr.mxu0 0.0
    %200 = vmatpush1.msra.mxu0 0.0
    %201 = vmatprep.subr.mxu0 0.0
    %202 = vmatpush1.msra.mxu0 0.0
    %203 = vmatprep.subr.mxu0 0.0
    %204 = vmatpush1.msra.mxu0 0.0
    %205 = vmatprep.subr.mxu0 0.0
    %206 = vmatpush1.msra.mxu0 0.0
    %207 = vmatprep.subr.mxu0 0.0
    %208 = vmatpush1.msra.mxu0 0.0
    %209 = vmatprep.subr.mxu0 0.0
    %210 = vmatpush1.msra.mxu0 0.0
    %211 = vmatprep.subr.mxu0 0.0
    %212 = vmatpush1.msra.mxu0 0.0
    %213 = vmatprep.subr.mxu0 0.0
    %214 = vmatpush1.msra.mxu0 0.0
    %215 = vmatprep.subr.mxu0 0.0
    %216 = vmatpush1.msra.mxu0 0.0
    %217 = vmatprep.subr.mxu0 0.0
    %218 = vmatpush1.msra.mxu0 0.0
    %219 = vmatprep.subr.mxu0 0.0
    %220 = vmatpush1.msra.mxu0 0.0
    %221 = vmatprep.subr.mxu0 0.0
    %222 = vmatpush1.msra.mxu0 0.0
    %223 = vmatprep.subr.mxu0 0.0
    %224 = vmatpush1.msra.mxu0 0.0
    %225 = vmatprep.subr.mxu0 0.0
    %226 = vmatpush1.msra.mxu0 0.0
    %227 = vmatprep.subr.mxu0 0.0
    %228 = vmatpush1.msra.mxu0 0.0
    %229 = vmatprep.subr.mxu0 0.0
    %230 = vmatpush1.msra.mxu0 0.0
    %231 = vmatprep.subr.mxu0 0.0
    %232 = vmatpush1.msra.mxu0 0.0
    %233 = vmatprep.subr.mxu0 0.0
    %234 = vmatpush1.msra.mxu0 0.0
    %235 = vmatprep.subr.mxu0 0.0
    %236 = vmatpush1.msra.mxu0 0.0
    %237 = vmatprep.subr.mxu0 0.0
    %238 = vmatpush1.msra.mxu0 0.0
    %239 = vmatprep.subr.mxu0 0.0
    %240 = vmatpush1.msra.mxu0 0.0
    %241 = vmatprep.subr.mxu0 0.0
    %242 = vmatpush1.msra.mxu0 0.0
    %243 = vmatprep.subr.mxu0 0.0
    %244 = vmatpush1.msra.mxu0 0.0
    %245 = vmatprep.subr.mxu0 0.0
    %246 = vmatpush1.msra.mxu0 0.0
    %247 = vmatprep.mubr.f32.mxu0 0.0
    %248 = vmatmul.mubr.f32.gmra.mrb[0].mxu0 %v181
    %v249 = vpop.f32.mrb[0].mxu0
    %v250 = vadd.f32 %v177, %v249
    %v251 = vpop.f32.mrb[0].mxu0
    %252 = vdwg.mxu0
    %v253 = vmax.f32 %v250, 0.0
    %vm254 = vcmask 254976
    %255 = vst.msk [vmem:[%s12] sm:$0x3] %vm254, %v253
    %v256 = vld [vmem:[#allocation7] sm:$0x3]
    %v257 = vmul.f32 %v253, 0.5
    %v258 = vmul.f32 %v257, 1.442695
    %v259 = vpow.pop %v258
    %261 = vrot.lane.b32.xlu0 %v259, 112
    %v262 = vpop.permute.xlu0 %261
    %v264 = vmul.f32 %v256, %v262
    %v265 = vadd.f32 %v264, %v253
    %v266 = vld [vmem:[#allocation5] sm:$0x3]
    %268 = vrot.lane.b32.xlu0 %v265, 16
    %v269 = vpop.permute.xlu0 %268
    %vm271 = vcmask 130048
    %v272 = vsel %vm271, %v266, %v269
    %v273 = vpack.c.bf16 %v272, %v272
    %v274 = vld [vmem:[#allocation11] sm:$0xff]
    %v275 = vld [vmem:[#allocation11 + $0x8] sm:$0xff]
    %v276 = vld [vmem:[#allocation11 + $0x10] sm:$0xff]
    %v277 = vld [vmem:[#allocation11 + $0x18] sm:$0xff]
    %v278 = vld [vmem:[#allocation11 + $0x20] sm:$0xff]
    %v279 = vld [vmem:[#allocation11 + $0x28] sm:$0xff]
    %v280 = vld [vmem:[#allocation11 + $0x30] sm:$0xff]
    %v281 = vld [vmem:[#allocation11 + $0x38] sm:$0xff]
    %v282 = vld [vmem:[#allocation11 + $0x40] sm:$0xff]
    %v283 = vld [vmem:[#allocation11 + $0x48] sm:$0xff]
    %v284 = vld [vmem:[#allocation11 + $0x50] sm:$0xff]
    %v285 = vld [vmem:[#allocation11 + $0x58] sm:$0xff]
    %v286 = vld [vmem:[#allocation11 + $0x60] sm:$0xff]
    %v287 = vld [vmem:[#allocation11 + $0x68] sm:$0xff]
    %v288 = vld [vmem:[#allocation11 + $0x70] sm:$0xff]
    %v289 = vld [vmem:[#allocation11 + $0x78] sm:$0xff]
    %v306 = vunpack.c.l.b16 %v274
    %v307 = vunpack.c.h.b16 %v274
    %v308 = vunpack.c.l.b16 %v275
    %v309 = vunpack.c.h.b16 %v275
    %v310 = vunpack.c.l.b16 %v276
    %v311 = vunpack.c.h.b16 %v276
    %v312 = vunpack.c.l.b16 %v277
    %v313 = vunpack.c.h.b16 %v277
    %v314 = vunpack.c.l.b16 %v278
    %v315 = vunpack.c.h.b16 %v278
    %v316 = vunpack.c.l.b16 %v279
    %v317 = vunpack.c.h.b16 %v279
    %v318 = vunpack.c.l.b16 %v280
    %v319 = vunpack.c.h.b16 %v280
    %v320 = vunpack.c.l.b16 %v281
    %v321 = vunpack.c.h.b16 %v281
    %v322 = vunpack.c.l.b16 %v282
    %v323 = vunpack.c.h.b16 %v282
    %v324 = vunpack.c.l.b16 %v283
    %v325 = vunpack.c.h.b16 %v283
    %v326 = vunpack.c.l.b16 %v284
    %v327 = vunpack.c.h.b16 %v284
    %v328 = vunpack.c.l.b16 %v285
    %v329 = vunpack.c.h.b16 %v285
    %v330 = vunpack.c.l.b16 %v286
    %v331 = vunpack.c.h.b16 %v286
    %v332 = vunpack.c.l.b16 %v287
    %v333 = vunpack.c.h.b16 %v287
    %v334 = vunpack.c.l.b16 %v288
    %v335 = vunpack.c.h.b16 %v288
    %v336 = vunpack.c.l.b16 %v289
    %v337 = vunpack.c.h.b16 %v289
    %v338 = vpack.c.b16 %v314, %v306
    %v339 = vpack.c.b16 %v315, %v307
    %v340 = vpack.c.b16 %v316, %v308
    %v341 = vpack.c.b16 %v317, %v309
    %v342 = vpack.c.b16 %v318, %v310
    %v343 = vpack.c.b16 %v319, %v311
    %v344 = vpack.c.b16 %v320, %v312
    %v345 = vpack.c.b16 %v321, %v313
    %v346 = vpack.c.b16 %v330, %v322
    %v347 = vpack.c.b16 %v331, %v323
    %v348 = vpack.c.b16 %v332, %v324
    %v349 = vpack.c.b16 %v333, %v325
    %v350 = vpack.c.b16 %v334, %v326
    %v351 = vpack.c.b16 %v335, %v327
    %v352 = vpack.c.b16 %v336, %v328
    %v353 = vpack.c.b16 %v337, %v329
    %v371 = vsel %vm179, %v273, 0
    %373 = vmatprep.subr.bf16.mxu0 %v339
    %374 = vmatpush1.bf16.msra.mxu0 %v338
    %375 = vmatprep.subr.bf16.mxu0 %v347
    %376 = vmatpush1.bf16.msra.mxu0 %v346
    %377 = vmatprep.subr.bf16.mxu0 0
    %378 = vmatpush1.bf16.msra.mxu0 0
    %379 = vmatprep.subr.bf16.mxu0 0
    %380 = vmatpush1.bf16.msra.mxu0 0
    %381 = vmatprep.subr.bf16.mxu0 0
    %382 = vmatpush1.bf16.msra.mxu0 0
    %383 = vmatprep.subr.bf16.mxu0 0
    %384 = vmatpush1.bf16.msra.mxu0 0
    %385 = vmatprep.subr.bf16.mxu0 0
    %386 = vmatpush1.bf16.msra.mxu0 0
    %387 = vmatprep.subr.bf16.mxu0 0
    %388 = vmatpush1.bf16.msra.mxu0 0
    %389 = vmatprep.subr.bf16.mxu0 0
    %390 = vmatpush1.bf16.msra.mxu0 0
    %391 = vmatprep.subr.bf16.mxu0 0
    %392 = vmatpush1.bf16.msra.mxu0 0
    %393 = vmatprep.subr.bf16.mxu0 0
    %394 = vmatpush1.bf16.msra.mxu0 0
    %395 = vmatprep.subr.bf16.mxu0 0
    %396 = vmatpush1.bf16.msra.mxu0 0
    %397 = vmatprep.subr.bf16.mxu0 0
    %398 = vmatpush1.bf16.msra.mxu0 0
    %399 = vmatprep.subr.bf16.mxu0 0
    %400 = vmatpush1.bf16.msra.mxu0 0
    %401 = vmatprep.subr.bf16.mxu0 0
    %402 = vmatpush1.bf16.msra.mxu0 0
    %403 = vmatprep.subr.bf16.mxu0 0
    %404 = vmatpush1.bf16.msra.mxu0 0
    %405 = vmatprep.mubr.bf16.mxu0 0
    %406 = vmatmul.mubr.bf16.gmra.mrb[0].mxu0 %v371
    %v407 = vpop.f32.mrb[0].mxu0
    %v408 = vadd.f32 0.0, %v407
    %v409 = vpop.f32.mrb[0].mxu0
    %v410 = vadd.f32 0.0, %v409
    %v411 = vpop.f32.mrb[0].mxu0
    %v412 = vpop.f32.mrb[0].mxu0
    %413 = vdwg.mxu0
    %414 = vmatprep.subr.bf16.mxu0 %v341
    %415 = vmatpush1.bf16.msra.mxu0 %v340
    %416 = vmatprep.subr.bf16.mxu0 %v349
    %417 = vmatpush1.bf16.msra.mxu0 %v348
    %418 = vmatprep.subr.bf16.mxu0 0
    %419 = vmatpush1.bf16.msra.mxu0 0
    %420 = vmatprep.subr.bf16.mxu0 0
    %421 = vmatpush1.bf16.msra.mxu0 0
    %422 = vmatprep.subr.bf16.mxu0 0
    %423 = vmatpush1.bf16.msra.mxu0 0
    %424 = vmatprep.subr.bf16.mxu0 0
    %425 = vmatpush1.bf16.msra.mxu0 0
    %426 = vmatprep.subr.bf16.mxu0 0
    %427 = vmatpush1.bf16.msra.mxu0 0
    %428 = vmatprep.subr.bf16.mxu0 0
    %429 = vmatpush1.bf16.msra.mxu0 0
    %430 = vmatprep.subr.bf16.mxu0 0
    %431 = vmatpush1.bf16.msra.mxu0 0
    %432 = vmatprep.subr.bf16.mxu0 0
    %433 = vmatpush1.bf16.msra.mxu0 0
    %434 = vmatprep.subr.bf16.mxu0 0
    %435 = vmatpush1.bf16.msra.mxu0 0
    %436 = vmatprep.subr.bf16.mxu0 0
    %437 = vmatpush1.bf16.msra.mxu0 0
    %438 = vmatprep.subr.bf16.mxu0 0
    %439 = vmatpush1.bf16.msra.mxu0 0
    %440 = vmatprep.subr.bf16.mxu0 0
    %441 = vmatpush1.bf16.msra.mxu0 0
    %442 = vmatprep.subr.bf16.mxu0 0
    %443 = vmatpush1.bf16.msra.mxu0 0
    %444 = vmatprep.subr.bf16.mxu0 0
    %445 = vmatpush1.bf16.msra.mxu0 0
    %446 = vmatprep.mubr.bf16.mxu0 0
    %447 = vmatmul.mubr.bf16.gmra.mrb[0].mxu0 %v371
    %v448 = vpop.f32.mrb[0].mxu0
    %v449 = vadd.f32 0.0, %v448
    %v450 = vpop.f32.mrb[0].mxu0
    %v451 = vadd.f32 0.0, %v450
    %v452 = vpop.f32.mrb[0].mxu0
    %v453 = vpop.f32.mrb[0].mxu0
    %454 = vdwg.mxu0
    %455 = vmatprep.subr.bf16.mxu0 %v343
    %456 = vmatpush1.bf16.msra.mxu0 %v342
    %457 = vmatprep.subr.bf16.mxu0 %v351
    %458 = vmatpush1.bf16.msra.mxu0 %v350
    %459 = vmatprep.subr.bf16.mxu0 0
    %460 = vmatpush1.bf16.msra.mxu0 0
    %461 = vmatprep.subr.bf16.mxu0 0
    %462 = vmatpush1.bf16.msra.mxu0 0
    %463 = vmatprep.subr.bf16.mxu0 0
    %464 = vmatpush1.bf16.msra.mxu0 0
    %465 = vmatprep.subr.bf16.mxu0 0
    %466 = vmatpush1.bf16.msra.mxu0 0
    %467 = vmatprep.subr.bf16.mxu0 0
    %468 = vmatpush1.bf16.msra.mxu0 0
    %469 = vmatprep.subr.bf16.mxu0 0
    %470 = vmatpush1.bf16.msra.mxu0 0
    %471 = vmatprep.subr.bf16.mxu0 0
    %472 = vmatpush1.bf16.msra.mxu0 0
    %473 = vmatprep.subr.bf16.mxu0 0
    %474 = vmatpush1.bf16.msra.mxu0 0
    %475 = vmatprep.subr.bf16.mxu0 0
    %476 = vmatpush1.bf16.msra.mxu0 0
    %477 = vmatprep.subr.bf16.mxu0 0
    %478 = vmatpush1.bf16.msra.mxu0 0
    %479 = vmatprep.subr.bf16.mxu0 0
    %480 = vmatpush1.bf16.msra.mxu0 0
    %481 = vmatprep.subr.bf16.mxu0 0
    %482 = vmatpush1.bf16.msra.mxu0 0
    %483 = vmatprep.subr.bf16.mxu0 0
    %484 = vmatpush1.bf16.msra.mxu0 0
    %485 = vmatprep.subr.bf16.mxu0 0
    %486 = vmatpush1.bf16.msra.mxu0 0
    %487 = vmatprep.mubr.bf16.mxu0 0
    %488 = vmatmul.mubr.bf16.gmra.mrb[0].mxu0 %v371
    %v489 = vpop.f32.mrb[0].mxu0
    %v490 = vadd.f32 0.0, %v489
    %v491 = vpop.f32.mrb[0].mxu0
    %v492 = vadd.f32 0.0, %v491
    %v493 = vpop.f32.mrb[0].mxu0
    %v494 = vpop.f32.mrb[0].mxu0
    %495 = vdwg.mxu0
    %496 = vmatprep.subr.bf16.mxu0 %v345
    %497 = vmatpush1.bf16.msra.mxu0 %v344
    %498 = vmatprep.subr.bf16.mxu0 %v353
    %499 = vmatpush1.bf16.msra.mxu0 %v352
    %500 = vmatprep.subr.bf16.mxu0 0
    %501 = vmatpush1.bf16.msra.mxu0 0
    %502 = vmatprep.subr.bf16.mxu0 0
    %503 = vmatpush1.bf16.msra.mxu0 0
    %504 = vmatprep.subr.bf16.mxu0 0
    %505 = vmatpush1.bf16.msra.mxu0 0
    %506 = vmatprep.subr.bf16.mxu0 0
    %507 = vmatpush1.bf16.msra.mxu0 0
    %508 = vmatprep.subr.bf16.mxu0 0
    %509 = vmatpush1.bf16.msra.mxu0 0
    %510 = vmatprep.subr.bf16.mxu0 0
    %511 = vmatpush1.bf16.msra.mxu0 0
    %512 = vmatprep.subr.bf16.mxu0 0
    %513 = vmatpush1.bf16.msra.mxu0 0
    %514 = vmatprep.subr.bf16.mxu0 0
    %515 = vmatpush1.bf16.msra.mxu0 0
    %516 = vmatprep.subr.bf16.mxu0 0
    %517 = vmatpush1.bf16.msra.mxu0 0
    %518 = vmatprep.subr.bf16.mxu0 0
    %519 = vmatpush1.bf16.msra.mxu0 0
    %520 = vmatprep.subr.bf16.mxu0 0
    %521 = vmatpush1.bf16.msra.mxu0 0
    %522 = vmatprep.subr.bf16.mxu0 0
    %523 = vmatpush1.bf16.msra.mxu0 0
    %524 = vmatprep.subr.bf16.mxu0 0
    %525 = vmatpush1.bf16.msra.mxu0 0
    %526 = vmatprep.subr.bf16.mxu0 0
    %527 = vmatpush1.bf16.msra.mxu0 0
    %528 = vmatprep.mubr.bf16.mxu0 0
    %529 = vmatmul.mubr.bf16.gmra.mrb[0].mxu0 %v371
    %v530 = vpop.f32.mrb[0].mxu0
    %v531 = vadd.f32 0.0, %v530
    %v532 = vpop.f32.mrb[0].mxu0
    %v533 = vadd.f32 0.0, %v532
    %v534 = vpop.f32.mrb[0].mxu0
    %v535 = vpop.f32.mrb[0].mxu0
    %536 = vdwg.mxu0
    %vm537 = vcmask 1041408
    %v538 = vsel %vm537, %v408, 0.0
    %v539 = vrot.slane %v538, 4
    %v540 = vadd.f32 %v538, %v539
    %v541 = vrot.slane %v540, 2
    %v542 = vadd.f32 %v540, %v541
    %v543 = vrot.slane %v542, 1
    %v544 = vadd.f32 %v542, %v543
    %v545 = vsel %vm537, %v410, 0.0
    %v546 = vrot.slane %v545, 4
    %v547 = vadd.f32 %v545, %v546
    %v548 = vrot.slane %v547, 2
    %v549 = vadd.f32 %v547, %v548
    %v550 = vrot.slane %v549, 1
    %v551 = vadd.f32 %v549, %v550
    %v552 = vsel %vm537, %v449, 0.0
    %v553 = vrot.slane %v552, 4
    %v554 = vadd.f32 %v552, %v553
    %v555 = vrot.slane %v554, 2
    %v556 = vadd.f32 %v554, %v555
    %v557 = vrot.slane %v556, 1
    %v558 = vadd.f32 %v556, %v557
    %v559 = vsel %vm537, %v451, 0.0
    %v560 = vrot.slane %v559, 4
    %v561 = vadd.f32 %v559, %v560
    %v562 = vrot.slane %v561, 2
    %v563 = vadd.f32 %v561, %v562
    %v564 = vrot.slane %v563, 1
    %v565 = vadd.f32 %v563, %v564
    %v566 = vsel %vm537, %v490, 0.0
    %v567 = vrot.slane %v566, 4
    %v568 = vadd.f32 %v566, %v567
    %v569 = vrot.slane %v568, 2
    %v570 = vadd.f32 %v568, %v569
    %v571 = vrot.slane %v570, 1
    %v572 = vadd.f32 %v570, %v571
    %v573 = vsel %vm537, %v492, 0.0
    %v574 = vrot.slane %v573, 4
    %v575 = vadd.f32 %v573, %v574
    %v576 = vrot.slane %v575, 2
    %v577 = vadd.f32 %v575, %v576
    %v578 = vrot.slane %v577, 1
    %v579 = vadd.f32 %v577, %v578
    %v580 = vsel %vm537, %v531, 0.0
    %v581 = vrot.slane %v580, 4
    %v582 = vadd.f32 %v580, %v581
    %v583 = vrot.slane %v582, 2
    %v584 = vadd.f32 %v582, %v583
    %v585 = vrot.slane %v584, 1
    %v586 = vadd.f32 %v584, %v585
    %v587 = vsel %vm537, %v533, 0.0
    %v588 = vrot.slane %v587, 4
    %v589 = vadd.f32 %v587, %v588
    %v590 = vrot.slane %v589, 2
    %v591 = vadd.f32 %v589, %v590
    %v592 = vrot.slane %v591, 1
    %v593 = vadd.f32 %v591, %v592
    %v594 = vrcp.pop 2.0
    %v595 = vmul.f32 %v544, %v594
    %v596 = vmul.f32 %v551, %v594
    %v597 = vmul.f32 %v558, %v594
    %v598 = vmul.f32 %v565, %v594
    %v599 = vmul.f32 %v572, %v594
    %v600 = vmul.f32 %v579, %v594
    %v601 = vmul.f32 %v586, %v594
    %v602 = vmul.f32 %v593, %v594
    %v603 = vsub.f32 %v408, %v595
    %v604 = vsub.f32 %v410, %v596
    %v605 = vsub.f32 %v449, %v597
    %v606 = vsub.f32 %v451, %v598
    %v607 = vsub.f32 %v490, %v599
    %v608 = vsub.f32 %v492, %v600
    %v609 = vsub.f32 %v531, %v601
    %v610 = vsub.f32 %v533, %v602
    %v611 = vmul.f32 %v603, %v603
    %v612 = vmul.f32 %v604, %v604
    %v613 = vmul.f32 %v605, %v605
    %v614 = vmul.f32 %v606, %v606
    %v615 = vmul.f32 %v607, %v607
    %v616 = vmul.f32 %v608, %v608
    %v617 = vmul.f32 %v609, %v609
    %v618 = vmul.f32 %v610, %v610
    %v619 = vsel %vm537, %v611, 0.0
    %v620 = vrot.slane %v619, 4
    %v621 = vadd.f32 %v619, %v620
    %v622 = vrot.slane %v621, 2
    %v623 = vadd.f32 %v621, %v622
    %v624 = vrot.slane %v623, 1
    %v625 = vadd.f32 %v623, %v624
    %v626 = vsel %vm537, %v612, 0.0
    %v627 = vrot.slane %v626, 4
    %v628 = vadd.f32 %v626, %v627
    %v629 = vrot.slane %v628, 2
    %v630 = vadd.f32 %v628, %v629
    %v631 = vrot.slane %v630, 1
    %v632 = vadd.f32 %v630, %v631
    %v633 = vsel %vm537, %v613, 0.0
    %v634 = vrot.slane %v633, 4
    %v635 = vadd.f32 %v633, %v634
    %v636 = vrot.slane %v635, 2
    %v637 = vadd.f32 %v635, %v636
    %v638 = vrot.slane %v637, 1
    %v639 = vadd.f32 %v637, %v638
    %v640 = vsel %vm537, %v614, 0.0
    %v641 = vrot.slane %v640, 4
    %v642 = vadd.f32 %v640, %v641
    %v643 = vrot.slane %v642, 2
    %v644 = vadd.f32 %v642, %v643
    %v645 = vrot.slane %v644, 1
    %v646 = vadd.f32 %v644, %v645
    %v647 = vsel %vm537, %v615, 0.0
    %v648 = vrot.slane %v647, 4
    %v649 = vadd.f32 %v647, %v648
    %v650 = vrot.slane %v649, 2
    %v651 = vadd.f32 %v649, %v650
    %v652 = vrot.slane %v651, 1
    %v653 = vadd.f32 %v651, %v652
    %v654 = vsel %vm537, %v616, 0.0
    %v655 = vrot.slane %v654, 4
    %v656 = vadd.f32 %v654, %v655
    %v657 = vrot.slane %v656, 2
    %v658 = vadd.f32 %v656, %v657
    %v659 = vrot.slane %v658, 1
    %v660 = vadd.f32 %v658, %v659
    %v661 = vsel %vm537, %v617, 0.0
    %v662 = vrot.slane %v661, 4
    %v663 = vadd.f32 %v661, %v662
    %v664 = vrot.slane %v663, 2
    %v665 = vadd.f32 %v663, %v664
    %v666 = vrot.slane %v665, 1
    %v667 = vadd.f32 %v665, %v666
    %v668 = vsel %vm537, %v618, 0.0
    %v669 = vrot.slane %v668, 4
    %v670 = vadd.f32 %v668, %v669
    %v671 = vrot.slane %v670, 2
    %v672 = vadd.f32 %v670, %v671
    %v673 = vrot.slane %v672, 1
    %v674 = vadd.f32 %v672, %v673
    %v675 = vmul.f32 %v625, %v594
    %v676 = vmul.f32 %v632, %v594
    %v677 = vmul.f32 %v639, %v594
    %v678 = vmul.f32 %v646, %v594
    %v679 = vmul.f32 %v653, %v594
    %v680 = vmul.f32 %v660, %v594
    %v681 = vmul.f32 %v667, %v594
    %v682 = vmul.f32 %v674, %v594
    %v683 = vadd.f32 %v675, 1e-05
    %v684 = vadd.f32 %v676, 1e-05
    %v685 = vadd.f32 %v677, 1e-05
    %v686 = vadd.f32 %v678, 1e-05
    %v687 = vadd.f32 %v679, 1e-05
    %v688 = vadd.f32 %v680, 1e-05
    %v689 = vadd.f32 %v681, 1e-05
    %v690 = vadd.f32 %v682, 1e-05
    %v691 = vrsqrt.pop %v683
    %v692 = vrsqrt.pop %v684
    %v693 = vrsqrt.pop %v685
    %v694 = vrsqrt.pop %v686
    %v695 = vrsqrt.pop %v687
    %v696 = vrsqrt.pop %v688
    %v697 = vrsqrt.pop %v689
    %v698 = vrsqrt.pop %v690
    %v699 = vmul.f32 %v603, %v691
    %v700 = vmul.f32 %v604, %v692
    %v701 = vmul.f32 %v605, %v693
    %v702 = vmul.f32 %v606, %v694
    %v703 = vmul.f32 %v607, %v695
    %v704 = vmul.f32 %v608, %v696
    %v705 = vmul.f32 %v609, %v697
    %v706 = vmul.f32 %v610, %v698
    %v707 = vld [vmem:[#allocation13] ss:$2 sm:$0xff]
    %v709 = vlaneseq
    %v710 = vshrl.u32 %v709, 7
    %v711 = vsub.s32 0, %v710
    %v712 = vrot.slane %v707, %v711
    %v713 = vlaneseq
    %v714 = vshrl.u32 %v713, 7
    %v715 = vsub.s32 1, %v714
    %v716 = vrot.slane %v707, %v715
    %v717 = vlaneseq
    %v718 = vshrl.u32 %v717, 7
    %v719 = vsub.s32 2, %v718
    %v720 = vrot.slane %v707, %v719
    %v721 = vlaneseq
    %v722 = vshrl.u32 %v721, 7
    %v723 = vsub.s32 3, %v722
    %v724 = vrot.slane %v707, %v723
    %v725 = vlaneseq
    %v726 = vshrl.u32 %v725, 7
    %v727 = vsub.s32 4, %v726
    %v728 = vrot.slane %v707, %v727
    %v729 = vlaneseq
    %v730 = vshrl.u32 %v729, 7
    %v731 = vsub.s32 5, %v730
    %v732 = vrot.slane %v707, %v731
    %v733 = vlaneseq
    %v734 = vshrl.u32 %v733, 7
    %v735 = vsub.s32 6, %v734
    %v736 = vrot.slane %v707, %v735
    %v737 = vlaneseq
    %v738 = vshrl.u32 %v737, 7
    %v739 = vsub.s32 7, %v738
    %v740 = vrot.slane %v707, %v739
    %v749 = vmul.f32 %v699, %v712
    %v750 = vmul.f32 %v700, %v716
    %v751 = vmul.f32 %v701, %v720
    %v752 = vmul.f32 %v702, %v724
    %v753 = vmul.f32 %v703, %v728
    %v754 = vmul.f32 %v704, %v732
    %v755 = vmul.f32 %v705, %v736
    %v756 = vmul.f32 %v706, %v740
    %s757 = scalar_lea.vmem [#allocation13], 1
    %v758 = vld [vmem:[%s757] ss:$2 sm:$0xff]
    %v760 = vlaneseq
    %v761 = vshrl.u32 %v760, 7
    %v762 = vsub.s32 0, %v761
    %v763 = vrot.slane %v758, %v762
    %v764 = vlaneseq
    %v765 = vshrl.u32 %v764, 7
    %v766 = vsub.s32 1, %v765
    %v767 = vrot.slane %v758, %v766
    %v768 = vlaneseq
    %v769 = vshrl.u32 %v768, 7
    %v770 = vsub.s32 2, %v769
    %v771 = vrot.slane %v758, %v770
    %v772 = vlaneseq
    %v773 = vshrl.u32 %v772, 7
    %v774 = vsub.s32 3, %v773
    %v775 = vrot.slane %v758, %v774
    %v776 = vlaneseq
    %v777 = vshrl.u32 %v776, 7
    %v778 = vsub.s32 4, %v777
    %v779 = vrot.slane %v758, %v778
    %v780 = vlaneseq
    %v781 = vshrl.u32 %v780, 7
    %v782 = vsub.s32 5, %v781
    %v783 = vrot.slane %v758, %v782
    %v784 = vlaneseq
    %v785 = vshrl.u32 %v784, 7
    %v786 = vsub.s32 6, %v785
    %v787 = vrot.slane %v758, %v786
    %v788 = vlaneseq
    %v789 = vshrl.u32 %v788, 7
    %v790 = vsub.s32 7, %v789
    %v791 = vrot.slane %v758, %v790
    %v800 = vadd.f32 %v749, %v763
    %v801 = vadd.f32 %v750, %v767
    %v802 = vadd.f32 %v751, %v771
    %v803 = vadd.f32 %v752, %v775
    %v804 = vadd.f32 %v753, %v779
    %v805 = vadd.f32 %v754, %v783
    %v806 = vadd.f32 %v755, %v787
    %v807 = vadd.f32 %v756, %v791
    %v808 = vmax.f32 %v800, 0.0
    %v809 = vmax.f32 %v801, 0.0
    %v810 = vmax.f32 %v802, 0.0
    %v811 = vmax.f32 %v803, 0.0
    %v812 = vmax.f32 %v804, 0.0
    %v813 = vmax.f32 %v805, 0.0
    %v814 = vmax.f32 %v806, 0.0
    %v815 = vmax.f32 %v807, 0.0
    %vm816 = vcmask 1040384
    %v817 = vsel %vm816, %v808, 0.0
    %v818 = vsel %vm816, %v809, 0.0
    %v819 = vsel %vm816, %v810, 0.0
    %v820 = vsel %vm816, %v811, 0.0
    %v821 = vsel %vm816, %v812, 0.0
    %v822 = vsel %vm816, %v813, 0.0
    %v823 = vsel %vm816, %v814, 0.0
    %v824 = vsel %vm816, %v815, 0.0
    %v825 = vrot.slane %v808, 1
    %v826 = vsel %vm816, %v825, 0.0
    %v827 = vrot.slane %v809, 1
    %v828 = vsel %vm816, %v827, 0.0
    %v829 = vrot.slane %v810, 1
    %v830 = vsel %vm816, %v829, 0.0
    %v831 = vrot.slane %v811, 1
    %v832 = vsel %vm816, %v831, 0.0
    %v833 = vrot.slane %v812, 1
    %v834 = vsel %vm816, %v833, 0.0
    %v835 = vrot.slane %v813, 1
    %v836 = vsel %vm816, %v835, 0.0
    %v837 = vrot.slane %v814, 1
    %v838 = vsel %vm816, %v837, 0.0
    %v839 = vrot.slane %v815, 1
    %v840 = vsel %vm816, %v839, 0.0
    %v857 = vrot.slane %v817, 7
    %v858 = vrot.slane %v818, 7
    %v859 = vrot.slane %v819, 7
    %v860 = vrot.slane %v820, 7
    %v861 = vrot.slane %v821, 7
    %v862 = vrot.slane %v822, 7
    %v863 = vrot.slane %v823, 7
    %v864 = vrot.slane %v824, 7
    %v865 = vrot.slane %v826, 7
    %v866 = vrot.slane %v828, 7
    %v867 = vrot.slane %v830, 7
    %v868 = vrot.slane %v832, 7
    %v869 = vrot.slane %v834, 7
    %v870 = vrot.slane %v836, 7
    %v871 = vrot.slane %v838, 7
    %v872 = vrot.slane %v840, 7
    %v889 = vsel %vm816, %v817, %v857
    %v890 = vsel %vm816, %v818, %v858
    %v891 = vsel %vm816, %v819, %v859
    %v892 = vsel %vm816, %v820, %v860
    %v893 = vsel %vm816, %v821, %v861
    %v894 = vsel %vm816, %v822, %v862
    %v895 = vsel %vm816, %v823, %v863
    %v896 = vsel %vm816, %v824, %v864
    %v897 = vsel %vm816, %v826, %v865
    %v898 = vsel %vm816, %v828, %v866
    %v899 = vsel %vm816, %v830, %v867
    %v900 = vsel %vm816, %v832, %v868
    %v901 = vsel %vm816, %v834, %v869
    %v902 = vsel %vm816, %v836, %v870
    %v903 = vsel %vm816, %v838, %v871
    %v904 = vsel %vm816, %v840, %v872
    %v921 = vcombine.low %v889, %v890
    %v923 = vunpack.c.l.s4 1983009808
    %v924 = vunpack.c.0.s8 %v923
    %v925 = vlaneseq
    %v926 = vshrl.u32 %v925, 7
    %v927 = vsub.s32 %v924, %v926
    %v928 = vrot.slane %v921, %v927
    %v929 = vcombine.low %v891, %v892
    %v931 = vunpack.c.l.s4 1983009808
    %v932 = vunpack.c.0.s8 %v931
    %v933 = vlaneseq
    %v934 = vshrl.u32 %v933, 7
    %v935 = vsub.s32 %v932, %v934
    %v936 = vrot.slane %v929, %v935
    %v937 = vcombine.low %v893, %v894
    %v939 = vunpack.c.l.s4 1983009808
    %v940 = vunpack.c.0.s8 %v939
    %v941 = vlaneseq
    %v942 = vshrl.u32 %v941, 7
    %v943 = vsub.s32 %v940, %v942
    %v944 = vrot.slane %v937, %v943
    %v945 = vcombine.low %v895, %v896
    %v947 = vunpack.c.l.s4 1983009808
    %v948 = vunpack.c.0.s8 %v947
    %v949 = vlaneseq
    %v950 = vshrl.u32 %v949, 7
    %v951 = vsub.s32 %v948, %v950
    %v952 = vrot.slane %v945, %v951
    %v953 = vcombine.low %v897, %v898
    %v955 = vunpack.c.l.s4 1983009808
    %v956 = vunpack.c.0.s8 %v955
    %v957 = vlaneseq
    %v958 = vshrl.u32 %v957, 7
    %v959 = vsub.s32 %v956, %v958
    %v960 = vrot.slane %v953, %v959
    %v961 = vcombine.low %v899, %v900
    %v963 = vunpack.c.l.s4 1983009808
    %v964 = vunpack.c.0.s8 %v963
    %v965 = vlaneseq
    %v966 = vshrl.u32 %v965, 7
    %v967 = vsub.s32 %v964, %v966
    %v968 = vrot.slane %v961, %v967
    %v969 = vcombine.low %v901, %v902
    %v971 = vunpack.c.l.s4 1983009808
    %v972 = vunpack.c.0.s8 %v971
    %v973 = vlaneseq
    %v974 = vshrl.u32 %v973, 7
    %v975 = vsub.s32 %v972, %v974
    %v976 = vrot.slane %v969, %v975
    %v977 = vcombine.low %v903, %v904
    %v979 = vunpack.c.l.s4 1983009808
    %v980 = vunpack.c.0.s8 %v979
    %v981 = vlaneseq
    %v982 = vshrl.u32 %v981, 7
    %v983 = vsub.s32 %v980, %v982
    %v984 = vrot.slane %v977, %v983
    %v985 = vlaneseq
    %vm986 = vcmp.ge.s32.totalorder %v985, 0
    %vm987 = vcmp.lt.s32.totalorder %v985, 256
    %vm988 = vmand %vm986, %vm987
    %989 = vst.msk [vmem:[#allocation2] ss:$8 sm:$0x3] %vm988, 0.0
    %990 = vst.msk [vmem:[#allocation2] ss:$8 sm:$0x0] %vm988, 0.0
    %s991 = scalar_lea.vmem [#allocation2], 144
    %992 = vst.msk [vmem:[%s991] ss:$8 sm:$0x3] %vm988, 0.0
    %993 = vst.msk [vmem:[%s991] ss:$8 sm:$0x0] %vm988, 0.0
    %v994 = vcombine.low %v928, %v936
    %v995 = vcombine.low %v944, %v952
    %v997 = vunpack.c.l.s4 1983009808
    %v998 = vunpack.c.0.s8 %v997
    %v999 = vlaneseq
    %v1000 = vshrl.u32 %v999, 7
    %v1001 = vsub.s32 %v998, %v1000
    %v1002 = vrot.slane %v994, %v1001
    %v1004 = vunpack.c.l.s4 1983009808
    %v1005 = vunpack.c.0.s8 %v1004
    %v1006 = vlaneseq
    %v1007 = vshrl.u32 %v1006, 7
    %v1008 = vsub.s32 %v1005, %v1007
    %v1009 = vrot.slane %v995, %v1008
    %v1010 = vcombine.low %v1002, %v1009
    %v1011 = vcombine.high %v1002, %v1009
    %v1012 = vcombine.low %v960, %v968
    %v1013 = vcombine.low %v976, %v984
    %v1015 = vunpack.c.l.s4 1983009808
    %v1016 = vunpack.c.0.s8 %v1015
    %v1017 = vlaneseq
    %v1018 = vshrl.u32 %v1017, 7
    %v1019 = vsub.s32 %v1016, %v1018
    %v1020 = vrot.slane %v1012, %v1019
    %v1022 = vunpack.c.l.s4 1983009808
    %v1023 = vunpack.c.0.s8 %v1022
    %v1024 = vlaneseq
    %v1025 = vshrl.u32 %v1024, 7
    %v1026 = vsub.s32 %v1023, %v1025
    %v1027 = vrot.slane %v1013, %v1026
    %v1028 = vcombine.low %v1020, %v1027
    %v1029 = vcombine.high %v1020, %v1027
    %v1030 = vrot.slane %v1010, 7
    %v1031 = vrot.slane %v1011, 7
    %v1032 = vrot.slane %v1028, 7
    %v1033 = vrot.slane %v1029, 7
    %1038 = vst [vmem:[#allocation2] sm:$0xfe] %v1030
    %1039 = vst [vmem:[#allocation2 + $0x8] sm:$0xfe] %v1031
    %1040 = vst [vmem:[#allocation2 + $0x10] sm:$0x1] %v1030
    %1041 = vst [vmem:[#allocation2 + $0x18] sm:$0x1] %v1031
    %1042 = vst [vmem:[#allocation2 + $0x90] sm:$0xfe] %v1032
    %1043 = vst [vmem:[#allocation2 + $0x98] sm:$0xfe] %v1033
    %1044 = vst [vmem:[#allocation2 + $0xa0] sm:$0x1] %v1032
    %1045 = vst [vmem:[#allocation2 + $0xa8] sm:$0x1] %v1033
    %s1046 = scalar_lea.vmem [#allocation2], 17
    %1047 = vst.msk [vmem:[%s1046] ss:$8 sm:$0x3] %vm988, 0.0
    %1048 = vst.msk [vmem:[%s1046] ss:$8 sm:$0x0] %vm988, 0.0
    %s1049 = scalar_lea.vmem [#allocation2], 161
    %1050 = vst.msk [vmem:[%s1049] ss:$8 sm:$0x3] %vm988, 0.0
    %1051 = vst.msk [vmem:[%s1049] ss:$8 sm:$0x0] %vm988, 0.0
    %v1052 = vld [vmem:[#allocation2] sm:$0xff]
    %v1053 = vld [vmem:[#allocation2 + $0x8] sm:$0xff]
    %v1054 = vld [vmem:[#allocation2 + $0x90] sm:$0xff]
    %v1055 = vld [vmem:[#allocation2 + $0x98] sm:$0xff]
    %v1056 = vld [vmem:[#allocation2] sm:$0xfe]
    %v1057 = vld [vmem:[#allocation2 + $0x8] sm:$0xfe]
    %v1058 = vld [vmem:[#allocation2 + $0x10] sm:$0x1]
    %v1059 = vld [vmem:[#allocation2 + $0x18] sm:$0x1]
    %v1060 = vld [vmem:[#allocation2 + $0x90] sm:$0xfe]
    %v1061 = vld [vmem:[#allocation2 + $0x98] sm:$0xfe]
    %v1062 = vld [vmem:[#allocation2 + $0xa0] sm:$0x1]
    %v1063 = vld [vmem:[#allocation2 + $0xa8] sm:$0x1]
    %v1064 = vld [vmem:[#allocation2] sm:$0xfc]
    %v1065 = vld [vmem:[#allocation2 + $0x8] sm:$0xfc]
    %v1066 = vld [vmem:[#allocation2 + $0x10] sm:$0x3]
    %v1067 = vld [vmem:[#allocation2 + $0x18] sm:$0x3]
    %v1068 = vld [vmem:[#allocation2 + $0x90] sm:$0xfc]
    %v1069 = vld [vmem:[#allocation2 + $0x98] sm:$0xfc]
    %v1070 = vld [vmem:[#allocation2 + $0xa0] sm:$0x3]
    %v1071 = vld [vmem:[#allocation2 + $0xa8] sm:$0x3]
    %vm1080 = vcmask 1046528
    %v1081 = vrot.slane %v1056, 1
    %v1082 = vrot.slane %v1058, 1
    %v1083 = vsel %vm1080, %v1081, %v1082
    %v1084 = vrot.slane %v1057, 1
    %v1085 = vrot.slane %v1059, 1
    %v1086 = vsel %vm1080, %v1084, %v1085
    %v1087 = vrot.slane %v1060, 1
    %v1088 = vrot.slane %v1062, 1
    %v1089 = vsel %vm1080, %v1087, %v1088
    %v1090 = vrot.slane %v1061, 1
    %v1091 = vrot.slane %v1063, 1
    %v1092 = vsel %vm1080, %v1090, %v1091
    %vm1105 = vcmask 1045504
    %v1106 = vrot.slane %v1064, 2
    %v1107 = vrot.slane %v1066, 2
    %v1108 = vsel %vm1105, %v1106, %v1107
    %v1109 = vrot.slane %v1065, 2
    %v1110 = vrot.slane %v1067, 2
    %v1111 = vsel %vm1105, %v1109, %v1110
    %v1112 = vrot.slane %v1068, 2
    %v1113 = vrot.slane %v1070, 2
    %v1114 = vsel %vm1105, %v1112, %v1113
    %v1115 = vrot.slane %v1069, 2
    %v1116 = vrot.slane %v1071, 2
    %v1117 = vsel %vm1105, %v1115, %v1116
    %v1122 = vpack.c.bf16 %v1054, %v1052
    %v1123 = vpack.c.bf16 %v1055, %v1053
    %v1124 = vpack.c.bf16 %v1089, %v1083
    %v1125 = vpack.c.bf16 %v1092, %v1086
    %v1126 = vpack.c.bf16 %v1114, %v1108
    %v1127 = vpack.c.bf16 %v1117, %v1111
    %v1128 = vld [vmem:[#allocation14] sm:$0xff]
    %v1129 = vld [vmem:[#allocation14 + $0x8] sm:$0xff]
    %v1130 = vld [vmem:[#allocation14 + $0x10] sm:$0xff]
    %v1131 = vld [vmem:[#allocation14 + $0x18] sm:$0xff]
    %v1132 = vld [vmem:[#allocation14 + $0x20] sm:$0xff]
    %v1133 = vld [vmem:[#allocation14 + $0x28] sm:$0xff]
    %v1134 = vld [vmem:[#allocation14 + $0x30] sm:$0xff]
    %v1135 = vld [vmem:[#allocation14 + $0x38] sm:$0xff]
    %v1136 = vld [vmem:[#allocation14 + $0x40] sm:$0xff]
    %v1137 = vld [vmem:[#allocation14 + $0x48] sm:$0xff]
    %v1138 = vld [vmem:[#allocation14 + $0x50] sm:$0xff]
    %v1139 = vld [vmem:[#allocation14 + $0x58] sm:$0xff]
    %v1140 = vld [vmem:[#allocation14 + $0x60] sm:$0xff]
    %v1141 = vld [vmem:[#allocation14 + $0x68] sm:$0xff]
    %v1142 = vld [vmem:[#allocation14 + $0x70] sm:$0xff]
    %v1143 = vld [vmem:[#allocation14 + $0x78] sm:$0xff]
    %v1144 = vld [vmem:[#allocation14 + $0x80] sm:$0xff]
    %v1145 = vld [vmem:[#allocation14 + $0x88] sm:$0xff]
    %v1146 = vld [vmem:[#allocation14 + $0x90] sm:$0xff]
    %v1147 = vld [vmem:[#allocation14 + $0x98] sm:$0xff]
    %v1148 = vld [vmem:[#allocation14 + $0xa0] sm:$0xff]
    %v1149 = vld [vmem:[#allocation14 + $0xa8] sm:$0xff]
    %v1150 = vld [vmem:[#allocation14 + $0xb0] sm:$0xff]
    %v1151 = vld [vmem:[#allocation14 + $0xb8] sm:$0xff]
    %v1152 = vld [vmem:[#allocation14 + $0xc0] sm:$0xff]
    %v1153 = vld [vmem:[#allocation14 + $0xc8] sm:$0xff]
    %v1154 = vld [vmem:[#allocation14 + $0xd0] sm:$0xff]
    %v1155 = vld [vmem:[#allocation14 + $0xd8] sm:$0xff]
    %v1156 = vld [vmem:[#allocation14 + $0xe0] sm:$0xff]
    %v1157 = vld [vmem:[#allocation14 + $0xe8] sm:$0xff]
    %v1158 = vld [vmem:[#allocation14 + $0xf0] sm:$0xff]
    %v1159 = vld [vmem:[#allocation14 + $0xf8] sm:$0xff]
    %v1160 = vld [vmem:[#allocation14 + $0x100] sm:$0xff]
    %v1161 = vld [vmem:[#allocation14 + $0x108] sm:$0xff]
    %v1162 = vld [vmem:[#allocation14 + $0x110] sm:$0xff]
    %v1163 = vld [vmem:[#allocation14 + $0x118] sm:$0xff]
    %v1164 = vld [vmem:[#allocation14 + $0x120] sm:$0xff]
    %v1165 = vld [vmem:[#allocation14 + $0x128] sm:$0xff]
    %v1166 = vld [vmem:[#allocation14 + $0x130] sm:$0xff]
    %v1167 = vld [vmem:[#allocation14 + $0x138] sm:$0xff]
    %v1168 = vld [vmem:[#allocation14 + $0x140] sm:$0xff]
    %v1169 = vld [vmem:[#allocation14 + $0x148] sm:$0xff]
    %v1170 = vld [vmem:[#allocation14 + $0x150] sm:$0xff]
    %v1171 = vld [vmem:[#allocation14 + $0x158] sm:$0xff]
    %v1172 = vld [vmem:[#allocation14 + $0x160] sm:$0xff]
    %v1173 = vld [vmem:[#allocation14 + $0x168] sm:$0xff]
    %v1174 = vld [vmem:[#allocation14 + $0x170] sm:$0xff]
    %v1175 = vld [vmem:[#allocation14 + $0x178] sm:$0xff]
    %v1176 = vld [vmem:[#allocation14 + $0x180] sm:$0xff]
    %v1177 = vld [vmem:[#allocation14 + $0x188] sm:$0xff]
    %v1178 = vld [vmem:[#allocation14 + $0x190] sm:$0xff]
    %v1179 = vld [vmem:[#allocation14 + $0x198] sm:$0xff]
    %v1180 = vld [vmem:[#allocation14 + $0x1a0] sm:$0xff]
    %v1181 = vld [vmem:[#allocation14 + $0x1a8] sm:$0xff]
    %v1182 = vld [vmem:[#allocation14 + $0x1b0] sm:$0xff]
    %v1183 = vld [vmem:[#allocation14 + $0x1b8] sm:$0xff]
    %v1184 = vld [vmem:[#allocation14 + $0x1c0] sm:$0xff]
    %v1185 = vld [vmem:[#allocation14 + $0x1c8] sm:$0xff]
    %v1186 = vld [vmem:[#allocation14 + $0x1d0] sm:$0xff]
    %v1187 = vld [vmem:[#allocation14 + $0x1d8] sm:$0xff]
    %v1188 = vld [vmem:[#allocation14 + $0x1e0] sm:$0xff]
    %v1189 = vld [vmem:[#allocation14 + $0x1e8] sm:$0xff]
    %v1190 = vld [vmem:[#allocation14 + $0x1f0] sm:$0xff]
    %v1191 = vld [vmem:[#allocation14 + $0x1f8] sm:$0xff]
    %v1192 = vld [vmem:[#allocation14 + $0x200] sm:$0xff]
    %v1193 = vld [vmem:[#allocation14 + $0x208] sm:$0xff]
    %v1194 = vld [vmem:[#allocation14 + $0x210] sm:$0xff]
    %v1195 = vld [vmem:[#allocation14 + $0x218] sm:$0xff]
    %v1196 = vld [vmem:[#allocation14 + $0x220] sm:$0xff]
    %v1197 = vld [vmem:[#allocation14 + $0x228] sm:$0xff]
    %v1198 = vld [vmem:[#allocation14 + $0x230] sm:$0xff]
    %v1199 = vld [vmem:[#allocation14 + $0x238] sm:$0xff]
    %v1200 = vld [vmem:[#allocation14 + $0x240] sm:$0xff]
    %v1201 = vld [vmem:[#allocation14 + $0x248] sm:$0xff]
    %v1202 = vld [vmem:[#allocation14 + $0x250] sm:$0xff]
    %v1203 = vld [vmem:[#allocation14 + $0x258] sm:$0xff]
    %v1204 = vld [vmem:[#allocation14 + $0x260] sm:$0xff]
    %v1205 = vld [vmem:[#allocation14 + $0x268] sm:$0xff]
    %v1206 = vld [vmem:[#allocation14 + $0x270] sm:$0xff]
    %v1207 = vld [vmem:[#allocation14 + $0x278] sm:$0xff]
    %v1208 = vld [vmem:[#allocation14 + $0x280] sm:$0xff]
    %v1209 = vld [vmem:[#allocation14 + $0x288] sm:$0xff]
    %v1210 = vld [vmem:[#allocation14 + $0x290] sm:$0xff]
    %v1211 = vld [vmem:[#allocation14 + $0x298] sm:$0xff]
    %v1212 = vld [vmem:[#allocation14 + $0x2a0] sm:$0xff]
    %v1213 = vld [vmem:[#allocation14 + $0x2a8] sm:$0xff]
    %v1214 = vld [vmem:[#allocation14 + $0x2b0] sm:$0xff]
    %v1215 = vld [vmem:[#allocation14 + $0x2b8] sm:$0xff]
    %v1216 = vld [vmem:[#allocation14 + $0x2c0] sm:$0xff]
    %v1217 = vld [vmem:[#allocation14 + $0x2c8] sm:$0xff]
    %v1218 = vld [vmem:[#allocation14 + $0x2d0] sm:$0xff]
    %v1219 = vld [vmem:[#allocation14 + $0x2d8] sm:$0xff]
    %v1220 = vld [vmem:[#allocation14 + $0x2e0] sm:$0xff]
    %v1221 = vld [vmem:[#allocation14 + $0x2e8] sm:$0xff]
    %v1222 = vld [vmem:[#allocation14 + $0x2f0] sm:$0xff]
    %v1223 = vld [vmem:[#allocation14 + $0x2f8] sm:$0xff]
    %v1320 = vunpack.c.l.b16 %v1128
    %v1321 = vunpack.c.h.b16 %v1128
    %v1322 = vunpack.c.l.b16 %v1129
    %v1323 = vunpack.c.h.b16 %v1129
    %v1324 = vunpack.c.l.b16 %v1130
    %v1325 = vunpack.c.h.b16 %v1130
    %v1326 = vunpack.c.l.b16 %v1131
    %v1327 = vunpack.c.h.b16 %v1131
    %v1328 = vunpack.c.l.b16 %v1132
    %v1329 = vunpack.c.h.b16 %v1132
    %v1330 = vunpack.c.l.b16 %v1133
    %v1331 = vunpack.c.h.b16 %v1133
    %v1332 = vunpack.c.l.b16 %v1134
    %v1333 = vunpack.c.h.b16 %v1134
    %v1334 = vunpack.c.l.b16 %v1135
    %v1335 = vunpack.c.h.b16 %v1135
    %v1336 = vunpack.c.l.b16 %v1136
    %v1337 = vunpack.c.h.b16 %v1136
    %v1338 = vunpack.c.l.b16 %v1137
    %v1339 = vunpack.c.h.b16 %v1137
    %v1340 = vunpack.c.l.b16 %v1138
    %v1341 = vunpack.c.h.b16 %v1138
    %v1342 = vunpack.c.l.b16 %v1139
    %v1343 = vunpack.c.h.b16 %v1139
    %v1344 = vunpack.c.l.b16 %v1140
    %v1345 = vunpack.c.h.b16 %v1140
    %v1346 = vunpack.c.l.b16 %v1141
    %v1347 = vunpack.c.h.b16 %v1141
    %v1348 = vunpack.c.l.b16 %v1142
    %v1349 = vunpack.c.h.b16 %v1142
    %v1350 = vunpack.c.l.b16 %v1143
    %v1351 = vunpack.c.h.b16 %v1143
    %v1352 = vunpack.c.l.b16 %v1144
    %v1353 = vunpack.c.h.b16 %v1144
    %v1354 = vunpack.c.l.b16 %v1145
    %v1355 = vunpack.c.h.b16 %v1145
    %v1356 = vunpack.c.l.b16 %v1146
    %v1357 = vunpack.c.h.b16 %v1146
    %v1358 = vunpack.c.l.b16 %v1147
    %v1359 = vunpack.c.h.b16 %v1147
    %v1360 = vunpack.c.l.b16 %v1148
    %v1361 = vunpack.c.h.b16 %v1148
    %v1362 = vunpack.c.l.b16 %v1149
    %v1363 = vunpack.c.h.b16 %v1149
    %v1364 = vunpack.c.l.b16 %v1150
    %v1365 = vunpack.c.h.b16 %v1150
    %v1366 = vunpack.c.l.b16 %v1151
    %v1367 = vunpack.c.h.b16 %v1151
    %v1368 = vunpack.c.l.b16 %v1152
    %v1369 = vunpack.c.h.b16 %v1152
    %v1370 = vunpack.c.l.b16 %v1153
    %v1371 = vunpack.c.h.b16 %v1153
    %v1372 = vunpack.c.l.b16 %v1154
    %v1373 = vunpack.c.h.b16 %v1154
    %v1374 = vunpack.c.l.b16 %v1155
    %v1375 = vunpack.c.h.b16 %v1155
    %v1376 = vunpack.c.l.b16 %v1156
    %v1377 = vunpack.c.h.b16 %v1156
    %v1378 = vunpack.c.l.b16 %v1157
    %v1379 = vunpack.c.h.b16 %v1157
    %v1380 = vunpack.c.l.b16 %v1158
    %v1381 = vunpack.c.h.b16 %v1158
    %v1382 = vunpack.c.l.b16 %v1159
    %v1383 = vunpack.c.h.b16 %v1159
    %v1384 = vunpack.c.l.b16 %v1160
    %v1385 = vunpack.c.h.b16 %v1160
    %v1386 = vunpack.c.l.b16 %v1161
    %v1387 = vunpack.c.h.b16 %v1161
    %v1388 = vunpack.c.l.b16 %v1162
    %v1389 = vunpack.c.h.b16 %v1162
    %v1390 = vunpack.c.l.b16 %v1163
    %v1391 = vunpack.c.h.b16 %v1163
    %v1392 = vunpack.c.l.b16 %v1164
    %v1393 = vunpack.c.h.b16 %v1164
    %v1394 = vunpack.c.l.b16 %v1165
    %v1395 = vunpack.c.h.b16 %v1165
    %v1396 = vunpack.c.l.b16 %v1166
    %v1397 = vunpack.c.h.b16 %v1166
    %v1398 = vunpack.c.l.b16 %v1167
    %v1399 = vunpack.c.h.b16 %v1167
    %v1400 = vunpack.c.l.b16 %v1168
    %v1401 = vunpack.c.h.b16 %v1168
    %v1402 = vunpack.c.l.b16 %v1169
    %v1403 = vunpack.c.h.b16 %v1169
    %v1404 = vunpack.c.l.b16 %v1170
    %v1405 = vunpack.c.h.b16 %v1170
    %v1406 = vunpack.c.l.b16 %v1171
    %v1407 = vunpack.c.h.b16 %v1171
    %v1408 = vunpack.c.l.b16 %v1172
    %v1409 = vunpack.c.h.b16 %v1172
    %v1410 = vunpack.c.l.b16 %v1173
    %v1411 = vunpack.c.h.b16 %v1173
    %v1412 = vunpack.c.l.b16 %v1174
    %v1413 = vunpack.c.h.b16 %v1174
    %v1414 = vunpack.c.l.b16 %v1175
    %v1415 = vunpack.c.h.b16 %v1175
    %v1416 = vunpack.c.l.b16 %v1176
    %v1417 = vunpack.c.h.b16 %v1176
    %v1418 = vunpack.c.l.b16 %v1177
    %v1419 = vunpack.c.h.b16 %v1177
    %v1420 = vunpack.c.l.b16 %v1178
    %v1421 = vunpack.c.h.b16 %v1178
    %v1422 = vunpack.c.l.b16 %v1179
    %v1423 = vunpack.c.h.b16 %v1179
    %v1424 = vunpack.c.l.b16 %v1180
    %v1425 = vunpack.c.h.b16 %v1180
    %v1426 = vunpack.c.l.b16 %v1181
    %v1427 = vunpack.c.h.b16 %v1181
    %v1428 = vunpack.c.l.b16 %v1182
    %v1429 = vunpack.c.h.b16 %v1182
    %v1430 = vunpack.c.l.b16 %v1183
    %v1431 = vunpack.c.h.b16 %v1183
    %v1432 = vunpack.c.l.b16 %v1184
    %v1433 = vunpack.c.h.b16 %v1184
    %v1434 = vunpack.c.l.b16 %v1185
    %v1435 = vunpack.c.h.b16 %v1185
    %v1436 = vunpack.c.l.b16 %v1186
    %v1437 = vunpack.c.h.b16 %v1186
    %v1438 = vunpack.c.l.b16 %v1187
    %v1439 = vunpack.c.h.b16 %v1187
    %v1440 = vunpack.c.l.b16 %v1188
    %v1441 = vunpack.c.h.b16 %v1188
    %v1442 = vunpack.c.l.b16 %v1189
    %v1443 = vunpack.c.h.b16 %v1189
    %v1444 = vunpack.c.l.b16 %v1190
    %v1445 = vunpack.c.h.b16 %v1190
    %v1446 = vunpack.c.l.b16 %v1191
    %v1447 = vunpack.c.h.b16 %v1191
    %v1448 = vunpack.c.l.b16 %v1192
    %v1449 = vunpack.c.h.b16 %v1192
    %v1450 = vunpack.c.l.b16 %v1193
    %v1451 = vunpack.c.h.b16 %v1193
    %v1452 = vunpack.c.l.b16 %v1194
    %v1453 = vunpack.c.h.b16 %v1194
    %v1454 = vunpack.c.l.b16 %v1195
    %v1455 = vunpack.c.h.b16 %v1195
    %v1456 = vunpack.c.l.b16 %v1196
    %v1457 = vunpack.c.h.b16 %v1196
    %v1458 = vunpack.c.l.b16 %v1197
    %v1459 = vunpack.c.h.b16 %v1197
    %v1460 = vunpack.c.l.b16 %v1198
    %v1461 = vunpack.c.h.b16 %v1198
    %v1462 = vunpack.c.l.b16 %v1199
    %v1463 = vunpack.c.h.b16 %v1199
    %v1464 = vunpack.c.l.b16 %v1200
    %v1465 = vunpack.c.h.b16 %v1200
    %v1466 = vunpack.c.l.b16 %v1201
    %v1467 = vunpack.c.h.b16 %v1201
    %v1468 = vunpack.c.l.b16 %v1202
    %v1469 = vunpack.c.h.b16 %v1202
    %v1470 = vunpack.c.l.b16 %v1203
    %v1471 = vunpack.c.h.b16 %v1203
    %v1472 = vunpack.c.l.b16 %v1204
    %v1473 = vunpack.c.h.b16 %v1204
    %v1474 = vunpack.c.l.b16 %v1205
    %v1475 = vunpack.c.h.b16 %v1205
    %v1476 = vunpack.c.l.b16 %v1206
    %v1477 = vunpack.c.h.b16 %v1206
    %v1478 = vunpack.c.l.b16 %v1207
    %v1479 = vunpack.c.h.b16 %v1207
    %v1480 = vunpack.c.l.b16 %v1208
    %v1481 = vunpack.c.h.b16 %v1208
    %v1482 = vunpack.c.l.b16 %v1209
    %v1483 = vunpack.c.h.b16 %v1209
    %v1484 = vunpack.c.l.b16 %v1210
    %v1485 = vunpack.c.h.b16 %v1210
    %v1486 = vunpack.c.l.b16 %v1211
    %v1487 = vunpack.c.h.b16 %v1211
    %v1488 = vunpack.c.l.b16 %v1212
    %v1489 = vunpack.c.h.b16 %v1212
    %v1490 = vunpack.c.l.b16 %v1213
    %v1491 = vunpack.c.h.b16 %v1213
    %v1492 = vunpack.c.l.b16 %v1214
    %v1493 = vunpack.c.h.b16 %v1214
    %v1494 = vunpack.c.l.b16 %v1215
    %v1495 = vunpack.c.h.b16 %v1215
    %v1496 = vunpack.c.l.b16 %v1216
    %v1497 = vunpack.c.h.b16 %v1216
    %v1498 = vunpack.c.l.b16 %v1217
    %v1499 = vunpack.c.h.b16 %v1217
    %v1500 = vunpack.c.l.b16 %v1218
    %v1501 = vunpack.c.h.b16 %v1218
    %v1502 = vunpack.c.l.b16 %v1219
    %v1503 = vunpack.c.h.b16 %v1219
    %v1504 = vunpack.c.l.b16 %v1220
    %v1505 = vunpack.c.h.b16 %v1220
    %v1506 = vunpack.c.l.b16 %v1221
    %v1507 = vunpack.c.h.b16 %v1221
    %v1508 = vunpack.c.l.b16 %v1222
    %v1509 = vunpack.c.h.b16 %v1222
    %v1510 = vunpack.c.l.b16 %v1223
    %v1511 = vunpack.c.h.b16 %v1223
    %v1512 = vpack.c.b16 %v1322, %v1320
    %v1513 = vpack.c.b16 %v1323, %v1321
    %v1514 = vpack.c.b16 %v1326, %v1324
    %v1515 = vpack.c.b16 %v1327, %v1325
    %v1516 = vpack.c.b16 %v1330, %v1328
    %v1517 = vpack.c.b16 %v1331, %v1329
    %v1518 = vpack.c.b16 %v1334, %v1332
    %v1519 = vpack.c.b16 %v1335, %v1333
    %v1520 = vpack.c.b16 %v1338, %v1336
    %v1521 = vpack.c.b16 %v1339, %v1337
    %v1522 = vpack.c.b16 %v1342, %v1340
    %v1523 = vpack.c.b16 %v1343, %v1341
    %v1524 = vpack.c.b16 %v1346, %v1344
    %v1525 = vpack.c.b16 %v1347, %v1345
    %v1526 = vpack.c.b16 %v1350, %v1348
    %v1527 = vpack.c.b16 %v1351, %v1349
    %v1528 = vpack.c.b16 %v1354, %v1352
    %v1529 = vpack.c.b16 %v1355, %v1353
    %v1530 = vpack.c.b16 %v1358, %v1356
    %v1531 = vpack.c.b16 %v1359, %v1357
    %v1532 = vpack.c.b16 %v1362, %v1360
    %v1533 = vpack.c.b16 %v1363, %v1361
    %v1534 = vpack.c.b16 %v1366, %v1364
    %v1535 = vpack.c.b16 %v1367, %v1365
    %v1536 = vpack.c.b16 %v1370, %v1368
    %v1537 = vpack.c.b16 %v1371, %v1369
    %v1538 = vpack.c.b16 %v1374, %v1372
    %v1539 = vpack.c.b16 %v1375, %v1373
    %v1540 = vpack.c.b16 %v1378, %v1376
    %v1541 = vpack.c.b16 %v1379, %v1377
    %v1542 = vpack.c.b16 %v1382, %v1380
    %v1543 = vpack.c.b16 %v1383, %v1381
    %v1544 = vpack.c.b16 %v1386, %v1384
    %v1545 = vpack.c.b16 %v1387, %v1385
    %v1546 = vpack.c.b16 %v1390, %v1388
    %v1547 = vpack.c.b16 %v1391, %v1389
    %v1548 = vpack.c.b16 %v1394, %v1392
    %v1549 = vpack.c.b16 %v1395, %v1393
    %v1550 = vpack.c.b16 %v1398, %v1396
    %v1551 = vpack.c.b16 %v1399, %v1397
    %v1552 = vpack.c.b16 %v1402, %v1400
    %v1553 = vpack.c.b16 %v1403, %v1401
    %v1554 = vpack.c.b16 %v1406, %v1404
    %v1555 = vpack.c.b16 %v1407, %v1405
    %v1556 = vpack.c.b16 %v1410, %v1408
    %v1557 = vpack.c.b16 %v1411, %v1409
    %v1558 = vpack.c.b16 %v1414, %v1412
    %v1559 = vpack.c.b16 %v1415, %v1413
    %v1560 = vpack.c.b16 %v1418, %v1416
    %v1561 = vpack.c.b16 %v1419, %v1417
    %v1562 = vpack.c.b16 %v1422, %v1420
    %v1563 = vpack.c.b16 %v1423, %v1421
    %v1564 = vpack.c.b16 %v1426, %v1424
    %v1565 = vpack.c.b16 %v1427, %v1425
    %v1566 = vpack.c.b16 %v1430, %v1428
    %v1567 = vpack.c.b16 %v1431, %v1429
    %v1568 = vpack.c.b16 %v1434, %v1432
    %v1569 = vpack.c.b16 %v1435, %v1433
    %v1570 = vpack.c.b16 %v1438, %v1436
    %v1571 = vpack.c.b16 %v1439, %v1437
    %v1572 = vpack.c.b16 %v1442, %v1440
    %v1573 = vpack.c.b16 %v1443, %v1441
    %v1574 = vpack.c.b16 %v1446, %v1444
    %v1575 = vpack.c.b16 %v1447, %v1445
    %v1576 = vpack.c.b16 %v1450, %v1448
    %v1577 = vpack.c.b16 %v1451, %v1449
    %v1578 = vpack.c.b16 %v1454, %v1452
    %v1579 = vpack.c.b16 %v1455, %v1453
    %v1580 = vpack.c.b16 %v1458, %v1456
    %v1581 = vpack.c.b16 %v1459, %v1457
    %v1582 = vpack.c.b16 %v1462, %v1460
    %v1583 = vpack.c.b16 %v1463, %v1461
    %v1584 = vpack.c.b16 %v1466, %v1464
    %v1585 = vpack.c.b16 %v1467, %v1465
    %v1586 = vpack.c.b16 %v1470, %v1468
    %v1587 = vpack.c.b16 %v1471, %v1469
    %v1588 = vpack.c.b16 %v1474, %v1472
    %v1589 = vpack.c.b16 %v1475, %v1473
    %v1590 = vpack.c.b16 %v1478, %v1476
    %v1591 = vpack.c.b16 %v1479, %v1477
    %v1592 = vpack.c.b16 %v1482, %v1480
    %v1593 = vpack.c.b16 %v1483, %v1481
    %v1594 = vpack.c.b16 %v1486, %v1484
    %v1595 = vpack.c.b16 %v1487, %v1485
    %v1596 = vpack.c.b16 %v1490, %v1488
    %v1597 = vpack.c.b16 %v1491, %v1489
    %v1598 = vpack.c.b16 %v1494, %v1492
    %v1599 = vpack.c.b16 %v1495, %v1493
    %v1600 = vpack.c.b16 %v1498, %v1496
    %v1601 = vpack.c.b16 %v1499, %v1497
    %v1602 = vpack.c.b16 %v1502, %v1500
    %v1603 = vpack.c.b16 %v1503, %v1501
    %v1604 = vpack.c.b16 %v1506, %v1504
    %v1605 = vpack.c.b16 %v1507, %v1505
    %v1606 = vpack.c.b16 %v1510, %v1508
    %v1607 = vpack.c.b16 %v1511, %v1509
    %1704 = vmatprep.subr.bf16.mxu0 %v1513
    %1705 = vmatpush1.bf16.msra.mxu0 %v1512
    %1706 = vmatprep.subr.bf16.mxu0 %v1515
    %1707 = vmatpush1.bf16.msra.mxu0 %v1514
    %1708 = vmatprep.subr.bf16.mxu0 %v1517
    %1709 = vmatpush1.bf16.msra.mxu0 %v1516
    %1710 = vmatprep.subr.bf16.mxu0 %v1519
    %1711 = vmatpush1.bf16.msra.mxu0 %v1518
    %1712 = vmatprep.subr.bf16.mxu0 %v1521
    %1713 = vmatpush1.bf16.msra.mxu0 %v1520
    %1714 = vmatprep.subr.bf16.mxu0 %v1523
    %1715 = vmatpush1.bf16.msra.mxu0 %v1522
    %1716 = vmatprep.subr.bf16.mxu0 %v1525
    %1717 = vmatpush1.bf16.msra.mxu0 %v1524
    %1718 = vmatprep.subr.bf16.mxu0 %v1527
    %1719 = vmatpush1.bf16.msra.mxu0 %v1526
    %1720 = vmatprep.subr.bf16.mxu0 %v1529
    %1721 = vmatpush1.bf16.msra.mxu0 %v1528
    %1722 = vmatprep.subr.bf16.mxu0 %v1531
    %1723 = vmatpush1.bf16.msra.mxu0 %v1530
    %1724 = vmatprep.subr.bf16.mxu0 %v1533
    %1725 = vmatpush1.bf16.msra.mxu0 %v1532
    %1726 = vmatprep.subr.bf16.mxu0 %v1535
    %1727 = vmatpush1.bf16.msra.mxu0 %v1534
    %1728 = vmatprep.subr.bf16.mxu0 %v1537
    %1729 = vmatpush1.bf16.msra.mxu0 %v1536
    %1730 = vmatprep.subr.bf16.mxu0 %v1539
    %1731 = vmatpush1.bf16.msra.mxu0 %v1538
    %1732 = vmatprep.subr.bf16.mxu0 %v1541
    %1733 = vmatpush1.bf16.msra.mxu0 %v1540
    %1734 = vmatprep.subr.bf16.mxu0 %v1543
    %1735 = vmatpush1.bf16.msra.mxu0 %v1542
    %1736 = vmatprep.mubr.bf16.mxu0 %v1123
    %1737 = vmatmul.mubr.bf16.gmra.mrb[0].mxu0 %v1122
    %v1738 = vpop.f32.mrb[0].mxu0
    %v1739 = vadd.f32 0.0, %v1738
    %v1740 = vpop.f32.mrb[0].mxu0
    %v1741 = vadd.f32 0.0, %v1740
    %v1742 = vpop.f32.mrb[0].mxu0
    %v1743 = vadd.f32 0.0, %v1742
    %v1744 = vpop.f32.mrb[0].mxu0
    %v1745 = vadd.f32 0.0, %v1744
    %1746 = vdwg.mxu0
    %1747 = vmatprep.subr.bf16.mxu0 %v1545
    %1748 = vmatpush1.bf16.msra.mxu0 %v1544
    %1749 = vmatprep.subr.bf16.mxu0 %v1547
    %1750 = vmatpush1.bf16.msra.mxu0 %v1546
    %1751 = vmatprep.subr.bf16.mxu0 %v1549
    %1752 = vmatpush1.bf16.msra.mxu0 %v1548
    %1753 = vmatprep.subr.bf16.mxu0 %v1551
    %1754 = vmatpush1.bf16.msra.mxu0 %v1550
    %1755 = vmatprep.subr.bf16.mxu0 %v1553
    %1756 = vmatpush1.bf16.msra.mxu0 %v1552
    %1757 = vmatprep.subr.bf16.mxu0 %v1555
    %1758 = vmatpush1.bf16.msra.mxu0 %v1554
    %1759 = vmatprep.subr.bf16.mxu0 %v1557
    %1760 = vmatpush1.bf16.msra.mxu0 %v1556
    %1761 = vmatprep.subr.bf16.mxu0 %v1559
    %1762 = vmatpush1.bf16.msra.mxu0 %v1558
    %1763 = vmatprep.subr.bf16.mxu0 %v1561
    %1764 = vmatpush1.bf16.msra.mxu0 %v1560
    %1765 = vmatprep.subr.bf16.mxu0 %v1563
    %1766 = vmatpush1.bf16.msra.mxu0 %v1562
    %1767 = vmatprep.subr.bf16.mxu0 %v1565
    %1768 = vmatpush1.bf16.msra.mxu0 %v1564
    %1769 = vmatprep.subr.bf16.mxu0 %v1567
    %1770 = vmatpush1.bf16.msra.mxu0 %v1566
    %1771 = vmatprep.subr.bf16.mxu0 %v1569
    %1772 = vmatpush1.bf16.msra.mxu0 %v1568
    %1773 = vmatprep.subr.bf16.mxu0 %v1571
    %1774 = vmatpush1.bf16.msra.mxu0 %v1570
    %1775 = vmatprep.subr.bf16.mxu0 %v1573
    %1776 = vmatpush1.bf16.msra.mxu0 %v1572
    %1777 = vmatprep.subr.bf16.mxu0 %v1575
    %1778 = vmatpush1.bf16.msra.mxu0 %v1574
    %1779 = vmatprep.mubr.bf16.mxu0 %v1125
    %1780 = vmatmul.mubr.bf16.gmra.mrb[0].mxu0 %v1124
    %v1781 = vpop.f32.mrb[0].mxu0
    %v1782 = vadd.f32 %v1739, %v1781
    %v1783 = vpop.f32.mrb[0].mxu0
    %v1784 = vadd.f32 %v1741, %v1783
    %v1785 = vpop.f32.mrb[0].mxu0
    %v1786 = vadd.f32 %v1743, %v1785
    %v1787 = vpop.f32.mrb[0].mxu0
    %v1788 = vadd.f32 %v1745, %v1787
    %1789 = vdwg.mxu0
    %1790 = vmatprep.subr.bf16.mxu0 %v1577
    %1791 = vmatpush1.bf16.msra.mxu0 %v1576
    %1792 = vmatprep.subr.bf16.mxu0 %v1579
    %1793 = vmatpush1.bf16.msra.mxu0 %v1578
    %1794 = vmatprep.subr.bf16.mxu0 %v1581
    %1795 = vmatpush1.bf16.msra.mxu0 %v1580
    %1796 = vmatprep.subr.bf16.mxu0 %v1583
    %1797 = vmatpush1.bf16.msra.mxu0 %v1582
    %1798 = vmatprep.subr.bf16.mxu0 %v1585
    %1799 = vmatpush1.bf16.msra.mxu0 %v1584
    %1800 = vmatprep.subr.bf16.mxu0 %v1587
    %1801 = vmatpush1.bf16.msra.mxu0 %v1586
    %1802 = vmatprep.subr.bf16.mxu0 %v1589
    %1803 = vmatpush1.bf16.msra.mxu0 %v1588
    %1804 = vmatprep.subr.bf16.mxu0 %v1591
    %1805 = vmatpush1.bf16.msra.mxu0 %v1590
    %1806 = vmatprep.subr.bf16.mxu0 %v1593
    %1807 = vmatpush1.bf16.msra.mxu0 %v1592
    %1808 = vmatprep.subr.bf16.mxu0 %v1595
    %1809 = vmatpush1.bf16.msra.mxu0 %v1594
    %1810 = vmatprep.subr.bf16.mxu0 %v1597
    %1811 = vmatpush1.bf16.msra.mxu0 %v1596
    %1812 = vmatprep.subr.bf16.mxu0 %v1599
    %1813 = vmatpush1.bf16.msra.mxu0 %v1598
    %1814 = vmatprep.subr.bf16.mxu0 %v1601
    %1815 = vmatpush1.bf16.msra.mxu0 %v1600
    %1816 = vmatprep.subr.bf16.mxu0 %v1603
    %1817 = vmatpush1.bf16.msra.mxu0 %v1602
    %1818 = vmatprep.subr.bf16.mxu0 %v1605
    %1819 = vmatpush1.bf16.msra.mxu0 %v1604
    %1820 = vmatprep.subr.bf16.mxu0 %v1607
    %1821 = vmatpush1.bf16.msra.mxu0 %v1606
    %1822 = vmatprep.mubr.bf16.mxu0 %v1127
    %1823 = vmatmul.mubr.bf16.gmra.mrb[0].mxu0 %v1126
    %v1824 = vpop.f32.mrb[0].mxu0
    %v1825 = vadd.f32 %v1782, %v1824
    %v1826 = vpop.f32.mrb[0].mxu0
    %v1827 = vadd.f32 %v1784, %v1826
    %v1828 = vpop.f32.mrb[0].mxu0
    %v1829 = vadd.f32 %v1786, %v1828
    %v1830 = vpop.f32.mrb[0].mxu0
    %v1831 = vadd.f32 %v1788, %v1830
    %1832 = vdwg.mxu0
    %v1833 = vadd.f32 %v1825, %v1829
    %v1834 = vrot.slane %v1833, 4
    %v1835 = vadd.f32 %v1833, %v1834
    %v1836 = vrot.slane %v1835, 2
    %v1837 = vadd.f32 %v1835, %v1836
    %v1838 = vrot.slane %v1837, 1
    %v1839 = vadd.f32 %v1837, %v1838
    %v1840 = vadd.f32 %v1827, %v1831
    %v1841 = vrot.slane %v1840, 4
    %v1842 = vadd.f32 %v1840, %v1841
    %v1843 = vrot.slane %v1842, 2
    %v1844 = vadd.f32 %v1842, %v1843
    %v1845 = vrot.slane %v1844, 1
    %v1846 = vadd.f32 %v1844, %v1845
    %v1847 = vmul.f32 %v1825, %v1825
    %v1848 = vmul.f32 %v1827, %v1827
    %v1849 = vmul.f32 %v1829, %v1829
    %v1850 = vmul.f32 %v1831, %v1831
    %v1851 = vadd.f32 %v1847, %v1849
    %v1852 = vrot.slane %v1851, 4
    %v1853 = vadd.f32 %v1851, %v1852
    %v1854 = vrot.slane %v1853, 2
    %v1855 = vadd.f32 %v1853, %v1854
    %v1856 = vrot.slane %v1855, 1
    %v1857 = vadd.f32 %v1855, %v1856
    %v1858 = vadd.f32 %v1848, %v1850
    %v1859 = vrot.slane %v1858, 4
    %v1860 = vadd.f32 %v1858, %v1859
    %v1861 = vrot.slane %v1860, 2
    %v1862 = vadd.f32 %v1860, %v1861
    %v1863 = vrot.slane %v1862, 1
    %v1864 = vadd.f32 %v1862, %v1863
    %v1865 = vsel %vm816, %v1839, %v1857
    %v1866 = vsel %vm816, %v1846, %v1864
    %v1867 = vld [vmem:[%s8] sm:$0xff]
    %v1868 = vld [vmem:[%s8 + $0x8] sm:$0xff]
    %v1869 = vld [vmem:[%s8 + $0x10] sm:$0xff]
    %v1870 = vld [vmem:[%s8 + $0x18] sm:$0xff]
    %v1871 = vld [vmem:[%s8 + $0x20] sm:$0xff]
    %v1872 = vld [vmem:[%s8 + $0x28] sm:$0xff]
    %v1873 = vld [vmem:[%s8 + $0x30] sm:$0xff]
    %v1874 = vld [vmem:[%s8 + $0x38] sm:$0xff]
    %v1875 = vld [vmem:[%s8 + $0x40] sm:$0xff]
    %v1876 = vld [vmem:[%s8 + $0x48] sm:$0xff]
    %v1877 = vld [vmem:[%s8 + $0x50] sm:$0xff]
    %v1878 = vld [vmem:[%s8 + $0x58] sm:$0xff]
    %v1879 = vld [vmem:[%s8 + $0x60] sm:$0xff]
    %v1880 = vld [vmem:[%s8 + $0x68] sm:$0xff]
    %v1881 = vld [vmem:[%s8 + $0x70] sm:$0xff]
    %v1882 = vld [vmem:[%s8 + $0x78] sm:$0xff]
    %v1883 = vld [vmem:[%s8 + $0x80] sm:$0xff]
    %v1884 = vld [vmem:[%s8 + $0x88] sm:$0xff]
    %v1885 = vld [vmem:[%s8 + $0x90] sm:$0xff]
    %v1886 = vld [vmem:[%s8 + $0x98] sm:$0xff]
    %v1887 = vld [vmem:[%s8 + $0xa0] sm:$0xff]
    %v1888 = vld [vmem:[%s8 + $0xa8] sm:$0xff]
    %v1889 = vld [vmem:[%s8 + $0xb0] sm:$0xff]
    %v1890 = vld [vmem:[%s8 + $0xb8] sm:$0xff]
    %v1891 = vld [vmem:[%s8 + $0xc0] sm:$0xff]
    %v1892 = vld [vmem:[%s8 + $0xc8] sm:$0xff]
    %v1893 = vld [vmem:[%s8 + $0xd0] sm:$0xff]
    %v1894 = vld [vmem:[%s8 + $0xd8] sm:$0xff]
    %v1895 = vld [vmem:[%s8 + $0xe0] sm:$0xff]
    %v1896 = vld [vmem:[%s8 + $0xe8] sm:$0xff]
    %v1897 = vld [vmem:[%s8 + $0xf0] sm:$0xff]
    %v1898 = vld [vmem:[%s8 + $0xf8] sm:$0xff]
    %1899 = vmatprep.subr.mxu0 0.0
    %1900 = vmatpush1.msra.mxu0 %v1867
    %1901 = vmatprep.subr.mxu0 0.0
    %1902 = vmatpush1.msra.mxu0 %v1868
    %1903 = vmatprep.subr.mxu0 0.0
    %1904 = vmatpush1.msra.mxu0 %v1869
    %1905 = vmatprep.subr.mxu0 0.0
    %1906 = vmatpush1.msra.mxu0 %v1870
    %1907 = vmatprep.subr.mxu0 0.0
    %1908 = vmatpush1.msra.mxu0 %v1871
    %1909 = vmatprep.subr.mxu0 0.0
    %1910 = vmatpush1.msra.mxu0 %v1872
    %1911 = vmatprep.subr.mxu0 0.0
    %1912 = vmatpush1.msra.mxu0 %v1873
    %1913 = vmatprep.subr.mxu0 0.0
    %1914 = vmatpush1.msra.mxu0 %v1874
    %1915 = vmatprep.subr.mxu0 0.0
    %1916 = vmatpush1.msra.mxu0 %v1875
    %1917 = vmatprep.subr.mxu0 0.0
    %1918 = vmatpush1.msra.mxu0 %v1876
    %1919 = vmatprep.subr.mxu0 0.0
    %1920 = vmatpush1.msra.mxu0 %v1877
    %1921 = vmatprep.subr.mxu0 0.0
    %1922 = vmatpush1.msra.mxu0 %v1878
    %1923 = vmatprep.subr.mxu0 0.0
    %1924 = vmatpush1.msra.mxu0 %v1879
    %1925 = vmatprep.subr.mxu0 0.0
    %1926 = vmatpush1.msra.mxu0 %v1880
    %1927 = vmatprep.subr.mxu0 0.0
    %1928 = vmatpush1.msra.mxu0 %v1881
    %1929 = vmatprep.subr.mxu0 0.0
    %1930 = vmatpush1.msra.mxu0 %v1882
    %1931 = vmatprep.subr.mxu0 0.0
    %1932 = vmatpush1.msra.mxu0 %v1883
    %1933 = vmatprep.subr.mxu0 0.0
    %1934 = vmatpush1.msra.mxu0 %v1884
    %1935 = vmatprep.subr.mxu0 0.0
    %1936 = vmatpush1.msra.mxu0 %v1885
    %1937 = vmatprep.subr.mxu0 0.0
    %1938 = vmatpush1.msra.mxu0 %v1886
    %1939 = vmatprep.subr.mxu0 0.0
    %1940 = vmatpush1.msra.mxu0 %v1887
    %1941 = vmatprep.subr.mxu0 0.0
    %1942 = vmatpush1.msra.mxu0 %v1888
    %1943 = vmatprep.subr.mxu0 0.0
    %1944 = vmatpush1.msra.mxu0 %v1889
    %1945 = vmatprep.subr.mxu0 0.0
    %1946 = vmatpush1.msra.mxu0 %v1890
    %1947 = vmatprep.subr.mxu0 0.0
    %1948 = vmatpush1.msra.mxu0 %v1891
    %1949 = vmatprep.subr.mxu0 0.0
    %1950 = vmatpush1.msra.mxu0 %v1892
    %1951 = vmatprep.subr.mxu0 0.0
    %1952 = vmatpush1.msra.mxu0 %v1893
    %1953 = vmatprep.subr.mxu0 0.0
    %1954 = vmatpush1.msra.mxu0 %v1894
    %1955 = vmatprep.subr.mxu0 0.0
    %1956 = vmatpush1.msra.mxu0 %v1895
    %1957 = vmatprep.subr.mxu0 0.0
    %1958 = vmatpush1.msra.mxu0 %v1896
    %1959 = vmatprep.subr.mxu0 0.0
    %1960 = vmatpush1.msra.mxu0 %v1897
    %1961 = vmatprep.subr.mxu0 0.0
    %1962 = vmatpush1.msra.mxu0 %v1898
    %1963 = vmatprep.mubr.f32.mxu0 %v1866
    %1964 = vmatmul.mubr.f32.gmra.mrb[0].mxu0 %v1865
    %v1965 = vpop.f32.mrb[0].mxu0
    %v1966 = vadd.f32 0.0, %v1965
    %v1967 = vpop.f32.mrb[0].mxu0
    %1968 = vdwg.mxu0
    %v1969 = vmul.f32 %v1966, 0.0078125
    %v1970 = vmul.f32 %v1969, %v1969
    %v1972 = vrot.slane %v1970, 7
    %v1974 = vsub.f32 %v1969, %v1972
    %v1975 = vmax.f32 %v1974, 0.0
    %v1976 = vld [vmem:[#allocation17] sm:$0x3]
    %v1977 = vadd.f32 %v1975, 1e-05
    %v1978 = vrsqrt.pop %v1977
    %v1980 = vrot.slane %v1978, 1
    %v1982 = vmul.f32 %v1976, %v1980
    %v1983 = vmul.f32 %v1969, %v1982
    %v1985 = vrot.slane %v1983, 7
    %v1987 = vsub.f32 %v1976, %v1985
    %v1988 = vsel %vm816, %v1982, %v1987
    %v1989 = vld [vmem:[#allocation16] sm:$0xff]
    %v1990 = vld [vmem:[#allocation16 + $0x8] sm:$0xff]
    %v1991 = vld [vmem:[#allocation16 + $0x10] sm:$0xff]
    %v1992 = vld [vmem:[#allocation16 + $0x18] sm:$0xff]
    %v1993 = vld [vmem:[#allocation16 + $0x20] sm:$0xff]
    %v1994 = vld [vmem:[#allocation16 + $0x28] sm:$0xff]
    %v1995 = vld [vmem:[#allocation16 + $0x30] sm:$0xff]
    %v1996 = vld [vmem:[#allocation16 + $0x38] sm:$0xff]
    %v1998 = vsel %vm179, %v1988, 0
    %2000 = vmatprep.subr.mxu0 %v1990
    %2001 = vmatpush1.msra.mxu0 %v1989
    %2002 = vmatprep.subr.mxu0 %v1992
    %2003 = vmatpush1.msra.mxu0 %v1991
    %2004 = vmatprep.subr.mxu0 %v1994
    %2005 = vmatpush1.msra.mxu0 %v1993
    %2006 = vmatprep.subr.mxu0 %v1996
    %2007 = vmatpush1.msra.mxu0 %v1995
    %2008 = vmatprep.subr.mxu0 0.0
    %2009 = vmatpush1.msra.mxu0 0.0
    %2010 = vmatprep.subr.mxu0 0.0
    %2011 = vmatpush1.msra.mxu0 0.0
    %2012 = vmatprep.subr.mxu0 0.0
    %2013 = vmatpush1.msra.mxu0 0.0
    %2014 = vmatprep.subr.mxu0 0.0
    %2015 = vmatpush1.msra.mxu0 0.0
    %2016 = vmatprep.subr.mxu0 0.0
    %2017 = vmatpush1.msra.mxu0 0.0
    %2018 = vmatprep.subr.mxu0 0.0
    %2019 = vmatpush1.msra.mxu0 0.0
    %2020 = vmatprep.subr.mxu0 0.0
    %2021 = vmatpush1.msra.mxu0 0.0
    %2022 = vmatprep.subr.mxu0 0.0
    %2023 = vmatpush1.msra.mxu0 0.0
    %2024 = vmatprep.subr.mxu0 0.0
    %2025 = vmatpush1.msra.mxu0 0.0
    %2026 = vmatprep.subr.mxu0 0.0
    %2027 = vmatpush1.msra.mxu0 0.0
    %2028 = vmatprep.subr.mxu0 0.0
    %2029 = vmatpush1.msra.mxu0 0.0
    %2030 = vmatprep.subr.mxu0 0.0
    %2031 = vmatpush1.msra.mxu0 0.0
    %2032 = vmatprep.subr.mxu0 0.0
    %2033 = vmatpush1.msra.mxu0 0.0
    %2034 = vmatprep.subr.mxu0 0.0
    %2035 = vmatpush1.msra.mxu0 0.0
    %2036 = vmatprep.subr.mxu0 0.0
    %2037 = vmatpush1.msra.mxu0 0.0
    %2038 = vmatprep.subr.mxu0 0.0
    %2039 = vmatpush1.msra.mxu0 0.0
    %2040 = vmatprep.subr.mxu0 0.0
    %2041 = vmatpush1.msra.mxu0 0.0
    %2042 = vmatprep.subr.mxu0 0.0
    %2043 = vmatpush1.msra.mxu0 0.0
    %2044 = vmatprep.subr.mxu0 0.0
    %2045 = vmatpush1.msra.mxu0 0.0
    %2046 = vmatprep.subr.mxu0 0.0
    %2047 = vmatpush1.msra.mxu0 0.0
    %2048 = vmatprep.subr.mxu0 0.0
    %2049 = vmatpush1.msra.mxu0 0.0
    %2050 = vmatprep.subr.mxu0 0.0
    %2051 = vmatpush1.msra.mxu0 0.0
    %2052 = vmatprep.subr.mxu0 0.0
    %2053 = vmatpush1.msra.mxu0 0.0
    %2054 = vmatprep.subr.mxu0 0.0
    %2055 = vmatpush1.msra.mxu0 0.0
    %2056 = vmatprep.subr.mxu0 0.0
    %2057 = vmatpush1.msra.mxu0 0.0
    %2058 = vmatprep.subr.mxu0 0.0
    %2059 = vmatpush1.msra.mxu0 0.0
    %2060 = vmatprep.subr.mxu0 0.0
    %2061 = vmatpush1.msra.mxu0 0.0
    %2062 = vmatprep.subr.mxu0 0.0
    %2063 = vmatpush1.msra.mxu0 0.0
    %2064 = vmatprep.mubr.f32.mxu0 0.0
    %2065 = vmatmul.mubr.f32.gmra.mrb[0].mxu0 %v1998
    %v2066 = vpop.f32.mrb[0].mxu0
    %v2067 = vadd.f32 0.0, %v2066
    %v2068 = vpop.f32.mrb[0].mxu0
    %v2069 = vadd.f32 0.0, %v2068
    %2070 = vdwg.mxu0
    %v2071 = vlaneseq
    %v2072 = vshrl.u32 %v2071, 7
    %v2073 = vsub.s32 0, %v2072
    %v2074 = vrot.slane %v2067, %v2073
    %v2075 = vlaneseq
    %v2076 = vshrl.u32 %v2075, 7
    %v2077 = vsub.s32 0, %v2076
    %v2078 = vrot.slane %v2069, %v2077
    %v2079 = vmul.f32 %v1825, %v2074
    %v2080 = vmul.f32 %v1827, %v2078
    %v2081 = vmul.f32 %v1829, %v2074
    %v2082 = vmul.f32 %v1831, %v2078
    %v2083 = vlaneseq
    %v2084 = vshrl.u32 %v2083, 7
    %v2085 = vsub.s32 1, %v2084
    %v2086 = vrot.slane %v2067, %v2085
    %v2087 = vlaneseq
    %v2088 = vshrl.u32 %v2087, 7
    %v2089 = vsub.s32 1, %v2088
    %v2090 = vrot.slane %v2069, %v2089
    %v2091 = vadd.f32 %v2079, %v2086
    %v2092 = vadd.f32 %v2080, %v2090
    %v2093 = vadd.f32 %v2081, %v2086
    %v2094 = vadd.f32 %v2082, %v2090
    %v2095 = vmax.f32 %v2091, 0.0
    %v2096 = vmax.f32 %v2092, 0.0
    %v2097 = vmax.f32 %v2093, 0.0
    %v2098 = vmax.f32 %v2094, 0.0
    %v2103 = vcombine.low %v2095, %v2096
    %v2104 = vcombine.high %v2095, %v2096
    %v2106 = vunpack.c.l.s4 1966171168
    %v2107 = vunpack.c.0.s8 %v2106
    %v2108 = vlaneseq
    %v2109 = vshrl.u32 %v2108, 7
    %v2110 = vsub.s32 %v2107, %v2109
    %v2111 = vrot.slane %v2103, %v2110
    %v2113 = vunpack.c.l.s4 1966171168
    %v2114 = vunpack.c.0.s8 %v2113
    %v2115 = vlaneseq
    %v2116 = vshrl.u32 %v2115, 7
    %v2117 = vsub.s32 %v2114, %v2116
    %v2118 = vrot.slane %v2104, %v2117
    %v2119 = vcombine.high %v2111, %v2111
    %v2120 = vcombine.high %v2118, %v2118
    %v2122 = vunpack.c.l.s4 1966171168
    %v2123 = vunpack.c.0.s8 %v2122
    %v2124 = vlaneseq
    %v2125 = vshrl.u32 %v2124, 7
    %v2126 = vsub.s32 %v2123, %v2125
    %v2127 = vrot.slane %v2111, %v2126
    %v2129 = vunpack.c.l.s4 1966171168
    %v2130 = vunpack.c.0.s8 %v2129
    %v2131 = vlaneseq
    %v2132 = vshrl.u32 %v2131, 7
    %v2133 = vsub.s32 %v2130, %v2132
    %v2134 = vrot.slane %v2118, %v2133
    %v2136 = vunpack.c.l.s4 1966171168
    %v2137 = vunpack.c.0.s8 %v2136
    %v2138 = vlaneseq
    %v2139 = vshrl.u32 %v2138, 7
    %v2140 = vsub.s32 %v2137, %v2139
    %v2141 = vrot.slane %v2119, %v2140
    %v2143 = vunpack.c.l.s4 1966171168
    %v2144 = vunpack.c.0.s8 %v2143
    %v2145 = vlaneseq
    %v2146 = vshrl.u32 %v2145, 7
    %v2147 = vsub.s32 %v2144, %v2146
    %v2148 = vrot.slane %v2120, %v2147
    %v2149 = vcombine.high %v2127, %v2127
    %v2150 = vcombine.high %v2134, %v2134
    %v2151 = vcombine.high %v2141, %v2141
    %v2152 = vcombine.high %v2148, %v2148
    %v2153 = vcombine.low %v2097, %v2098
    %v2154 = vcombine.high %v2097, %v2098
    %v2156 = vunpack.c.l.s4 1966171168
    %v2157 = vunpack.c.0.s8 %v2156
    %v2158 = vlaneseq
    %v2159 = vshrl.u32 %v2158, 7
    %v2160 = vsub.s32 %v2157, %v2159
    %v2161 = vrot.slane %v2153, %v2160
    %v2163 = vunpack.c.l.s4 1966171168
    %v2164 = vunpack.c.0.s8 %v2163
    %v2165 = vlaneseq
    %v2166 = vshrl.u32 %v2165, 7
    %v2167 = vsub.s32 %v2164, %v2166
    %v2168 = vrot.slane %v2154, %v2167
    %v2169 = vcombine.high %v2161, %v2161
    %v2170 = vcombine.high %v2168, %v2168
    %v2172 = vunpack.c.l.s4 1966171168
    %v2173 = vunpack.c.0.s8 %v2172
    %v2174 = vlaneseq
    %v2175 = vshrl.u32 %v2174, 7
    %v2176 = vsub.s32 %v2173, %v2175
    %v2177 = vrot.slane %v2161, %v2176
    %v2179 = vunpack.c.l.s4 1966171168
    %v2180 = vunpack.c.0.s8 %v2179
    %v2181 = vlaneseq
    %v2182 = vshrl.u32 %v2181, 7
    %v2183 = vsub.s32 %v2180, %v2182
    %v2184 = vrot.slane %v2168, %v2183
    %v2186 = vunpack.c.l.s4 1966171168
    %v2187 = vunpack.c.0.s8 %v2186
    %v2188 = vlaneseq
    %v2189 = vshrl.u32 %v2188, 7
    %v2190 = vsub.s32 %v2187, %v2189
    %v2191 = vrot.slane %v2169, %v2190
    %v2193 = vunpack.c.l.s4 1966171168
    %v2194 = vunpack.c.0.s8 %v2193
    %v2195 = vlaneseq
    %v2196 = vshrl.u32 %v2195, 7
    %v2197 = vsub.s32 %v2194, %v2196
    %v2198 = vrot.slane %v2170, %v2197
    %v2199 = vcombine.high %v2177, %v2177
    %v2200 = vcombine.high %v2184, %v2184
    %v2201 = vcombine.high %v2191, %v2191
    %v2202 = vcombine.high %v2198, %v2198
    %v2203 = vlaneseq
    %v2204 = vshrl.u32 %v2203, 7
    %v2205 = vsub.s32 0, %v2204
    %v2206 = vrot.slane %v2127, %v2205
    %v2207 = vlaneseq
    %v2208 = vshrl.u32 %v2207, 7
    %v2209 = vsub.s32 1, %v2208
    %v2210 = vrot.slane %v2127, %v2209
    %v2211 = vlaneseq
    %v2212 = vshrl.u32 %v2211, 7
    %v2213 = vsub.s32 0, %v2212
    %v2214 = vrot.slane %v2141, %v2213
    %v2215 = vlaneseq
    %v2216 = vshrl.u32 %v2215, 7
    %v2217 = vsub.s32 1, %v2216
    %v2218 = vrot.slane %v2141, %v2217
    %v2219 = vlaneseq
    %v2220 = vshrl.u32 %v2219, 7
    %v2221 = vsub.s32 0, %v2220
    %v2222 = vrot.slane %v2149, %v2221
    %v2223 = vlaneseq
    %v2224 = vshrl.u32 %v2223, 7
    %v2225 = vsub.s32 1, %v2224
    %v2226 = vrot.slane %v2149, %v2225
    %v2227 = vlaneseq
    %v2228 = vshrl.u32 %v2227, 7
    %v2229 = vsub.s32 0, %v2228
    %v2230 = vrot.slane %v2151, %v2229
    %v2231 = vlaneseq
    %v2232 = vshrl.u32 %v2231, 7
    %v2233 = vsub.s32 1, %v2232
    %v2234 = vrot.slane %v2151, %v2233
    %v2235 = vlaneseq
    %v2236 = vshrl.u32 %v2235, 7
    %v2237 = vsub.s32 0, %v2236
    %v2238 = vrot.slane %v2134, %v2237
    %v2239 = vlaneseq
    %v2240 = vshrl.u32 %v2239, 7
    %v2241 = vsub.s32 1, %v2240
    %v2242 = vrot.slane %v2134, %v2241
    %v2243 = vlaneseq
    %v2244 = vshrl.u32 %v2243, 7
    %v2245 = vsub.s32 0, %v2244
    %v2246 = vrot.slane %v2148, %v2245
    %v2247 = vlaneseq
    %v2248 = vshrl.u32 %v2247, 7
    %v2249 = vsub.s32 1, %v2248
    %v2250 = vrot.slane %v2148, %v2249
    %v2251 = vlaneseq
    %v2252 = vshrl.u32 %v2251, 7
    %v2253 = vsub.s32 0, %v2252
    %v2254 = vrot.slane %v2150, %v2253
    %v2255 = vlaneseq
    %v2256 = vshrl.u32 %v2255, 7
    %v2257 = vsub.s32 1, %v2256
    %v2258 = vrot.slane %v2150, %v2257
    %v2259 = vlaneseq
    %v2260 = vshrl.u32 %v2259, 7
    %v2261 = vsub.s32 0, %v2260
    %v2262 = vrot.slane %v2152, %v2261
    %v2263 = vlaneseq
    %v2264 = vshrl.u32 %v2263, 7
    %v2265 = vsub.s32 1, %v2264
    %v2266 = vrot.slane %v2152, %v2265
    %v2267 = vlaneseq
    %v2268 = vshrl.u32 %v2267, 7
    %v2269 = vsub.s32 0, %v2268
    %v2270 = vrot.slane %v2177, %v2269
    %v2271 = vlaneseq
    %v2272 = vshrl.u32 %v2271, 7
    %v2273 = vsub.s32 1, %v2272
    %v2274 = vrot.slane %v2177, %v2273
    %v2275 = vlaneseq
    %v2276 = vshrl.u32 %v2275, 7
    %v2277 = vsub.s32 0, %v2276
    %v2278 = vrot.slane %v2191, %v2277
    %v2279 = vlaneseq
    %v2280 = vshrl.u32 %v2279, 7
    %v2281 = vsub.s32 1, %v2280
    %v2282 = vrot.slane %v2191, %v2281
    %v2283 = vlaneseq
    %v2284 = vshrl.u32 %v2283, 7
    %v2285 = vsub.s32 0, %v2284
    %v2286 = vrot.slane %v2199, %v2285
    %v2287 = vlaneseq
    %v2288 = vshrl.u32 %v2287, 7
    %v2289 = vsub.s32 1, %v2288
    %v2290 = vrot.slane %v2199, %v2289
    %v2291 = vlaneseq
    %v2292 = vshrl.u32 %v2291, 7
    %v2293 = vsub.s32 0, %v2292
    %v2294 = vrot.slane %v2201, %v2293
    %v2295 = vlaneseq
    %v2296 = vshrl.u32 %v2295, 7
    %v2297 = vsub.s32 1, %v2296
    %v2298 = vrot.slane %v2201, %v2297
    %v2299 = vlaneseq
    %v2300 = vshrl.u32 %v2299, 7
    %v2301 = vsub.s32 0, %v2300
    %v2302 = vrot.slane %v2184, %v2301
    %v2303 = vlaneseq
    %v2304 = vshrl.u32 %v2303, 7
    %v2305 = vsub.s32 1, %v2304
    %v2306 = vrot.slane %v2184, %v2305
    %v2307 = vlaneseq
    %v2308 = vshrl.u32 %v2307, 7
    %v2309 = vsub.s32 0, %v2308
    %v2310 = vrot.slane %v2198, %v2309
    %v2311 = vlaneseq
    %v2312 = vshrl.u32 %v2311, 7
    %v2313 = vsub.s32 1, %v2312
    %v2314 = vrot.slane %v2198, %v2313
    %v2315 = vlaneseq
    %v2316 = vshrl.u32 %v2315, 7
    %v2317 = vsub.s32 0, %v2316
    %v2318 = vrot.slane %v2200, %v2317
    %v2319 = vlaneseq
    %v2320 = vshrl.u32 %v2319, 7
    %v2321 = vsub.s32 1, %v2320
    %v2322 = vrot.slane %v2200, %v2321
    %v2323 = vlaneseq
    %v2324 = vshrl.u32 %v2323, 7
    %v2325 = vsub.s32 0, %v2324
    %v2326 = vrot.slane %v2202, %v2325
    %v2327 = vlaneseq
    %v2328 = vshrl.u32 %v2327, 7
    %v2329 = vsub.s32 1, %v2328
    %v2330 = vrot.slane %v2202, %v2329
    %v2395 = vcombine.low %v2206, %v2210
    %v2397 = vunpack.c.l.s4 1983009808
    %v2398 = vunpack.c.0.s8 %v2397
    %v2399 = vlaneseq
    %v2400 = vshrl.u32 %v2399, 7
    %v2401 = vsub.s32 %v2398, %v2400
    %v2402 = vrot.slane %v2395, %v2401
    %v2403 = vcombine.low %v2214, %v2218
    %v2405 = vunpack.c.l.s4 1983009808
    %v2406 = vunpack.c.0.s8 %v2405
    %v2407 = vlaneseq
    %v2408 = vshrl.u32 %v2407, 7
    %v2409 = vsub.s32 %v2406, %v2408
    %v2410 = vrot.slane %v2403, %v2409
    %v2411 = vcombine.low %v2222, %v2226
    %v2413 = vunpack.c.l.s4 1983009808
    %v2414 = vunpack.c.0.s8 %v2413
    %v2415 = vlaneseq
    %v2416 = vshrl.u32 %v2415, 7
    %v2417 = vsub.s32 %v2414, %v2416
    %v2418 = vrot.slane %v2411, %v2417
    %v2419 = vcombine.low %v2230, %v2234
    %v2421 = vunpack.c.l.s4 1983009808
    %v2422 = vunpack.c.0.s8 %v2421
    %v2423 = vlaneseq
    %v2424 = vshrl.u32 %v2423, 7
    %v2425 = vsub.s32 %v2422, %v2424
    %v2426 = vrot.slane %v2419, %v2425
    %v2427 = vcombine.low %v2238, %v2242
    %v2429 = vunpack.c.l.s4 1983009808
    %v2430 = vunpack.c.0.s8 %v2429
    %v2431 = vlaneseq
    %v2432 = vshrl.u32 %v2431, 7
    %v2433 = vsub.s32 %v2430, %v2432
    %v2434 = vrot.slane %v2427, %v2433
    %v2435 = vcombine.low %v2246, %v2250
    %v2437 = vunpack.c.l.s4 1983009808
    %v2438 = vunpack.c.0.s8 %v2437
    %v2439 = vlaneseq
    %v2440 = vshrl.u32 %v2439, 7
    %v2441 = vsub.s32 %v2438, %v2440
    %v2442 = vrot.slane %v2435, %v2441
    %v2443 = vcombine.low %v2254, %v2258
    %v2445 = vunpack.c.l.s4 1983009808
    %v2446 = vunpack.c.0.s8 %v2445
    %v2447 = vlaneseq
    %v2448 = vshrl.u32 %v2447, 7
    %v2449 = vsub.s32 %v2446, %v2448
    %v2450 = vrot.slane %v2443, %v2449
    %v2451 = vcombine.low %v2262, %v2266
    %v2453 = vunpack.c.l.s4 1983009808
    %v2454 = vunpack.c.0.s8 %v2453
    %v2455 = vlaneseq
    %v2456 = vshrl.u32 %v2455, 7
    %v2457 = vsub.s32 %v2454, %v2456
    %v2458 = vrot.slane %v2451, %v2457
    %v2459 = vcombine.low %v2270, %v2274
    %v2461 = vunpack.c.l.s4 1983009808
    %v2462 = vunpack.c.0.s8 %v2461
    %v2463 = vlaneseq
    %v2464 = vshrl.u32 %v2463, 7
    %v2465 = vsub.s32 %v2462, %v2464
    %v2466 = vrot.slane %v2459, %v2465
    %v2467 = vcombine.low %v2278, %v2282
    %v2469 = vunpack.c.l.s4 1983009808
    %v2470 = vunpack.c.0.s8 %v2469
    %v2471 = vlaneseq
    %v2472 = vshrl.u32 %v2471, 7
    %v2473 = vsub.s32 %v2470, %v2472
    %v2474 = vrot.slane %v2467, %v2473
    %v2475 = vcombine.low %v2286, %v2290
    %v2477 = vunpack.c.l.s4 1983009808
    %v2478 = vunpack.c.0.s8 %v2477
    %v2479 = vlaneseq
    %v2480 = vshrl.u32 %v2479, 7
    %v2481 = vsub.s32 %v2478, %v2480
    %v2482 = vrot.slane %v2475, %v2481
    %v2483 = vcombine.low %v2294, %v2298
    %v2485 = vunpack.c.l.s4 1983009808
    %v2486 = vunpack.c.0.s8 %v2485
    %v2487 = vlaneseq
    %v2488 = vshrl.u32 %v2487, 7
    %v2489 = vsub.s32 %v2486, %v2488
    %v2490 = vrot.slane %v2483, %v2489
    %v2491 = vcombine.low %v2302, %v2306
    %v2493 = vunpack.c.l.s4 1983009808
    %v2494 = vunpack.c.0.s8 %v2493
    %v2495 = vlaneseq
    %v2496 = vshrl.u32 %v2495, 7
    %v2497 = vsub.s32 %v2494, %v2496
    %v2498 = vrot.slane %v2491, %v2497
    %v2499 = vcombine.low %v2310, %v2314
    %v2501 = vunpack.c.l.s4 1983009808
    %v2502 = vunpack.c.0.s8 %v2501
    %v2503 = vlaneseq
    %v2504 = vshrl.u32 %v2503, 7
    %v2505 = vsub.s32 %v2502, %v2504
    %v2506 = vrot.slane %v2499, %v2505
    %v2507 = vcombine.low %v2318, %v2322
    %v2509 = vunpack.c.l.s4 1983009808
    %v2510 = vunpack.c.0.s8 %v2509
    %v2511 = vlaneseq
    %v2512 = vshrl.u32 %v2511, 7
    %v2513 = vsub.s32 %v2510, %v2512
    %v2514 = vrot.slane %v2507, %v2513
    %v2515 = vcombine.low %v2326, %v2330
    %v2517 = vunpack.c.l.s4 1983009808
    %v2518 = vunpack.c.0.s8 %v2517
    %v2519 = vlaneseq
    %v2520 = vshrl.u32 %v2519, 7
    %v2521 = vsub.s32 %v2518, %v2520
    %v2522 = vrot.slane %v2515, %v2521
    %2523 = vst.msk [vmem:[#allocation2] ss:$8 sm:$0x3] %vm988, 0.0
    %2524 = vst.msk [vmem:[#allocation2] ss:$8 sm:$0x0] %vm988, 0.0
    %2525 = vst.msk [vmem:[%s991] ss:$8 sm:$0x3] %vm988, 0.0
    %2526 = vst.msk [vmem:[%s991] ss:$8 sm:$0x0] %vm988, 0.0
    %v2527 = vcombine.low %v2402, %v2410
    %v2528 = vcombine.low %v2418, %v2426
    %v2530 = vunpack.c.l.s4 1983009808
    %v2531 = vunpack.c.0.s8 %v2530
    %v2532 = vlaneseq
    %v2533 = vshrl.u32 %v2532, 7
    %v2534 = vsub.s32 %v2531, %v2533
    %v2535 = vrot.slane %v2527, %v2534
    %v2537 = vunpack.c.l.s4 1983009808
    %v2538 = vunpack.c.0.s8 %v2537
    %v2539 = vlaneseq
    %v2540 = vshrl.u32 %v2539, 7
    %v2541 = vsub.s32 %v2538, %v2540
    %v2542 = vrot.slane %v2528, %v2541
    %v2543 = vcombine.low %v2535, %v2542
    %v2544 = vcombine.high %v2535, %v2542
    %v2545 = vcombine.low %v2434, %v2442
    %v2546 = vcombine.low %v2450, %v2458
    %v2548 = vunpack.c.l.s4 1983009808
    %v2549 = vunpack.c.0.s8 %v2548
    %v2550 = vlaneseq
    %v2551 = vshrl.u32 %v2550, 7
    %v2552 = vsub.s32 %v2549, %v2551
    %v2553 = vrot.slane %v2545, %v2552
    %v2555 = vunpack.c.l.s4 1983009808
    %v2556 = vunpack.c.0.s8 %v2555
    %v2557 = vlaneseq
    %v2558 = vshrl.u32 %v2557, 7
    %v2559 = vsub.s32 %v2556, %v2558
    %v2560 = vrot.slane %v2546, %v2559
    %v2561 = vcombine.low %v2553, %v2560
    %v2562 = vcombine.high %v2553, %v2560
    %v2563 = vcombine.low %v2466, %v2474
    %v2564 = vcombine.low %v2482, %v2490
    %v2566 = vunpack.c.l.s4 1983009808
    %v2567 = vunpack.c.0.s8 %v2566
    %v2568 = vlaneseq
    %v2569 = vshrl.u32 %v2568, 7
    %v2570 = vsub.s32 %v2567, %v2569
    %v2571 = vrot.slane %v2563, %v2570
    %v2573 = vunpack.c.l.s4 1983009808
    %v2574 = vunpack.c.0.s8 %v2573
    %v2575 = vlaneseq
    %v2576 = vshrl.u32 %v2575, 7
    %v2577 = vsub.s32 %v2574, %v2576
    %v2578 = vrot.slane %v2564, %v2577
    %v2579 = vcombine.low %v2571, %v2578
    %v2580 = vcombine.high %v2571, %v2578
    %v2581 = vcombine.low %v2498, %v2506
    %v2582 = vcombine.low %v2514, %v2522
    %v2584 = vunpack.c.l.s4 1983009808
    %v2585 = vunpack.c.0.s8 %v2584
    %v2586 = vlaneseq
    %v2587 = vshrl.u32 %v2586, 7
    %v2588 = vsub.s32 %v2585, %v2587
    %v2589 = vrot.slane %v2581, %v2588
    %v2591 = vunpack.c.l.s4 1983009808
    %v2592 = vunpack.c.0.s8 %v2591
    %v2593 = vlaneseq
    %v2594 = vshrl.u32 %v2593, 7
    %v2595 = vsub.s32 %v2592, %v2594
    %v2596 = vrot.slane %v2582, %v2595
    %v2597 = vcombine.low %v2589, %v2596
    %v2598 = vcombine.high %v2589, %v2596
    %v2599 = vrot.slane %v2543, 7
    %v2600 = vrot.slane %v2544, 7
    %v2601 = vrot.slane %v2561, 7
    %v2602 = vsel %vm816, %v2599, %v2601
    %v2603 = vrot.slane %v2562, 7
    %v2604 = vsel %vm816, %v2600, %v2603
    %v2605 = vrot.slane %v2579, 7
    %v2606 = vrot.slane %v2580, 7
    %v2607 = vrot.slane %v2597, 7
    %v2608 = vsel %vm816, %v2605, %v2607
    %v2609 = vrot.slane %v2598, 7
    %v2610 = vsel %vm816, %v2606, %v2609
    %2623 = vst [vmem:[#allocation2] sm:$0xfe] %v2599
    %2624 = vst [vmem:[#allocation2 + $0x8] sm:$0xfe] %v2600
    %2625 = vst [vmem:[#allocation2 + $0x10] sm:$0xff] %v2602
    %2626 = vst [vmem:[#allocation2 + $0x18] sm:$0xff] %v2604
    %2627 = vst [vmem:[#allocation2 + $0x20] sm:$0x1] %v2601
    %2628 = vst [vmem:[#allocation2 + $0x28] sm:$0x1] %v2603
    %2629 = vst [vmem:[#allocation2 + $0x90] sm:$0xfe] %v2605
    %2630 = vst [vmem:[#allocation2 + $0x98] sm:$0xfe] %v2606
    %2631 = vst [vmem:[#allocation2 + $0xa0] sm:$0xff] %v2608
    %2632 = vst [vmem:[#allocation2 + $0xa8] sm:$0xff] %v2610
    %2633 = vst [vmem:[#allocation2 + $0xb0] sm:$0x1] %v2607
    %2634 = vst [vmem:[#allocation2 + $0xb8] sm:$0x1] %v2609
    %s2635 = scalar_lea.vmem [#allocation2], 33
    %2636 = vst.msk [vmem:[%s2635] ss:$8 sm:$0x3] %vm988, 0.0
    %2637 = vst.msk [vmem:[%s2635] ss:$8 sm:$0x0] %vm988, 0.0
    %s2638 = scalar_lea.vmem [#allocation2], 177
    %2639 = vst.msk [vmem:[%s2638] ss:$8 sm:$0x3] %vm988, 0.0
    %2640 = vst.msk [vmem:[%s2638] ss:$8 sm:$0x0] %vm988, 0.0
    %v2641 = vld [vmem:[#allocation2] sm:$0xff]
    %v2642 = vld [vmem:[#allocation2 + $0x8] sm:$0xff]
    %v2643 = vld [vmem:[#allocation2 + $0x10] sm:$0xff]
    %v2644 = vld [vmem:[#allocation2 + $0x18] sm:$0xff]
    %v2645 = vld [vmem:[#allocation2 + $0x90] sm:$0xff]
    %v2646 = vld [vmem:[#allocation2 + $0x98] sm:$0xff]
    %v2647 = vld [vmem:[#allocation2 + $0xa0] sm:$0xff]
    %v2648 = vld [vmem:[#allocation2 + $0xa8] sm:$0xff]
    %v2649 = vld [vmem:[#allocation2] sm:$0xfe]
    %v2650 = vld [vmem:[#allocation2 + $0x8] sm:$0xfe]
    %v2651 = vld [vmem:[#allocation2 + $0x20] sm:$0x1]
    %v2652 = vld [vmem:[#allocation2 + $0x28] sm:$0x1]
    %v2653 = vld [vmem:[#allocation2 + $0x90] sm:$0xfe]
    %v2654 = vld [vmem:[#allocation2 + $0x98] sm:$0xfe]
    %v2655 = vld [vmem:[#allocation2 + $0xb0] sm:$0x1]
    %v2656 = vld [vmem:[#allocation2 + $0xb8] sm:$0x1]
    %v2657 = vld [vmem:[#allocation2] sm:$0xfc]
    %v2658 = vld [vmem:[#allocation2 + $0x8] sm:$0xfc]
    %v2659 = vld [vmem:[#allocation2 + $0x20] sm:$0x3]
    %v2660 = vld [vmem:[#allocation2 + $0x28] sm:$0x3]
    %v2661 = vld [vmem:[#allocation2 + $0x90] sm:$0xfc]
    %v2662 = vld [vmem:[#allocation2 + $0x98] sm:$0xfc]
    %v2663 = vld [vmem:[#allocation2 + $0xb0] sm:$0x3]
    %v2664 = vld [vmem:[#allocation2 + $0xb8] sm:$0x3]
    %v2677 = vrot.slane %v2649, 1
    %v2678 = vrot.slane %v2643, 1
    %v2679 = vsel %vm1080, %v2677, %v2678
    %v2680 = vrot.slane %v2650, 1
    %v2681 = vrot.slane %v2644, 1
    %v2682 = vsel %vm1080, %v2680, %v2681
    %v2683 = vrot.slane %v2651, 1
    %v2684 = vsel %vm1080, %v2678, %v2683
    %v2685 = vrot.slane %v2652, 1
    %v2686 = vsel %vm1080, %v2681, %v2685
    %v2687 = vrot.slane %v2653, 1
    %v2688 = vrot.slane %v2647, 1
    %v2689 = vsel %vm1080, %v2687, %v2688
    %v2690 = vrot.slane %v2654, 1
    %v2691 = vrot.slane %v2648, 1
    %v2692 = vsel %vm1080, %v2690, %v2691
    %v2693 = vrot.slane %v2655, 1
    %v2694 = vsel %vm1080, %v2688, %v2693
    %v2695 = vrot.slane %v2656, 1
    %v2696 = vsel %vm1080, %v2691, %v2695
    %v2713 = vrot.slane %v2657, 2
    %v2714 = vrot.slane %v2643, 2
    %v2715 = vsel %vm1105, %v2713, %v2714
    %v2716 = vrot.slane %v2658, 2
    %v2717 = vrot.slane %v2644, 2
    %v2718 = vsel %vm1105, %v2716, %v2717
    %v2719 = vrot.slane %v2659, 2
    %v2720 = vsel %vm1105, %v2714, %v2719
    %v2721 = vrot.slane %v2660, 2
    %v2722 = vsel %vm1105, %v2717, %v2721
    %v2723 = vrot.slane %v2661, 2
    %v2724 = vrot.slane %v2647, 2
    %v2725 = vsel %vm1105, %v2723, %v2724
    %v2726 = vrot.slane %v2662, 2
    %v2727 = vrot.slane %v2648, 2
    %v2728 = vsel %vm1105, %v2726, %v2727
    %v2729 = vrot.slane %v2663, 2
    %v2730 = vsel %vm1105, %v2724, %v2729
    %v2731 = vrot.slane %v2664, 2
    %v2732 = vsel %vm1105, %v2727, %v2731
    %v2741 = vpack.c.bf16 %v2643, %v2641
    %v2742 = vpack.c.bf16 %v2644, %v2642
    %v2743 = vpack.c.bf16 %v2684, %v2679
    %v2744 = vpack.c.bf16 %v2686, %v2682
    %v2745 = vpack.c.bf16 %v2720, %v2715
    %v2746 = vpack.c.bf16 %v2722, %v2718
    %v2747 = vpack.c.bf16 %v2647, %v2645
    %v2748 = vpack.c.bf16 %v2648, %v2646
    %v2749 = vpack.c.bf16 %v2694, %v2689
    %v2750 = vpack.c.bf16 %v2696, %v2692
    %v2751 = vpack.c.bf16 %v2730, %v2725
    %v2752 = vpack.c.bf16 %v2732, %v2728
    %s2753 = scalar_lea.vmem [#allocation14], 768
    %v2754 = vld [vmem:[%s2753] sm:$0xff]
    %v2755 = vld [vmem:[%s2753 + $0x8] sm:$0xff]
    %v2756 = vld [vmem:[%s2753 + $0x10] sm:$0xff]
    %v2757 = vld [vmem:[%s2753 + $0x18] sm:$0xff]
    %v2758 = vld [vmem:[%s2753 + $0x20] sm:$0xff]
    %v2759 = vld [vmem:[%s2753 + $0x28] sm:$0xff]
    %v2760 = vld [vmem:[%s2753 + $0x30] sm:$0xff]
    %v2761 = vld [vmem:[%s2753 + $0x38] sm:$0xff]
    %v2762 = vld [vmem:[%s2753 + $0x40] sm:$0xff]
    %v2763 = vld [vmem:[%s2753 + $0x48] sm:$0xff]
    %v2764 = vld [vmem:[%s2753 + $0x50] sm:$0xff]
    %v2765 = vld [vmem:[%s2753 + $0x58] sm:$0xff]
    %v2766 = vld [vmem:[%s2753 + $0x60] sm:$0xff]
    %v2767 = vld [vmem:[%s2753 + $0x68] sm:$0xff]
    %v2768 = vld [vmem:[%s2753 + $0x70] sm:$0xff]
    %v2769 = vld [vmem:[%s2753 + $0x78] sm:$0xff]
    %v2770 = vld [vmem:[%s2753 + $0x80] sm:$0xff]
    %v2771 = vld [vmem:[%s2753 + $0x88] sm:$0xff]
    %v2772 = vld [vmem:[%s2753 + $0x90] sm:$0xff]
    %v2773 = vld [vmem:[%s2753 + $0x98] sm:$0xff]
    %v2774 = vld [vmem:[%s2753 + $0xa0] sm:$0xff]
    %v2775 = vld [vmem:[%s2753 + $0xa8] sm:$0xff]
    %v2776 = vld [vmem:[%s2753 + $0xb0] sm:$0xff]
    %v2777 = vld [vmem:[%s2753 + $0xb8] sm:$0xff]
    %v2778 = vld [vmem:[%s2753 + $0xc0] sm:$0xff]
    %v2779 = vld [vmem:[%s2753 + $0xc8] sm:$0xff]
    %v2780 = vld [vmem:[%s2753 + $0xd0] sm:$0xff]
    %v2781 = vld [vmem:[%s2753 + $0xd8] sm:$0xff]
    %v2782 = vld [vmem:[%s2753 + $0xe0] sm:$0xff]
    %v2783 = vld [vmem:[%s2753 + $0xe8] sm:$0xff]
    %v2784 = vld [vmem:[%s2753 + $0xf0] sm:$0xff]
    %v2785 = vld [vmem:[%s2753 + $0xf8] sm:$0xff]
    %v2786 = vld [vmem:[%s2753 + $0x100] sm:$0xff]
    %v2787 = vld [vmem:[%s2753 + $0x108] sm:$0xff]
    %v2788 = vld [vmem:[%s2753 + $0x110] sm:$0xff]
    %v2789 = vld [vmem:[%s2753 + $0x118] sm:$0xff]
    %v2790 = vld [vmem:[%s2753 + $0x120] sm:$0xff]
    %v2791 = vld [vmem:[%s2753 + $0x128] sm:$0xff]
    %v2792 = vld [vmem:[%s2753 + $0x130] sm:$0xff]
    %v2793 = vld [vmem:[%s2753 + $0x138] sm:$0xff]
    %v2794 = vld [vmem:[%s2753 + $0x140] sm:$0xff]
    %v2795 = vld [vmem:[%s2753 + $0x148] sm:$0xff]
    %v2796 = vld [vmem:[%s2753 + $0x150] sm:$0xff]
    %v2797 = vld [vmem:[%s2753 + $0x158] sm:$0xff]
    %v2798 = vld [vmem:[%s2753 + $0x160] sm:$0xff]
    %v2799 = vld [vmem:[%s2753 + $0x168] sm:$0xff]
    %v2800 = vld [vmem:[%s2753 + $0x170] sm:$0xff]
    %v2801 = vld [vmem:[%s2753 + $0x178] sm:$0xff]
    %v2802 = vld [vmem:[%s2753 + $0x180] sm:$0xff]
    %v2803 = vld [vmem:[%s2753 + $0x188] sm:$0xff]
    %v2804 = vld [vmem:[%s2753 + $0x190] sm:$0xff]
    %v2805 = vld [vmem:[%s2753 + $0x198] sm:$0xff]
    %v2806 = vld [vmem:[%s2753 + $0x1a0] sm:$0xff]
    %v2807 = vld [vmem:[%s2753 + $0x1a8] sm:$0xff]
    %v2808 = vld [vmem:[%s2753 + $0x1b0] sm:$0xff]
    %v2809 = vld [vmem:[%s2753 + $0x1b8] sm:$0xff]
    %v2810 = vld [vmem:[%s2753 + $0x1c0] sm:$0xff]
    %v2811 = vld [vmem:[%s2753 + $0x1c8] sm:$0xff]
    %v2812 = vld [vmem:[%s2753 + $0x1d0] sm:$0xff]
    %v2813 = vld [vmem:[%s2753 + $0x1d8] sm:$0xff]
    %v2814 = vld [vmem:[%s2753 + $0x1e0] sm:$0xff]
    %v2815 = vld [vmem:[%s2753 + $0x1e8] sm:$0xff]
    %v2816 = vld [vmem:[%s2753 + $0x1f0] sm:$0xff]
    %v2817 = vld [vmem:[%s2753 + $0x1f8] sm:$0xff]
    %v2818 = vld [vmem:[%s2753 + $0x200] sm:$0xff]
    %v2819 = vld [vmem:[%s2753 + $0x208] sm:$0xff]
    %v2820 = vld [vmem:[%s2753 + $0x210] sm:$0xff]
    %v2821 = vld [vmem:[%s2753 + $0x218] sm:$0xff]
    %v2822 = vld [vmem:[%s2753 + $0x220] sm:$0xff]
    %v2823 = vld [vmem:[%s2753 + $0x228] sm:$0xff]
    %v2824 = vld [vmem:[%s2753 + $0x230] sm:$0xff]
    %v2825 = vld [vmem:[%s2753 + $0x238] sm:$0xff]
    %v2826 = vld [vmem:[%s2753 + $0x240] sm:$0xff]
    %v2827 = vld [vmem:[%s2753 + $0x248] sm:$0xff]
    %v2828 = vld [vmem:[%s2753 + $0x250] sm:$0xff]
    %v2829 = vld [vmem:[%s2753 + $0x258] sm:$0xff]
    %v2830 = vld [vmem:[%s2753 + $0x260] sm:$0xff]
    %v2831 = vld [vmem:[%s2753 + $0x268] sm:$0xff]
    %v2832 = vld [vmem:[%s2753 + $0x270] sm:$0xff]
    %v2833 = vld [vmem:[%s2753 + $0x278] sm:$0xff]
    %v2834 = vld [vmem:[%s2753 + $0x280] sm:$0xff]
    %v2835 = vld [vmem:[%s2753 + $0x288] sm:$0xff]
    %v2836 = vld [vmem:[%s2753 + $0x290] sm:$0xff]
    %v2837 = vld [vmem:[%s2753 + $0x298] sm:$0xff]
    %v2838 = vld [vmem:[%s2753 + $0x2a0] sm:$0xff]
    %v2839 = vld [vmem:[%s2753 + $0x2a8] sm:$0xff]
    %v2840 = vld [vmem:[%s2753 + $0x2b0] sm:$0xff]
    %v2841 = vld [vmem:[%s2753 + $0x2b8] sm:$0xff]
    %v2842 = vld [vmem:[%s2753 + $0x2c0] sm:$0xff]
    %v2843 = vld [vmem:[%s2753 + $0x2c8] sm:$0xff]
    %v2844 = vld [vmem:[%s2753 + $0x2d0] sm:$0xff]
    %v2845 = vld [vmem:[%s2753 + $0x2d8] sm:$0xff]
    %v2846 = vld [vmem:[%s2753 + $0x2e0] sm:$0xff]
    %v2847 = vld [vmem:[%s2753 + $0x2e8] sm:$0xff]
    %v2848 = vld [vmem:[%s2753 + $0x2f0] sm:$0xff]
    %v2849 = vld [vmem:[%s2753 + $0x2f8] sm:$0xff]
    %v2946 = vunpack.c.l.b16 %v2754
    %v2947 = vunpack.c.h.b16 %v2754
    %v2948 = vunpack.c.l.b16 %v2755
    %v2949 = vunpack.c.h.b16 %v2755
    %v2950 = vunpack.c.l.b16 %v2756
    %v2951 = vunpack.c.h.b16 %v2756
    %v2952 = vunpack.c.l.b16 %v2757
    %v2953 = vunpack.c.h.b16 %v2757
    %v2954 = vunpack.c.l.b16 %v2758
    %v2955 = vunpack.c.h.b16 %v2758
    %v2956 = vunpack.c.l.b16 %v2759
    %v2957 = vunpack.c.h.b16 %v2759
    %v2958 = vunpack.c.l.b16 %v2760
    %v2959 = vunpack.c.h.b16 %v2760
    %v2960 = vunpack.c.l.b16 %v2761
    %v2961 = vunpack.c.h.b16 %v2761
    %v2962 = vunpack.c.l.b16 %v2762
    %v2963 = vunpack.c.h.b16 %v2762
    %v2964 = vunpack.c.l.b16 %v2763
    %v2965 = vunpack.c.h.b16 %v2763
    %v2966 = vunpack.c.l.b16 %v2764
    %v2967 = vunpack.c.h.b16 %v2764
    %v2968 = vunpack.c.l.b16 %v2765
    %v2969 = vunpack.c.h.b16 %v2765
    %v2970 = vunpack.c.l.b16 %v2766
    %v2971 = vunpack.c.h.b16 %v2766
    %v2972 = vunpack.c.l.b16 %v2767
    %v2973 = vunpack.c.h.b16 %v2767
    %v2974 = vunpack.c.l.b16 %v2768
    %v2975 = vunpack.c.h.b16 %v2768
    %v2976 = vunpack.c.l.b16 %v2769
    %v2977 = vunpack.c.h.b16 %v2769
    %v2978 = vunpack.c.l.b16 %v2770
    %v2979 = vunpack.c.h.b16 %v2770
    %v2980 = vunpack.c.l.b16 %v2771
    %v2981 = vunpack.c.h.b16 %v2771
    %v2982 = vunpack.c.l.b16 %v2772
    %v2983 = vunpack.c.h.b16 %v2772
    %v2984 = vunpack.c.l.b16 %v2773
    %v2985 = vunpack.c.h.b16 %v2773
    %v2986 = vunpack.c.l.b16 %v2774
    %v2987 = vunpack.c.h.b16 %v2774
    %v2988 = vunpack.c.l.b16 %v2775
    %v2989 = vunpack.c.h.b16 %v2775
    %v2990 = vunpack.c.l.b16 %v2776
    %v2991 = vunpack.c.h.b16 %v2776
    %v2992 = vunpack.c.l.b16 %v2777
    %v2993 = vunpack.c.h.b16 %v2777
    %v2994 = vunpack.c.l.b16 %v2778
    %v2995 = vunpack.c.h.b16 %v2778
    %v2996 = vunpack.c.l.b16 %v2779
    %v2997 = vunpack.c.h.b16 %v2779
    %v2998 = vunpack.c.l.b16 %v2780
    %v2999 = vunpack.c.h.b16 %v2780
    %v3000 = vunpack.c.l.b16 %v2781
    %v3001 = vunpack.c.h.b16 %v2781
    %v3002 = vunpack.c.l.b16 %v2782
    %v3003 = vunpack.c.h.b16 %v2782
    %v3004 = vunpack.c.l.b16 %v2783
    %v3005 = vunpack.c.h.b16 %v2783
    %v3006 = vunpack.c.l.b16 %v2784
    %v3007 = vunpack.c.h.b16 %v2784
    %v3008 = vunpack.c.l.b16 %v2785
    %v3009 = vunpack.c.h.b16 %v2785
    %v3010 = vunpack.c.l.b16 %v2786
    %v3011 = vunpack.c.h.b16 %v2786
    %v3012 = vunpack.c.l.b16 %v2787
    %v3013 = vunpack.c.h.b16 %v2787
    %v3014 = vunpack.c.l.b16 %v2788
    %v3015 = vunpack.c.h.b16 %v2788
    %v3016 = vunpack.c.l.b16 %v2789
    %v3017 = vunpack.c.h.b16 %v2789
    %v3018 = vunpack.c.l.b16 %v2790
    %v3019 = vunpack.c.h.b16 %v2790
    %v3020 = vunpack.c.l.b16 %v2791
    %v3021 = vunpack.c.h.b16 %v2791
    %v3022 = vunpack.c.l.b16 %v2792
    %v3023 = vunpack.c.h.b16 %v2792
    %v3024 = vunpack.c.l.b16 %v2793
    %v3025 = vunpack.c.h.b16 %v2793
    %v3026 = vunpack.c.l.b16 %v2794
    %v3027 = vunpack.c.h.b16 %v2794
    %v3028 = vunpack.c.l.b16 %v2795
    %v3029 = vunpack.c.h.b16 %v2795
    %v3030 = vunpack.c.l.b16 %v2796
    %v3031 = vunpack.c.h.b16 %v2796
    %v3032 = vunpack.c.l.b16 %v2797
    %v3033 = vunpack.c.h.b16 %v2797
    %v3034 = vunpack.c.l.b16 %v2798
    %v3035 = vunpack.c.h.b16 %v2798
    %v3036 = vunpack.c.l.b16 %v2799
    %v3037 = vunpack.c.h.b16 %v2799
    %v3038 = vunpack.c.l.b16 %v2800
    %v3039 = vunpack.c.h.b16 %v2800
    %v3040 = vunpack.c.l.b16 %v2801
    %v3041 = vunpack.c.h.b16 %v2801
    %v3042 = vunpack.c.l.b16 %v2802
    %v3043 = vunpack.c.h.b16 %v2802
    %v3044 = vunpack.c.l.b16 %v2803
    %v3045 = vunpack.c.h.b16 %v2803
    %v3046 = vunpack.c.l.b16 %v2804
    %v3047 = vunpack.c.h.b16 %v2804
    %v3048 = vunpack.c.l.b16 %v2805
    %v3049 = vunpack.c.h.b16 %v2805
    %v3050 = vunpack.c.l.b16 %v2806
    %v3051 = vunpack.c.h.b16 %v2806
    %v3052 = vunpack.c.l.b16 %v2807
    %v3053 = vunpack.c.h.b16 %v2807
    %v3054 = vunpack.c.l.b16 %v2808
    %v3055 = vunpack.c.h.b16 %v2808
    %v3056 = vunpack.c.l.b16 %v2809
    %v3057 = vunpack.c.h.b16 %v2809
    %v3058 = vunpack.c.l.b16 %v2810
    %v3059 = vunpack.c.h.b16 %v2810
    %v3060 = vunpack.c.l.b16 %v2811
    %v3061 = vunpack.c.h.b16 %v2811
    %v3062 = vunpack.c.l.b16 %v2812
    %v3063 = vunpack.c.h.b16 %v2812
    %v3064 = vunpack.c.l.b16 %v2813
    %v3065 = vunpack.c.h.b16 %v2813
    %v3066 = vunpack.c.l.b16 %v2814
    %v3067 = vunpack.c.h.b16 %v2814
    %v3068 = vunpack.c.l.b16 %v2815
    %v3069 = vunpack.c.h.b16 %v2815
    %v3070 = vunpack.c.l.b16 %v2816
    %v3071 = vunpack.c.h.b16 %v2816
    %v3072 = vunpack.c.l.b16 %v2817
    %v3073 = vunpack.c.h.b16 %v2817
    %v3074 = vunpack.c.l.b16 %v2818
    %v3075 = vunpack.c.h.b16 %v2818
    %v3076 = vunpack.c.l.b16 %v2819
    %v3077 = vunpack.c.h.b16 %v2819
    %v3078 = vunpack.c.l.b16 %v2820
    %v3079 = vunpack.c.h.b16 %v2820
    %v3080 = vunpack.c.l.b16 %v2821
    %v3081 = vunpack.c.h.b16 %v2821
    %v3082 = vunpack.c.l.b16 %v2822
    %v3083 = vunpack.c.h.b16 %v2822
    %v3084 = vunpack.c.l.b16 %v2823
    %v3085 = vunpack.c.h.b16 %v2823
    %v3086 = vunpack.c.l.b16 %v2824
    %v3087 = vunpack.c.h.b16 %v2824
    %v3088 = vunpack.c.l.b16 %v2825
    %v3089 = vunpack.c.h.b16 %v2825
    %v3090 = vunpack.c.l.b16 %v2826
    %v3091 = vunpack.c.h.b16 %v2826
    %v3092 = vunpack.c.l.b16 %v2827
    %v3093 = vunpack.c.h.b16 %v2827
    %v3094 = vunpack.c.l.b16 %v2828
    %v3095 = vunpack.c.h.b16 %v2828
    %v3096 = vunpack.c.l.b16 %v2829
    %v3097 = vunpack.c.h.b16 %v2829
    %v3098 = vunpack.c.l.b16 %v2830
    %v3099 = vunpack.c.h.b16 %v2830
    %v3100 = vunpack.c.l.b16 %v2831
    %v3101 = vunpack.c.h.b16 %v2831
    %v3102 = vunpack.c.l.b16 %v2832
    %v3103 = vunpack.c.h.b16 %v2832
    %v3104 = vunpack.c.l.b16 %v2833
    %v3105 = vunpack.c.h.b16 %v2833
    %v3106 = vunpack.c.l.b16 %v2834
    %v3107 = vunpack.c.h.b16 %v2834
    %v3108 = vunpack.c.l.b16 %v2835
    %v3109 = vunpack.c.h.b16 %v2835
    %v3110 = vunpack.c.l.b16 %v2836
    %v3111 = vunpack.c.h.b16 %v2836
    %v3112 = vunpack.c.l.b16 %v2837
    %v3113 = vunpack.c.h.b16 %v2837
    %v3114 = vunpack.c.l.b16 %v2838
    %v3115 = vunpack.c.h.b16 %v2838
    %v3116 = vunpack.c.l.b16 %v2839
    %v3117 = vunpack.c.h.b16 %v2839
    %v3118 = vunpack.c.l.b16 %v2840
    %v3119 = vunpack.c.h.b16 %v2840
    %v3120 = vunpack.c.l.b16 %v2841
    %v3121 = vunpack.c.h.b16 %v2841
    %v3122 = vunpack.c.l.b16 %v2842
    %v3123 = vunpack.c.h.b16 %v2842
    %v3124 = vunpack.c.l.b16 %v2843
    %v3125 = vunpack.c.h.b16 %v2843
    %v3126 = vunpack.c.l.b16 %v2844
    %v3127 = vunpack.c.h.b16 %v2844
    %v3128 = vunpack.c.l.b16 %v2845
    %v3129 = vunpack.c.h.b16 %v2845
    %v3130 = vunpack.c.l.b16 %v2846
    %v3131 = vunpack.c.h.b16 %v2846
    %v3132 = vunpack.c.l.b16 %v2847
    %v3133 = vunpack.c.h.b16 %v2847
    %v3134 = vunpack.c.l.b16 %v2848
    %v3135 = vunpack.c.h.b16 %v2848
    %v3136 = vunpack.c.l.b16 %v2849
    %v3137 = vunpack.c.h.b16 %v2849
    %v3138 = vpack.c.b16 %v2948, %v2946
    %v3139 = vpack.c.b16 %v2949, %v2947
    %v3140 = vpack.c.b16 %v2952, %v2950
    %v3141 = vpack.c.b16 %v2953, %v2951
    %v3142 = vpack.c.b16 %v2956, %v2954
    %v3143 = vpack.c.b16 %v2957, %v2955
    %v3144 = vpack.c.b16 %v2960, %v2958
    %v3145 = vpack.c.b16 %v2961, %v2959
    %v3146 = vpack.c.b16 %v2964, %v2962
    %v3147 = vpack.c.b16 %v2965, %v2963
    %v3148 = vpack.c.b16 %v2968, %v2966
    %v3149 = vpack.c.b16 %v2969, %v2967
    %v3150 = vpack.c.b16 %v2972, %v2970
    %v3151 = vpack.c.b16 %v2973, %v2971
    %v3152 = vpack.c.b16 %v2976, %v2974
    %v3153 = vpack.c.b16 %v2977, %v2975
    %v3154 = vpack.c.b16 %v2980, %v2978
    %v3155 = vpack.c.b16 %v2981, %v2979
    %v3156 = vpack.c.b16 %v2984, %v2982
    %v3157 = vpack.c.b16 %v2985, %v2983
    %v3158 = vpack.c.b16 %v2988, %v2986
    %v3159 = vpack.c.b16 %v2989, %v2987
    %v3160 = vpack.c.b16 %v2992, %v2990
    %v3161 = vpack.c.b16 %v2993, %v2991
    %v3162 = vpack.c.b16 %v2996, %v2994
    %v3163 = vpack.c.b16 %v2997, %v2995
    %v3164 = vpack.c.b16 %v3000, %v2998
    %v3165 = vpack.c.b16 %v3001, %v2999
    %v3166 = vpack.c.b16 %v3004, %v3002
    %v3167 = vpack.c.b16 %v3005, %v3003
    %v3168 = vpack.c.b16 %v3008, %v3006
    %v3169 = vpack.c.b16 %v3009, %v3007
    %v3170 = vpack.c.b16 %v3012, %v3010
    %v3171 = vpack.c.b16 %v3013, %v3011
    %v3172 = vpack.c.b16 %v3016, %v3014
    %v3173 = vpack.c.b16 %v3017, %v3015
    %v3174 = vpack.c.b16 %v3020, %v3018
    %v3175 = vpack.c.b16 %v3021, %v3019
    %v3176 = vpack.c.b16 %v3024, %v3022
    %v3177 = vpack.c.b16 %v3025, %v3023
    %v3178 = vpack.c.b16 %v3028, %v3026
    %v3179 = vpack.c.b16 %v3029, %v3027
    %v3180 = vpack.c.b16 %v3032, %v3030
    %v3181 = vpack.c.b16 %v3033, %v3031
    %v3182 = vpack.c.b16 %v3036, %v3034
    %v3183 = vpack.c.b16 %v3037, %v3035
    %v3184 = vpack.c.b16 %v3040, %v3038
    %v3185 = vpack.c.b16 %v3041, %v3039
    %v3186 = vpack.c.b16 %v3044, %v3042
    %v3187 = vpack.c.b16 %v3045, %v3043
    %v3188 = vpack.c.b16 %v3048, %v3046
    %v3189 = vpack.c.b16 %v3049, %v3047
    %v3190 = vpack.c.b16 %v3052, %v3050
    %v3191 = vpack.c.b16 %v3053, %v3051
    %v3192 = vpack.c.b16 %v3056, %v3054
    %v3193 = vpack.c.b16 %v3057, %v3055
    %v3194 = vpack.c.b16 %v3060, %v3058
    %v3195 = vpack.c.b16 %v3061, %v3059
    %v3196 = vpack.c.b16 %v3064, %v3062
    %v3197 = vpack.c.b16 %v3065, %v3063
    %v3198 = vpack.c.b16 %v3068, %v3066
    %v3199 = vpack.c.b16 %v3069, %v3067
    %v3200 = vpack.c.b16 %v3072, %v3070
    %v3201 = vpack.c.b16 %v3073, %v3071
    %v3202 = vpack.c.b16 %v3076, %v3074
    %v3203 = vpack.c.b16 %v3077, %v3075
    %v3204 = vpack.c.b16 %v3080, %v3078
    %v3205 = vpack.c.b16 %v3081, %v3079
    %v3206 = vpack.c.b16 %v3084, %v3082
    %v3207 = vpack.c.b16 %v3085, %v3083
    %v3208 = vpack.c.b16 %v3088, %v3086
    %v3209 = vpack.c.b16 %v3089, %v3087
    %v3210 = vpack.c.b16 %v3092, %v3090
    %v3211 = vpack.c.b16 %v3093, %v3091
    %v3212 = vpack.c.b16 %v3096, %v3094
    %v3213 = vpack.c.b16 %v3097, %v3095
    %v3214 = vpack.c.b16 %v3100, %v3098
    %v3215 = vpack.c.b16 %v3101, %v3099
    %v3216 = vpack.c.b16 %v3104, %v3102
    %v3217 = vpack.c.b16 %v3105, %v3103
    %v3218 = vpack.c.b16 %v3108, %v3106
    %v3219 = vpack.c.b16 %v3109, %v3107
    %v3220 = vpack.c.b16 %v3112, %v3110
    %v3221 = vpack.c.b16 %v3113, %v3111
    %v3222 = vpack.c.b16 %v3116, %v3114
    %v3223 = vpack.c.b16 %v3117, %v3115
    %v3224 = vpack.c.b16 %v3120, %v3118
    %v3225 = vpack.c.b16 %v3121, %v3119
    %v3226 = vpack.c.b16 %v3124, %v3122
    %v3227 = vpack.c.b16 %v3125, %v3123
    %v3228 = vpack.c.b16 %v3128, %v3126
    %v3229 = vpack.c.b16 %v3129, %v3127
    %v3230 = vpack.c.b16 %v3132, %v3130
    %v3231 = vpack.c.b16 %v3133, %v3131
    %v3232 = vpack.c.b16 %v3136, %v3134
    %v3233 = vpack.c.b16 %v3137, %v3135
    %3330 = vmatprep.subr.bf16.mxu0 %v3139
    %3331 = vmatpush1.bf16.msra.mxu0 %v3138
    %3332 = vmatprep.subr.bf16.mxu0 %v3141
    %3333 = vmatpush1.bf16.msra.mxu0 %v3140
    %3334 = vmatprep.subr.bf16.mxu0 %v3143
    %3335 = vmatpush1.bf16.msra.mxu0 %v3142
    %3336 = vmatprep.subr.bf16.mxu0 %v3145
    %3337 = vmatpush1.bf16.msra.mxu0 %v3144
    %3338 = vmatprep.subr.bf16.mxu0 %v3147
    %3339 = vmatpush1.bf16.msra.mxu0 %v3146
    %3340 = vmatprep.subr.bf16.mxu0 %v3149
    %3341 = vmatpush1.bf16.msra.mxu0 %v3148
    %3342 = vmatprep.subr.bf16.mxu0 %v3151
    %3343 = vmatpush1.bf16.msra.mxu0 %v3150
    %3344 = vmatprep.subr.bf16.mxu0 %v3153
    %3345 = vmatpush1.bf16.msra.mxu0 %v3152
    %3346 = vmatprep.subr.bf16.mxu0 %v3155
    %3347 = vmatpush1.bf16.msra.mxu0 %v3154
    %3348 = vmatprep.subr.bf16.mxu0 %v3157
    %3349 = vmatpush1.bf16.msra.mxu0 %v3156
    %3350 = vmatprep.subr.bf16.mxu0 %v3159
    %3351 = vmatpush1.bf16.msra.mxu0 %v3158
    %3352 = vmatprep.subr.bf16.mxu0 %v3161
    %3353 = vmatpush1.bf16.msra.mxu0 %v3160
    %3354 = vmatprep.subr.bf16.mxu0 %v3163
    %3355 = vmatpush1.bf16.msra.mxu0 %v3162
    %3356 = vmatprep.subr.bf16.mxu0 %v3165
    %3357 = vmatpush1.bf16.msra.mxu0 %v3164
    %3358 = vmatprep.subr.bf16.mxu0 %v3167
    %3359 = vmatpush1.bf16.msra.mxu0 %v3166
    %3360 = vmatprep.subr.bf16.mxu0 %v3169
    %3361 = vmatpush1.bf16.msra.mxu0 %v3168
    %3362 = vmatprep.mubr.bf16.mxu0 %v2742
    %3363 = vmatmul.mubr.bf16.gmra.mrb[0].mxu0 %v2741
    %v3364 = vpop.f32.mrb[0].mxu0
    %v3365 = vadd.f32 0.0, %v3364
    %v3366 = vpop.f32.mrb[0].mxu0
    %v3367 = vadd.f32 0.0, %v3366
    %v3368 = vpop.f32.mrb[0].mxu0
    %v3369 = vadd.f32 0.0, %v3368
    %v3370 = vpop.f32.mrb[0].mxu0
    %v3371 = vadd.f32 0.0, %v3370
    %3372 = vmatprep.mubr.bf16.mxu0 %v2748
    %3373 = vmatmul.mubr.bf16.gmra.mrb[0].mxu0 %v2747
    %v3374 = vpop.f32.mrb[0].mxu0
    %v3375 = vadd.f32 0.0, %v3374
    %v3376 = vpop.f32.mrb[0].mxu0
    %v3377 = vadd.f32 0.0, %v3376
    %v3378 = vpop.f32.mrb[0].mxu0
    %v3379 = vadd.f32 0.0, %v3378
    %v3380 = vpop.f32.mrb[0].mxu0
    %v3381 = vadd.f32 0.0, %v3380
    %3382 = vdwg.mxu0
    %3383 = vmatprep.subr.bf16.mxu0 %v3171
    %3384 = vmatpush1.bf16.msra.mxu0 %v3170
    %3385 = vmatprep.subr.bf16.mxu0 %v3173
    %3386 = vmatpush1.bf16.msra.mxu0 %v3172
    %3387 = vmatprep.subr.bf16.mxu0 %v3175
    %3388 = vmatpush1.bf16.msra.mxu0 %v3174
    %3389 = vmatprep.subr.bf16.mxu0 %v3177
    %3390 = vmatpush1.bf16.msra.mxu0 %v3176
    %3391 = vmatprep.subr.bf16.mxu0 %v3179
    %3392 = vmatpush1.bf16.msra.mxu0 %v3178
    %3393 = vmatprep.subr.bf16.mxu0 %v3181
    %3394 = vmatpush1.bf16.msra.mxu0 %v3180
    %3395 = vmatprep.subr.bf16.mxu0 %v3183
    %3396 = vmatpush1.bf16.msra.mxu0 %v3182
    %3397 = vmatprep.subr.bf16.mxu0 %v3185
    %3398 = vmatpush1.bf16.msra.mxu0 %v3184
    %3399 = vmatprep.subr.bf16.mxu0 %v3187
    %3400 = vmatpush1.bf16.msra.mxu0 %v3186
    %3401 = vmatprep.subr.bf16.mxu0 %v3189
    %3402 = vmatpush1.bf16.msra.mxu0 %v3188
    %3403 = vmatprep.subr.bf16.mxu0 %v3191
    %3404 = vmatpush1.bf16.msra.mxu0 %v3190
    %3405 = vmatprep.subr.bf16.mxu0 %v3193
    %3406 = vmatpush1.bf16.msra.mxu0 %v3192
    %3407 = vmatprep.subr.bf16.mxu0 %v3195
    %3408 = vmatpush1.bf16.msra.mxu0 %v3194
    %3409 = vmatprep.subr.bf16.mxu0 %v3197
    %3410 = vmatpush1.bf16.msra.mxu0 %v3196
    %3411 = vmatprep.subr.bf16.mxu0 %v3199
    %3412 = vmatpush1.bf16.msra.mxu0 %v3198
    %3413 = vmatprep.subr.bf16.mxu0 %v3201
    %3414 = vmatpush1.bf16.msra.mxu0 %v3200
    %3415 = vmatprep.mubr.bf16.mxu0 %v2744
    %3416 = vmatmul.mubr.bf16.gmra.mrb[0].mxu0 %v2743
    %v3417 = vpop.f32.mrb[0].mxu0
    %v3418 = vadd.f32 %v3365, %v3417
    %v3419 = vpop.f32.mrb[0].mxu0
    %v3420 = vadd.f32 %v3367, %v3419
    %v3421 = vpop.f32.mrb[0].mxu0
    %v3422 = vadd.f32 %v3369, %v3421
    %v3423 = vpop.f32.mrb[0].mxu0
    %v3424 = vadd.f32 %v3371, %v3423
    %3425 = vmatprep.mubr.bf16.mxu0 %v2750
    %3426 = vmatmul.mubr.bf16.gmra.mrb[0].mxu0 %v2749
    %v3427 = vpop.f32.mrb[0].mxu0
    %v3428 = vadd.f32 %v3375, %v3427
    %v3429 = vpop.f32.mrb[0].mxu0
    %v3430 = vadd.f32 %v3377, %v3429
    %v3431 = vpop.f32.mrb[0].mxu0
    %v3432 = vadd.f32 %v3379, %v3431
    %v3433 = vpop.f32.mrb[0].mxu0
    %v3434 = vadd.f32 %v3381, %v3433
    %3435 = vdwg.mxu0
    %3436 = vmatprep.subr.bf16.mxu0 %v3203
    %3437 = vmatpush1.bf16.msra.mxu0 %v3202
    %3438 = vmatprep.subr.bf16.mxu0 %v3205
    %3439 = vmatpush1.bf16.msra.mxu0 %v3204
    %3440 = vmatprep.subr.bf16.mxu0 %v3207
    %3441 = vmatpush1.bf16.msra.mxu0 %v3206
    %3442 = vmatprep.subr.bf16.mxu0 %v3209
    %3443 = vmatpush1.bf16.msra.mxu0 %v3208
    %3444 = vmatprep.subr.bf16.mxu0 %v3211
    %3445 = vmatpush1.bf16.msra.mxu0 %v3210
    %3446 = vmatprep.subr.bf16.mxu0 %v3213
    %3447 = vmatpush1.bf16.msra.mxu0 %v3212
    %3448 = vmatprep.subr.bf16.mxu0 %v3215
    %3449 = vmatpush1.bf16.msra.mxu0 %v3214
    %3450 = vmatprep.subr.bf16.mxu0 %v3217
    %3451 = vmatpush1.bf16.msra.mxu0 %v3216
    %3452 = vmatprep.subr.bf16.mxu0 %v3219
    %3453 = vmatpush1.bf16.msra.mxu0 %v3218
    %3454 = vmatprep.subr.bf16.mxu0 %v3221
    %3455 = vmatpush1.bf16.msra.mxu0 %v3220
    %3456 = vmatprep.subr.bf16.mxu0 %v3223
    %3457 = vmatpush1.bf16.msra.mxu0 %v3222
    %3458 = vmatprep.subr.bf16.mxu0 %v3225
    %3459 = vmatpush1.bf16.msra.mxu0 %v3224
    %3460 = vmatprep.subr.bf16.mxu0 %v3227
    %3461 = vmatpush1.bf16.msra.mxu0 %v3226
    %3462 = vmatprep.subr.bf16.mxu0 %v3229
    %3463 = vmatpush1.bf16.msra.mxu0 %v3228
    %3464 = vmatprep.subr.bf16.mxu0 %v3231
    %3465 = vmatpush1.bf16.msra.mxu0 %v3230
    %3466 = vmatprep.subr.bf16.mxu0 %v3233
    %3467 = vmatpush1.bf16.msra.mxu0 %v3232
    %3468 = vmatprep.mubr.bf16.mxu0 %v2746
    %3469 = vmatmul.mubr.bf16.gmra.mrb[0].mxu0 %v2745
    %v3470 = vpop.f32.mrb[0].mxu0
    %v3471 = vadd.f32 %v3418, %v3470
    %v3472 = vpop.f32.mrb[0].mxu0
    %v3473 = vadd.f32 %v3420, %v3472
    %v3474 = vpop.f32.mrb[0].mxu0
    %v3475 = vadd.f32 %v3422, %v3474
    %v3476 = vpop.f32.mrb[0].mxu0
    %v3477 = vadd.f32 %v3424, %v3476
    %3478 = vmatprep.mubr.bf16.mxu0 %v2752
    %3479 = vmatmul.mubr.bf16.gmra.mrb[0].mxu0 %v2751
    %v3480 = vpop.f32.mrb[0].mxu0
    %v3481 = vadd.f32 %v3428, %v3480
    %v3482 = vpop.f32.mrb[0].mxu0
    %v3483 = vadd.f32 %v3430, %v3482
    %v3484 = vpop.f32.mrb[0].mxu0
    %v3485 = vadd.f32 %v3432, %v3484
    %v3486 = vpop.f32.mrb[0].mxu0
    %v3487 = vadd.f32 %v3434, %v3486
    %3488 = vdwg.mxu0
    %v3489 = vadd.f32 %v3471, %v3475
    %v3490 = vadd.f32 %v3489, %v3481
    %v3491 = vadd.f32 %v3490, %v3485
    %v3492 = vrot.slane %v3491, 4
    %v3493 = vadd.f32 %v3491, %v3492
    %v3494 = vrot.slane %v3493, 2
    %v3495 = vadd.f32 %v3493, %v3494
    %v3496 = vrot.slane %v3495, 1
    %v3497 = vadd.f32 %v3495, %v3496
    %v3498 = vadd.f32 %v3473, %v3477
    %v3499 = vadd.f32 %v3498, %v3483
    %v3500 = vadd.f32 %v3499, %v3487
    %v3501 = vrot.slane %v3500, 4
    %v3502 = vadd.f32 %v3500, %v3501
    %v3503 = vrot.slane %v3502, 2
    %v3504 = vadd.f32 %v3502, %v3503
    %v3505 = vrot.slane %v3504, 1
    %v3506 = vadd.f32 %v3504, %v3505
    %v3507 = vmul.f32 %v3471, %v3471
    %v3508 = vmul.f32 %v3473, %v3473
    %v3509 = vmul.f32 %v3475, %v3475
    %v3510 = vmul.f32 %v3477, %v3477
    %v3511 = vmul.f32 %v3481, %v3481
    %v3512 = vmul.f32 %v3483, %v3483
    %v3513 = vmul.f32 %v3485, %v3485
    %v3514 = vmul.f32 %v3487, %v3487
    %v3515 = vadd.f32 %v3507, %v3509
    %v3516 = vadd.f32 %v3515, %v3511
    %v3517 = vadd.f32 %v3516, %v3513
    %v3518 = vrot.slane %v3517, 4
    %v3519 = vadd.f32 %v3517, %v3518
    %v3520 = vrot.slane %v3519, 2
    %v3521 = vadd.f32 %v3519, %v3520
    %v3522 = vrot.slane %v3521, 1
    %v3523 = vadd.f32 %v3521, %v3522
    %v3524 = vadd.f32 %v3508, %v3510
    %v3525 = vadd.f32 %v3524, %v3512
    %v3526 = vadd.f32 %v3525, %v3514
    %v3527 = vrot.slane %v3526, 4
    %v3528 = vadd.f32 %v3526, %v3527
    %v3529 = vrot.slane %v3528, 2
    %v3530 = vadd.f32 %v3528, %v3529
    %v3531 = vrot.slane %v3530, 1
    %v3532 = vadd.f32 %v3530, %v3531
    %v3533 = vsel %vm816, %v3497, %v3523
    %v3534 = vsel %vm816, %v3506, %v3532
    %s3535 = scalar_lea.vmem %s8, 256
    %v3536 = vld [vmem:[%s3535] sm:$0xff]
    %v3537 = vld [vmem:[%s3535 + $0x8] sm:$0xff]
    %v3538 = vld [vmem:[%s3535 + $0x10] sm:$0xff]
    %v3539 = vld [vmem:[%s3535 + $0x18] sm:$0xff]
    %v3540 = vld [vmem:[%s3535 + $0x20] sm:$0xff]
    %v3541 = vld [vmem:[%s3535 + $0x28] sm:$0xff]
    %v3542 = vld [vmem:[%s3535 + $0x30] sm:$0xff]
    %v3543 = vld [vmem:[%s3535 + $0x38] sm:$0xff]
    %v3544 = vld [vmem:[%s3535 + $0x40] sm:$0xff]
    %v3545 = vld [vmem:[%s3535 + $0x48] sm:$0xff]
    %v3546 = vld [vmem:[%s3535 + $0x50] sm:$0xff]
    %v3547 = vld [vmem:[%s3535 + $0x58] sm:$0xff]
    %v3548 = vld [vmem:[%s3535 + $0x60] sm:$0xff]
    %v3549 = vld [vmem:[%s3535 + $0x68] sm:$0xff]
    %v3550 = vld [vmem:[%s3535 + $0x70] sm:$0xff]
    %v3551 = vld [vmem:[%s3535 + $0x78] sm:$0xff]
    %v3552 = vld [vmem:[%s3535 + $0x80] sm:$0xff]
    %v3553 = vld [vmem:[%s3535 + $0x88] sm:$0xff]
    %v3554 = vld [vmem:[%s3535 + $0x90] sm:$0xff]
    %v3555 = vld [vmem:[%s3535 + $0x98] sm:$0xff]
    %v3556 = vld [vmem:[%s3535 + $0xa0] sm:$0xff]
    %v3557 = vld [vmem:[%s3535 + $0xa8] sm:$0xff]
    %v3558 = vld [vmem:[%s3535 + $0xb0] sm:$0xff]
    %v3559 = vld [vmem:[%s3535 + $0xb8] sm:$0xff]
    %v3560 = vld [vmem:[%s3535 + $0xc0] sm:$0xff]
    %v3561 = vld [vmem:[%s3535 + $0xc8] sm:$0xff]
    %v3562 = vld [vmem:[%s3535 + $0xd0] sm:$0xff]
    %v3563 = vld [vmem:[%s3535 + $0xd8] sm:$0xff]
    %v3564 = vld [vmem:[%s3535 + $0xe0] sm:$0xff]
    %v3565 = vld [vmem:[%s3535 + $0xe8] sm:$0xff]
    %v3566 = vld [vmem:[%s3535 + $0xf0] sm:$0xff]
    %v3567 = vld [vmem:[%s3535 + $0xf8] sm:$0xff]
    %3568 = vmatprep.subr.mxu0 0.0
    %3569 = vmatpush1.msra.mxu0 %v3536
    %3570 = vmatprep.subr.mxu0 0.0
    %3571 = vmatpush1.msra.mxu0 %v3537
    %3572 = vmatprep.subr.mxu0 0.0
    %3573 = vmatpush1.msra.mxu0 %v3538
    %3574 = vmatprep.subr.mxu0 0.0
    %3575 = vmatpush1.msra.mxu0 %v3539
    %3576 = vmatprep.subr.mxu0 0.0
    %3577 = vmatpush1.msra.mxu0 %v3540
    %3578 = vmatprep.subr.mxu0 0.0
    %3579 = vmatpush1.msra.mxu0 %v3541
    %3580 = vmatprep.subr.mxu0 0.0
    %3581 = vmatpush1.msra.mxu0 %v3542
    %3582 = vmatprep.subr.mxu0 0.0
    %3583 = vmatpush1.msra.mxu0 %v3543
    %3584 = vmatprep.subr.mxu0 0.0
    %3585 = vmatpush1.msra.mxu0 %v3544
    %3586 = vmatprep.subr.mxu0 0.0
    %3587 = vmatpush1.msra.mxu0 %v3545
    %3588 = vmatprep.subr.mxu0 0.0
    %3589 = vmatpush1.msra.mxu0 %v3546
    %3590 = vmatprep.subr.mxu0 0.0
    %3591 = vmatpush1.msra.mxu0 %v3547
    %3592 = vmatprep.subr.mxu0 0.0
    %3593 = vmatpush1.msra.mxu0 %v3548
    %3594 = vmatprep.subr.mxu0 0.0
    %3595 = vmatpush1.msra.mxu0 %v3549
    %3596 = vmatprep.subr.mxu0 0.0
    %3597 = vmatpush1.msra.mxu0 %v3550
    %3598 = vmatprep.subr.mxu0 0.0
    %3599 = vmatpush1.msra.mxu0 %v3551
    %3600 = vmatprep.subr.mxu0 0.0
    %3601 = vmatpush1.msra.mxu0 %v3552
    %3602 = vmatprep.subr.mxu0 0.0
    %3603 = vmatpush1.msra.mxu0 %v3553
    %3604 = vmatprep.subr.mxu0 0.0
    %3605 = vmatpush1.msra.mxu0 %v3554
    %3606 = vmatprep.subr.mxu0 0.0
    %3607 = vmatpush1.msra.mxu0 %v3555
    %3608 = vmatprep.subr.mxu0 0.0
    %3609 = vmatpush1.msra.mxu0 %v3556
    %3610 = vmatprep.subr.mxu0 0.0
    %3611 = vmatpush1.msra.mxu0 %v3557
    %3612 = vmatprep.subr.mxu0 0.0
    %3613 = vmatpush1.msra.mxu0 %v3558
    %3614 = vmatprep.subr.mxu0 0.0
    %3615 = vmatpush1.msra.mxu0 %v3559
    %3616 = vmatprep.subr.mxu0 0.0
    %3617 = vmatpush1.msra.mxu0 %v3560
    %3618 = vmatprep.subr.mxu0 0.0
    %3619 = vmatpush1.msra.mxu0 %v3561
    %3620 = vmatprep.subr.mxu0 0.0
    %3621 = vmatpush1.msra.mxu0 %v3562
    %3622 = vmatprep.subr.mxu0 0.0
    %3623 = vmatpush1.msra.mxu0 %v3563
    %3624 = vmatprep.subr.mxu0 0.0
    %3625 = vmatpush1.msra.mxu0 %v3564
    %3626 = vmatprep.subr.mxu0 0.0
    %3627 = vmatpush1.msra.mxu0 %v3565
    %3628 = vmatprep.subr.mxu0 0.0
    %3629 = vmatpush1.msra.mxu0 %v3566
    %3630 = vmatprep.subr.mxu0 0.0
    %3631 = vmatpush1.msra.mxu0 %v3567
    %3632 = vmatprep.mubr.f32.mxu0 %v3534
    %3633 = vmatmul.mubr.f32.gmra.mrb[0].mxu0 %v3533
    %v3634 = vpop.f32.mrb[0].mxu0
    %v3635 = vadd.f32 0.0, %v3634
    %v3636 = vpop.f32.mrb[0].mxu0
    %3637 = vdwg.mxu0
    %v3638 = vmul.f32 %v3635, 0.001953125
    %v3639 = vmul.f32 %v3638, %v3638
    %v3641 = vrot.slane %v3639, 7
    %v3643 = vsub.f32 %v3638, %v3641
    %v3644 = vmax.f32 %v3643, 0.0
    %s3645 = scalar_lea.vmem [#allocation17], 2
    %v3646 = vld [vmem:[%s3645] sm:$0x3]
    %v3647 = vadd.f32 %v3644, 1e-05
    %v3648 = vrsqrt.pop %v3647
    %v3650 = vrot.slane %v3648, 1
    %v3652 = vmul.f32 %v3646, %v3650
    %v3653 = vmul.f32 %v3638, %v3652
    %v3655 = vrot.slane %v3653, 7
    %v3657 = vsub.f32 %v3646, %v3655
    %v3658 = vsel %vm816, %v3652, %v3657
    %s3659 = scalar_lea.vmem [#allocation16], 64
    %v3660 = vld [vmem:[%s3659] sm:$0xff]
    %v3661 = vld [vmem:[%s3659 + $0x8] sm:$0xff]
    %v3662 = vld [vmem:[%s3659 + $0x10] sm:$0xff]
    %v3663 = vld [vmem:[%s3659 + $0x18] sm:$0xff]
    %v3664 = vld [vmem:[%s3659 + $0x20] sm:$0xff]
    %v3665 = vld [vmem:[%s3659 + $0x28] sm:$0xff]
    %v3666 = vld [vmem:[%s3659 + $0x30] sm:$0xff]
    %v3667 = vld [vmem:[%s3659 + $0x38] sm:$0xff]
    %v3669 = vsel %vm179, %v3658, 0
    %3671 = vmatprep.subr.mxu0 %v3661
    %3672 = vmatpush1.msra.mxu0 %v3660
    %3673 = vmatprep.subr.mxu0 %v3663
    %3674 = vmatpush1.msra.mxu0 %v3662
    %3675 = vmatprep.subr.mxu0 %v3665
    %3676 = vmatpush1.msra.mxu0 %v3664
    %3677 = vmatprep.subr.mxu0 %v3667
    %3678 = vmatpush1.msra.mxu0 %v3666
    %3679 = vmatprep.subr.mxu0 0.0
    %3680 = vmatpush1.msra.mxu0 0.0
    %3681 = vmatprep.subr.mxu0 0.0
    %3682 = vmatpush1.msra.mxu0 0.0
    %3683 = vmatprep.subr.mxu0 0.0
    %3684 = vmatpush1.msra.mxu0 0.0
    %3685 = vmatprep.subr.mxu0 0.0
    %3686 = vmatpush1.msra.mxu0 0.0
    %3687 = vmatprep.subr.mxu0 0.0
    %3688 = vmatpush1.msra.mxu0 0.0
    %3689 = vmatprep.subr.mxu0 0.0
    %3690 = vmatpush1.msra.mxu0 0.0
    %3691 = vmatprep.subr.mxu0 0.0
    %3692 = vmatpush1.msra.mxu0 0.0
    %3693 = vmatprep.subr.mxu0 0.0
    %3694 = vmatpush1.msra.mxu0 0.0
    %3695 = vmatprep.subr.mxu0 0.0
    %3696 = vmatpush1.msra.mxu0 0.0
    %3697 = vmatprep.subr.mxu0 0.0
    %3698 = vmatpush1.msra.mxu0 0.0
    %3699 = vmatprep.subr.mxu0 0.0
    %3700 = vmatpush1.msra.mxu0 0.0
    %3701 = vmatprep.subr.mxu0 0.0
    %3702 = vmatpush1.msra.mxu0 0.0
    %3703 = vmatprep.subr.mxu0 0.0
    %3704 = vmatpush1.msra.mxu0 0.0
    %3705 = vmatprep.subr.mxu0 0.0
    %3706 = vmatpush1.msra.mxu0 0.0
    %3707 = vmatprep.subr.mxu0 0.0
    %3708 = vmatpush1.msra.mxu0 0.0
    %3709 = vmatprep.subr.mxu0 0.0
    %3710 = vmatpush1.msra.mxu0 0.0
    %3711 = vmatprep.subr.mxu0 0.0
    %3712 = vmatpush1.msra.mxu0 0.0
    %3713 = vmatprep.subr.mxu0 0.0
    %3714 = vmatpush1.msra.mxu0 0.0
    %3715 = vmatprep.subr.mxu0 0.0
    %3716 = vmatpush1.msra.mxu0 0.0
    %3717 = vmatprep.subr.mxu0 0.0
    %3718 = vmatpush1.msra.mxu0 0.0
    %3719 = vmatprep.subr.mxu0 0.0
    %3720 = vmatpush1.msra.mxu0 0.0
    %3721 = vmatprep.subr.mxu0 0.0
    %3722 = vmatpush1.msra.mxu0 0.0
    %3723 = vmatprep.subr.mxu0 0.0
    %3724 = vmatpush1.msra.mxu0 0.0
    %3725 = vmatprep.subr.mxu0 0.0
    %3726 = vmatpush1.msra.mxu0 0.0
    %3727 = vmatprep.subr.mxu0 0.0
    %3728 = vmatpush1.msra.mxu0 0.0
    %3729 = vmatprep.subr.mxu0 0.0
    %3730 = vmatpush1.msra.mxu0 0.0
    %3731 = vmatprep.subr.mxu0 0.0
    %3732 = vmatpush1.msra.mxu0 0.0
    %3733 = vmatprep.subr.mxu0 0.0
    %3734 = vmatpush1.msra.mxu0 0.0
    %3735 = vmatprep.mubr.f32.mxu0 0.0
    %3736 = vmatmul.mubr.f32.gmra.mrb[0].mxu0 %v3669
    %v3737 = vpop.f32.mrb[0].mxu0
    %v3738 = vadd.f32 0.0, %v3737
    %v3739 = vpop.f32.mrb[0].mxu0
    %v3740 = vadd.f32 0.0, %v3739
    %3741 = vdwg.mxu0
    %v3742 = vlaneseq
    %v3743 = vshrl.u32 %v3742, 7
    %v3744 = vsub.s32 0, %v3743
    %v3745 = vrot.slane %v3738, %v3744
    %v3746 = vlaneseq
    %v3747 = vshrl.u32 %v3746, 7
    %v3748 = vsub.s32 0, %v3747
    %v3749 = vrot.slane %v3740, %v3748
    %v3750 = vmul.f32 %v3471, %v3745
    %v3751 = vmul.f32 %v3473, %v3749
    %v3752 = vmul.f32 %v3475, %v3745
    %v3753 = vmul.f32 %v3477, %v3749
    %v3754 = vmul.f32 %v3481, %v3745
    %v3755 = vmul.f32 %v3483, %v3749
    %v3756 = vmul.f32 %v3485, %v3745
    %v3757 = vmul.f32 %v3487, %v3749
    %v3758 = vlaneseq
    %v3759 = vshrl.u32 %v3758, 7
    %v3760 = vsub.s32 1, %v3759
    %v3761 = vrot.slane %v3738, %v3760
    %v3762 = vlaneseq
    %v3763 = vshrl.u32 %v3762, 7
    %v3764 = vsub.s32 1, %v3763
    %v3765 = vrot.slane %v3740, %v3764
    %v3766 = vadd.f32 %v3750, %v3761
    %v3767 = vadd.f32 %v3751, %v3765
    %v3768 = vadd.f32 %v3752, %v3761
    %v3769 = vadd.f32 %v3753, %v3765
    %v3770 = vadd.f32 %v3754, %v3761
    %v3771 = vadd.f32 %v3755, %v3765
    %v3772 = vadd.f32 %v3756, %v3761
    %v3773 = vadd.f32 %v3757, %v3765
    %v3774 = vmax.f32 %v3766, 0.0
    %v3775 = vmax.f32 %v3767, 0.0
    %v3776 = vmax.f32 %v3768, 0.0
    %v3777 = vmax.f32 %v3769, 0.0
    %v3778 = vmax.f32 %v3770, 0.0
    %v3779 = vmax.f32 %v3771, 0.0
    %v3780 = vmax.f32 %v3772, 0.0
    %v3781 = vmax.f32 %v3773, 0.0
    %v3790 = vcombine.low %v3774, %v3775
    %v3791 = vcombine.high %v3774, %v3775
    %v3793 = vunpack.c.l.s4 1966171168
    %v3794 = vunpack.c.0.s8 %v3793
    %v3795 = vlaneseq
    %v3796 = vshrl.u32 %v3795, 7
    %v3797 = vsub.s32 %v3794, %v3796
    %v3798 = vrot.slane %v3790, %v3797
    %v3800 = vunpack.c.l.s4 1966171168
    %v3801 = vunpack.c.0.s8 %v3800
    %v3802 = vlaneseq
    %v3803 = vshrl.u32 %v3802, 7
    %v3804 = vsub.s32 %v3801, %v3803
    %v3805 = vrot.slane %v3791, %v3804
    %v3806 = vcombine.high %v3798, %v3798
    %v3807 = vcombine.high %v3805, %v3805
    %v3809 = vunpack.c.l.s4 1966171168
    %v3810 = vunpack.c.0.s8 %v3809
    %v3811 = vlaneseq
    %v3812 = vshrl.u32 %v3811, 7
    %v3813 = vsub.s32 %v3810, %v3812
    %v3814 = vrot.slane %v3798, %v3813
    %v3816 = vunpack.c.l.s4 1966171168
    %v3817 = vunpack.c.0.s8 %v3816
    %v3818 = vlaneseq
    %v3819 = vshrl.u32 %v3818, 7
    %v3820 = vsub.s32 %v3817, %v3819
    %v3821 = vrot.slane %v3805, %v3820
    %v3823 = vunpack.c.l.s4 1966171168
    %v3824 = vunpack.c.0.s8 %v3823
    %v3825 = vlaneseq
    %v3826 = vshrl.u32 %v3825, 7
    %v3827 = vsub.s32 %v3824, %v3826
    %v3828 = vrot.slane %v3806, %v3827
    %v3830 = vunpack.c.l.s4 1966171168
    %v3831 = vunpack.c.0.s8 %v3830
    %v3832 = vlaneseq
    %v3833 = vshrl.u32 %v3832, 7
    %v3834 = vsub.s32 %v3831, %v3833
    %v3835 = vrot.slane %v3807, %v3834
    %v3836 = vcombine.high %v3814, %v3814
    %v3837 = vcombine.high %v3821, %v3821
    %v3838 = vcombine.high %v3828, %v3828
    %v3839 = vcombine.high %v3835, %v3835
    %v3840 = vcombine.low %v3776, %v3777
    %v3841 = vcombine.high %v3776, %v3777
    %v3843 = vunpack.c.l.s4 1966171168
    %v3844 = vunpack.c.0.s8 %v3843
    %v3845 = vlaneseq
    %v3846 = vshrl.u32 %v3845, 7
    %v3847 = vsub.s32 %v3844, %v3846
    %v3848 = vrot.slane %v3840, %v3847
    %v3850 = vunpack.c.l.s4 1966171168
    %v3851 = vunpack.c.0.s8 %v3850
    %v3852 = vlaneseq
    %v3853 = vshrl.u32 %v3852, 7
    %v3854 = vsub.s32 %v3851, %v3853
    %v3855 = vrot.slane %v3841, %v3854
    %v3856 = vcombine.high %v3848, %v3848
    %v3857 = vcombine.high %v3855, %v3855
    %v3859 = vunpack.c.l.s4 1966171168
    %v3860 = vunpack.c.0.s8 %v3859
    %v3861 = vlaneseq
    %v3862 = vshrl.u32 %v3861, 7
    %v3863 = vsub.s32 %v3860, %v3862
    %v3864 = vrot.slane %v3848, %v3863
    %v3866 = vunpack.c.l.s4 1966171168
    %v3867 = vunpack.c.0.s8 %v3866
    %v3868 = vlaneseq
    %v3869 = vshrl.u32 %v3868, 7
    %v3870 = vsub.s32 %v3867, %v3869
    %v3871 = vrot.slane %v3855, %v3870
    %v3873 = vunpack.c.l.s4 1966171168
    %v3874 = vunpack.c.0.s8 %v3873
    %v3875 = vlaneseq
    %v3876 = vshrl.u32 %v3875, 7
    %v3877 = vsub.s32 %v3874, %v3876
    %v3878 = vrot.slane %v3856, %v3877
    %v3880 = vunpack.c.l.s4 1966171168
    %v3881 = vunpack.c.0.s8 %v3880
    %v3882 = vlaneseq
    %v3883 = vshrl.u32 %v3882, 7
    %v3884 = vsub.s32 %v3881, %v3883
    %v3885 = vrot.slane %v3857, %v3884
    %v3886 = vcombine.high %v3864, %v3864
    %v3887 = vcombine.high %v3871, %v3871
    %v3888 = vcombine.high %v3878, %v3878
    %v3889 = vcombine.high %v3885, %v3885
    %v3890 = vcombine.low %v3778, %v3779
    %v3891 = vcombine.high %v3778, %v3779
    %v3893 = vunpack.c.l.s4 1966171168
    %v3894 = vunpack.c.0.s8 %v3893
    %v3895 = vlaneseq
    %v3896 = vshrl.u32 %v3895, 7
    %v3897 = vsub.s32 %v3894, %v3896
    %v3898 = vrot.slane %v3890, %v3897
    %v3900 = vunpack.c.l.s4 1966171168
    %v3901 = vunpack.c.0.s8 %v3900
    %v3902 = vlaneseq
    %v3903 = vshrl.u32 %v3902, 7
    %v3904 = vsub.s32 %v3901, %v3903
    %v3905 = vrot.slane %v3891, %v3904
    %v3906 = vcombine.high %v3898, %v3898
    %v3907 = vcombine.high %v3905, %v3905
    %v3909 = vunpack.c.l.s4 1966171168
    %v3910 = vunpack.c.0.s8 %v3909
    %v3911 = vlaneseq
    %v3912 = vshrl.u32 %v3911, 7
    %v3913 = vsub.s32 %v3910, %v3912
    %v3914 = vrot.slane %v3898, %v3913
    %v3916 = vunpack.c.l.s4 1966171168
    %v3917 = vunpack.c.0.s8 %v3916
    %v3918 = vlaneseq
    %v3919 = vshrl.u32 %v3918, 7
    %v3920 = vsub.s32 %v3917, %v3919
    %v3921 = vrot.slane %v3905, %v3920
    %v3923 = vunpack.c.l.s4 1966171168
    %v3924 = vunpack.c.0.s8 %v3923
    %v3925 = vlaneseq
    %v3926 = vshrl.u32 %v3925, 7
    %v3927 = vsub.s32 %v3924, %v3926
    %v3928 = vrot.slane %v3906, %v3927
    %v3930 = vunpack.c.l.s4 1966171168
    %v3931 = vunpack.c.0.s8 %v3930
    %v3932 = vlaneseq
    %v3933 = vshrl.u32 %v3932, 7
    %v3934 = vsub.s32 %v3931, %v3933
    %v3935 = vrot.slane %v3907, %v3934
    %v3936 = vcombine.high %v3914, %v3914
    %v3937 = vcombine.high %v3921, %v3921
    %v3938 = vcombine.high %v3928, %v3928
    %v3939 = vcombine.high %v3935, %v3935
    %v3940 = vcombine.low %v3780, %v3781
    %v3941 = vcombine.high %v3780, %v3781
    %v3943 = vunpack.c.l.s4 1966171168
    %v3944 = vunpack.c.0.s8 %v3943
    %v3945 = vlaneseq
    %v3946 = vshrl.u32 %v3945, 7
    %v3947 = vsub.s32 %v3944, %v3946
    %v3948 = vrot.slane %v3940, %v3947
    %v3950 = vunpack.c.l.s4 1966171168
    %v3951 = vunpack.c.0.s8 %v3950
    %v3952 = vlaneseq
    %v3953 = vshrl.u32 %v3952, 7
    %v3954 = vsub.s32 %v3951, %v3953
    %v3955 = vrot.slane %v3941, %v3954
    %v3956 = vcombine.high %v3948, %v3948
    %v3957 = vcombine.high %v3955, %v3955
    %v3959 = vunpack.c.l.s4 1966171168
    %v3960 = vunpack.c.0.s8 %v3959
    %v3961 = vlaneseq
    %v3962 = vshrl.u32 %v3961, 7
    %v3963 = vsub.s32 %v3960, %v3962
    %v3964 = vrot.slane %v3948, %v3963
    %v3966 = vunpack.c.l.s4 1966171168
    %v3967 = vunpack.c.0.s8 %v3966
    %v3968 = vlaneseq
    %v3969 = vshrl.u32 %v3968, 7
    %v3970 = vsub.s32 %v3967, %v3969
    %v3971 = vrot.slane %v3955, %v3970
    %v3973 = vunpack.c.l.s4 1966171168
    %v3974 = vunpack.c.0.s8 %v3973
    %v3975 = vlaneseq
    %v3976 = vshrl.u32 %v3975, 7
    %v3977 = vsub.s32 %v3974, %v3976
    %v3978 = vrot.slane %v3956, %v3977
    %v3980 = vunpack.c.l.s4 1966171168
    %v3981 = vunpack.c.0.s8 %v3980
    %v3982 = vlaneseq
    %v3983 = vshrl.u32 %v3982, 7
    %v3984 = vsub.s32 %v3981, %v3983
    %v3985 = vrot.slane %v3957, %v3984
    %v3986 = vcombine.high %v3964, %v3964
    %v3987 = vcombine.high %v3971, %v3971
    %v3988 = vcombine.high %v3978, %v3978
    %v3989 = vcombine.high %v3985, %v3985
    %v3990 = vlaneseq
    %v3991 = vshrl.u32 %v3990, 7
    %v3992 = vsub.s32 0, %v3991
    %v3993 = vrot.slane %v3814, %v3992
    %v3994 = vlaneseq
    %v3995 = vshrl.u32 %v3994, 7
    %v3996 = vsub.s32 1, %v3995
    %v3997 = vrot.slane %v3814, %v3996
    %v3998 = vlaneseq
    %v3999 = vshrl.u32 %v3998, 7
    %v4000 = vsub.s32 0, %v3999
    %v4001 = vrot.slane %v3828, %v4000
    %v4002 = vlaneseq
    %v4003 = vshrl.u32 %v4002, 7
    %v4004 = vsub.s32 1, %v4003
    %v4005 = vrot.slane %v3828, %v4004
    %v4006 = vlaneseq
    %v4007 = vshrl.u32 %v4006, 7
    %v4008 = vsub.s32 0, %v4007
    %v4009 = vrot.slane %v3836, %v4008
    %v4010 = vlaneseq
    %v4011 = vshrl.u32 %v4010, 7
    %v4012 = vsub.s32 1, %v4011
    %v4013 = vrot.slane %v3836, %v4012
    %v4014 = vlaneseq
    %v4015 = vshrl.u32 %v4014, 7
    %v4016 = vsub.s32 0, %v4015
    %v4017 = vrot.slane %v3838, %v4016
    %v4018 = vlaneseq
    %v4019 = vshrl.u32 %v4018, 7
    %v4020 = vsub.s32 1, %v4019
    %v4021 = vrot.slane %v3838, %v4020
    %v4022 = vlaneseq
    %v4023 = vshrl.u32 %v4022, 7
    %v4024 = vsub.s32 0, %v4023
    %v4025 = vrot.slane %v3821, %v4024
    %v4026 = vlaneseq
    %v4027 = vshrl.u32 %v4026, 7
    %v4028 = vsub.s32 1, %v4027
    %v4029 = vrot.slane %v3821, %v4028
    %v4030 = vlaneseq
    %v4031 = vshrl.u32 %v4030, 7
    %v4032 = vsub.s32 0, %v4031
    %v4033 = vrot.slane %v3835, %v4032
    %v4034 = vlaneseq
    %v4035 = vshrl.u32 %v4034, 7
    %v4036 = vsub.s32 1, %v4035
    %v4037 = vrot.slane %v3835, %v4036
    %v4038 = vlaneseq
    %v4039 = vshrl.u32 %v4038, 7
    %v4040 = vsub.s32 0, %v4039
    %v4041 = vrot.slane %v3837, %v4040
    %v4042 = vlaneseq
    %v4043 = vshrl.u32 %v4042, 7
    %v4044 = vsub.s32 1, %v4043
    %v4045 = vrot.slane %v3837, %v4044
    %v4046 = vlaneseq
    %v4047 = vshrl.u32 %v4046, 7
    %v4048 = vsub.s32 0, %v4047
    %v4049 = vrot.slane %v3839, %v4048
    %v4050 = vlaneseq
    %v4051 = vshrl.u32 %v4050, 7
    %v4052 = vsub.s32 1, %v4051
    %v4053 = vrot.slane %v3839, %v4052
    %v4054 = vlaneseq
    %v4055 = vshrl.u32 %v4054, 7
    %v4056 = vsub.s32 0, %v4055
    %v4057 = vrot.slane %v3864, %v4056
    %v4058 = vlaneseq
    %v4059 = vshrl.u32 %v4058, 7
    %v4060 = vsub.s32 1, %v4059
    %v4061 = vrot.slane %v3864, %v4060
    %v4062 = vlaneseq
    %v4063 = vshrl.u32 %v4062, 7
    %v4064 = vsub.s32 0, %v4063
    %v4065 = vrot.slane %v3878, %v4064
    %v4066 = vlaneseq
    %v4067 = vshrl.u32 %v4066, 7
    %v4068 = vsub.s32 1, %v4067
    %v4069 = vrot.slane %v3878, %v4068
    %v4070 = vlaneseq
    %v4071 = vshrl.u32 %v4070, 7
    %v4072 = vsub.s32 0, %v4071
    %v4073 = vrot.slane %v3886, %v4072
    %v4074 = vlaneseq
    %v4075 = vshrl.u32 %v4074, 7
    %v4076 = vsub.s32 1, %v4075
    %v4077 = vrot.slane %v3886, %v4076
    %v4078 = vlaneseq
    %v4079 = vshrl.u32 %v4078, 7
    %v4080 = vsub.s32 0, %v4079
    %v4081 = vrot.slane %v3888, %v4080
    %v4082 = vlaneseq
    %v4083 = vshrl.u32 %v4082, 7
    %v4084 = vsub.s32 1, %v4083
    %v4085 = vrot.slane %v3888, %v4084
    %v4086 = vlaneseq
    %v4087 = vshrl.u32 %v4086, 7
    %v4088 = vsub.s32 0, %v4087
    %v4089 = vrot.slane %v3871, %v4088
    %v4090 = vlaneseq
    %v4091 = vshrl.u32 %v4090, 7
    %v4092 = vsub.s32 1, %v4091
    %v4093 = vrot.slane %v3871, %v4092
    %v4094 = vlaneseq
    %v4095 = vshrl.u32 %v4094, 7
    %v4096 = vsub.s32 0, %v4095
    %v4097 = vrot.slane %v3885, %v4096
    %v4098 = vlaneseq
    %v4099 = vshrl.u32 %v4098, 7
    %v4100 = vsub.s32 1, %v4099
    %v4101 = vrot.slane %v3885, %v4100
    %v4102 = vlaneseq
    %v4103 = vshrl.u32 %v4102, 7
    %v4104 = vsub.s32 0, %v4103
    %v4105 = vrot.slane %v3887, %v4104
    %v4106 = vlaneseq
    %v4107 = vshrl.u32 %v4106, 7
    %v4108 = vsub.s32 1, %v4107
    %v4109 = vrot.slane %v3887, %v4108
    %v4110 = vlaneseq
    %v4111 = vshrl.u32 %v4110, 7
    %v4112 = vsub.s32 0, %v4111
    %v4113 = vrot.slane %v3889, %v4112
    %v4114 = vlaneseq
    %v4115 = vshrl.u32 %v4114, 7
    %v4116 = vsub.s32 1, %v4115
    %v4117 = vrot.slane %v3889, %v4116
    %v4118 = vlaneseq
    %v4119 = vshrl.u32 %v4118, 7
    %v4120 = vsub.s32 0, %v4119
    %v4121 = vrot.slane %v3914, %v4120
    %v4122 = vlaneseq
    %v4123 = vshrl.u32 %v4122, 7
    %v4124 = vsub.s32 1, %v4123
    %v4125 = vrot.slane %v3914, %v4124
    %v4126 = vlaneseq
    %v4127 = vshrl.u32 %v4126, 7
    %v4128 = vsub.s32 0, %v4127
    %v4129 = vrot.slane %v3928, %v4128
    %v4130 = vlaneseq
    %v4131 = vshrl.u32 %v4130, 7
    %v4132 = vsub.s32 1, %v4131
    %v4133 = vrot.slane %v3928, %v4132
    %v4134 = vlaneseq
    %v4135 = vshrl.u32 %v4134, 7
    %v4136 = vsub.s32 0, %v4135
    %v4137 = vrot.slane %v3936, %v4136
    %v4138 = vlaneseq
    %v4139 = vshrl.u32 %v4138, 7
    %v4140 = vsub.s32 1, %v4139
    %v4141 = vrot.slane %v3936, %v4140
    %v4142 = vlaneseq
    %v4143 = vshrl.u32 %v4142, 7
    %v4144 = vsub.s32 0, %v4143
    %v4145 = vrot.slane %v3938, %v4144
    %v4146 = vlaneseq
    %v4147 = vshrl.u32 %v4146, 7
    %v4148 = vsub.s32 1, %v4147
    %v4149 = vrot.slane %v3938, %v4148
    %v4150 = vlaneseq
    %v4151 = vshrl.u32 %v4150, 7
    %v4152 = vsub.s32 0, %v4151
    %v4153 = vrot.slane %v3921, %v4152
    %v4154 = vlaneseq
    %v4155 = vshrl.u32 %v4154, 7
    %v4156 = vsub.s32 1, %v4155
    %v4157 = vrot.slane %v3921, %v4156
    %v4158 = vlaneseq
    %v4159 = vshrl.u32 %v4158, 7
    %v4160 = vsub.s32 0, %v4159
    %v4161 = vrot.slane %v3935, %v4160
    %v4162 = vlaneseq
    %v4163 = vshrl.u32 %v4162, 7
    %v4164 = vsub.s32 1, %v4163
    %v4165 = vrot.slane %v3935, %v4164
    %v4166 = vlaneseq
    %v4167 = vshrl.u32 %v4166, 7
    %v4168 = vsub.s32 0, %v4167
    %v4169 = vrot.slane %v3937, %v4168
    %v4170 = vlaneseq
    %v4171 = vshrl.u32 %v4170, 7
    %v4172 = vsub.s32 1, %v4171
    %v4173 = vrot.slane %v3937, %v4172
    %v4174 = vlaneseq
    %v4175 = vshrl.u32 %v4174, 7
    %v4176 = vsub.s32 0, %v4175
    %v4177 = vrot.slane %v3939, %v4176
    %v4178 = vlaneseq
    %v4179 = vshrl.u32 %v4178, 7
    %v4180 = vsub.s32 1, %v4179
    %v4181 = vrot.slane %v3939, %v4180
    %v4182 = vlaneseq
    %v4183 = vshrl.u32 %v4182, 7
    %v4184 = vsub.s32 0, %v4183
    %v4185 = vrot.slane %v3964, %v4184
    %v4186 = vlaneseq
    %v4187 = vshrl.u32 %v4186, 7
    %v4188 = vsub.s32 1, %v4187
    %v4189 = vrot.slane %v3964, %v4188
    %v4190 = vlaneseq
    %v4191 = vshrl.u32 %v4190, 7
    %v4192 = vsub.s32 0, %v4191
    %v4193 = vrot.slane %v3978, %v4192
    %v4194 = vlaneseq
    %v4195 = vshrl.u32 %v4194, 7
    %v4196 = vsub.s32 1, %v4195
    %v4197 = vrot.slane %v3978, %v4196
    %v4198 = vlaneseq
    %v4199 = vshrl.u32 %v4198, 7
    %v4200 = vsub.s32 0, %v4199
    %v4201 = vrot.slane %v3986, %v4200
    %v4202 = vlaneseq
    %v4203 = vshrl.u32 %v4202, 7
    %v4204 = vsub.s32 1, %v4203
    %v4205 = vrot.slane %v3986, %v4204
    %v4206 = vlaneseq
    %v4207 = vshrl.u32 %v4206, 7
    %v4208 = vsub.s32 0, %v4207
    %v4209 = vrot.slane %v3988, %v4208
    %v4210 = vlaneseq
    %v4211 = vshrl.u32 %v4210, 7
    %v4212 = vsub.s32 1, %v4211
    %v4213 = vrot.slane %v3988, %v4212
    %v4214 = vlaneseq
    %v4215 = vshrl.u32 %v4214, 7
    %v4216 = vsub.s32 0, %v4215
    %v4217 = vrot.slane %v3971, %v4216
    %v4218 = vlaneseq
    %v4219 = vshrl.u32 %v4218, 7
    %v4220 = vsub.s32 1, %v4219
    %v4221 = vrot.slane %v3971, %v4220
    %v4222 = vlaneseq
    %v4223 = vshrl.u32 %v4222, 7
    %v4224 = vsub.s32 0, %v4223
    %v4225 = vrot.slane %v3985, %v4224
    %v4226 = vlaneseq
    %v4227 = vshrl.u32 %v4226, 7
    %v4228 = vsub.s32 1, %v4227
    %v4229 = vrot.slane %v3985, %v4228
    %v4230 = vlaneseq
    %v4231 = vshrl.u32 %v4230, 7
    %v4232 = vsub.s32 0, %v4231
    %v4233 = vrot.slane %v3987, %v4232
    %v4234 = vlaneseq
    %v4235 = vshrl.u32 %v4234, 7
    %v4236 = vsub.s32 1, %v4235
    %v4237 = vrot.slane %v3987, %v4236
    %v4238 = vlaneseq
    %v4239 = vshrl.u32 %v4238, 7
    %v4240 = vsub.s32 0, %v4239
    %v4241 = vrot.slane %v3989, %v4240
    %v4242 = vlaneseq
    %v4243 = vshrl.u32 %v4242, 7
    %v4244 = vsub.s32 1, %v4243
    %v4245 = vrot.slane %v3989, %v4244
    %v4374 = vcombine.low %v3993, %v3997
    %v4376 = vunpack.c.l.s4 1983009808
    %v4377 = vunpack.c.0.s8 %v4376
    %v4378 = vlaneseq
    %v4379 = vshrl.u32 %v4378, 7
    %v4380 = vsub.s32 %v4377, %v4379
    %v4381 = vrot.slane %v4374, %v4380
    %v4382 = vcombine.low %v4001, %v4005
    %v4384 = vunpack.c.l.s4 1983009808
    %v4385 = vunpack.c.0.s8 %v4384
    %v4386 = vlaneseq
    %v4387 = vshrl.u32 %v4386, 7
    %v4388 = vsub.s32 %v4385, %v4387
    %v4389 = vrot.slane %v4382, %v4388
    %v4390 = vcombine.low %v4009, %v4013
    %v4392 = vunpack.c.l.s4 1983009808
    %v4393 = vunpack.c.0.s8 %v4392
    %v4394 = vlaneseq
    %v4395 = vshrl.u32 %v4394, 7
    %v4396 = vsub.s32 %v4393, %v4395
    %v4397 = vrot.slane %v4390, %v4396
    %v4398 = vcombine.low %v4017, %v4021
    %v4400 = vunpack.c.l.s4 1983009808
    %v4401 = vunpack.c.0.s8 %v4400
    %v4402 = vlaneseq
    %v4403 = vshrl.u32 %v4402, 7
    %v4404 = vsub.s32 %v4401, %v4403
    %v4405 = vrot.slane %v4398, %v4404
    %v4406 = vcombine.low %v4025, %v4029
    %v4408 = vunpack.c.l.s4 1983009808
    %v4409 = vunpack.c.0.s8 %v4408
    %v4410 = vlaneseq
    %v4411 = vshrl.u32 %v4410, 7
    %v4412 = vsub.s32 %v4409, %v4411
    %v4413 = vrot.slane %v4406, %v4412
    %v4414 = vcombine.low %v4033, %v4037
    %v4416 = vunpack.c.l.s4 1983009808
    %v4417 = vunpack.c.0.s8 %v4416
    %v4418 = vlaneseq
    %v4419 = vshrl.u32 %v4418, 7
    %v4420 = vsub.s32 %v4417, %v4419
    %v4421 = vrot.slane %v4414, %v4420
    %v4422 = vcombine.low %v4041, %v4045
    %v4424 = vunpack.c.l.s4 1983009808
    %v4425 = vunpack.c.0.s8 %v4424
    %v4426 = vlaneseq
    %v4427 = vshrl.u32 %v4426, 7
    %v4428 = vsub.s32 %v4425, %v4427
    %v4429 = vrot.slane %v4422, %v4428
    %v4430 = vcombine.low %v4049, %v4053
    %v4432 = vunpack.c.l.s4 1983009808
    %v4433 = vunpack.c.0.s8 %v4432
    %v4434 = vlaneseq
    %v4435 = vshrl.u32 %v4434, 7
    %v4436 = vsub.s32 %v4433, %v4435
    %v4437 = vrot.slane %v4430, %v4436
    %v4438 = vcombine.low %v4057, %v4061
    %v4440 = vunpack.c.l.s4 1983009808
    %v4441 = vunpack.c.0.s8 %v4440
    %v4442 = vlaneseq
    %v4443 = vshrl.u32 %v4442, 7
    %v4444 = vsub.s32 %v4441, %v4443
    %v4445 = vrot.slane %v4438, %v4444
    %v4446 = vcombine.low %v4065, %v4069
    %v4448 = vunpack.c.l.s4 1983009808
    %v4449 = vunpack.c.0.s8 %v4448
    %v4450 = vlaneseq
    %v4451 = vshrl.u32 %v4450, 7
    %v4452 = vsub.s32 %v4449, %v4451
    %v4453 = vrot.slane %v4446, %v4452
    %v4454 = vcombine.low %v4073, %v4077
    %v4456 = vunpack.c.l.s4 1983009808
    %v4457 = vunpack.c.0.s8 %v4456
    %v4458 = vlaneseq
    %v4459 = vshrl.u32 %v4458, 7
    %v4460 = vsub.s32 %v4457, %v4459
    %v4461 = vrot.slane %v4454, %v4460
    %v4462 = vcombine.low %v4081, %v4085
    %v4464 = vunpack.c.l.s4 1983009808
    %v4465 = vunpack.c.0.s8 %v4464
    %v4466 = vlaneseq
    %v4467 = vshrl.u32 %v4466, 7
    %v4468 = vsub.s32 %v4465, %v4467
    %v4469 = vrot.slane %v4462, %v4468
    %v4470 = vcombine.low %v4089, %v4093
    %v4472 = vunpack.c.l.s4 1983009808
    %v4473 = vunpack.c.0.s8 %v4472
    %v4474 = vlaneseq
    %v4475 = vshrl.u32 %v4474, 7
    %v4476 = vsub.s32 %v4473, %v4475
    %v4477 = vrot.slane %v4470, %v4476
    %v4478 = vcombine.low %v4097, %v4101
    %v4480 = vunpack.c.l.s4 1983009808
    %v4481 = vunpack.c.0.s8 %v4480
    %v4482 = vlaneseq
    %v4483 = vshrl.u32 %v4482, 7
    %v4484 = vsub.s32 %v4481, %v4483
    %v4485 = vrot.slane %v4478, %v4484
    %v4486 = vcombine.low %v4105, %v4109
    %v4488 = vunpack.c.l.s4 1983009808
    %v4489 = vunpack.c.0.s8 %v4488
    %v4490 = vlaneseq
    %v4491 = vshrl.u32 %v4490, 7
    %v4492 = vsub.s32 %v4489, %v4491
    %v4493 = vrot.slane %v4486, %v4492
    %v4494 = vcombine.low %v4113, %v4117
    %v4496 = vunpack.c.l.s4 1983009808
    %v4497 = vunpack.c.0.s8 %v4496
    %v4498 = vlaneseq
    %v4499 = vshrl.u32 %v4498, 7
    %v4500 = vsub.s32 %v4497, %v4499
    %v4501 = vrot.slane %v4494, %v4500
    %v4502 = vcombine.low %v4121, %v4125
    %v4504 = vunpack.c.l.s4 1983009808
    %v4505 = vunpack.c.0.s8 %v4504
    %v4506 = vlaneseq
    %v4507 = vshrl.u32 %v4506, 7
    %v4508 = vsub.s32 %v4505, %v4507
    %v4509 = vrot.slane %v4502, %v4508
    %v4510 = vcombine.low %v4129, %v4133
    %v4512 = vunpack.c.l.s4 1983009808
    %v4513 = vunpack.c.0.s8 %v4512
    %v4514 = vlaneseq
    %v4515 = vshrl.u32 %v4514, 7
    %v4516 = vsub.s32 %v4513, %v4515
    %v4517 = vrot.slane %v4510, %v4516
    %v4518 = vcombine.low %v4137, %v4141
    %v4520 = vunpack.c.l.s4 1983009808
    %v4521 = vunpack.c.0.s8 %v4520
    %v4522 = vlaneseq
    %v4523 = vshrl.u32 %v4522, 7
    %v4524 = vsub.s32 %v4521, %v4523
    %v4525 = vrot.slane %v4518, %v4524
    %v4526 = vcombine.low %v4145, %v4149
    %v4528 = vunpack.c.l.s4 1983009808
    %v4529 = vunpack.c.0.s8 %v4528
    %v4530 = vlaneseq
    %v4531 = vshrl.u32 %v4530, 7
    %v4532 = vsub.s32 %v4529, %v4531
    %v4533 = vrot.slane %v4526, %v4532
    %v4534 = vcombine.low %v4153, %v4157
    %v4536 = vunpack.c.l.s4 1983009808
    %v4537 = vunpack.c.0.s8 %v4536
    %v4538 = vlaneseq
    %v4539 = vshrl.u32 %v4538, 7
    %v4540 = vsub.s32 %v4537, %v4539
    %v4541 = vrot.slane %v4534, %v4540
    %v4542 = vcombine.low %v4161, %v4165
    %v4544 = vunpack.c.l.s4 1983009808
    %v4545 = vunpack.c.0.s8 %v4544
    %v4546 = vlaneseq
    %v4547 = vshrl.u32 %v4546, 7
    %v4548 = vsub.s32 %v4545, %v4547
    %v4549 = vrot.slane %v4542, %v4548
    %v4550 = vcombine.low %v4169, %v4173
    %v4552 = vunpack.c.l.s4 1983009808
    %v4553 = vunpack.c.0.s8 %v4552
    %v4554 = vlaneseq
    %v4555 = vshrl.u32 %v4554, 7
    %v4556 = vsub.s32 %v4553, %v4555
    %v4557 = vrot.slane %v4550, %v4556
    %v4558 = vcombine.low %v4177, %v4181
    %v4560 = vunpack.c.l.s4 1983009808
    %v4561 = vunpack.c.0.s8 %v4560
    %v4562 = vlaneseq
    %v4563 = vshrl.u32 %v4562, 7
    %v4564 = vsub.s32 %v4561, %v4563
    %v4565 = vrot.slane %v4558, %v4564
    %v4566 = vcombine.low %v4185, %v4189
    %v4568 = vunpack.c.l.s4 1983009808
    %v4569 = vunpack.c.0.s8 %v4568
    %v4570 = vlaneseq
    %v4571 = vshrl.u32 %v4570, 7
    %v4572 = vsub.s32 %v4569, %v4571
    %v4573 = vrot.slane %v4566, %v4572
    %v4574 = vcombine.low %v4193, %v4197
    %v4576 = vunpack.c.l.s4 1983009808
    %v4577 = vunpack.c.0.s8 %v4576
    %v4578 = vlaneseq
    %v4579 = vshrl.u32 %v4578, 7
    %v4580 = vsub.s32 %v4577, %v4579
    %v4581 = vrot.slane %v4574, %v4580
    %v4582 = vcombine.low %v4201, %v4205
    %v4584 = vunpack.c.l.s4 1983009808
    %v4585 = vunpack.c.0.s8 %v4584
    %v4586 = vlaneseq
    %v4587 = vshrl.u32 %v4586, 7
    %v4588 = vsub.s32 %v4585, %v4587
    %v4589 = vrot.slane %v4582, %v4588
    %v4590 = vcombine.low %v4209, %v4213
    %v4592 = vunpack.c.l.s4 1983009808
    %v4593 = vunpack.c.0.s8 %v4592
    %v4594 = vlaneseq
    %v4595 = vshrl.u32 %v4594, 7
    %v4596 = vsub.s32 %v4593, %v4595
    %v4597 = vrot.slane %v4590, %v4596
    %v4598 = vcombine.low %v4217, %v4221
    %v4600 = vunpack.c.l.s4 1983009808
    %v4601 = vunpack.c.0.s8 %v4600
    %v4602 = vlaneseq
    %v4603 = vshrl.u32 %v4602, 7
    %v4604 = vsub.s32 %v4601, %v4603
    %v4605 = vrot.slane %v4598, %v4604
    %v4606 = vcombine.low %v4225, %v4229
    %v4608 = vunpack.c.l.s4 1983009808
    %v4609 = vunpack.c.0.s8 %v4608
    %v4610 = vlaneseq
    %v4611 = vshrl.u32 %v4610, 7
    %v4612 = vsub.s32 %v4609, %v4611
    %v4613 = vrot.slane %v4606, %v4612
    %v4614 = vcombine.low %v4233, %v4237
    %v4616 = vunpack.c.l.s4 1983009808
    %v4617 = vunpack.c.0.s8 %v4616
    %v4618 = vlaneseq
    %v4619 = vshrl.u32 %v4618, 7
    %v4620 = vsub.s32 %v4617, %v4619
    %v4621 = vrot.slane %v4614, %v4620
    %v4622 = vcombine.low %v4241, %v4245
    %v4624 = vunpack.c.l.s4 1983009808
    %v4625 = vunpack.c.0.s8 %v4624
    %v4626 = vlaneseq
    %v4627 = vshrl.u32 %v4626, 7
    %v4628 = vsub.s32 %v4625, %v4627
    %v4629 = vrot.slane %v4622, %v4628
    %4630 = vst.msk [vmem:[#allocation2] ss:$8 sm:$0x3] %vm988, 0.0
    %4631 = vst.msk [vmem:[#allocation2] ss:$8 sm:$0x0] %vm988, 0.0
    %4632 = vst.msk [vmem:[%s991] ss:$8 sm:$0x3] %vm988, 0.0
    %4633 = vst.msk [vmem:[%s991] ss:$8 sm:$0x0] %vm988, 0.0
    %v4634 = vcombine.low %v4381, %v4389
    %v4635 = vcombine.low %v4397, %v4405
    %v4637 = vunpack.c.l.s4 1983009808
    %v4638 = vunpack.c.0.s8 %v4637
    %v4639 = vlaneseq
    %v4640 = vshrl.u32 %v4639, 7
    %v4641 = vsub.s32 %v4638, %v4640
    %v4642 = vrot.slane %v4634, %v4641
    %v4644 = vunpack.c.l.s4 1983009808
    %v4645 = vunpack.c.0.s8 %v4644
    %v4646 = vlaneseq
    %v4647 = vshrl.u32 %v4646, 7
    %v4648 = vsub.s32 %v4645, %v4647
    %v4649 = vrot.slane %v4635, %v4648
    %v4650 = vcombine.low %v4642, %v4649
    %v4651 = vcombine.high %v4642, %v4649
    %v4652 = vcombine.low %v4413, %v4421
    %v4653 = vcombine.low %v4429, %v4437
    %v4655 = vunpack.c.l.s4 1983009808
    %v4656 = vunpack.c.0.s8 %v4655
    %v4657 = vlaneseq
    %v4658 = vshrl.u32 %v4657, 7
    %v4659 = vsub.s32 %v4656, %v4658
    %v4660 = vrot.slane %v4652, %v4659
    %v4662 = vunpack.c.l.s4 1983009808
    %v4663 = vunpack.c.0.s8 %v4662
    %v4664 = vlaneseq
    %v4665 = vshrl.u32 %v4664, 7
    %v4666 = vsub.s32 %v4663, %v4665
    %v4667 = vrot.slane %v4653, %v4666
    %v4668 = vcombine.low %v4660, %v4667
    %v4669 = vcombine.high %v4660, %v4667
    %v4670 = vcombine.low %v4445, %v4453
    %v4671 = vcombine.low %v4461, %v4469
    %v4673 = vunpack.c.l.s4 1983009808
    %v4674 = vunpack.c.0.s8 %v4673
    %v4675 = vlaneseq
    %v4676 = vshrl.u32 %v4675, 7
    %v4677 = vsub.s32 %v4674, %v4676
    %v4678 = vrot.slane %v4670, %v4677
    %v4680 = vunpack.c.l.s4 1983009808
    %v4681 = vunpack.c.0.s8 %v4680
    %v4682 = vlaneseq
    %v4683 = vshrl.u32 %v4682, 7
    %v4684 = vsub.s32 %v4681, %v4683
    %v4685 = vrot.slane %v4671, %v4684
    %v4686 = vcombine.low %v4678, %v4685
    %v4687 = vcombine.high %v4678, %v4685
    %v4688 = vcombine.low %v4477, %v4485
    %v4689 = vcombine.low %v4493, %v4501
    %v4691 = vunpack.c.l.s4 1983009808
    %v4692 = vunpack.c.0.s8 %v4691
    %v4693 = vlaneseq
    %v4694 = vshrl.u32 %v4693, 7
    %v4695 = vsub.s32 %v4692, %v4694
    %v4696 = vrot.slane %v4688, %v4695
    %v4698 = vunpack.c.l.s4 1983009808
    %v4699 = vunpack.c.0.s8 %v4698
    %v4700 = vlaneseq
    %v4701 = vshrl.u32 %v4700, 7
    %v4702 = vsub.s32 %v4699, %v4701
    %v4703 = vrot.slane %v4689, %v4702
    %v4704 = vcombine.low %v4696, %v4703
    %v4705 = vcombine.high %v4696, %v4703
    %v4706 = vcombine.low %v4509, %v4517
    %v4707 = vcombine.low %v4525, %v4533
    %v4709 = vunpack.c.l.s4 1983009808
    %v4710 = vunpack.c.0.s8 %v4709
    %v4711 = vlaneseq
    %v4712 = vshrl.u32 %v4711, 7
    %v4713 = vsub.s32 %v4710, %v4712
    %v4714 = vrot.slane %v4706, %v4713
    %v4716 = vunpack.c.l.s4 1983009808
    %v4717 = vunpack.c.0.s8 %v4716
    %v4718 = vlaneseq
    %v4719 = vshrl.u32 %v4718, 7
    %v4720 = vsub.s32 %v4717, %v4719
    %v4721 = vrot.slane %v4707, %v4720
    %v4722 = vcombine.low %v4714, %v4721
    %v4723 = vcombine.high %v4714, %v4721
    %v4724 = vcombine.low %v4541, %v4549
    %v4725 = vcombine.low %v4557, %v4565
    %v4727 = vunpack.c.l.s4 1983009808
    %v4728 = vunpack.c.0.s8 %v4727
    %v4729 = vlaneseq
    %v4730 = vshrl.u32 %v4729, 7
    %v4731 = vsub.s32 %v4728, %v4730
    %v4732 = vrot.slane %v4724, %v4731
    %v4734 = vunpack.c.l.s4 1983009808
    %v4735 = vunpack.c.0.s8 %v4734
    %v4736 = vlaneseq
    %v4737 = vshrl.u32 %v4736, 7
    %v4738 = vsub.s32 %v4735, %v4737
    %v4739 = vrot.slane %v4725, %v4738
    %v4740 = vcombine.low %v4732, %v4739
    %v4741 = vcombine.high %v4732, %v4739
    %v4742 = vcombine.low %v4573, %v4581
    %v4743 = vcombine.low %v4589, %v4597
    %v4745 = vunpack.c.l.s4 1983009808
    %v4746 = vunpack.c.0.s8 %v4745
    %v4747 = vlaneseq
    %v4748 = vshrl.u32 %v4747, 7
    %v4749 = vsub.s32 %v4746, %v4748
    %v4750 = vrot.slane %v4742, %v4749
    %v4752 = vunpack.c.l.s4 1983009808
    %v4753 = vunpack.c.0.s8 %v4752
    %v4754 = vlaneseq
    %v4755 = vshrl.u32 %v4754, 7
    %v4756 = vsub.s32 %v4753, %v4755
    %v4757 = vrot.slane %v4743, %v4756
    %v4758 = vcombine.low %v4750, %v4757
    %v4759 = vcombine.high %v4750, %v4757
    %v4760 = vcombine.low %v4605, %v4613
    %v4761 = vcombine.low %v4621, %v4629
    %v4763 = vunpack.c.l.s4 1983009808
    %v4764 = vunpack.c.0.s8 %v4763
    %v4765 = vlaneseq
    %v4766 = vshrl.u32 %v4765, 7
    %v4767 = vsub.s32 %v4764, %v4766
    %v4768 = vrot.slane %v4760, %v4767
    %v4770 = vunpack.c.l.s4 1983009808
    %v4771 = vunpack.c.0.s8 %v4770
    %v4772 = vlaneseq
    %v4773 = vshrl.u32 %v4772, 7
    %v4774 = vsub.s32 %v4771, %v4773
    %v4775 = vrot.slane %v4761, %v4774
    %v4776 = vcombine.low %v4768, %v4775
    %v4777 = vcombine.high %v4768, %v4775
    %v4778 = vrot.slane %v4650, 7
    %v4779 = vrot.slane %v4651, 7
    %v4780 = vrot.slane %v4668, 7
    %v4781 = vsel %vm816, %v4778, %v4780
    %v4782 = vrot.slane %v4669, 7
    %v4783 = vsel %vm816, %v4779, %v4782
    %v4784 = vrot.slane %v4686, 7
    %v4785 = vsel %vm816, %v4780, %v4784
    %v4786 = vrot.slane %v4687, 7
    %v4787 = vsel %vm816, %v4782, %v4786
    %v4788 = vrot.slane %v4704, 7
    %v4789 = vsel %vm816, %v4784, %v4788
    %v4790 = vrot.slane %v4705, 7
    %v4791 = vsel %vm816, %v4786, %v4790
    %v4792 = vrot.slane %v4722, 7
    %v4793 = vrot.slane %v4723, 7
    %v4794 = vrot.slane %v4740, 7
    %v4795 = vsel %vm816, %v4792, %v4794
    %v4796 = vrot.slane %v4741, 7
    %v4797 = vsel %vm816, %v4793, %v4796
    %v4798 = vrot.slane %v4758, 7
    %v4799 = vsel %vm816, %v4794, %v4798
    %v4800 = vrot.slane %v4759, 7
    %v4801 = vsel %vm816, %v4796, %v4800
    %v4802 = vrot.slane %v4776, 7
    %v4803 = vsel %vm816, %v4798, %v4802
    %v4804 = vrot.slane %v4777, 7
    %v4805 = vsel %vm816, %v4800, %v4804
    %4826 = vst [vmem:[#allocation2] sm:$0xfe] %v4778
    %4827 = vst [vmem:[#allocation2 + $0x8] sm:$0xfe] %v4779
    %4828 = vst [vmem:[#allocation2 + $0x10] sm:$0xff] %v4781
    %4829 = vst [vmem:[#allocation2 + $0x18] sm:$0xff] %v4783
    %4830 = vst [vmem:[#allocation2 + $0x20] sm:$0xff] %v4785
    %4831 = vst [vmem:[#allocation2 + $0x28] sm:$0xff] %v4787
    %4832 = vst [vmem:[#allocation2 + $0x30] sm:$0xff] %v4789
    %4833 = vst [vmem:[#allocation2 + $0x38] sm:$0xff] %v4791
    %4834 = vst [vmem:[#allocation2 + $0x40] sm:$0x1] %v4788
    %4835 = vst [vmem:[#allocation2 + $0x48] sm:$0x1] %v4790
    %4836 = vst [vmem:[#allocation2 + $0x90] sm:$0xfe] %v4792
    %4837 = vst [vmem:[#allocation2 + $0x98] sm:$0xfe] %v4793
    %4838 = vst [vmem:[#allocation2 + $0xa0] sm:$0xff] %v4795
    %4839 = vst [vmem:[#allocation2 + $0xa8] sm:$0xff] %v4797
    %4840 = vst [vmem:[#allocation2 + $0xb0] sm:$0xff] %v4799
    %4841 = vst [vmem:[#allocation2 + $0xb8] sm:$0xff] %v4801
    %4842 = vst [vmem:[#allocation2 + $0xc0] sm:$0xff] %v4803
    %4843 = vst [vmem:[#allocation2 + $0xc8] sm:$0xff] %v4805
    %4844 = vst [vmem:[#allocation2 + $0xd0] sm:$0x1] %v4802
    %4845 = vst [vmem:[#allocation2 + $0xd8] sm:$0x1] %v4804
    %s4846 = scalar_lea.vmem [#allocation2], 65
    %4847 = vst.msk [vmem:[%s4846] ss:$8 sm:$0x3] %vm988, 0.0
    %4848 = vst.msk [vmem:[%s4846] ss:$8 sm:$0x0] %vm988, 0.0
    %s4849 = scalar_lea.vmem [#allocation2], 209
    %4850 = vst.msk [vmem:[%s4849] ss:$8 sm:$0x3] %vm988, 0.0
    %4851 = vst.msk [vmem:[%s4849] ss:$8 sm:$0x0] %vm988, 0.0
    %v4852 = vld [vmem:[#allocation2] sm:$0xff]
    %v4853 = vld [vmem:[#allocation2 + $0x8] sm:$0xff]
    %v4854 = vld [vmem:[#allocation2 + $0x10] sm:$0xff]
    %v4855 = vld [vmem:[#allocation2 + $0x18] sm:$0xff]
    %v4856 = vld [vmem:[#allocation2 + $0x20] sm:$0xff]
    %v4857 = vld [vmem:[#allocation2 + $0x28] sm:$0xff]
    %v4858 = vld [vmem:[#allocation2 + $0x30] sm:$0xff]
    %v4859 = vld [vmem:[#allocation2 + $0x38] sm:$0xff]
    %v4860 = vld [vmem:[#allocation2 + $0x90] sm:$0xff]
    %v4861 = vld [vmem:[#allocation2 + $0x98] sm:$0xff]
    %v4862 = vld [vmem:[#allocation2 + $0xa0] sm:$0xff]
    %v4863 = vld [vmem:[#allocation2 + $0xa8] sm:$0xff]
    %v4864 = vld [vmem:[#allocation2 + $0xb0] sm:$0xff]
    %v4865 = vld [vmem:[#allocation2 + $0xb8] sm:$0xff]
    %v4866 = vld [vmem:[#allocation2 + $0xc0] sm:$0xff]
    %v4867 = vld [vmem:[#allocation2 + $0xc8] sm:$0xff]
    %v4868 = vld [vmem:[#allocation2] sm:$0xfe]
    %v4869 = vld [vmem:[#allocation2 + $0x8] sm:$0xfe]
    %v4870 = vld [vmem:[#allocation2 + $0x40] sm:$0x1]
    %v4871 = vld [vmem:[#allocation2 + $0x48] sm:$0x1]
    %v4872 = vld [vmem:[#allocation2 + $0x90] sm:$0xfe]
    %v4873 = vld [vmem:[#allocation2 + $0x98] sm:$0xfe]
    %v4874 = vld [vmem:[#allocation2 + $0xd0] sm:$0x1]
    %v4875 = vld [vmem:[#allocation2 + $0xd8] sm:$0x1]
    %v4876 = vld [vmem:[#allocation2] sm:$0xfc]
    %v4877 = vld [vmem:[#allocation2 + $0x8] sm:$0xfc]
    %v4878 = vld [vmem:[#allocation2 + $0x40] sm:$0x3]
    %v4879 = vld [vmem:[#allocation2 + $0x48] sm:$0x3]
    %v4880 = vld [vmem:[#allocation2 + $0x90] sm:$0xfc]
    %v4881 = vld [vmem:[#allocation2 + $0x98] sm:$0xfc]
    %v4882 = vld [vmem:[#allocation2 + $0xd0] sm:$0x3]
    %v4883 = vld [vmem:[#allocation2 + $0xd8] sm:$0x3]
    %v4904 = vrot.slane %v4868, 1
    %v4905 = vrot.slane %v4854, 1
    %v4906 = vsel %vm1080, %v4904, %v4905
    %v4907 = vrot.slane %v4869, 1
    %v4908 = vrot.slane %v4855, 1
    %v4909 = vsel %vm1080, %v4907, %v4908
    %v4910 = vrot.slane %v4856, 1
    %v4911 = vsel %vm1080, %v4905, %v4910
    %v4912 = vrot.slane %v4857, 1
    %v4913 = vsel %vm1080, %v4908, %v4912
    %v4914 = vrot.slane %v4858, 1
    %v4915 = vsel %vm1080, %v4910, %v4914
    %v4916 = vrot.slane %v4859, 1
    %v4917 = vsel %vm1080, %v4912, %v4916
    %v4918 = vrot.slane %v4870, 1
    %v4919 = vsel %vm1080, %v4914, %v4918
    %v4920 = vrot.slane %v4871, 1
    %v4921 = vsel %vm1080, %v4916, %v4920
    %v4922 = vrot.slane %v4872, 1
    %v4923 = vrot.slane %v4862, 1
    %v4924 = vsel %vm1080, %v4922, %v4923
    %v4925 = vrot.slane %v4873, 1
    %v4926 = vrot.slane %v4863, 1
    %v4927 = vsel %vm1080, %v4925, %v4926
    %v4928 = vrot.slane %v4864, 1
    %v4929 = vsel %vm1080, %v4923, %v4928
    %v4930 = vrot.slane %v4865, 1
    %v4931 = vsel %vm1080, %v4926, %v4930
    %v4932 = vrot.slane %v4866, 1
    %v4933 = vsel %vm1080, %v4928, %v4932
    %v4934 = vrot.slane %v4867, 1
    %v4935 = vsel %vm1080, %v4930, %v4934
    %v4936 = vrot.slane %v4874, 1
    %v4937 = vsel %vm1080, %v4932, %v4936
    %v4938 = vrot.slane %v4875, 1
    %v4939 = vsel %vm1080, %v4934, %v4938
    %v4964 = vrot.slane %v4876, 2
    %v4965 = vrot.slane %v4854, 2
    %v4966 = vsel %vm1105, %v4964, %v4965
    %v4967 = vrot.slane %v4877, 2
    %v4968 = vrot.slane %v4855, 2
    %v4969 = vsel %vm1105, %v4967, %v4968
    %v4970 = vrot.slane %v4856, 2
    %v4971 = vsel %vm1105, %v4965, %v4970
    %v4972 = vrot.slane %v4857, 2
    %v4973 = vsel %vm1105, %v4968, %v4972
    %v4974 = vrot.slane %v4858, 2
    %v4975 = vsel %vm1105, %v4970, %v4974
    %v4976 = vrot.slane %v4859, 2
    %v4977 = vsel %vm1105, %v4972, %v4976
    %v4978 = vrot.slane %v4878, 2
    %v4979 = vsel %vm1105, %v4974, %v4978
    %v4980 = vrot.slane %v4879, 2
    %v4981 = vsel %vm1105, %v4976, %v4980
    %v4982 = vrot.slane %v4880, 2
    %v4983 = vrot.slane %v4862, 2
    %v4984 = vsel %vm1105, %v4982, %v4983
    %v4985 = vrot.slane %v4881, 2
    %v4986 = vrot.slane %v4863, 2
    %v4987 = vsel %vm1105, %v4985, %v4986
    %v4988 = vrot.slane %v4864, 2
    %v4989 = vsel %vm1105, %v4983, %v4988
    %v4990 = vrot.slane %v4865, 2
    %v4991 = vsel %vm1105, %v4986, %v4990
    %v4992 = vrot.slane %v4866, 2
    %v4993 = vsel %vm1105, %v4988, %v4992
    %v4994 = vrot.slane %v4867, 2
    %v4995 = vsel %vm1105, %v4990, %v4994
    %v4996 = vrot.slane %v4882, 2
    %v4997 = vsel %vm1105, %v4992, %v4996
    %v4998 = vrot.slane %v4883, 2
    %v4999 = vsel %vm1105, %v4994, %v4998
    %v5016 = vpack.c.bf16 %v4854, %v4852
    %v5017 = vpack.c.bf16 %v4855, %v4853
    %v5018 = vpack.c.bf16 %v4911, %v4906
    %v5019 = vpack.c.bf16 %v4913, %v4909
    %v5020 = vpack.c.bf16 %v4971, %v4966
    %v5021 = vpack.c.bf16 %v4973, %v4969
    %v5022 = vpack.c.bf16 %v4858, %v4856
    %v5023 = vpack.c.bf16 %v4859, %v4857
    %v5024 = vpack.c.bf16 %v4919, %v4915
    %v5025 = vpack.c.bf16 %v4921, %v4917
    %v5026 = vpack.c.bf16 %v4979, %v4975
    %v5027 = vpack.c.bf16 %v4981, %v4977
    %v5028 = vpack.c.bf16 %v4862, %v4860
    %v5029 = vpack.c.bf16 %v4863, %v4861
    %v5030 = vpack.c.bf16 %v4929, %v4924
    %v5031 = vpack.c.bf16 %v4931, %v4927
    %v5032 = vpack.c.bf16 %v4989, %v4984
    %v5033 = vpack.c.bf16 %v4991, %v4987
    %v5034 = vpack.c.bf16 %v4866, %v4864
    %v5035 = vpack.c.bf16 %v4867, %v4865
    %v5036 = vpack.c.bf16 %v4937, %v4933
    %v5037 = vpack.c.bf16 %v4939, %v4935
    %v5038 = vpack.c.bf16 %v4997, %v4993
    %v5039 = vpack.c.bf16 %v4999, %v4995
    %s5040 = scalar_lea.vmem [#allocation14], 1536
    %v5041 = vld [vmem:[%s5040] sm:$0xff]
    %v5042 = vld [vmem:[%s5040 + $0x8] sm:$0xff]
    %v5043 = vld [vmem:[%s5040 + $0x10] sm:$0xff]
    %v5044 = vld [vmem:[%s5040 + $0x18] sm:$0xff]
    %v5045 = vld [vmem:[%s5040 + $0x20] sm:$0xff]
    %v5046 = vld [vmem:[%s5040 + $0x28] sm:$0xff]
    %v5047 = vld [vmem:[%s5040 + $0x30] sm:$0xff]
    %v5048 = vld [vmem:[%s5040 + $0x38] sm:$0xff]
    %v5049 = vld [vmem:[%s5040 + $0x40] sm:$0xff]
    %v5050 = vld [vmem:[%s5040 + $0x48] sm:$0xff]
    %v5051 = vld [vmem:[%s5040 + $0x50] sm:$0xff]
    %v5052 = vld [vmem:[%s5040 + $0x58] sm:$0xff]
    %v5053 = vld [vmem:[%s5040 + $0x60] sm:$0xff]
    %v5054 = vld [vmem:[%s5040 + $0x68] sm:$0xff]
    %v5055 = vld [vmem:[%s5040 + $0x70] sm:$0xff]
    %v5056 = vld [vmem:[%s5040 + $0x78] sm:$0xff]
    %v5057 = vld [vmem:[%s5040 + $0x80] sm:$0xff]
    %v5058 = vld [vmem:[%s5040 + $0x88] sm:$0xff]
    %v5059 = vld [vmem:[%s5040 + $0x90] sm:$0xff]
    %v5060 = vld [vmem:[%s5040 + $0x98] sm:$0xff]
    %v5061 = vld [vmem:[%s5040 + $0xa0] sm:$0xff]
    %v5062 = vld [vmem:[%s5040 + $0xa8] sm:$0xff]
    %v5063 = vld [vmem:[%s5040 + $0xb0] sm:$0xff]
    %v5064 = vld [vmem:[%s5040 + $0xb8] sm:$0xff]
    %v5065 = vld [vmem:[%s5040 + $0xc0] sm:$0xff]
    %v5066 = vld [vmem:[%s5040 + $0xc8] sm:$0xff]
    %v5067 = vld [vmem:[%s5040 + $0xd0] sm:$0xff]
    %v5068 = vld [vmem:[%s5040 + $0xd8] sm:$0xff]
    %v5069 = vld [vmem:[%s5040 + $0xe0] sm:$0xff]
    %v5070 = vld [vmem:[%s5040 + $0xe8] sm:$0xff]
    %v5071 = vld [vmem:[%s5040 + $0xf0] sm:$0xff]
    %v5072 = vld [vmem:[%s5040 + $0xf8] sm:$0xff]
    %v5073 = vld [vmem:[%s5040 + $0x100] sm:$0xff]
    %v5074 = vld [vmem:[%s5040 + $0x108] sm:$0xff]
    %v5075 = vld [vmem:[%s5040 + $0x110] sm:$0xff]
    %v5076 = vld [vmem:[%s5040 + $0x118] sm:$0xff]
    %v5077 = vld [vmem:[%s5040 + $0x120] sm:$0xff]
    %v5078 = vld [vmem:[%s5040 + $0x128] sm:$0xff]
    %v5079 = vld [vmem:[%s5040 + $0x130] sm:$0xff]
    %v5080 = vld [vmem:[%s5040 + $0x138] sm:$0xff]
    %v5081 = vld [vmem:[%s5040 + $0x140] sm:$0xff]
    %v5082 = vld [vmem:[%s5040 + $0x148] sm:$0xff]
    %v5083 = vld [vmem:[%s5040 + $0x150] sm:$0xff]
    %v5084 = vld [vmem:[%s5040 + $0x158] sm:$0xff]
    %v5085 = vld [vmem:[%s5040 + $0x160] sm:$0xff]
    %v5086 = vld [vmem:[%s5040 + $0x168] sm:$0xff]
    %v5087 = vld [vmem:[%s5040 + $0x170] sm:$0xff]
    %v5088 = vld [vmem:[%s5040 + $0x178] sm:$0xff]
    %v5089 = vld [vmem:[%s5040 + $0x180] sm:$0xff]
    %v5090 = vld [vmem:[%s5040 + $0x188] sm:$0xff]
    %v5091 = vld [vmem:[%s5040 + $0x190] sm:$0xff]
    %v5092 = vld [vmem:[%s5040 + $0x198] sm:$0xff]
    %v5093 = vld [vmem:[%s5040 + $0x1a0] sm:$0xff]
    %v5094 = vld [vmem:[%s5040 + $0x1a8] sm:$0xff]
    %v5095 = vld [vmem:[%s5040 + $0x1b0] sm:$0xff]
    %v5096 = vld [vmem:[%s5040 + $0x1b8] sm:$0xff]
    %v5097 = vld [vmem:[%s5040 + $0x1c0] sm:$0xff]
    %v5098 = vld [vmem:[%s5040 + $0x1c8] sm:$0xff]
    %v5099 = vld [vmem:[%s5040 + $0x1d0] sm:$0xff]
    %v5100 = vld [vmem:[%s5040 + $0x1d8] sm:$0xff]
    %v5101 = vld [vmem:[%s5040 + $0x1e0] sm:$0xff]
    %v5102 = vld [vmem:[%s5040 + $0x1e8] sm:$0xff]
    %v5103 = vld [vmem:[%s5040 + $0x1f0] sm:$0xff]
    %v5104 = vld [vmem:[%s5040 + $0x1f8] sm:$0xff]
    %v5105 = vld [vmem:[%s5040 + $0x200] sm:$0xff]
    %v5106 = vld [vmem:[%s5040 + $0x208] sm:$0xff]
    %v5107 = vld [vmem:[%s5040 + $0x210] sm:$0xff]
    %v5108 = vld [vmem:[%s5040 + $0x218] sm:$0xff]
    %v5109 = vld [vmem:[%s5040 + $0x220] sm:$0xff]
    %v5110 = vld [vmem:[%s5040 + $0x228] sm:$0xff]
    %v5111 = vld [vmem:[%s5040 + $0x230] sm:$0xff]
    %v5112 = vld [vmem:[%s5040 + $0x238] sm:$0xff]
    %v5113 = vld [vmem:[%s5040 + $0x240] sm:$0xff]
    %v5114 = vld [vmem:[%s5040 + $0x248] sm:$0xff]
    %v5115 = vld [vmem:[%s5040 + $0x250] sm:$0xff]
    %v5116 = vld [vmem:[%s5040 + $0x258] sm:$0xff]
    %v5117 = vld [vmem:[%s5040 + $0x260] sm:$0xff]
    %v5118 = vld [vmem:[%s5040 + $0x268] sm:$0xff]
    %v5119 = vld [vmem:[%s5040 + $0x270] sm:$0xff]
    %v5120 = vld [vmem:[%s5040 + $0x278] sm:$0xff]
    %v5121 = vld [vmem:[%s5040 + $0x280] sm:$0xff]
    %v5122 = vld [vmem:[%s5040 + $0x288] sm:$0xff]
    %v5123 = vld [vmem:[%s5040 + $0x290] sm:$0xff]
    %v5124 = vld [vmem:[%s5040 + $0x298] sm:$0xff]
    %v5125 = vld [vmem:[%s5040 + $0x2a0] sm:$0xff]
    %v5126 = vld [vmem:[%s5040 + $0x2a8] sm:$0xff]
    %v5127 = vld [vmem:[%s5040 + $0x2b0] sm:$0xff]
    %v5128 = vld [vmem:[%s5040 + $0x2b8] sm:$0xff]
    %v5129 = vld [vmem:[%s5040 + $0x2c0] sm:$0xff]
    %v5130 = vld [vmem:[%s5040 + $0x2c8] sm:$0xff]
    %v5131 = vld [vmem:[%s5040 + $0x2d0] sm:$0xff]
    %v5132 = vld [vmem:[%s5040 + $0x2d8] sm:$0xff]
    %v5133 = vld [vmem:[%s5040 + $0x2e0] sm:$0xff]
    %v5134 = vld [vmem:[%s5040 + $0x2e8] sm:$0xff]
    %v5135 = vld [vmem:[%s5040 + $0x2f0] sm:$0xff]
    %v5136 = vld [vmem:[%s5040 + $0x2f8] sm:$0xff]
    %v5233 = vunpack.c.l.b16 %v5041
    %v5234 = vunpack.c.h.b16 %v5041
    %v5235 = vunpack.c.l.b16 %v5042
    %v5236 = vunpack.c.h.b16 %v5042
    %v5237 = vunpack.c.l.b16 %v5043
    %v5238 = vunpack.c.h.b16 %v5043
    %v5239 = vunpack.c.l.b16 %v5044
    %v5240 = vunpack.c.h.b16 %v5044
    %v5241 = vunpack.c.l.b16 %v5045
    %v5242 = vunpack.c.h.b16 %v5045
    %v5243 = vunpack.c.l.b16 %v5046
    %v5244 = vunpack.c.h.b16 %v5046
    %v5245 = vunpack.c.l.b16 %v5047
    %v5246 = vunpack.c.h.b16 %v5047
    %v5247 = vunpack.c.l.b16 %v5048
    %v5248 = vunpack.c.h.b16 %v5048
    %v5249 = vunpack.c.l.b16 %v5049
    %v5250 = vunpack.c.h.b16 %v5049
    %v5251 = vunpack.c.l.b16 %v5050
    %v5252 = vunpack.c.h.b16 %v5050
    %v5253 = vunpack.c.l.b16 %v5051
    %v5254 = vunpack.c.h.b16 %v5051
    %v5255 = vunpack.c.l.b16 %v5052
    %v5256 = vunpack.c.h.b16 %v5052
    %v5257 = vunpack.c.l.b16 %v5053
    %v5258 = vunpack.c.h.b16 %v5053
    %v5259 = vunpack.c.l.b16 %v5054
    %v5260 = vunpack.c.h.b16 %v5054
    %v5261 = vunpack.c.l.b16 %v5055
    %v5262 = vunpack.c.h.b16 %v5055
    %v5263 = vunpack.c.l.b16 %v5056
    %v5264 = vunpack.c.h.b16 %v5056
    %v5265 = vunpack.c.l.b16 %v5057
    %v5266 = vunpack.c.h.b16 %v5057
    %v5267 = vunpack.c.l.b16 %v5058
    %v5268 = vunpack.c.h.b16 %v5058
    %v5269 = vunpack.c.l.b16 %v5059
    %v5270 = vunpack.c.h.b16 %v5059
    %v5271 = vunpack.c.l.b16 %v5060
    %v5272 = vunpack.c.h.b16 %v5060
    %v5273 = vunpack.c.l.b16 %v5061
    %v5274 = vunpack.c.h.b16 %v5061
    %v5275 = vunpack.c.l.b16 %v5062
    %v5276 = vunpack.c.h.b16 %v5062
    %v5277 = vunpack.c.l.b16 %v5063
    %v5278 = vunpack.c.h.b16 %v5063
    %v5279 = vunpack.c.l.b16 %v5064
    %v5280 = vunpack.c.h.b16 %v5064
    %v5281 = vunpack.c.l.b16 %v5065
    %v5282 = vunpack.c.h.b16 %v5065
    %v5283 = vunpack.c.l.b16 %v5066
    %v5284 = vunpack.c.h.b16 %v5066
    %v5285 = vunpack.c.l.b16 %v5067
    %v5286 = vunpack.c.h.b16 %v5067
    %v5287 = vunpack.c.l.b16 %v5068
    %v5288 = vunpack.c.h.b16 %v5068
    %v5289 = vunpack.c.l.b16 %v5069
    %v5290 = vunpack.c.h.b16 %v5069
    %v5291 = vunpack.c.l.b16 %v5070
    %v5292 = vunpack.c.h.b16 %v5070
    %v5293 = vunpack.c.l.b16 %v5071
    %v5294 = vunpack.c.h.b16 %v5071
    %v5295 = vunpack.c.l.b16 %v5072
    %v5296 = vunpack.c.h.b16 %v5072
    %v5297 = vunpack.c.l.b16 %v5073
    %v5298 = vunpack.c.h.b16 %v5073
    %v5299 = vunpack.c.l.b16 %v5074
    %v5300 = vunpack.c.h.b16 %v5074
    %v5301 = vunpack.c.l.b16 %v5075
    %v5302 = vunpack.c.h.b16 %v5075
    %v5303 = vunpack.c.l.b16 %v5076
    %v5304 = vunpack.c.h.b16 %v5076
    %v5305 = vunpack.c.l.b16 %v5077
    %v5306 = vunpack.c.h.b16 %v5077
    %v5307 = vunpack.c.l.b16 %v5078
    %v5308 = vunpack.c.h.b16 %v5078
    %v5309 = vunpack.c.l.b16 %v5079
    %v5310 = vunpack.c.h.b16 %v5079
    %v5311 = vunpack.c.l.b16 %v5080
    %v5312 = vunpack.c.h.b16 %v5080
    %v5313 = vunpack.c.l.b16 %v5081
    %v5314 = vunpack.c.h.b16 %v5081
    %v5315 = vunpack.c.l.b16 %v5082
    %v5316 = vunpack.c.h.b16 %v5082
    %v5317 = vunpack.c.l.b16 %v5083
    %v5318 = vunpack.c.h.b16 %v5083
    %v5319 = vunpack.c.l.b16 %v5084
    %v5320 = vunpack.c.h.b16 %v5084
    %v5321 = vunpack.c.l.b16 %v5085
    %v5322 = vunpack.c.h.b16 %v5085
    %v5323 = vunpack.c.l.b16 %v5086
    %v5324 = vunpack.c.h.b16 %v5086
    %v5325 = vunpack.c.l.b16 %v5087
    %v5326 = vunpack.c.h.b16 %v5087
    %v5327 = vunpack.c.l.b16 %v5088
    %v5328 = vunpack.c.h.b16 %v5088
    %v5329 = vunpack.c.l.b16 %v5089
    %v5330 = vunpack.c.h.b16 %v5089
    %v5331 = vunpack.c.l.b16 %v5090
    %v5332 = vunpack.c.h.b16 %v5090
    %v5333 = vunpack.c.l.b16 %v5091
    %v5334 = vunpack.c.h.b16 %v5091
    %v5335 = vunpack.c.l.b16 %v5092
    %v5336 = vunpack.c.h.b16 %v5092
    %v5337 = vunpack.c.l.b16 %v5093
    %v5338 = vunpack.c.h.b16 %v5093
    %v5339 = vunpack.c.l.b16 %v5094
    %v5340 = vunpack.c.h.b16 %v5094
    %v5341 = vunpack.c.l.b16 %v5095
    %v5342 = vunpack.c.h.b16 %v5095
    %v5343 = vunpack.c.l.b16 %v5096
    %v5344 = vunpack.c.h.b16 %v5096
    %v5345 = vunpack.c.l.b16 %v5097
    %v5346 = vunpack.c.h.b16 %v5097
    %v5347 = vunpack.c.l.b16 %v5098
    %v5348 = vunpack.c.h.b16 %v5098
    %v5349 = vunpack.c.l.b16 %v5099
    %v5350 = vunpack.c.h.b16 %v5099
    %v5351 = vunpack.c.l.b16 %v5100
    %v5352 = vunpack.c.h.b16 %v5100
    %v5353 = vunpack.c.l.b16 %v5101
    %v5354 = vunpack.c.h.b16 %v5101
    %v5355 = vunpack.c.l.b16 %v5102
    %v5356 = vunpack.c.h.b16 %v5102
    %v5357 = vunpack.c.l.b16 %v5103
    %v5358 = vunpack.c.h.b16 %v5103
    %v5359 = vunpack.c.l.b16 %v5104
    %v5360 = vunpack.c.h.b16 %v5104
    %v5361 = vunpack.c.l.b16 %v5105
    %v5362 = vunpack.c.h.b16 %v5105
    %v5363 = vunpack.c.l.b16 %v5106
    %v5364 = vunpack.c.h.b16 %v5106
    %v5365 = vunpack.c.l.b16 %v5107
    %v5366 = vunpack.c.h.b16 %v5107
    %v5367 = vunpack.c.l.b16 %v5108
    %v5368 = vunpack.c.h.b16 %v5108
    %v5369 = vunpack.c.l.b16 %v5109
    %v5370 = vunpack.c.h.b16 %v5109
    %v5371 = vunpack.c.l.b16 %v5110
    %v5372 = vunpack.c.h.b16 %v5110
    %v5373 = vunpack.c.l.b16 %v5111
    %v5374 = vunpack.c.h.b16 %v5111
    %v5375 = vunpack.c.l.b16 %v5112
    %v5376 = vunpack.c.h.b16 %v5112
    %v5377 = vunpack.c.l.b16 %v5113
    %v5378 = vunpack.c.h.b16 %v5113
    %v5379 = vunpack.c.l.b16 %v5114
    %v5380 = vunpack.c.h.b16 %v5114
    %v5381 = vunpack.c.l.b16 %v5115
    %v5382 = vunpack.c.h.b16 %v5115
    %v5383 = vunpack.c.l.b16 %v5116
    %v5384 = vunpack.c.h.b16 %v5116
    %v5385 = vunpack.c.l.b16 %v5117
    %v5386 = vunpack.c.h.b16 %v5117
    %v5387 = vunpack.c.l.b16 %v5118
    %v5388 = vunpack.c.h.b16 %v5118
    %v5389 = vunpack.c.l.b16 %v5119
    %v5390 = vunpack.c.h.b16 %v5119
    %v5391 = vunpack.c.l.b16 %v5120
    %v5392 = vunpack.c.h.b16 %v5120
    %v5393 = vunpack.c.l.b16 %v5121
    %v5394 = vunpack.c.h.b16 %v5121
    %v5395 = vunpack.c.l.b16 %v5122
    %v5396 = vunpack.c.h.b16 %v5122
    %v5397 = vunpack.c.l.b16 %v5123
    %v5398 = vunpack.c.h.b16 %v5123
    %v5399 = vunpack.c.l.b16 %v5124
    %v5400 = vunpack.c.h.b16 %v5124
    %v5401 = vunpack.c.l.b16 %v5125
    %v5402 = vunpack.c.h.b16 %v5125
    %v5403 = vunpack.c.l.b16 %v5126
    %v5404 = vunpack.c.h.b16 %v5126
    %v5405 = vunpack.c.l.b16 %v5127
    %v5406 = vunpack.c.h.b16 %v5127
    %v5407 = vunpack.c.l.b16 %v5128
    %v5408 = vunpack.c.h.b16 %v5128
    %v5409 = vunpack.c.l.b16 %v5129
    %v5410 = vunpack.c.h.b16 %v5129
    %v5411 = vunpack.c.l.b16 %v5130
    %v5412 = vunpack.c.h.b16 %v5130
    %v5413 = vunpack.c.l.b16 %v5131
    %v5414 = vunpack.c.h.b16 %v5131
    %v5415 = vunpack.c.l.b16 %v5132
    %v5416 = vunpack.c.h.b16 %v5132
    %v5417 = vunpack.c.l.b16 %v5133
    %v5418 = vunpack.c.h.b16 %v5133
    %v5419 = vunpack.c.l.b16 %v5134
    %v5420 = vunpack.c.h.b16 %v5134
    %v5421 = vunpack.c.l.b16 %v5135
    %v5422 = vunpack.c.h.b16 %v5135
    %v5423 = vunpack.c.l.b16 %v5136
    %v5424 = vunpack.c.h.b16 %v5136
    %v5425 = vpack.c.b16 %v5235, %v5233
    %v5426 = vpack.c.b16 %v5236, %v5234
    %v5427 = vpack.c.b16 %v5239, %v5237
    %v5428 = vpack.c.b16 %v5240, %v5238
    %v5429 = vpack.c.b16 %v5243, %v5241
    %v5430 = vpack.c.b16 %v5244, %v5242
    %v5431 = vpack.c.b16 %v5247, %v5245
    %v5432 = vpack.c.b16 %v5248, %v5246
    %v5433 = vpack.c.b16 %v5251, %v5249
    %v5434 = vpack.c.b16 %v5252, %v5250
    %v5435 = vpack.c.b16 %v5255, %v5253
    %v5436 = vpack.c.b16 %v5256, %v5254
    %v5437 = vpack.c.b16 %v5259, %v5257
    %v5438 = vpack.c.b16 %v5260, %v5258
    %v5439 = vpack.c.b16 %v5263, %v5261
    %v5440 = vpack.c.b16 %v5264, %v5262
    %v5441 = vpack.c.b16 %v5267, %v5265
    %v5442 = vpack.c.b16 %v5268, %v5266
    %v5443 = vpack.c.b16 %v5271, %v5269
    %v5444 = vpack.c.b16 %v5272, %v5270
    %v5445 = vpack.c.b16 %v5275, %v5273
    %v5446 = vpack.c.b16 %v5276, %v5274
    %v5447 = vpack.c.b16 %v5279, %v5277
    %v5448 = vpack.c.b16 %v5280, %v5278
    %v5449 = vpack.c.b16 %v5283, %v5281
    %v5450 = vpack.c.b16 %v5284, %v5282
    %v5451 = vpack.c.b16 %v5287, %v5285
    %v5452 = vpack.c.b16 %v5288, %v5286
    %v5453 = vpack.c.b16 %v5291, %v5289
    %v5454 = vpack.c.b16 %v5292, %v5290
    %v5455 = vpack.c.b16 %v5295, %v5293
    %v5456 = vpack.c.b16 %v5296, %v5294
    %v5457 = vpack.c.b16 %v5299, %v5297
    %v5458 = vpack.c.b16 %v5300, %v5298
    %v5459 = vpack.c.b16 %v5303, %v5301
    %v5460 = vpack.c.b16 %v5304, %v5302
    %v5461 = vpack.c.b16 %v5307, %v5305
    %v5462 = vpack.c.b16 %v5308, %v5306
    %v5463 = vpack.c.b16 %v5311, %v5309
    %v5464 = vpack.c.b16 %v5312, %v5310
    %v5465 = vpack.c.b16 %v5315, %v5313
    %v5466 = vpack.c.b16 %v5316, %v5314
    %v5467 = vpack.c.b16 %v5319, %v5317
    %v5468 = vpack.c.b16 %v5320, %v5318
    %v5469 = vpack.c.b16 %v5323, %v5321
    %v5470 = vpack.c.b16 %v5324, %v5322
    %v5471 = vpack.c.b16 %v5327, %v5325
    %v5472 = vpack.c.b16 %v5328, %v5326
    %v5473 = vpack.c.b16 %v5331, %v5329
    %v5474 = vpack.c.b16 %v5332, %v5330
    %v5475 = vpack.c.b16 %v5335, %v5333
    %v5476 = vpack.c.b16 %v5336, %v5334
    %v5477 = vpack.c.b16 %v5339, %v5337
    %v5478 = vpack.c.b16 %v5340, %v5338
    %v5479 = vpack.c.b16 %v5343, %v5341
    %v5480 = vpack.c.b16 %v5344, %v5342
    %v5481 = vpack.c.b16 %v5347, %v5345
    %v5482 = vpack.c.b16 %v5348, %v5346
    %v5483 = vpack.c.b16 %v5351, %v5349
    %v5484 = vpack.c.b16 %v5352, %v5350
    %v5485 = vpack.c.b16 %v5355, %v5353
    %v5486 = vpack.c.b16 %v5356, %v5354
    %v5487 = vpack.c.b16 %v5359, %v5357
    %v5488 = vpack.c.b16 %v5360, %v5358
    %v5489 = vpack.c.b16 %v5363, %v5361
    %v5490 = vpack.c.b16 %v5364, %v5362
    %v5491 = vpack.c.b16 %v5367, %v5365
    %v5492 = vpack.c.b16 %v5368, %v5366
    %v5493 = vpack.c.b16 %v5371, %v5369
    %v5494 = vpack.c.b16 %v5372, %v5370
    %v5495 = vpack.c.b16 %v5375, %v5373
    %v5496 = vpack.c.b16 %v5376, %v5374
    %v5497 = vpack.c.b16 %v5379, %v5377
    %v5498 = vpack.c.b16 %v5380, %v5378
    %v5499 = vpack.c.b16 %v5383, %v5381
    %v5500 = vpack.c.b16 %v5384, %v5382
    %v5501 = vpack.c.b16 %v5387, %v5385
    %v5502 = vpack.c.b16 %v5388, %v5386
    %v5503 = vpack.c.b16 %v5391, %v5389
    %v5504 = vpack.c.b16 %v5392, %v5390
    %v5505 = vpack.c.b16 %v5395, %v5393
    %v5506 = vpack.c.b16 %v5396, %v5394
    %v5507 = vpack.c.b16 %v5399, %v5397
    %v5508 = vpack.c.b16 %v5400, %v5398
    %v5509 = vpack.c.b16 %v5403, %v5401
    %v5510 = vpack.c.b16 %v5404, %v5402
    %v5511 = vpack.c.b16 %v5407, %v5405
    %v5512 = vpack.c.b16 %v5408, %v5406
    %v5513 = vpack.c.b16 %v5411, %v5409
    %v5514 = vpack.c.b16 %v5412, %v5410
    %v5515 = vpack.c.b16 %v5415, %v5413
    %v5516 = vpack.c.b16 %v5416, %v5414
    %v5517 = vpack.c.b16 %v5419, %v5417
    %v5518 = vpack.c.b16 %v5420, %v5418
    %v5519 = vpack.c.b16 %v5423, %v5421
    %v5520 = vpack.c.b16 %v5424, %v5422
    %5617 = vmatprep.subr.bf16.mxu0 %v5426
    %5618 = vmatpush1.bf16.msra.mxu0 %v5425
    %5619 = vmatprep.subr.bf16.mxu0 %v5428
    %5620 = vmatpush1.bf16.msra.mxu0 %v5427
    %5621 = vmatprep.subr.bf16.mxu0 %v5430
    %5622 = vmatpush1.bf16.msra.mxu0 %v5429
    %5623 = vmatprep.subr.bf16.mxu0 %v5432
    %5624 = vmatpush1.bf16.msra.mxu0 %v5431
    %5625 = vmatprep.subr.bf16.mxu0 %v5434
    %5626 = vmatpush1.bf16.msra.mxu0 %v5433
    %5627 = vmatprep.subr.bf16.mxu0 %v5436
    %5628 = vmatpush1.bf16.msra.mxu0 %v5435
    %5629 = vmatprep.subr.bf16.mxu0 %v5438
    %5630 = vmatpush1.bf16.msra.mxu0 %v5437
    %5631 = vmatprep.subr.bf16.mxu0 %v5440
    %5632 = vmatpush1.bf16.msra.mxu0 %v5439
    %5633 = vmatprep.subr.bf16.mxu0 %v5442
    %5634 = vmatpush1.bf16.msra.mxu0 %v5441
    %5635 = vmatprep.subr.bf16.mxu0 %v5444
    %5636 = vmatpush1.bf16.msra.mxu0 %v5443
    %5637 = vmatprep.subr.bf16.mxu0 %v5446
    %5638 = vmatpush1.bf16.msra.mxu0 %v5445
    %5639 = vmatprep.subr.bf16.mxu0 %v5448
    %5640 = vmatpush1.bf16.msra.mxu0 %v5447
    %5641 = vmatprep.subr.bf16.mxu0 %v5450
    %5642 = vmatpush1.bf16.msra.mxu0 %v5449
    %5643 = vmatprep.subr.bf16.mxu0 %v5452
    %5644 = vmatpush1.bf16.msra.mxu0 %v5451
    %5645 = vmatprep.subr.bf16.mxu0 %v5454
    %5646 = vmatpush1.bf16.msra.mxu0 %v5453
    %5647 = vmatprep.subr.bf16.mxu0 %v5456
    %5648 = vmatpush1.bf16.msra.mxu0 %v5455
    %5649 = vmatprep.mubr.bf16.mxu0 %v5017
    %5650 = vmatmul.mubr.bf16.gmra.mrb[0].mxu0 %v5016
    %v5651 = vpop.f32.mrb[0].mxu0
    %v5652 = vadd.f32 0.0, %v5651
    %v5653 = vpop.f32.mrb[0].mxu0
    %v5654 = vadd.f32 0.0, %v5653
    %v5655 = vpop.f32.mrb[0].mxu0
    %v5656 = vadd.f32 0.0, %v5655
    %v5657 = vpop.f32.mrb[0].mxu0
    %v5658 = vadd.f32 0.0, %v5657
    %5659 = vmatprep.mubr.bf16.mxu0 %v5023
    %5660 = vmatmul.mubr.bf16.gmra.mrb[0].mxu0 %v5022
    %v5661 = vpop.f32.mrb[0].mxu0
    %v5662 = vadd.f32 0.0, %v5661
    %v5663 = vpop.f32.mrb[0].mxu0
    %v5664 = vadd.f32 0.0, %v5663
    %v5665 = vpop.f32.mrb[0].mxu0
    %v5666 = vadd.f32 0.0, %v5665
    %v5667 = vpop.f32.mrb[0].mxu0
    %v5668 = vadd.f32 0.0, %v5667
    %5669 = vmatprep.mubr.bf16.mxu0 %v5029
    %5670 = vmatmul.mubr.bf16.gmra.mrb[0].mxu0 %v5028
    %v5671 = vpop.f32.mrb[0].mxu0
    %v5672 = vadd.f32 0.0, %v5671
    %v5673 = vpop.f32.mrb[0].mxu0
    %v5674 = vadd.f32 0.0, %v5673
    %v5675 = vpop.f32.mrb[0].mxu0
    %v5676 = vadd.f32 0.0, %v5675
    %v5677 = vpop.f32.mrb[0].mxu0
    %v5678 = vadd.f32 0.0, %v5677
    %5679 = vmatprep.mubr.bf16.mxu0 %v5035
    %5680 = vmatmul.mubr.bf16.gmra.mrb[0].mxu0 %v5034
    %v5681 = vpop.f32.mrb[0].mxu0
    %v5682 = vadd.f32 0.0, %v5681
    %v5683 = vpop.f32.mrb[0].mxu0
    %v5684 = vadd.f32 0.0, %v5683
    %v5685 = vpop.f32.mrb[0].mxu0
    %v5686 = vadd.f32 0.0, %v5685
    %v5687 = vpop.f32.mrb[0].mxu0
    %v5688 = vadd.f32 0.0, %v5687
    %5689 = vdwg.mxu0
    %5690 = vmatprep.subr.bf16.mxu0 %v5458
    %5691 = vmatpush1.bf16.msra.mxu0 %v5457
    %5692 = vmatprep.subr.bf16.mxu0 %v5460
    %5693 = vmatpush1.bf16.msra.mxu0 %v5459
    %5694 = vmatprep.subr.bf16.mxu0 %v5462
    %5695 = vmatpush1.bf16.msra.mxu0 %v5461
    %5696 = vmatprep.subr.bf16.mxu0 %v5464
    %5697 = vmatpush1.bf16.msra.mxu0 %v5463
    %5698 = vmatprep.subr.bf16.mxu0 %v5466
    %5699 = vmatpush1.bf16.msra.mxu0 %v5465
    %5700 = vmatprep.subr.bf16.mxu0 %v5468
    %5701 = vmatpush1.bf16.msra.mxu0 %v5467
    %5702 = vmatprep.subr.bf16.mxu0 %v5470
    %5703 = vmatpush1.bf16.msra.mxu0 %v5469
    %5704 = vmatprep.subr.bf16.mxu0 %v5472
    %5705 = vmatpush1.bf16.msra.mxu0 %v5471
    %5706 = vmatprep.subr.bf16.mxu0 %v5474
    %5707 = vmatpush1.bf16.msra.mxu0 %v5473
    %5708 = vmatprep.subr.bf16.mxu0 %v5476
    %5709 = vmatpush1.bf16.msra.mxu0 %v5475
    %5710 = vmatprep.subr.bf16.mxu0 %v5478
    %5711 = vmatpush1.bf16.msra.mxu0 %v5477
    %5712 = vmatprep.subr.bf16.mxu0 %v5480
    %5713 = vmatpush1.bf16.msra.mxu0 %v5479
    %5714 = vmatprep.subr.bf16.mxu0 %v5482
    %5715 = vmatpush1.bf16.msra.mxu0 %v5481
    %5716 = vmatprep.subr.bf16.mxu0 %v5484
    %5717 = vmatpush1.bf16.msra.mxu0 %v5483
    %5718 = vmatprep.subr.bf16.mxu0 %v5486
    %5719 = vmatpush1.bf16.msra.mxu0 %v5485
    %5720 = vmatprep.subr.bf16.mxu0 %v5488
    %5721 = vmatpush1.bf16.msra.mxu0 %v5487
    %5722 = vmatprep.mubr.bf16.mxu0 %v5019
    %5723 = vmatmul.mubr.bf16.gmra.mrb[0].mxu0 %v5018
    %v5724 = vpop.f32.mrb[0].mxu0
    %v5725 = vadd.f32 %v5652, %v5724
    %v5726 = vpop.f32.mrb[0].mxu0
    %v5727 = vadd.f32 %v5654, %v5726
    %v5728 = vpop.f32.mrb[0].mxu0
    %v5729 = vadd.f32 %v5656, %v5728
    %v5730 = vpop.f32.mrb[0].mxu0
    %v5731 = vadd.f32 %v5658, %v5730
    %5732 = vmatprep.mubr.bf16.mxu0 %v5025
    %5733 = vmatmul.mubr.bf16.gmra.mrb[0].mxu0 %v5024
    %v5734 = vpop.f32.mrb[0].mxu0
    %v5735 = vadd.f32 %v5662, %v5734
    %v5736 = vpop.f32.mrb[0].mxu0
    %v5737 = vadd.f32 %v5664, %v5736
    %v5738 = vpop.f32.mrb[0].mxu0
    %v5739 = vadd.f32 %v5666, %v5738
    %v5740 = vpop.f32.mrb[0].mxu0
    %v5741 = vadd.f32 %v5668, %v5740
    %5742 = vmatprep.mubr.bf16.mxu0 %v5031
    %5743 = vmatmul.mubr.bf16.gmra.mrb[0].mxu0 %v5030
    %v5744 = vpop.f32.mrb[0].mxu0
    %v5745 = vadd.f32 %v5672, %v5744
    %v5746 = vpop.f32.mrb[0].mxu0
    %v5747 = vadd.f32 %v5674, %v5746
    %v5748 = vpop.f32.mrb[0].mxu0
    %v5749 = vadd.f32 %v5676, %v5748
    %v5750 = vpop.f32.mrb[0].mxu0
    %v5751 = vadd.f32 %v5678, %v5750
    %5752 = vmatprep.mubr.bf16.mxu0 %v5037
    %5753 = vmatmul.mubr.bf16.gmra.mrb[0].mxu0 %v5036
    %v5754 = vpop.f32.mrb[0].mxu0
    %v5755 = vadd.f32 %v5682, %v5754
    %v5756 = vpop.f32.mrb[0].mxu0
    %v5757 = vadd.f32 %v5684, %v5756
    %v5758 = vpop.f32.mrb[0].mxu0
    %v5759 = vadd.f32 %v5686, %v5758
    %v5760 = vpop.f32.mrb[0].mxu0
    %v5761 = vadd.f32 %v5688, %v5760
    %5762 = vdwg.mxu0
    %5763 = vmatprep.subr.bf16.mxu0 %v5490
    %5764 = vmatpush1.bf16.msra.mxu0 %v5489
    %5765 = vmatprep.subr.bf16.mxu0 %v5492
    %5766 = vmatpush1.bf16.msra.mxu0 %v5491
    %5767 = vmatprep.subr.bf16.mxu0 %v5494
    %5768 = vmatpush1.bf16.msra.mxu0 %v5493
    %5769 = vmatprep.subr.bf16.mxu0 %v5496
    %5770 = vmatpush1.bf16.msra.mxu0 %v5495
    %5771 = vmatprep.subr.bf16.mxu0 %v5498
    %5772 = vmatpush1.bf16.msra.mxu0 %v5497
    %5773 = vmatprep.subr.bf16.mxu0 %v5500
    %5774 = vmatpush1.bf16.msra.mxu0 %v5499
    %5775 = vmatprep.subr.bf16.mxu0 %v5502
    %5776 = vmatpush1.bf16.msra.mxu0 %v5501
    %5777 = vmatprep.subr.bf16.mxu0 %v5504
    %5778 = vmatpush1.bf16.msra.mxu0 %v5503
    %5779 = vmatprep.subr.bf16.mxu0 %v5506
    %5780 = vmatpush1.bf16.msra.mxu0 %v5505
    %5781 = vmatprep.subr.bf16.mxu0 %v5508
    %5782 = vmatpush1.bf16.msra.mxu0 %v5507
    %5783 = vmatprep.subr.bf16.mxu0 %v5510
    %5784 = vmatpush1.bf16.msra.mxu0 %v5509
    %5785 = vmatprep.subr.bf16.mxu0 %v5512
    %5786 = vmatpush1.bf16.msra.mxu0 %v5511
    %5787 = vmatprep.subr.bf16.mxu0 %v5514
    %5788 = vmatpush1.bf16.msra.mxu0 %v5513
    %5789 = vmatprep.subr.bf16.mxu0 %v5516
    %5790 = vmatpush1.bf16.msra.mxu0 %v5515
    %5791 = vmatprep.subr.bf16.mxu0 %v5518
    %5792 = vmatpush1.bf16.msra.mxu0 %v5517
    %5793 = vmatprep.subr.bf16.mxu0 %v5520
    %5794 = vmatpush1.bf16.msra.mxu0 %v5519
    %5795 = vmatprep.mubr.bf16.mxu0 %v5021
    %5796 = vmatmul.mubr.bf16.gmra.mrb[0].mxu0 %v5020
    %v5797 = vpop.f32.mrb[0].mxu0
    %v5798 = vadd.f32 %v5725, %v5797
    %v5799 = vpop.f32.mrb[0].mxu0
    %v5800 = vadd.f32 %v5727, %v5799
    %v5801 = vpop.f32.mrb[0].mxu0
    %v5802 = vadd.f32 %v5729, %v5801
    %v5803 = vpop.f32.mrb[0].mxu0
    %v5804 = vadd.f32 %v5731, %v5803
    %5805 = vmatprep.mubr.bf16.mxu0 %v5027
    %5806 = vmatmul.mubr.bf16.gmra.mrb[0].mxu0 %v5026
    %v5807 = vpop.f32.mrb[0].mxu0
    %v5808 = vadd.f32 %v5735, %v5807
    %v5809 = vpop.f32.mrb[0].mxu0
    %v5810 = vadd.f32 %v5737, %v5809
    %v5811 = vpop.f32.mrb[0].mxu0
    %v5812 = vadd.f32 %v5739, %v5811
    %v5813 = vpop.f32.mrb[0].mxu0
    %v5814 = vadd.f32 %v5741, %v5813
    %5815 = vmatprep.mubr.bf16.mxu0 %v5033
    %5816 = vmatmul.mubr.bf16.gmra.mrb[0].mxu0 %v5032
    %v5817 = vpop.f32.mrb[0].mxu0
    %v5818 = vadd.f32 %v5745, %v5817
    %v5819 = vpop.f32.mrb[0].mxu0
    %v5820 = vadd.f32 %v5747, %v5819
    %v5821 = vpop.f32.mrb[0].mxu0
    %v5822 = vadd.f32 %v5749, %v5821
    %v5823 = vpop.f32.mrb[0].mxu0
    %v5824 = vadd.f32 %v5751, %v5823
    %5825 = vmatprep.mubr.bf16.mxu0 %v5039
    %5826 = vmatmul.mubr.bf16.gmra.mrb[0].mxu0 %v5038
    %v5827 = vpop.f32.mrb[0].mxu0
    %v5828 = vadd.f32 %v5755, %v5827
    %v5829 = vpop.f32.mrb[0].mxu0
    %v5830 = vadd.f32 %v5757, %v5829
    %v5831 = vpop.f32.mrb[0].mxu0
    %v5832 = vadd.f32 %v5759, %v5831
    %v5833 = vpop.f32.mrb[0].mxu0
    %v5834 = vadd.f32 %v5761, %v5833
    %5835 = vdwg.mxu0
    %v5836 = vadd.f32 %v5798, %v5802
    %v5837 = vadd.f32 %v5836, %v5808
    %v5838 = vadd.f32 %v5837, %v5812
    %v5839 = vadd.f32 %v5838, %v5818
    %v5840 = vadd.f32 %v5839, %v5822
    %v5841 = vadd.f32 %v5840, %v5828
    %v5842 = vadd.f32 %v5841, %v5832
    %v5843 = vrot.slane %v5842, 4
    %v5844 = vadd.f32 %v5842, %v5843
    %v5845 = vrot.slane %v5844, 2
    %v5846 = vadd.f32 %v5844, %v5845
    %v5847 = vrot.slane %v5846, 1
    %v5848 = vadd.f32 %v5846, %v5847
    %v5849 = vadd.f32 %v5800, %v5804
    %v5850 = vadd.f32 %v5849, %v5810
    %v5851 = vadd.f32 %v5850, %v5814
    %v5852 = vadd.f32 %v5851, %v5820
    %v5853 = vadd.f32 %v5852, %v5824
    %v5854 = vadd.f32 %v5853, %v5830
    %v5855 = vadd.f32 %v5854, %v5834
    %v5856 = vrot.slane %v5855, 4
    %v5857 = vadd.f32 %v5855, %v5856
    %v5858 = vrot.slane %v5857, 2
    %v5859 = vadd.f32 %v5857, %v5858
    %v5860 = vrot.slane %v5859, 1
    %v5861 = vadd.f32 %v5859, %v5860
    %v5862 = vmul.f32 %v5798, %v5798
    %v5863 = vmul.f32 %v5800, %v5800
    %v5864 = vmul.f32 %v5802, %v5802
    %v5865 = vmul.f32 %v5804, %v5804
    %v5866 = vmul.f32 %v5808, %v5808
    %v5867 = vmul.f32 %v5810, %v5810
    %v5868 = vmul.f32 %v5812, %v5812
    %v5869 = vmul.f32 %v5814, %v5814
    %v5870 = vmul.f32 %v5818, %v5818
    %v5871 = vmul.f32 %v5820, %v5820
    %v5872 = vmul.f32 %v5822, %v5822
    %v5873 = vmul.f32 %v5824, %v5824
    %v5874 = vmul.f32 %v5828, %v5828
    %v5875 = vmul.f32 %v5830, %v5830
    %v5876 = vmul.f32 %v5832, %v5832
    %v5877 = vmul.f32 %v5834, %v5834
    %v5878 = vadd.f32 %v5862, %v5864
    %v5879 = vadd.f32 %v5878, %v5866
    %v5880 = vadd.f32 %v5879, %v5868
    %v5881 = vadd.f32 %v5880, %v5870
    %v5882 = vadd.f32 %v5881, %v5872
    %v5883 = vadd.f32 %v5882, %v5874
    %v5884 = vadd.f32 %v5883, %v5876
    %v5885 = vrot.slane %v5884, 4
    %v5886 = vadd.f32 %v5884, %v5885
    %v5887 = vrot.slane %v5886, 2
    %v5888 = vadd.f32 %v5886, %v5887
    %v5889 = vrot.slane %v5888, 1
    %v5890 = vadd.f32 %v5888, %v5889
    %v5891 = vadd.f32 %v5863, %v5865
    %v5892 = vadd.f32 %v5891, %v5867
    %v5893 = vadd.f32 %v5892, %v5869
    %v5894 = vadd.f32 %v5893, %v5871
    %v5895 = vadd.f32 %v5894, %v5873
    %v5896 = vadd.f32 %v5895, %v5875
    %v5897 = vadd.f32 %v5896, %v5877
    %v5898 = vrot.slane %v5897, 4
    %v5899 = vadd.f32 %v5897, %v5898
    %v5900 = vrot.slane %v5899, 2
    %v5901 = vadd.f32 %v5899, %v5900
    %v5902 = vrot.slane %v5901, 1
    %v5903 = vadd.f32 %v5901, %v5902
    %v5904 = vsel %vm816, %v5848, %v5890
    %v5905 = vsel %vm816, %v5861, %v5903
    %s5906 = scalar_lea.vmem %s8, 512
    %v5907 = vld [vmem:[%s5906] sm:$0xff]
    %v5908 = vld [vmem:[%s5906 + $0x8] sm:$0xff]
    %v5909 = vld [vmem:[%s5906 + $0x10] sm:$0xff]
    %v5910 = vld [vmem:[%s5906 + $0x18] sm:$0xff]
    %v5911 = vld [vmem:[%s5906 + $0x20] sm:$0xff]
    %v5912 = vld [vmem:[%s5906 + $0x28] sm:$0xff]
    %v5913 = vld [vmem:[%s5906 + $0x30] sm:$0xff]
    %v5914 = vld [vmem:[%s5906 + $0x38] sm:$0xff]
    %v5915 = vld [vmem:[%s5906 + $0x40] sm:$0xff]
    %v5916 = vld [vmem:[%s5906 + $0x48] sm:$0xff]
    %v5917 = vld [vmem:[%s5906 + $0x50] sm:$0xff]
    %v5918 = vld [vmem:[%s5906 + $0x58] sm:$0xff]
    %v5919 = vld [vmem:[%s5906 + $0x60] sm:$0xff]
    %v5920 = vld [vmem:[%s5906 + $0x68] sm:$0xff]
    %v5921 = vld [vmem:[%s5906 + $0x70] sm:$0xff]
    %v5922 = vld [vmem:[%s5906 + $0x78] sm:$0xff]
    %v5923 = vld [vmem:[%s5906 + $0x80] sm:$0xff]
    %v5924 = vld [vmem:[%s5906 + $0x88] sm:$0xff]
    %v5925 = vld [vmem:[%s5906 + $0x90] sm:$0xff]
    %v5926 = vld [vmem:[%s5906 + $0x98] sm:$0xff]
    %v5927 = vld [vmem:[%s5906 + $0xa0] sm:$0xff]
    %v5928 = vld [vmem:[%s5906 + $0xa8] sm:$0xff]
    %v5929 = vld [vmem:[%s5906 + $0xb0] sm:$0xff]
    %v5930 = vld [vmem:[%s5906 + $0xb8] sm:$0xff]
    %v5931 = vld [vmem:[%s5906 + $0xc0] sm:$0xff]
    %v5932 = vld [vmem:[%s5906 + $0xc8] sm:$0xff]
    %v5933 = vld [vmem:[%s5906 + $0xd0] sm:$0xff]
    %v5934 = vld [vmem:[%s5906 + $0xd8] sm:$0xff]
    %v5935 = vld [vmem:[%s5906 + $0xe0] sm:$0xff]
    %v5936 = vld [vmem:[%s5906 + $0xe8] sm:$0xff]
    %v5937 = vld [vmem:[%s5906 + $0xf0] sm:$0xff]
    %v5938 = vld [vmem:[%s5906 + $0xf8] sm:$0xff]
    %5939 = vmatprep.subr.mxu0 0.0
    %5940 = vmatpush1.msra.mxu0 %v5907
    %5941 = vmatprep.subr.mxu0 0.0
    %5942 = vmatpush1.msra.mxu0 %v5908
    %5943 = vmatprep.subr.mxu0 0.0
    %5944 = vmatpush1.msra.mxu0 %v5909
    %5945 = vmatprep.subr.mxu0 0.0
    %5946 = vmatpush1.msra.mxu0 %v5910
    %5947 = vmatprep.subr.mxu0 0.0
    %5948 = vmatpush1.msra.mxu0 %v5911
    %5949 = vmatprep.subr.mxu0 0.0
    %5950 = vmatpush1.msra.mxu0 %v5912
    %5951 = vmatprep.subr.mxu0 0.0
    %5952 = vmatpush1.msra.mxu0 %v5913
    %5953 = vmatprep.subr.mxu0 0.0
    %5954 = vmatpush1.msra.mxu0 %v5914
    %5955 = vmatprep.subr.mxu0 0.0
    %5956 = vmatpush1.msra.mxu0 %v5915
    %5957 = vmatprep.subr.mxu0 0.0
    %5958 = vmatpush1.msra.mxu0 %v5916
    %5959 = vmatprep.subr.mxu0 0.0
    %5960 = vmatpush1.msra.mxu0 %v5917
    %5961 = vmatprep.subr.mxu0 0.0
    %5962 = vmatpush1.msra.mxu0 %v5918
    %5963 = vmatprep.subr.mxu0 0.0
    %5964 = vmatpush1.msra.mxu0 %v5919
    %5965 = vmatprep.subr.mxu0 0.0
    %5966 = vmatpush1.msra.mxu0 %v5920
    %5967 = vmatprep.subr.mxu0 0.0
    %5968 = vmatpush1.msra.mxu0 %v5921
    %5969 = vmatprep.subr.mxu0 0.0
    %5970 = vmatpush1.msra.mxu0 %v5922
    %5971 = vmatprep.subr.mxu0 0.0
    %5972 = vmatpush1.msra.mxu0 %v5923
    %5973 = vmatprep.subr.mxu0 0.0
    %5974 = vmatpush1.msra.mxu0 %v5924
    %5975 = vmatprep.subr.mxu0 0.0
    %5976 = vmatpush1.msra.mxu0 %v5925
    %5977 = vmatprep.subr.mxu0 0.0
    %5978 = vmatpush1.msra.mxu0 %v5926
    %5979 = vmatprep.subr.mxu0 0.0
    %5980 = vmatpush1.msra.mxu0 %v5927
    %5981 = vmatprep.subr.mxu0 0.0
    %5982 = vmatpush1.msra.mxu0 %v5928
    %5983 = vmatprep.subr.mxu0 0.0
    %5984 = vmatpush1.msra.mxu0 %v5929
    %5985 = vmatprep.subr.mxu0 0.0
    %5986 = vmatpush1.msra.mxu0 %v5930
    %5987 = vmatprep.subr.mxu0 0.0
    %5988 = vmatpush1.msra.mxu0 %v5931
    %5989 = vmatprep.subr.mxu0 0.0
    %5990 = vmatpush1.msra.mxu0 %v5932
    %5991 = vmatprep.subr.mxu0 0.0
    %5992 = vmatpush1.msra.mxu0 %v5933
    %5993 = vmatprep.subr.mxu0 0.0
    %5994 = vmatpush1.msra.mxu0 %v5934
    %5995 = vmatprep.subr.mxu0 0.0
    %5996 = vmatpush1.msra.mxu0 %v5935
    %5997 = vmatprep.subr.mxu0 0.0
    %5998 = vmatpush1.msra.mxu0 %v5936
    %5999 = vmatprep.subr.mxu0 0.0
    %6000 = vmatpush1.msra.mxu0 %v5937
    %6001 = vmatprep.subr.mxu0 0.0
    %6002 = vmatpush1.msra.mxu0 %v5938
    %6003 = vmatprep.mubr.f32.mxu0 %v5905
    %6004 = vmatmul.mubr.f32.gmra.mrb[0].mxu0 %v5904
    %v6005 = vpop.f32.mrb[0].mxu0
    %v6006 = vadd.f32 0.0, %v6005
    %v6007 = vpop.f32.mrb[0].mxu0
    %6008 = vdwg.mxu0
    %v6009 = vmul.f32 %v6006, 0.00048828125
    %v6010 = vmul.f32 %v6009, %v6009
    %v6012 = vrot.slane %v6010, 7
    %v6014 = vsub.f32 %v6009, %v6012
    %v6015 = vmax.f32 %v6014, 0.0
    %s6016 = scalar_lea.vmem [#allocation17], 4
    %v6017 = vld [vmem:[%s6016] sm:$0x3]
    %v6018 = vadd.f32 %v6015, 1e-05
    %v6019 = vrsqrt.pop %v6018
    %v6021 = vrot.slane %v6019, 1
    %v6023 = vmul.f32 %v6017, %v6021
    %v6024 = vmul.f32 %v6009, %v6023
    %v6026 = vrot.slane %v6024, 7
    %v6028 = vsub.f32 %v6017, %v6026
    %v6029 = vsel %vm816, %v6023, %v6028
    %s6030 = scalar_lea.vmem [#allocation16], 128
    %v6031 = vld [vmem:[%s6030] sm:$0xff]
    %v6032 = vld [vmem:[%s6030 + $0x8] sm:$0xff]
    %v6033 = vld [vmem:[%s6030 + $0x10] sm:$0xff]
    %v6034 = vld [vmem:[%s6030 + $0x18] sm:$0xff]
    %v6035 = vld [vmem:[%s6030 + $0x20] sm:$0xff]
    %v6036 = vld [vmem:[%s6030 + $0x28] sm:$0xff]
    %v6037 = vld [vmem:[%s6030 + $0x30] sm:$0xff]
    %v6038 = vld [vmem:[%s6030 + $0x38] sm:$0xff]
    %v6040 = vsel %vm179, %v6029, 0
    %6042 = vmatprep.subr.mxu0 %v6032
    %6043 = vmatpush1.msra.mxu0 %v6031
    %6044 = vmatprep.subr.mxu0 %v6034
    %6045 = vmatpush1.msra.mxu0 %v6033
    %6046 = vmatprep.subr.mxu0 %v6036
    %6047 = vmatpush1.msra.mxu0 %v6035
    %6048 = vmatprep.subr.mxu0 %v6038
    %6049 = vmatpush1.msra.mxu0 %v6037
    %6050 = vmatprep.subr.mxu0 0.0
    %6051 = vmatpush1.msra.mxu0 0.0
    %6052 = vmatprep.subr.mxu0 0.0
    %6053 = vmatpush1.msra.mxu0 0.0
    %6054 = vmatprep.subr.mxu0 0.0
    %6055 = vmatpush1.msra.mxu0 0.0
    %6056 = vmatprep.subr.mxu0 0.0
    %6057 = vmatpush1.msra.mxu0 0.0
    %6058 = vmatprep.subr.mxu0 0.0
    %6059 = vmatpush1.msra.mxu0 0.0
    %6060 = vmatprep.subr.mxu0 0.0
    %6061 = vmatpush1.msra.mxu0 0.0
    %6062 = vmatprep.subr.mxu0 0.0
    %6063 = vmatpush1.msra.mxu0 0.0
    %6064 = vmatprep.subr.mxu0 0.0
    %6065 = vmatpush1.msra.mxu0 0.0
    %6066 = vmatprep.subr.mxu0 0.0
    %6067 = vmatpush1.msra.mxu0 0.0
    %6068 = vmatprep.subr.mxu0 0.0
    %6069 = vmatpush1.msra.mxu0 0.0
    %6070 = vmatprep.subr.mxu0 0.0
    %6071 = vmatpush1.msra.mxu0 0.0
    %6072 = vmatprep.subr.mxu0 0.0
    %6073 = vmatpush1.msra.mxu0 0.0
    %6074 = vmatprep.subr.mxu0 0.0
    %6075 = vmatpush1.msra.mxu0 0.0
    %6076 = vmatprep.subr.mxu0 0.0
    %6077 = vmatpush1.msra.mxu0 0.0
    %6078 = vmatprep.subr.mxu0 0.0
    %6079 = vmatpush1.msra.mxu0 0.0
    %6080 = vmatprep.subr.mxu0 0.0
    %6081 = vmatpush1.msra.mxu0 0.0
    %6082 = vmatprep.subr.mxu0 0.0
    %6083 = vmatpush1.msra.mxu0 0.0
    %6084 = vmatprep.subr.mxu0 0.0
    %6085 = vmatpush1.msra.mxu0 0.0
    %6086 = vmatprep.subr.mxu0 0.0
    %6087 = vmatpush1.msra.mxu0 0.0
    %6088 = vmatprep.subr.mxu0 0.0
    %6089 = vmatpush1.msra.mxu0 0.0
    %6090 = vmatprep.subr.mxu0 0.0
    %6091 = vmatpush1.msra.mxu0 0.0
    %6092 = vmatprep.subr.mxu0 0.0
    %6093 = vmatpush1.msra.mxu0 0.0
    %6094 = vmatprep.subr.mxu0 0.0
    %6095 = vmatpush1.msra.mxu0 0.0
    %6096 = vmatprep.subr.mxu0 0.0
    %6097 = vmatpush1.msra.mxu0 0.0
    %6098 = vmatprep.subr.mxu0 0.0
    %6099 = vmatpush1.msra.mxu0 0.0
    %6100 = vmatprep.subr.mxu0 0.0
    %6101 = vmatpush1.msra.mxu0 0.0
    %6102 = vmatprep.subr.mxu0 0.0
    %6103 = vmatpush1.msra.mxu0 0.0
    %6104 = vmatprep.subr.mxu0 0.0
    %6105 = vmatpush1.msra.mxu0 0.0
    %6106 = vmatprep.mubr.f32.mxu0 0.0
    %6107 = vmatmul.mubr.f32.gmra.mrb[0].mxu0 %v6040
    %v6108 = vpop.f32.mrb[0].mxu0
    %v6109 = vadd.f32 0.0, %v6108
    %v6110 = vpop.f32.mrb[0].mxu0
    %v6111 = vadd.f32 0.0, %v6110
    %6112 = vdwg.mxu0
    %v6113 = vlaneseq
    %v6114 = vshrl.u32 %v6113, 7
    %v6115 = vsub.s32 0, %v6114
    %v6116 = vrot.slane %v6109, %v6115
    %v6117 = vlaneseq
    %v6118 = vshrl.u32 %v6117, 7
    %v6119 = vsub.s32 0, %v6118
    %v6120 = vrot.slane %v6111, %v6119
    %v6121 = vmul.f32 %v5798, %v6116
    %v6122 = vmul.f32 %v5800, %v6120
    %v6123 = vmul.f32 %v5802, %v6116
    %v6124 = vmul.f32 %v5804, %v6120
    %v6125 = vmul.f32 %v5808, %v6116
    %v6126 = vmul.f32 %v5810, %v6120
    %v6127 = vmul.f32 %v5812, %v6116
    %v6128 = vmul.f32 %v5814, %v6120
    %v6129 = vmul.f32 %v5818, %v6116
    %v6130 = vmul.f32 %v5820, %v6120
    %v6131 = vmul.f32 %v5822, %v6116
    %v6132 = vmul.f32 %v5824, %v6120
    %v6133 = vmul.f32 %v5828, %v6116
    %v6134 = vmul.f32 %v5830, %v6120
    %v6135 = vmul.f32 %v5832, %v6116
    %v6136 = vmul.f32 %v5834, %v6120
    %v6137 = vlaneseq
    %v6138 = vshrl.u32 %v6137, 7
    %v6139 = vsub.s32 1, %v6138
    %v6140 = vrot.slane %v6109, %v6139
    %v6141 = vlaneseq
    %v6142 = vshrl.u32 %v6141, 7
    %v6143 = vsub.s32 1, %v6142
    %v6144 = vrot.slane %v6111, %v6143
    %v6145 = vadd.f32 %v6121, %v6140
    %v6146 = vadd.f32 %v6122, %v6144
    %v6147 = vadd.f32 %v6123, %v6140
    %v6148 = vadd.f32 %v6124, %v6144
    %v6149 = vadd.f32 %v6125, %v6140
    %v6150 = vadd.f32 %v6126, %v6144
    %v6151 = vadd.f32 %v6127, %v6140
    %v6152 = vadd.f32 %v6128, %v6144
    %v6153 = vadd.f32 %v6129, %v6140
    %v6154 = vadd.f32 %v6130, %v6144
    %v6155 = vadd.f32 %v6131, %v6140
    %v6156 = vadd.f32 %v6132, %v6144
    %v6157 = vadd.f32 %v6133, %v6140
    %v6158 = vadd.f32 %v6134, %v6144
    %v6159 = vadd.f32 %v6135, %v6140
    %v6160 = vadd.f32 %v6136, %v6144
    %v6161 = vmax.f32 %v6145, 0.0
    %v6162 = vmax.f32 %v6146, 0.0
    %v6163 = vmax.f32 %v6147, 0.0
    %v6164 = vmax.f32 %v6148, 0.0
    %v6165 = vmax.f32 %v6149, 0.0
    %v6166 = vmax.f32 %v6150, 0.0
    %v6167 = vmax.f32 %v6151, 0.0
    %v6168 = vmax.f32 %v6152, 0.0
    %v6169 = vmax.f32 %v6153, 0.0
    %v6170 = vmax.f32 %v6154, 0.0
    %v6171 = vmax.f32 %v6155, 0.0
    %v6172 = vmax.f32 %v6156, 0.0
    %v6173 = vmax.f32 %v6157, 0.0
    %v6174 = vmax.f32 %v6158, 0.0
    %v6175 = vmax.f32 %v6159, 0.0
    %v6176 = vmax.f32 %v6160, 0.0
    %v6193 = vcombine.low %v6161, %v6162
    %v6194 = vcombine.high %v6161, %v6162
    %v6196 = vunpack.c.l.s4 1966171168
    %v6197 = vunpack.c.0.s8 %v6196
    %v6198 = vlaneseq
    %v6199 = vshrl.u32 %v6198, 7
    %v6200 = vsub.s32 %v6197, %v6199
    %v6201 = vrot.slane %v6193, %v6200
    %v6203 = vunpack.c.l.s4 1966171168
    %v6204 = vunpack.c.0.s8 %v6203
    %v6205 = vlaneseq
    %v6206 = vshrl.u32 %v6205, 7
    %v6207 = vsub.s32 %v6204, %v6206
    %v6208 = vrot.slane %v6194, %v6207
    %v6209 = vcombine.high %v6201, %v6201
    %v6210 = vcombine.high %v6208, %v6208
    %v6212 = vunpack.c.l.s4 1966171168
    %v6213 = vunpack.c.0.s8 %v6212
    %v6214 = vlaneseq
    %v6215 = vshrl.u32 %v6214, 7
    %v6216 = vsub.s32 %v6213, %v6215
    %v6217 = vrot.slane %v6201, %v6216
    %v6219 = vunpack.c.l.s4 1966171168
    %v6220 = vunpack.c.0.s8 %v6219
    %v6221 = vlaneseq
    %v6222 = vshrl.u32 %v6221, 7
    %v6223 = vsub.s32 %v6220, %v6222
    %v6224 = vrot.slane %v6208, %v6223
    %v6226 = vunpack.c.l.s4 1966171168
    %v6227 = vunpack.c.0.s8 %v6226
    %v6228 = vlaneseq
    %v6229 = vshrl.u32 %v6228, 7
    %v6230 = vsub.s32 %v6227, %v6229
    %v6231 = vrot.slane %v6209, %v6230
    %v6233 = vunpack.c.l.s4 1966171168
    %v6234 = vunpack.c.0.s8 %v6233
    %v6235 = vlaneseq
    %v6236 = vshrl.u32 %v6235, 7
    %v6237 = vsub.s32 %v6234, %v6236
    %v6238 = vrot.slane %v6210, %v6237
    %v6239 = vcombine.high %v6217, %v6217
    %v6240 = vcombine.high %v6224, %v6224
    %v6241 = vcombine.high %v6231, %v6231
    %v6242 = vcombine.high %v6238, %v6238
    %v6243 = vcombine.low %v6163, %v6164
    %v6244 = vcombine.high %v6163, %v6164
    %v6246 = vunpack.c.l.s4 1966171168
    %v6247 = vunpack.c.0.s8 %v6246
    %v6248 = vlaneseq
    %v6249 = vshrl.u32 %v6248, 7
    %v6250 = vsub.s32 %v6247, %v6249
    %v6251 = vrot.slane %v6243, %v6250
    %v6253 = vunpack.c.l.s4 1966171168
    %v6254 = vunpack.c.0.s8 %v6253
    %v6255 = vlaneseq
    %v6256 = vshrl.u32 %v6255, 7
    %v6257 = vsub.s32 %v6254, %v6256
    %v6258 = vrot.slane %v6244, %v6257
    %v6259 = vcombine.high %v6251, %v6251
    %v6260 = vcombine.high %v6258, %v6258
    %v6262 = vunpack.c.l.s4 1966171168
    %v6263 = vunpack.c.0.s8 %v6262
    %v6264 = vlaneseq
    %v6265 = vshrl.u32 %v6264, 7
    %v6266 = vsub.s32 %v6263, %v6265
    %v6267 = vrot.slane %v6251, %v6266
    %v6269 = vunpack.c.l.s4 1966171168
    %v6270 = vunpack.c.0.s8 %v6269
    %v6271 = vlaneseq
    %v6272 = vshrl.u32 %v6271, 7
    %v6273 = vsub.s32 %v6270, %v6272
    %v6274 = vrot.slane %v6258, %v6273
    %v6276 = vunpack.c.l.s4 1966171168
    %v6277 = vunpack.c.0.s8 %v6276
    %v6278 = vlaneseq
    %v6279 = vshrl.u32 %v6278, 7
    %v6280 = vsub.s32 %v6277, %v6279
    %v6281 = vrot.slane %v6259, %v6280
    %v6283 = vunpack.c.l.s4 1966171168
    %v6284 = vunpack.c.0.s8 %v6283
    %v6285 = vlaneseq
    %v6286 = vshrl.u32 %v6285, 7
    %v6287 = vsub.s32 %v6284, %v6286
    %v6288 = vrot.slane %v6260, %v6287
    %v6289 = vcombine.high %v6267, %v6267
    %v6290 = vcombine.high %v6274, %v6274
    %v6291 = vcombine.high %v6281, %v6281
    %v6292 = vcombine.high %v6288, %v6288
    %v6293 = vcombine.low %v6165, %v6166
    %v6294 = vcombine.high %v6165, %v6166
    %v6296 = vunpack.c.l.s4 1966171168
    %v6297 = vunpack.c.0.s8 %v6296
    %v6298 = vlaneseq
    %v6299 = vshrl.u32 %v6298, 7
    %v6300 = vsub.s32 %v6297, %v6299
    %v6301 = vrot.slane %v6293, %v6300
    %v6303 = vunpack.c.l.s4 1966171168
    %v6304 = vunpack.c.0.s8 %v6303
    %v6305 = vlaneseq
    %v6306 = vshrl.u32 %v6305, 7
    %v6307 = vsub.s32 %v6304, %v6306
    %v6308 = vrot.slane %v6294, %v6307
    %v6309 = vcombine.high %v6301, %v6301
    %v6310 = vcombine.high %v6308, %v6308
    %v6312 = vunpack.c.l.s4 1966171168
    %v6313 = vunpack.c.0.s8 %v6312
    %v6314 = vlaneseq
    %v6315 = vshrl.u32 %v6314, 7
    %v6316 = vsub.s32 %v6313, %v6315
    %v6317 = vrot.slane %v6301, %v6316
    %v6319 = vunpack.c.l.s4 1966171168
    %v6320 = vunpack.c.0.s8 %v6319
    %v6321 = vlaneseq
    %v6322 = vshrl.u32 %v6321, 7
    %v6323 = vsub.s32 %v6320, %v6322
    %v6324 = vrot.slane %v6308, %v6323
    %v6326 = vunpack.c.l.s4 1966171168
    %v6327 = vunpack.c.0.s8 %v6326
    %v6328 = vlaneseq
    %v6329 = vshrl.u32 %v6328, 7
    %v6330 = vsub.s32 %v6327, %v6329
    %v6331 = vrot.slane %v6309, %v6330
    %v6333 = vunpack.c.l.s4 1966171168
    %v6334 = vunpack.c.0.s8 %v6333
    %v6335 = vlaneseq
    %v6336 = vshrl.u32 %v6335, 7
    %v6337 = vsub.s32 %v6334, %v6336
    %v6338 = vrot.slane %v6310, %v6337
    %v6339 = vcombine.high %v6317, %v6317
    %v6340 = vcombine.high %v6324, %v6324
    %v6341 = vcombine.high %v6331, %v6331
    %v6342 = vcombine.high %v6338, %v6338
    %v6343 = vcombine.low %v6167, %v6168
    %v6344 = vcombine.high %v6167, %v6168
    %v6346 = vunpack.c.l.s4 1966171168
    %v6347 = vunpack.c.0.s8 %v6346
    %v6348 = vlaneseq
    %v6349 = vshrl.u32 %v6348, 7
    %v6350 = vsub.s32 %v6347, %v6349
    %v6351 = vrot.slane %v6343, %v6350
    %v6353 = vunpack.c.l.s4 1966171168
    %v6354 = vunpack.c.0.s8 %v6353
    %v6355 = vlaneseq
    %v6356 = vshrl.u32 %v6355, 7
    %v6357 = vsub.s32 %v6354, %v6356
    %v6358 = vrot.slane %v6344, %v6357
    %v6359 = vcombine.high %v6351, %v6351
    %v6360 = vcombine.high %v6358, %v6358
    %v6362 = vunpack.c.l.s4 1966171168
    %v6363 = vunpack.c.0.s8 %v6362
    %v6364 = vlaneseq
    %v6365 = vshrl.u32 %v6364, 7
    %v6366 = vsub.s32 %v6363, %v6365
    %v6367 = vrot.slane %v6351, %v6366
    %v6369 = vunpack.c.l.s4 1966171168
    %v6370 = vunpack.c.0.s8 %v6369
    %v6371 = vlaneseq
    %v6372 = vshrl.u32 %v6371, 7
    %v6373 = vsub.s32 %v6370, %v6372
    %v6374 = vrot.slane %v6358, %v6373
    %v6376 = vunpack.c.l.s4 1966171168
    %v6377 = vunpack.c.0.s8 %v6376
    %v6378 = vlaneseq
    %v6379 = vshrl.u32 %v6378, 7
    %v6380 = vsub.s32 %v6377, %v6379
    %v6381 = vrot.slane %v6359, %v6380
    %v6383 = vunpack.c.l.s4 1966171168
    %v6384 = vunpack.c.0.s8 %v6383
    %v6385 = vlaneseq
    %v6386 = vshrl.u32 %v6385, 7
    %v6387 = vsub.s32 %v6384, %v6386
    %v6388 = vrot.slane %v6360, %v6387
    %v6389 = vcombine.high %v6367, %v6367
    %v6390 = vcombine.high %v6374, %v6374
    %v6391 = vcombine.high %v6381, %v6381
    %v6392 = vcombine.high %v6388, %v6388
    %v6393 = vcombine.low %v6169, %v6170
    %v6394 = vcombine.high %v6169, %v6170
    %v6396 = vunpack.c.l.s4 1966171168
    %v6397 = vunpack.c.0.s8 %v6396
    %v6398 = vlaneseq
    %v6399 = vshrl.u32 %v6398, 7
    %v6400 = vsub.s32 %v6397, %v6399
    %v6401 = vrot.slane %v6393, %v6400
    %v6403 = vunpack.c.l.s4 1966171168
    %v6404 = vunpack.c.0.s8 %v6403
    %v6405 = vlaneseq
    %v6406 = vshrl.u32 %v6405, 7
    %v6407 = vsub.s32 %v6404, %v6406
    %v6408 = vrot.slane %v6394, %v6407
    %v6409 = vcombine.high %v6401, %v6401
    %v6410 = vcombine.high %v6408, %v6408
    %v6412 = vunpack.c.l.s4 1966171168
    %v6413 = vunpack.c.0.s8 %v6412
    %v6414 = vlaneseq
    %v6415 = vshrl.u32 %v6414, 7
    %v6416 = vsub.s32 %v6413, %v6415
    %v6417 = vrot.slane %v6401, %v6416
    %v6419 = vunpack.c.l.s4 1966171168
    %v6420 = vunpack.c.0.s8 %v6419
    %v6421 = vlaneseq
    %v6422 = vshrl.u32 %v6421, 7
    %v6423 = vsub.s32 %v6420, %v6422
    %v6424 = vrot.slane %v6408, %v6423
    %v6426 = vunpack.c.l.s4 1966171168
    %v6427 = vunpack.c.0.s8 %v6426
    %v6428 = vlaneseq
    %v6429 = vshrl.u32 %v6428, 7
    %v6430 = vsub.s32 %v6427, %v6429
    %v6431 = vrot.slane %v6409, %v6430
    %v6433 = vunpack.c.l.s4 1966171168
    %v6434 = vunpack.c.0.s8 %v6433
    %v6435 = vlaneseq
    %v6436 = vshrl.u32 %v6435, 7
    %v6437 = vsub.s32 %v6434, %v6436
    %v6438 = vrot.slane %v6410, %v6437
    %v6439 = vcombine.high %v6417, %v6417
    %v6440 = vcombine.high %v6424, %v6424
    %v6441 = vcombine.high %v6431, %v6431
    %v6442 = vcombine.high %v6438, %v6438
    %v6443 = vcombine.low %v6171, %v6172
    %v6444 = vcombine.high %v6171, %v6172
    %v6446 = vunpack.c.l.s4 1966171168
    %v6447 = vunpack.c.0.s8 %v6446
    %v6448 = vlaneseq
    %v6449 = vshrl.u32 %v6448, 7
    %v6450 = vsub.s32 %v6447, %v6449
    %v6451 = vrot.slane %v6443, %v6450
    %v6453 = vunpack.c.l.s4 1966171168
    %v6454 = vunpack.c.0.s8 %v6453
    %v6455 = vlaneseq
    %v6456 = vshrl.u32 %v6455, 7
    %v6457 = vsub.s32 %v6454, %v6456
    %v6458 = vrot.slane %v6444, %v6457
    %v6459 = vcombine.high %v6451, %v6451
    %v6460 = vcombine.high %v6458, %v6458
    %v6462 = vunpack.c.l.s4 1966171168
    %v6463 = vunpack.c.0.s8 %v6462
    %v6464 = vlaneseq
    %v6465 = vshrl.u32 %v6464, 7
    %v6466 = vsub.s32 %v6463, %v6465
    %v6467 = vrot.slane %v6451, %v6466
    %v6469 = vunpack.c.l.s4 1966171168
    %v6470 = vunpack.c.0.s8 %v6469
    %v6471 = vlaneseq
    %v6472 = vshrl.u32 %v6471, 7
    %v6473 = vsub.s32 %v6470, %v6472
    %v6474 = vrot.slane %v6458, %v6473
    %v6476 = vunpack.c.l.s4 1966171168
    %v6477 = vunpack.c.0.s8 %v6476
    %v6478 = vlaneseq
    %v6479 = vshrl.u32 %v6478, 7
    %v6480 = vsub.s32 %v6477, %v6479
    %v6481 = vrot.slane %v6459, %v6480
    %v6483 = vunpack.c.l.s4 1966171168
    %v6484 = vunpack.c.0.s8 %v6483
    %v6485 = vlaneseq
    %v6486 = vshrl.u32 %v6485, 7
    %v6487 = vsub.s32 %v6484, %v6486
    %v6488 = vrot.slane %v6460, %v6487
    %v6489 = vcombine.high %v6467, %v6467
    %v6490 = vcombine.high %v6474, %v6474
    %v6491 = vcombine.high %v6481, %v6481
    %v6492 = vcombine.high %v6488, %v6488
    %v6493 = vcombine.low %v6173, %v6174
    %v6494 = vcombine.high %v6173, %v6174
    %v6496 = vunpack.c.l.s4 1966171168
    %v6497 = vunpack.c.0.s8 %v6496
    %v6498 = vlaneseq
    %v6499 = vshrl.u32 %v6498, 7
    %v6500 = vsub.s32 %v6497, %v6499
    %v6501 = vrot.slane %v6493, %v6500
    %v6503 = vunpack.c.l.s4 1966171168
    %v6504 = vunpack.c.0.s8 %v6503
    %v6505 = vlaneseq
    %v6506 = vshrl.u32 %v6505, 7
    %v6507 = vsub.s32 %v6504, %v6506
    %v6508 = vrot.slane %v6494, %v6507
    %v6509 = vcombine.high %v6501, %v6501
    %v6510 = vcombine.high %v6508, %v6508
    %v6512 = vunpack.c.l.s4 1966171168
    %v6513 = vunpack.c.0.s8 %v6512
    %v6514 = vlaneseq
    %v6515 = vshrl.u32 %v6514, 7
    %v6516 = vsub.s32 %v6513, %v6515
    %v6517 = vrot.slane %v6501, %v6516
    %v6519 = vunpack.c.l.s4 1966171168
    %v6520 = vunpack.c.0.s8 %v6519
    %v6521 = vlaneseq
    %v6522 = vshrl.u32 %v6521, 7
    %v6523 = vsub.s32 %v6520, %v6522
    %v6524 = vrot.slane %v6508, %v6523
    %v6526 = vunpack.c.l.s4 1966171168
    %v6527 = vunpack.c.0.s8 %v6526
    %v6528 = vlaneseq
    %v6529 = vshrl.u32 %v6528, 7
    %v6530 = vsub.s32 %v6527, %v6529
    %v6531 = vrot.slane %v6509, %v6530
    %v6533 = vunpack.c.l.s4 1966171168
    %v6534 = vunpack.c.0.s8 %v6533
    %v6535 = vlaneseq
    %v6536 = vshrl.u32 %v6535, 7
    %v6537 = vsub.s32 %v6534, %v6536
    %v6538 = vrot.slane %v6510, %v6537
    %v6539 = vcombine.high %v6517, %v6517
    %v6540 = vcombine.high %v6524, %v6524
    %v6541 = vcombine.high %v6531, %v6531
    %v6542 = vcombine.high %v6538, %v6538
    %v6543 = vcombine.low %v6175, %v6176
    %v6544 = vcombine.high %v6175, %v6176
    %v6546 = vunpack.c.l.s4 1966171168
    %v6547 = vunpack.c.0.s8 %v6546
    %v6548 = vlaneseq
    %v6549 = vshrl.u32 %v6548, 7
    %v6550 = vsub.s32 %v6547, %v6549
    %v6551 = vrot.slane %v6543, %v6550
    %v6553 = vunpack.c.l.s4 1966171168
    %v6554 = vunpack.c.0.s8 %v6553
    %v6555 = vlaneseq
    %v6556 = vshrl.u32 %v6555, 7
    %v6557 = vsub.s32 %v6554, %v6556
    %v6558 = vrot.slane %v6544, %v6557
    %v6559 = vcombine.high %v6551, %v6551
    %v6560 = vcombine.high %v6558, %v6558
    %v6562 = vunpack.c.l.s4 1966171168
    %v6563 = vunpack.c.0.s8 %v6562
    %v6564 = vlaneseq
    %v6565 = vshrl.u32 %v6564, 7
    %v6566 = vsub.s32 %v6563, %v6565
    %v6567 = vrot.slane %v6551, %v6566
    %v6569 = vunpack.c.l.s4 1966171168
    %v6570 = vunpack.c.0.s8 %v6569
    %v6571 = vlaneseq
    %v6572 = vshrl.u32 %v6571, 7
    %v6573 = vsub.s32 %v6570, %v6572
    %v6574 = vrot.slane %v6558, %v6573
    %v6576 = vunpack.c.l.s4 1966171168
    %v6577 = vunpack.c.0.s8 %v6576
    %v6578 = vlaneseq
    %v6579 = vshrl.u32 %v6578, 7
    %v6580 = vsub.s32 %v6577, %v6579
    %v6581 = vrot.slane %v6559, %v6580
    %v6583 = vunpack.c.l.s4 1966171168
    %v6584 = vunpack.c.0.s8 %v6583
    %v6585 = vlaneseq
    %v6586 = vshrl.u32 %v6585, 7
    %v6587 = vsub.s32 %v6584, %v6586
    %v6588 = vrot.slane %v6560, %v6587
    %v6589 = vcombine.high %v6567, %v6567
    %v6590 = vcombine.high %v6574, %v6574
    %v6591 = vcombine.high %v6581, %v6581
    %v6592 = vcombine.high %v6588, %v6588
    %v6593 = vlaneseq
    %v6594 = vshrl.u32 %v6593, 7
    %v6595 = vsub.s32 0, %v6594
    %v6596 = vrot.slane %v6217, %v6595
    %v6597 = vlaneseq
    %v6598 = vshrl.u32 %v6597, 7
    %v6599 = vsub.s32 1, %v6598
    %v6600 = vrot.slane %v6217, %v6599
    %v6601 = vlaneseq
    %v6602 = vshrl.u32 %v6601, 7
    %v6603 = vsub.s32 0, %v6602
    %v6604 = vrot.slane %v6231, %v6603
    %v6605 = vlaneseq
    %v6606 = vshrl.u32 %v6605, 7
    %v6607 = vsub.s32 1, %v6606
    %v6608 = vrot.slane %v6231, %v6607
    %v6609 = vlaneseq
    %v6610 = vshrl.u32 %v6609, 7
    %v6611 = vsub.s32 0, %v6610
    %v6612 = vrot.slane %v6239, %v6611
    %v6613 = vlaneseq
    %v6614 = vshrl.u32 %v6613, 7
    %v6615 = vsub.s32 1, %v6614
    %v6616 = vrot.slane %v6239, %v6615
    %v6617 = vlaneseq
    %v6618 = vshrl.u32 %v6617, 7
    %v6619 = vsub.s32 0, %v6618
    %v6620 = vrot.slane %v6241, %v6619
    %v6621 = vlaneseq
    %v6622 = vshrl.u32 %v6621, 7
    %v6623 = vsub.s32 1, %v6622
    %v6624 = vrot.slane %v6241, %v6623
    %v6625 = vlaneseq
    %v6626 = vshrl.u32 %v6625, 7
    %v6627 = vsub.s32 0, %v6626
    %v6628 = vrot.slane %v6224, %v6627
    %v6629 = vlaneseq
    %v6630 = vshrl.u32 %v6629, 7
    %v6631 = vsub.s32 1, %v6630
    %v6632 = vrot.slane %v6224, %v6631
    %v6633 = vlaneseq
    %v6634 = vshrl.u32 %v6633, 7
    %v6635 = vsub.s32 0, %v6634
    %v6636 = vrot.slane %v6238, %v6635
    %v6637 = vlaneseq
    %v6638 = vshrl.u32 %v6637, 7
    %v6639 = vsub.s32 1, %v6638
    %v6640 = vrot.slane %v6238, %v6639
    %v6641 = vlaneseq
    %v6642 = vshrl.u32 %v6641, 7
    %v6643 = vsub.s32 0, %v6642
    %v6644 = vrot.slane %v6240, %v6643
    %v6645 = vlaneseq
    %v6646 = vshrl.u32 %v6645, 7
    %v6647 = vsub.s32 1, %v6646
    %v6648 = vrot.slane %v6240, %v6647
    %v6649 = vlaneseq
    %v6650 = vshrl.u32 %v6649, 7
    %v6651 = vsub.s32 0, %v6650
    %v6652 = vrot.slane %v6242, %v6651
    %v6653 = vlaneseq
    %v6654 = vshrl.u32 %v6653, 7
    %v6655 = vsub.s32 1, %v6654
    %v6656 = vrot.slane %v6242, %v6655
    %v6657 = vlaneseq
    %v6658 = vshrl.u32 %v6657, 7
    %v6659 = vsub.s32 0, %v6658
    %v6660 = vrot.slane %v6267, %v6659
    %v6661 = vlaneseq
    %v6662 = vshrl.u32 %v6661, 7
    %v6663 = vsub.s32 1, %v6662
    %v6664 = vrot.slane %v6267, %v6663
    %v6665 = vlaneseq
    %v6666 = vshrl.u32 %v6665, 7
    %v6667 = vsub.s32 0, %v6666
    %v6668 = vrot.slane %v6281, %v6667
    %v6669 = vlaneseq
    %v6670 = vshrl.u32 %v6669, 7
    %v6671 = vsub.s32 1, %v6670
    %v6672 = vrot.slane %v6281, %v6671
    %v6673 = vlaneseq
    %v6674 = vshrl.u32 %v6673, 7
    %v6675 = vsub.s32 0, %v6674
    %v6676 = vrot.slane %v6289, %v6675
    %v6677 = vlaneseq
    %v6678 = vshrl.u32 %v6677, 7
    %v6679 = vsub.s32 1, %v6678
    %v6680 = vrot.slane %v6289, %v6679
    %v6681 = vlaneseq
    %v6682 = vshrl.u32 %v6681, 7
    %v6683 = vsub.s32 0, %v6682
    %v6684 = vrot.slane %v6291, %v6683
    %v6685 = vlaneseq
    %v6686 = vshrl.u32 %v6685, 7
    %v6687 = vsub.s32 1, %v6686
    %v6688 = vrot.slane %v6291, %v6687
    %v6689 = vlaneseq
    %v6690 = vshrl.u32 %v6689, 7
    %v6691 = vsub.s32 0, %v6690
    %v6692 = vrot.slane %v6274, %v6691
    %v6693 = vlaneseq
    %v6694 = vshrl.u32 %v6693, 7
    %v6695 = vsub.s32 1, %v6694
    %v6696 = vrot.slane %v6274, %v6695
    %v6697 = vlaneseq
    %v6698 = vshrl.u32 %v6697, 7
    %v6699 = vsub.s32 0, %v6698
    %v6700 = vrot.slane %v6288, %v6699
    %v6701 = vlaneseq
    %v6702 = vshrl.u32 %v6701, 7
    %v6703 = vsub.s32 1, %v6702
    %v6704 = vrot.slane %v6288, %v6703
    %v6705 = vlaneseq
    %v6706 = vshrl.u32 %v6705, 7
    %v6707 = vsub.s32 0, %v6706
    %v6708 = vrot.slane %v6290, %v6707
    %v6709 = vlaneseq
    %v6710 = vshrl.u32 %v6709, 7
    %v6711 = vsub.s32 1, %v6710
    %v6712 = vrot.slane %v6290, %v6711
    %v6713 = vlaneseq
    %v6714 = vshrl.u32 %v6713, 7
    %v6715 = vsub.s32 0, %v6714
    %v6716 = vrot.slane %v6292, %v6715
    %v6717 = vlaneseq
    %v6718 = vshrl.u32 %v6717, 7
    %v6719 = vsub.s32 1, %v6718
    %v6720 = vrot.slane %v6292, %v6719
    %v6721 = vlaneseq
    %v6722 = vshrl.u32 %v6721, 7
    %v6723 = vsub.s32 0, %v6722
    %v6724 = vrot.slane %v6317, %v6723
    %v6725 = vlaneseq
    %v6726 = vshrl.u32 %v6725, 7
    %v6727 = vsub.s32 1, %v6726
    %v6728 = vrot.slane %v6317, %v6727
    %v6729 = vlaneseq
    %v6730 = vshrl.u32 %v6729, 7
    %v6731 = vsub.s32 0, %v6730
    %v6732 = vrot.slane %v6331, %v6731
    %v6733 = vlaneseq
    %v6734 = vshrl.u32 %v6733, 7
    %v6735 = vsub.s32 1, %v6734
    %v6736 = vrot.slane %v6331, %v6735
    %v6737 = vlaneseq
    %v6738 = vshrl.u32 %v6737, 7
    %v6739 = vsub.s32 0, %v6738
    %v6740 = vrot.slane %v6339, %v6739
    %v6741 = vlaneseq
    %v6742 = vshrl.u32 %v6741, 7
    %v6743 = vsub.s32 1, %v6742
    %v6744 = vrot.slane %v6339, %v6743
    %v6745 = vlaneseq
    %v6746 = vshrl.u32 %v6745, 7
    %v6747 = vsub.s32 0, %v6746
    %v6748 = vrot.slane %v6341, %v6747
    %v6749 = vlaneseq
    %v6750 = vshrl.u32 %v6749, 7
    %v6751 = vsub.s32 1, %v6750
    %v6752 = vrot.slane %v6341, %v6751
    %v6753 = vlaneseq
    %v6754 = vshrl.u32 %v6753, 7
    %v6755 = vsub.s32 0, %v6754
    %v6756 = vrot.slane %v6324, %v6755
    %v6757 = vlaneseq
    %v6758 = vshrl.u32 %v6757, 7
    %v6759 = vsub.s32 1, %v6758
    %v6760 = vrot.slane %v6324, %v6759
    %v6761 = vlaneseq
    %v6762 = vshrl.u32 %v6761, 7
    %v6763 = vsub.s32 0, %v6762
    %v6764 = vrot.slane %v6338, %v6763
    %v6765 = vlaneseq
    %v6766 = vshrl.u32 %v6765, 7
    %v6767 = vsub.s32 1, %v6766
    %v6768 = vrot.slane %v6338, %v6767
    %v6769 = vlaneseq
    %v6770 = vshrl.u32 %v6769, 7
    %v6771 = vsub.s32 0, %v6770
    %v6772 = vrot.slane %v6340, %v6771
    %v6773 = vlaneseq
    %v6774 = vshrl.u32 %v6773, 7
    %v6775 = vsub.s32 1, %v6774
    %v6776 = vrot.slane %v6340, %v6775
    %v6777 = vlaneseq
    %v6778 = vshrl.u32 %v6777, 7
    %v6779 = vsub.s32 0, %v6778
    %v6780 = vrot.slane %v6342, %v6779
    %v6781 = vlaneseq
    %v6782 = vshrl.u32 %v6781, 7
    %v6783 = vsub.s32 1, %v6782
    %v6784 = vrot.slane %v6342, %v6783
    %v6785 = vlaneseq
    %v6786 = vshrl.u32 %v6785, 7
    %v6787 = vsub.s32 0, %v6786
    %v6788 = vrot.slane %v6367, %v6787
    %v6789 = vlaneseq
    %v6790 = vshrl.u32 %v6789, 7
    %v6791 = vsub.s32 1, %v6790
    %v6792 = vrot.slane %v6367, %v6791
    %v6793 = vlaneseq
    %v6794 = vshrl.u32 %v6793, 7
    %v6795 = vsub.s32 0, %v6794
    %v6796 = vrot.slane %v6381, %v6795
    %v6797 = vlaneseq
    %v6798 = vshrl.u32 %v6797, 7
    %v6799 = vsub.s32 1, %v6798
    %v6800 = vrot.slane %v6381, %v6799
    %v6801 = vlaneseq
    %v6802 = vshrl.u32 %v6801, 7
    %v6803 = vsub.s32 0, %v6802
    %v6804 = vrot.slane %v6389, %v6803
    %v6805 = vlaneseq
    %v6806 = vshrl.u32 %v6805, 7
    %v6807 = vsub.s32 1, %v6806
    %v6808 = vrot.slane %v6389, %v6807
    %v6809 = vlaneseq
    %v6810 = vshrl.u32 %v6809, 7
    %v6811 = vsub.s32 0, %v6810
    %v6812 = vrot.slane %v6391, %v6811
    %v6813 = vlaneseq
    %v6814 = vshrl.u32 %v6813, 7
    %v6815 = vsub.s32 1, %v6814
    %v6816 = vrot.slane %v6391, %v6815
    %v6817 = vlaneseq
    %v6818 = vshrl.u32 %v6817, 7
    %v6819 = vsub.s32 0, %v6818
    %v6820 = vrot.slane %v6374, %v6819
    %v6821 = vlaneseq
    %v6822 = vshrl.u32 %v6821, 7
    %v6823 = vsub.s32 1, %v6822
    %v6824 = vrot.slane %v6374, %v6823
    %v6825 = vlaneseq
    %v6826 = vshrl.u32 %v6825, 7
    %v6827 = vsub.s32 0, %v6826
    %v6828 = vrot.slane %v6388, %v6827
    %v6829 = vlaneseq
    %v6830 = vshrl.u32 %v6829, 7
    %v6831 = vsub.s32 1, %v6830
    %v6832 = vrot.slane %v6388, %v6831
    %v6833 = vlaneseq
    %v6834 = vshrl.u32 %v6833, 7
    %v6835 = vsub.s32 0, %v6834
    %v6836 = vrot.slane %v6390, %v6835
    %v6837 = vlaneseq
    %v6838 = vshrl.u32 %v6837, 7
    %v6839 = vsub.s32 1, %v6838
    %v6840 = vrot.slane %v6390, %v6839
    %v6841 = vlaneseq
    %v6842 = vshrl.u32 %v6841, 7
    %v6843 = vsub.s32 0, %v6842
    %v6844 = vrot.slane %v6392, %v6843
    %v6845 = vlaneseq
    %v6846 = vshrl.u32 %v6845, 7
    %v6847 = vsub.s32 1, %v6846
    %v6848 = vrot.slane %v6392, %v6847
    %v6849 = vlaneseq
    %v6850 = vshrl.u32 %v6849, 7
    %v6851 = vsub.s32 0, %v6850
    %v6852 = vrot.slane %v6417, %v6851
    %v6853 = vlaneseq
    %v6854 = vshrl.u32 %v6853, 7
    %v6855 = vsub.s32 1, %v6854
    %v6856 = vrot.slane %v6417, %v6855
    %v6857 = vlaneseq
    %v6858 = vshrl.u32 %v6857, 7
    %v6859 = vsub.s32 0, %v6858
    %v6860 = vrot.slane %v6431, %v6859
    %v6861 = vlaneseq
    %v6862 = vshrl.u32 %v6861, 7
    %v6863 = vsub.s32 1, %v6862
    %v6864 = vrot.slane %v6431, %v6863
    %v6865 = vlaneseq
    %v6866 = vshrl.u32 %v6865, 7
    %v6867 = vsub.s32 0, %v6866
    %v6868 = vrot.slane %v6439, %v6867
    %v6869 = vlaneseq
    %v6870 = vshrl.u32 %v6869, 7
    %v6871 = vsub.s32 1, %v6870
    %v6872 = vrot.slane %v6439, %v6871
    %v6873 = vlaneseq
    %v6874 = vshrl.u32 %v6873, 7
    %v6875 = vsub.s32 0, %v6874
    %v6876 = vrot.slane %v6441, %v6875
    %v6877 = vlaneseq
    %v6878 = vshrl.u32 %v6877, 7
    %v6879 = vsub.s32 1, %v6878
    %v6880 = vrot.slane %v6441, %v6879
    %v6881 = vlaneseq
    %v6882 = vshrl.u32 %v6881, 7
    %v6883 = vsub.s32 0, %v6882
    %v6884 = vrot.slane %v6424, %v6883
    %v6885 = vlaneseq
    %v6886 = vshrl.u32 %v6885, 7
    %v6887 = vsub.s32 1, %v6886
    %v6888 = vrot.slane %v6424, %v6887
    %v6889 = vlaneseq
    %v6890 = vshrl.u32 %v6889, 7
    %v6891 = vsub.s32 0, %v6890
    %v6892 = vrot.slane %v6438, %v6891
    %v6893 = vlaneseq
    %v6894 = vshrl.u32 %v6893, 7
    %v6895 = vsub.s32 1, %v6894
    %v6896 = vrot.slane %v6438, %v6895
    %v6897 = vlaneseq
    %v6898 = vshrl.u32 %v6897, 7
    %v6899 = vsub.s32 0, %v6898
    %v6900 = vrot.slane %v6440, %v6899
    %v6901 = vlaneseq
    %v6902 = vshrl.u32 %v6901, 7
    %v6903 = vsub.s32 1, %v6902
    %v6904 = vrot.slane %v6440, %v6903
    %v6905 = vlaneseq
    %v6906 = vshrl.u32 %v6905, 7
    %v6907 = vsub.s32 0, %v6906
    %v6908 = vrot.slane %v6442, %v6907
    %v6909 = vlaneseq
    %v6910 = vshrl.u32 %v6909, 7
    %v6911 = vsub.s32 1, %v6910
    %v6912 = vrot.slane %v6442, %v6911
    %v6913 = vlaneseq
    %v6914 = vshrl.u32 %v6913, 7
    %v6915 = vsub.s32 0, %v6914
    %v6916 = vrot.slane %v6467, %v6915
    %v6917 = vlaneseq
    %v6918 = vshrl.u32 %v6917, 7
    %v6919 = vsub.s32 1, %v6918
    %v6920 = vrot.slane %v6467, %v6919
    %v6921 = vlaneseq
    %v6922 = vshrl.u32 %v6921, 7
    %v6923 = vsub.s32 0, %v6922
    %v6924 = vrot.slane %v6481, %v6923
    %v6925 = vlaneseq
    %v6926 = vshrl.u32 %v6925, 7
    %v6927 = vsub.s32 1, %v6926
    %v6928 = vrot.slane %v6481, %v6927
    %v6929 = vlaneseq
    %v6930 = vshrl.u32 %v6929, 7
    %v6931 = vsub.s32 0, %v6930
    %v6932 = vrot.slane %v6489, %v6931
    %v6933 = vlaneseq
    %v6934 = vshrl.u32 %v6933, 7
    %v6935 = vsub.s32 1, %v6934
    %v6936 = vrot.slane %v6489, %v6935
    %v6937 = vlaneseq
    %v6938 = vshrl.u32 %v6937, 7
    %v6939 = vsub.s32 0, %v6938
    %v6940 = vrot.slane %v6491, %v6939
    %v6941 = vlaneseq
    %v6942 = vshrl.u32 %v6941, 7
    %v6943 = vsub.s32 1, %v6942
    %v6944 = vrot.slane %v6491, %v6943
    %v6945 = vlaneseq
    %v6946 = vshrl.u32 %v6945, 7
    %v6947 = vsub.s32 0, %v6946
    %v6948 = vrot.slane %v6474, %v6947
    %v6949 = vlaneseq
    %v6950 = vshrl.u32 %v6949, 7
    %v6951 = vsub.s32 1, %v6950
    %v6952 = vrot.slane %v6474, %v6951
    %v6953 = vlaneseq
    %v6954 = vshrl.u32 %v6953, 7
    %v6955 = vsub.s32 0, %v6954
    %v6956 = vrot.slane %v6488, %v6955
    %v6957 = vlaneseq
    %v6958 = vshrl.u32 %v6957, 7
    %v6959 = vsub.s32 1, %v6958
    %v6960 = vrot.slane %v6488, %v6959
    %v6961 = vlaneseq
    %v6962 = vshrl.u32 %v6961, 7
    %v6963 = vsub.s32 0, %v6962
    %v6964 = vrot.slane %v6490, %v6963
    %v6965 = vlaneseq
    %v6966 = vshrl.u32 %v6965, 7
    %v6967 = vsub.s32 1, %v6966
    %v6968 = vrot.slane %v6490, %v6967
    %v6969 = vlaneseq
    %v6970 = vshrl.u32 %v6969, 7
    %v6971 = vsub.s32 0, %v6970
    %v6972 = vrot.slane %v6492, %v6971
    %v6973 = vlaneseq
    %v6974 = vshrl.u32 %v6973, 7
    %v6975 = vsub.s32 1, %v6974
    %v6976 = vrot.slane %v6492, %v6975
    %v6977 = vlaneseq
    %v6978 = vshrl.u32 %v6977, 7
    %v6979 = vsub.s32 0, %v6978
    %v6980 = vrot.slane %v6517, %v6979
    %v6981 = vlaneseq
    %v6982 = vshrl.u32 %v6981, 7
    %v6983 = vsub.s32 1, %v6982
    %v6984 = vrot.slane %v6517, %v6983
    %v6985 = vlaneseq
    %v6986 = vshrl.u32 %v6985, 7
    %v6987 = vsub.s32 0, %v6986
    %v6988 = vrot.slane %v6531, %v6987
    %v6989 = vlaneseq
    %v6990 = vshrl.u32 %v6989, 7
    %v6991 = vsub.s32 1, %v6990
    %v6992 = vrot.slane %v6531, %v6991
    %v6993 = vlaneseq
    %v6994 = vshrl.u32 %v6993, 7
    %v6995 = vsub.s32 0, %v6994
    %v6996 = vrot.slane %v6539, %v6995
    %v6997 = vlaneseq
    %v6998 = vshrl.u32 %v6997, 7
    %v6999 = vsub.s32 1, %v6998
    %v7000 = vrot.slane %v6539, %v6999
    %v7001 = vlaneseq
    %v7002 = vshrl.u32 %v7001, 7
    %v7003 = vsub.s32 0, %v7002
    %v7004 = vrot.slane %v6541, %v7003
    %v7005 = vlaneseq
    %v7006 = vshrl.u32 %v7005, 7
    %v7007 = vsub.s32 1, %v7006
    %v7008 = vrot.slane %v6541, %v7007
    %v7009 = vlaneseq
    %v7010 = vshrl.u32 %v7009, 7
    %v7011 = vsub.s32 0, %v7010
    %v7012 = vrot.slane %v6524, %v7011
    %v7013 = vlaneseq
    %v7014 = vshrl.u32 %v7013, 7
    %v7015 = vsub.s32 1, %v7014
    %v7016 = vrot.slane %v6524, %v7015
    %v7017 = vlaneseq
    %v7018 = vshrl.u32 %v7017, 7
    %v7019 = vsub.s32 0, %v7018
    %v7020 = vrot.slane %v6538, %v7019
    %v7021 = vlaneseq
    %v7022 = vshrl.u32 %v7021, 7
    %v7023 = vsub.s32 1, %v7022
    %v7024 = vrot.slane %v6538, %v7023
    %v7025 = vlaneseq
    %v7026 = vshrl.u32 %v7025, 7
    %v7027 = vsub.s32 0, %v7026
    %v7028 = vrot.slane %v6540, %v7027
    %v7029 = vlaneseq
    %v7030 = vshrl.u32 %v7029, 7
    %v7031 = vsub.s32 1, %v7030
    %v7032 = vrot.slane %v6540, %v7031
    %v7033 = vlaneseq
    %v7034 = vshrl.u32 %v7033, 7
    %v7035 = vsub.s32 0, %v7034
    %v7036 = vrot.slane %v6542, %v7035
    %v7037 = vlaneseq
    %v7038 = vshrl.u32 %v7037, 7
    %v7039 = vsub.s32 1, %v7038
    %v7040 = vrot.slane %v6542, %v7039
    %v7041 = vlaneseq
    %v7042 = vshrl.u32 %v7041, 7
    %v7043 = vsub.s32 0, %v7042
    %v7044 = vrot.slane %v6567, %v7043
    %v7045 = vlaneseq
    %v7046 = vshrl.u32 %v7045, 7
    %v7047 = vsub.s32 1, %v7046
    %v7048 = vrot.slane %v6567, %v7047
    %v7049 = vlaneseq
    %v7050 = vshrl.u32 %v7049, 7
    %v7051 = vsub.s32 0, %v7050
    %v7052 = vrot.slane %v6581, %v7051
    %v7053 = vlaneseq
    %v7054 = vshrl.u32 %v7053, 7
    %v7055 = vsub.s32 1, %v7054
    %v7056 = vrot.slane %v6581, %v7055
    %v7057 = vlaneseq
    %v7058 = vshrl.u32 %v7057, 7
    %v7059 = vsub.s32 0, %v7058
    %v7060 = vrot.slane %v6589, %v7059
    %v7061 = vlaneseq
    %v7062 = vshrl.u32 %v7061, 7
    %v7063 = vsub.s32 1, %v7062
    %v7064 = vrot.slane %v6589, %v7063
    %v7065 = vlaneseq
    %v7066 = vshrl.u32 %v7065, 7
    %v7067 = vsub.s32 0, %v7066
    %v7068 = vrot.slane %v6591, %v7067
    %v7069 = vlaneseq
    %v7070 = vshrl.u32 %v7069, 7
    %v7071 = vsub.s32 1, %v7070
    %v7072 = vrot.slane %v6591, %v7071
    %v7073 = vlaneseq
    %v7074 = vshrl.u32 %v7073, 7
    %v7075 = vsub.s32 0, %v7074
    %v7076 = vrot.slane %v6574, %v7075
    %v7077 = vlaneseq
    %v7078 = vshrl.u32 %v7077, 7
    %v7079 = vsub.s32 1, %v7078
    %v7080 = vrot.slane %v6574, %v7079
    %v7081 = vlaneseq
    %v7082 = vshrl.u32 %v7081, 7
    %v7083 = vsub.s32 0, %v7082
    %v7084 = vrot.slane %v6588, %v7083
    %v7085 = vlaneseq
    %v7086 = vshrl.u32 %v7085, 7
    %v7087 = vsub.s32 1, %v7086
    %v7088 = vrot.slane %v6588, %v7087
    %v7089 = vlaneseq
    %v7090 = vshrl.u32 %v7089, 7
    %v7091 = vsub.s32 0, %v7090
    %v7092 = vrot.slane %v6590, %v7091
    %v7093 = vlaneseq
    %v7094 = vshrl.u32 %v7093, 7
    %v7095 = vsub.s32 1, %v7094
    %v7096 = vrot.slane %v6590, %v7095
    %v7097 = vlaneseq
    %v7098 = vshrl.u32 %v7097, 7
    %v7099 = vsub.s32 0, %v7098
    %v7100 = vrot.slane %v6592, %v7099
    %v7101 = vlaneseq
    %v7102 = vshrl.u32 %v7101, 7
    %v7103 = vsub.s32 1, %v7102
    %v7104 = vrot.slane %v6592, %v7103
    %v7361 = vcombine.low %v6596, %v6600
    %v7363 = vunpack.c.l.s4 1983009808
    %v7364 = vunpack.c.0.s8 %v7363
    %v7365 = vlaneseq
    %v7366 = vshrl.u32 %v7365, 7
    %v7367 = vsub.s32 %v7364, %v7366
    %v7368 = vrot.slane %v7361, %v7367
    %v7369 = vcombine.low %v6604, %v6608
    %v7371 = vunpack.c.l.s4 1983009808
    %v7372 = vunpack.c.0.s8 %v7371
    %v7373 = vlaneseq
    %v7374 = vshrl.u32 %v7373, 7
    %v7375 = vsub.s32 %v7372, %v7374
    %v7376 = vrot.slane %v7369, %v7375
    %v7377 = vcombine.low %v6612, %v6616
    %v7379 = vunpack.c.l.s4 1983009808
    %v7380 = vunpack.c.0.s8 %v7379
    %v7381 = vlaneseq
    %v7382 = vshrl.u32 %v7381, 7
    %v7383 = vsub.s32 %v7380, %v7382
    %v7384 = vrot.slane %v7377, %v7383
    %v7385 = vcombine.low %v6620, %v6624
    %v7387 = vunpack.c.l.s4 1983009808
    %v7388 = vunpack.c.0.s8 %v7387
    %v7389 = vlaneseq
    %v7390 = vshrl.u32 %v7389, 7
    %v7391 = vsub.s32 %v7388, %v7390
    %v7392 = vrot.slane %v7385, %v7391
    %v7393 = vcombine.low %v6628, %v6632
    %v7395 = vunpack.c.l.s4 1983009808
    %v7396 = vunpack.c.0.s8 %v7395
    %v7397 = vlaneseq
    %v7398 = vshrl.u32 %v7397, 7
    %v7399 = vsub.s32 %v7396, %v7398
    %v7400 = vrot.slane %v7393, %v7399
    %v7401 = vcombine.low %v6636, %v6640
    %v7403 = vunpack.c.l.s4 1983009808
    %v7404 = vunpack.c.0.s8 %v7403
    %v7405 = vlaneseq
    %v7406 = vshrl.u32 %v7405, 7
    %v7407 = vsub.s32 %v7404, %v7406
    %v7408 = vrot.slane %v7401, %v7407
    %v7409 = vcombine.low %v6644, %v6648
    %v7411 = vunpack.c.l.s4 1983009808
    %v7412 = vunpack.c.0.s8 %v7411
    %v7413 = vlaneseq
    %v7414 = vshrl.u32 %v7413, 7
    %v7415 = vsub.s32 %v7412, %v7414
    %v7416 = vrot.slane %v7409, %v7415
    %v7417 = vcombine.low %v6652, %v6656
    %v7419 = vunpack.c.l.s4 1983009808
    %v7420 = vunpack.c.0.s8 %v7419
    %v7421 = vlaneseq
    %v7422 = vshrl.u32 %v7421, 7
    %v7423 = vsub.s32 %v7420, %v7422
    %v7424 = vrot.slane %v7417, %v7423
    %v7425 = vcombine.low %v6660, %v6664
    %v7427 = vunpack.c.l.s4 1983009808
    %v7428 = vunpack.c.0.s8 %v7427
    %v7429 = vlaneseq
    %v7430 = vshrl.u32 %v7429, 7
    %v7431 = vsub.s32 %v7428, %v7430
    %v7432 = vrot.slane %v7425, %v7431
    %v7433 = vcombine.low %v6668, %v6672
    %v7435 = vunpack.c.l.s4 1983009808
    %v7436 = vunpack.c.0.s8 %v7435
    %v7437 = vlaneseq
    %v7438 = vshrl.u32 %v7437, 7
    %v7439 = vsub.s32 %v7436, %v7438
    %v7440 = vrot.slane %v7433, %v7439
    %v7441 = vcombine.low %v6676, %v6680
    %v7443 = vunpack.c.l.s4 1983009808
    %v7444 = vunpack.c.0.s8 %v7443
    %v7445 = vlaneseq
    %v7446 = vshrl.u32 %v7445, 7
    %v7447 = vsub.s32 %v7444, %v7446
    %v7448 = vrot.slane %v7441, %v7447
    %v7449 = vcombine.low %v6684, %v6688
    %v7451 = vunpack.c.l.s4 1983009808
    %v7452 = vunpack.c.0.s8 %v7451
    %v7453 = vlaneseq
    %v7454 = vshrl.u32 %v7453, 7
    %v7455 = vsub.s32 %v7452, %v7454
    %v7456 = vrot.slane %v7449, %v7455
    %v7457 = vcombine.low %v6692, %v6696
    %v7459 = vunpack.c.l.s4 1983009808
    %v7460 = vunpack.c.0.s8 %v7459
    %v7461 = vlaneseq
    %v7462 = vshrl.u32 %v7461, 7
    %v7463 = vsub.s32 %v7460, %v7462
    %v7464 = vrot.slane %v7457, %v7463
    %v7465 = vcombine.low %v6700, %v6704
    %v7467 = vunpack.c.l.s4 1983009808
    %v7468 = vunpack.c.0.s8 %v7467
    %v7469 = vlaneseq
    %v7470 = vshrl.u32 %v7469, 7
    %v7471 = vsub.s32 %v7468, %v7470
    %v7472 = vrot.slane %v7465, %v7471
    %v7473 = vcombine.low %v6708, %v6712
    %v7475 = vunpack.c.l.s4 1983009808
    %v7476 = vunpack.c.0.s8 %v7475
    %v7477 = vlaneseq
    %v7478 = vshrl.u32 %v7477, 7
    %v7479 = vsub.s32 %v7476, %v7478
    %v7480 = vrot.slane %v7473, %v7479
    %v7481 = vcombine.low %v6716, %v6720
    %v7483 = vunpack.c.l.s4 1983009808
    %v7484 = vunpack.c.0.s8 %v7483
    %v7485 = vlaneseq
    %v7486 = vshrl.u32 %v7485, 7
    %v7487 = vsub.s32 %v7484, %v7486
    %v7488 = vrot.slane %v7481, %v7487
    %v7489 = vcombine.low %v6724, %v6728
    %v7491 = vunpack.c.l.s4 1983009808
    %v7492 = vunpack.c.0.s8 %v7491
    %v7493 = vlaneseq
    %v7494 = vshrl.u32 %v7493, 7
    %v7495 = vsub.s32 %v7492, %v7494
    %v7496 = vrot.slane %v7489, %v7495
    %v7497 = vcombine.low %v6732, %v6736
    %v7499 = vunpack.c.l.s4 1983009808
    %v7500 = vunpack.c.0.s8 %v7499
    %v7501 = vlaneseq
    %v7502 = vshrl.u32 %v7501, 7
    %v7503 = vsub.s32 %v7500, %v7502
    %v7504 = vrot.slane %v7497, %v7503
    %v7505 = vcombine.low %v6740, %v6744
    %v7507 = vunpack.c.l.s4 1983009808
    %v7508 = vunpack.c.0.s8 %v7507
    %v7509 = vlaneseq
    %v7510 = vshrl.u32 %v7509, 7
    %v7511 = vsub.s32 %v7508, %v7510
    %v7512 = vrot.slane %v7505, %v7511
    %v7513 = vcombine.low %v6748, %v6752
    %v7515 = vunpack.c.l.s4 1983009808
    %v7516 = vunpack.c.0.s8 %v7515
    %v7517 = vlaneseq
    %v7518 = vshrl.u32 %v7517, 7
    %v7519 = vsub.s32 %v7516, %v7518
    %v7520 = vrot.slane %v7513, %v7519
    %v7521 = vcombine.low %v6756, %v6760
    %v7523 = vunpack.c.l.s4 1983009808
    %v7524 = vunpack.c.0.s8 %v7523
    %v7525 = vlaneseq
    %v7526 = vshrl.u32 %v7525, 7
    %v7527 = vsub.s32 %v7524, %v7526
    %v7528 = vrot.slane %v7521, %v7527
    %v7529 = vcombine.low %v6764, %v6768
    %v7531 = vunpack.c.l.s4 1983009808
    %v7532 = vunpack.c.0.s8 %v7531
    %v7533 = vlaneseq
    %v7534 = vshrl.u32 %v7533, 7
    %v7535 = vsub.s32 %v7532, %v7534
    %v7536 = vrot.slane %v7529, %v7535
    %v7537 = vcombine.low %v6772, %v6776
    %v7539 = vunpack.c.l.s4 1983009808
    %v7540 = vunpack.c.0.s8 %v7539
    %v7541 = vlaneseq
    %v7542 = vshrl.u32 %v7541, 7
    %v7543 = vsub.s32 %v7540, %v7542
    %v7544 = vrot.slane %v7537, %v7543
    %v7545 = vcombine.low %v6780, %v6784
    %v7547 = vunpack.c.l.s4 1983009808
    %v7548 = vunpack.c.0.s8 %v7547
    %v7549 = vlaneseq
    %v7550 = vshrl.u32 %v7549, 7
    %v7551 = vsub.s32 %v7548, %v7550
    %v7552 = vrot.slane %v7545, %v7551
    %v7553 = vcombine.low %v6788, %v6792
    %v7555 = vunpack.c.l.s4 1983009808
    %v7556 = vunpack.c.0.s8 %v7555
    %v7557 = vlaneseq
    %v7558 = vshrl.u32 %v7557, 7
    %v7559 = vsub.s32 %v7556, %v7558
    %v7560 = vrot.slane %v7553, %v7559
    %v7561 = vcombine.low %v6796, %v6800
    %v7563 = vunpack.c.l.s4 1983009808
    %v7564 = vunpack.c.0.s8 %v7563
    %v7565 = vlaneseq
    %v7566 = vshrl.u32 %v7565, 7
    %v7567 = vsub.s32 %v7564, %v7566
    %v7568 = vrot.slane %v7561, %v7567
    %v7569 = vcombine.low %v6804, %v6808
    %v7571 = vunpack.c.l.s4 1983009808
    %v7572 = vunpack.c.0.s8 %v7571
    %v7573 = vlaneseq
    %v7574 = vshrl.u32 %v7573, 7
    %v7575 = vsub.s32 %v7572, %v7574
    %v7576 = vrot.slane %v7569, %v7575
    %v7577 = vcombine.low %v6812, %v6816
    %v7579 = vunpack.c.l.s4 1983009808
    %v7580 = vunpack.c.0.s8 %v7579
    %v7581 = vlaneseq
    %v7582 = vshrl.u32 %v7581, 7
    %v7583 = vsub.s32 %v7580, %v7582
    %v7584 = vrot.slane %v7577, %v7583
    %v7585 = vcombine.low %v6820, %v6824
    %v7587 = vunpack.c.l.s4 1983009808
    %v7588 = vunpack.c.0.s8 %v7587
    %v7589 = vlaneseq
    %v7590 = vshrl.u32 %v7589, 7
    %v7591 = vsub.s32 %v7588, %v7590
    %v7592 = vrot.slane %v7585, %v7591
    %v7593 = vcombine.low %v6828, %v6832
    %v7595 = vunpack.c.l.s4 1983009808
    %v7596 = vunpack.c.0.s8 %v7595
    %v7597 = vlaneseq
    %v7598 = vshrl.u32 %v7597, 7
    %v7599 = vsub.s32 %v7596, %v7598
    %v7600 = vrot.slane %v7593, %v7599
    %v7601 = vcombine.low %v6836, %v6840
    %v7603 = vunpack.c.l.s4 1983009808
    %v7604 = vunpack.c.0.s8 %v7603
    %v7605 = vlaneseq
    %v7606 = vshrl.u32 %v7605, 7
    %v7607 = vsub.s32 %v7604, %v7606
    %v7608 = vrot.slane %v7601, %v7607
    %v7609 = vcombine.low %v6844, %v6848
    %v7611 = vunpack.c.l.s4 1983009808
    %v7612 = vunpack.c.0.s8 %v7611
    %v7613 = vlaneseq
    %v7614 = vshrl.u32 %v7613, 7
    %v7615 = vsub.s32 %v7612, %v7614
    %v7616 = vrot.slane %v7609, %v7615
    %v7617 = vcombine.low %v6852, %v6856
    %v7619 = vunpack.c.l.s4 1983009808
    %v7620 = vunpack.c.0.s8 %v7619
    %v7621 = vlaneseq
    %v7622 = vshrl.u32 %v7621, 7
    %v7623 = vsub.s32 %v7620, %v7622
    %v7624 = vrot.slane %v7617, %v7623
    %v7625 = vcombine.low %v6860, %v6864
    %v7627 = vunpack.c.l.s4 1983009808
    %v7628 = vunpack.c.0.s8 %v7627
    %v7629 = vlaneseq
    %v7630 = vshrl.u32 %v7629, 7
    %v7631 = vsub.s32 %v7628, %v7630
    %v7632 = vrot.slane %v7625, %v7631
    %v7633 = vcombine.low %v6868, %v6872
    %v7635 = vunpack.c.l.s4 1983009808
    %v7636 = vunpack.c.0.s8 %v7635
    %v7637 = vlaneseq
    %v7638 = vshrl.u32 %v7637, 7
    %v7639 = vsub.s32 %v7636, %v7638
    %v7640 = vrot.slane %v7633, %v7639
    %v7641 = vcombine.low %v6876, %v6880
    %v7643 = vunpack.c.l.s4 1983009808
    %v7644 = vunpack.c.0.s8 %v7643
    %v7645 = vlaneseq
    %v7646 = vshrl.u32 %v7645, 7
    %v7647 = vsub.s32 %v7644, %v7646
    %v7648 = vrot.slane %v7641, %v7647
    %v7649 = vcombine.low %v6884, %v6888
    %v7651 = vunpack.c.l.s4 1983009808
    %v7652 = vunpack.c.0.s8 %v7651
    %v7653 = vlaneseq
    %v7654 = vshrl.u32 %v7653, 7
    %v7655 = vsub.s32 %v7652, %v7654
    %v7656 = vrot.slane %v7649, %v7655
    %v7657 = vcombine.low %v6892, %v6896
    %v7659 = vunpack.c.l.s4 1983009808
    %v7660 = vunpack.c.0.s8 %v7659
    %v7661 = vlaneseq
    %v7662 = vshrl.u32 %v7661, 7
    %v7663 = vsub.s32 %v7660, %v7662
    %v7664 = vrot.slane %v7657, %v7663
    %v7665 = vcombine.low %v6900, %v6904
    %v7667 = vunpack.c.l.s4 1983009808
    %v7668 = vunpack.c.0.s8 %v7667
    %v7669 = vlaneseq
    %v7670 = vshrl.u32 %v7669, 7
    %v7671 = vsub.s32 %v7668, %v7670
    %v7672 = vrot.slane %v7665, %v7671
    %v7673 = vcombine.low %v6908, %v6912
    %v7675 = vunpack.c.l.s4 1983009808
    %v7676 = vunpack.c.0.s8 %v7675
    %v7677 = vlaneseq
    %v7678 = vshrl.u32 %v7677, 7
    %v7679 = vsub.s32 %v7676, %v7678
    %v7680 = vrot.slane %v7673, %v7679
    %v7681 = vcombine.low %v6916, %v6920
    %v7683 = vunpack.c.l.s4 1983009808
    %v7684 = vunpack.c.0.s8 %v7683
    %v7685 = vlaneseq
    %v7686 = vshrl.u32 %v7685, 7
    %v7687 = vsub.s32 %v7684, %v7686
    %v7688 = vrot.slane %v7681, %v7687
    %v7689 = vcombine.low %v6924, %v6928
    %v7691 = vunpack.c.l.s4 1983009808
    %v7692 = vunpack.c.0.s8 %v7691
    %v7693 = vlaneseq
    %v7694 = vshrl.u32 %v7693, 7
    %v7695 = vsub.s32 %v7692, %v7694
    %v7696 = vrot.slane %v7689, %v7695
    %v7697 = vcombine.low %v6932, %v6936
    %v7699 = vunpack.c.l.s4 1983009808
    %v7700 = vunpack.c.0.s8 %v7699
    %v7701 = vlaneseq
    %v7702 = vshrl.u32 %v7701, 7
    %v7703 = vsub.s32 %v7700, %v7702
    %v7704 = vrot.slane %v7697, %v7703
    %v7705 = vcombine.low %v6940, %v6944
    %v7707 = vunpack.c.l.s4 1983009808
    %v7708 = vunpack.c.0.s8 %v7707
    %v7709 = vlaneseq
    %v7710 = vshrl.u32 %v7709, 7
    %v7711 = vsub.s32 %v7708, %v7710
    %v7712 = vrot.slane %v7705, %v7711
    %v7713 = vcombine.low %v6948, %v6952
    %v7715 = vunpack.c.l.s4 1983009808
    %v7716 = vunpack.c.0.s8 %v7715
    %v7717 = vlaneseq
    %v7718 = vshrl.u32 %v7717, 7
    %v7719 = vsub.s32 %v7716, %v7718
    %v7720 = vrot.slane %v7713, %v7719
    %v7721 = vcombine.low %v6956, %v6960
    %v7723 = vunpack.c.l.s4 1983009808
    %v7724 = vunpack.c.0.s8 %v7723
    %v7725 = vlaneseq
    %v7726 = vshrl.u32 %v7725, 7
    %v7727 = vsub.s32 %v7724, %v7726
    %v7728 = vrot.slane %v7721, %v7727
    %v7729 = vcombine.low %v6964, %v6968
    %v7731 = vunpack.c.l.s4 1983009808
    %v7732 = vunpack.c.0.s8 %v7731
    %v7733 = vlaneseq
    %v7734 = vshrl.u32 %v7733, 7
    %v7735 = vsub.s32 %v7732, %v7734
    %v7736 = vrot.slane %v7729, %v7735
    %v7737 = vcombine.low %v6972, %v6976
    %v7739 = vunpack.c.l.s4 1983009808
    %v7740 = vunpack.c.0.s8 %v7739
    %v7741 = vlaneseq
    %v7742 = vshrl.u32 %v7741, 7
    %v7743 = vsub.s32 %v7740, %v7742
    %v7744 = vrot.slane %v7737, %v7743
    %v7745 = vcombine.low %v6980, %v6984
    %v7747 = vunpack.c.l.s4 1983009808
    %v7748 = vunpack.c.0.s8 %v7747
    %v7749 = vlaneseq
    %v7750 = vshrl.u32 %v7749, 7
    %v7751 = vsub.s32 %v7748, %v7750
    %v7752 = vrot.slane %v7745, %v7751
    %v7753 = vcombine.low %v6988, %v6992
    %v7755 = vunpack.c.l.s4 1983009808
    %v7756 = vunpack.c.0.s8 %v7755
    %v7757 = vlaneseq
    %v7758 = vshrl.u32 %v7757, 7
    %v7759 = vsub.s32 %v7756, %v7758
    %v7760 = vrot.slane %v7753, %v7759
    %v7761 = vcombine.low %v6996, %v7000
    %v7763 = vunpack.c.l.s4 1983009808
    %v7764 = vunpack.c.0.s8 %v7763
    %v7765 = vlaneseq
    %v7766 = vshrl.u32 %v7765, 7
    %v7767 = vsub.s32 %v7764, %v7766
    %v7768 = vrot.slane %v7761, %v7767
    %v7769 = vcombine.low %v7004, %v7008
    %v7771 = vunpack.c.l.s4 1983009808
    %v7772 = vunpack.c.0.s8 %v7771
    %v7773 = vlaneseq
    %v7774 = vshrl.u32 %v7773, 7
    %v7775 = vsub.s32 %v7772, %v7774
    %v7776 = vrot.slane %v7769, %v7775
    %v7777 = vcombine.low %v7012, %v7016
    %v7779 = vunpack.c.l.s4 1983009808
    %v7780 = vunpack.c.0.s8 %v7779
    %v7781 = vlaneseq
    %v7782 = vshrl.u32 %v7781, 7
    %v7783 = vsub.s32 %v7780, %v7782
    %v7784 = vrot.slane %v7777, %v7783
    %v7785 = vcombine.low %v7020, %v7024
    %v7787 = vunpack.c.l.s4 1983009808
    %v7788 = vunpack.c.0.s8 %v7787
    %v7789 = vlaneseq
    %v7790 = vshrl.u32 %v7789, 7
    %v7791 = vsub.s32 %v7788, %v7790
    %v7792 = vrot.slane %v7785, %v7791
    %v7793 = vcombine.low %v7028, %v7032
    %v7795 = vunpack.c.l.s4 1983009808
    %v7796 = vunpack.c.0.s8 %v7795
    %v7797 = vlaneseq
    %v7798 = vshrl.u32 %v7797, 7
    %v7799 = vsub.s32 %v7796, %v7798
    %v7800 = vrot.slane %v7793, %v7799
    %v7801 = vcombine.low %v7036, %v7040
    %v7803 = vunpack.c.l.s4 1983009808
    %v7804 = vunpack.c.0.s8 %v7803
    %v7805 = vlaneseq
    %v7806 = vshrl.u32 %v7805, 7
    %v7807 = vsub.s32 %v7804, %v7806
    %v7808 = vrot.slane %v7801, %v7807
    %v7809 = vcombine.low %v7044, %v7048
    %v7811 = vunpack.c.l.s4 1983009808
    %v7812 = vunpack.c.0.s8 %v7811
    %v7813 = vlaneseq
    %v7814 = vshrl.u32 %v7813, 7
    %v7815 = vsub.s32 %v7812, %v7814
    %v7816 = vrot.slane %v7809, %v7815
    %v7817 = vcombine.low %v7052, %v7056
    %v7819 = vunpack.c.l.s4 1983009808
    %v7820 = vunpack.c.0.s8 %v7819
    %v7821 = vlaneseq
    %v7822 = vshrl.u32 %v7821, 7
    %v7823 = vsub.s32 %v7820, %v7822
    %v7824 = vrot.slane %v7817, %v7823
    %v7825 = vcombine.low %v7060, %v7064
    %v7827 = vunpack.c.l.s4 1983009808
    %v7828 = vunpack.c.0.s8 %v7827
    %v7829 = vlaneseq
    %v7830 = vshrl.u32 %v7829, 7
    %v7831 = vsub.s32 %v7828, %v7830
    %v7832 = vrot.slane %v7825, %v7831
    %v7833 = vcombine.low %v7068, %v7072
    %v7835 = vunpack.c.l.s4 1983009808
    %v7836 = vunpack.c.0.s8 %v7835
    %v7837 = vlaneseq
    %v7838 = vshrl.u32 %v7837, 7
    %v7839 = vsub.s32 %v7836, %v7838
    %v7840 = vrot.slane %v7833, %v7839
    %v7841 = vcombine.low %v7076, %v7080
    %v7843 = vunpack.c.l.s4 1983009808
    %v7844 = vunpack.c.0.s8 %v7843
    %v7845 = vlaneseq
    %v7846 = vshrl.u32 %v7845, 7
    %v7847 = vsub.s32 %v7844, %v7846
    %v7848 = vrot.slane %v7841, %v7847
    %v7849 = vcombine.low %v7084, %v7088
    %v7851 = vunpack.c.l.s4 1983009808
    %v7852 = vunpack.c.0.s8 %v7851
    %v7853 = vlaneseq
    %v7854 = vshrl.u32 %v7853, 7
    %v7855 = vsub.s32 %v7852, %v7854
    %v7856 = vrot.slane %v7849, %v7855
    %v7857 = vcombine.low %v7092, %v7096
    %v7859 = vunpack.c.l.s4 1983009808
    %v7860 = vunpack.c.0.s8 %v7859
    %v7861 = vlaneseq
    %v7862 = vshrl.u32 %v7861, 7
    %v7863 = vsub.s32 %v7860, %v7862
    %v7864 = vrot.slane %v7857, %v7863
    %v7865 = vcombine.low %v7100, %v7104
    %v7867 = vunpack.c.l.s4 1983009808
    %v7868 = vunpack.c.0.s8 %v7867
    %v7869 = vlaneseq
    %v7870 = vshrl.u32 %v7869, 7
    %v7871 = vsub.s32 %v7868, %v7870
    %v7872 = vrot.slane %v7865, %v7871
    %7873 = vst.msk [vmem:[#allocation2] ss:$8 sm:$0x3] %vm988, 0.0
    %7874 = vst.msk [vmem:[#allocation2] ss:$8 sm:$0x0] %vm988, 0.0
    %7875 = vst.msk [vmem:[%s991] ss:$8 sm:$0x3] %vm988, 0.0
    %7876 = vst.msk [vmem:[%s991] ss:$8 sm:$0x0] %vm988, 0.0
    %v7877 = vcombine.low %v7368, %v7376
    %v7878 = vcombine.low %v7384, %v7392
    %v7880 = vunpack.c.l.s4 1983009808
    %v7881 = vunpack.c.0.s8 %v7880
    %v7882 = vlaneseq
    %v7883 = vshrl.u32 %v7882, 7
    %v7884 = vsub.s32 %v7881, %v7883
    %v7885 = vrot.slane %v7877, %v7884
    %v7887 = vunpack.c.l.s4 1983009808
    %v7888 = vunpack.c.0.s8 %v7887
    %v7889 = vlaneseq
    %v7890 = vshrl.u32 %v7889, 7
    %v7891 = vsub.s32 %v7888, %v7890
    %v7892 = vrot.slane %v7878, %v7891
    %v7893 = vcombine.low %v7885, %v7892
    %v7894 = vcombine.high %v7885, %v7892
    %v7895 = vcombine.low %v7400, %v7408
    %v7896 = vcombine.low %v7416, %v7424
    %v7898 = vunpack.c.l.s4 1983009808
    %v7899 = vunpack.c.0.s8 %v7898
    %v7900 = vlaneseq
    %v7901 = vshrl.u32 %v7900, 7
    %v7902 = vsub.s32 %v7899, %v7901
    %v7903 = vrot.slane %v7895, %v7902
    %v7905 = vunpack.c.l.s4 1983009808
    %v7906 = vunpack.c.0.s8 %v7905
    %v7907 = vlaneseq
    %v7908 = vshrl.u32 %v7907, 7
    %v7909 = vsub.s32 %v7906, %v7908
    %v7910 = vrot.slane %v7896, %v7909
    %v7911 = vcombine.low %v7903, %v7910
    %v7912 = vcombine.high %v7903, %v7910
    %v7913 = vcombine.low %v7432, %v7440
    %v7914 = vcombine.low %v7448, %v7456
    %v7916 = vunpack.c.l.s4 1983009808
    %v7917 = vunpack.c.0.s8 %v7916
    %v7918 = vlaneseq
    %v7919 = vshrl.u32 %v7918, 7
    %v7920 = vsub.s32 %v7917, %v7919
    %v7921 = vrot.slane %v7913, %v7920
    %v7923 = vunpack.c.l.s4 1983009808
    %v7924 = vunpack.c.0.s8 %v7923
    %v7925 = vlaneseq
    %v7926 = vshrl.u32 %v7925, 7
    %v7927 = vsub.s32 %v7924, %v7926
    %v7928 = vrot.slane %v7914, %v7927
    %v7929 = vcombine.low %v7921, %v7928
    %v7930 = vcombine.high %v7921, %v7928
    %v7931 = vcombine.low %v7464, %v7472
    %v7932 = vcombine.low %v7480, %v7488
    %v7934 = vunpack.c.l.s4 1983009808
    %v7935 = vunpack.c.0.s8 %v7934
    %v7936 = vlaneseq
    %v7937 = vshrl.u32 %v7936, 7
    %v7938 = vsub.s32 %v7935, %v7937
    %v7939 = vrot.slane %v7931, %v7938
    %v7941 = vunpack.c.l.s4 1983009808
    %v7942 = vunpack.c.0.s8 %v7941
    %v7943 = vlaneseq
    %v7944 = vshrl.u32 %v7943, 7
    %v7945 = vsub.s32 %v7942, %v7944
    %v7946 = vrot.slane %v7932, %v7945
    %v7947 = vcombine.low %v7939, %v7946
    %v7948 = vcombine.high %v7939, %v7946
    %v7949 = vcombine.low %v7496, %v7504
    %v7950 = vcombine.low %v7512, %v7520
    %v7952 = vunpack.c.l.s4 1983009808
    %v7953 = vunpack.c.0.s8 %v7952
    %v7954 = vlaneseq
    %v7955 = vshrl.u32 %v7954, 7
    %v7956 = vsub.s32 %v7953, %v7955
    %v7957 = vrot.slane %v7949, %v7956
    %v7959 = vunpack.c.l.s4 1983009808
    %v7960 = vunpack.c.0.s8 %v7959
    %v7961 = vlaneseq
    %v7962 = vshrl.u32 %v7961, 7
    %v7963 = vsub.s32 %v7960, %v7962
    %v7964 = vrot.slane %v7950, %v7963
    %v7965 = vcombine.low %v7957, %v7964
    %v7966 = vcombine.high %v7957, %v7964
    %v7967 = vcombine.low %v7528, %v7536
    %v7968 = vcombine.low %v7544, %v7552
    %v7970 = vunpack.c.l.s4 1983009808
    %v7971 = vunpack.c.0.s8 %v7970
    %v7972 = vlaneseq
    %v7973 = vshrl.u32 %v7972, 7
    %v7974 = vsub.s32 %v7971, %v7973
    %v7975 = vrot.slane %v7967, %v7974
    %v7977 = vunpack.c.l.s4 1983009808
    %v7978 = vunpack.c.0.s8 %v7977
    %v7979 = vlaneseq
    %v7980 = vshrl.u32 %v7979, 7
    %v7981 = vsub.s32 %v7978, %v7980
    %v7982 = vrot.slane %v7968, %v7981
    %v7983 = vcombine.low %v7975, %v7982
    %v7984 = vcombine.high %v7975, %v7982
    %v7985 = vcombine.low %v7560, %v7568
    %v7986 = vcombine.low %v7576, %v7584
    %v7988 = vunpack.c.l.s4 1983009808
    %v7989 = vunpack.c.0.s8 %v7988
    %v7990 = vlaneseq
    %v7991 = vshrl.u32 %v7990, 7
    %v7992 = vsub.s32 %v7989, %v7991
    %v7993 = vrot.slane %v7985, %v7992
    %v7995 = vunpack.c.l.s4 1983009808
    %v7996 = vunpack.c.0.s8 %v7995
    %v7997 = vlaneseq
    %v7998 = vshrl.u32 %v7997, 7
    %v7999 = vsub.s32 %v7996, %v7998
    %v8000 = vrot.slane %v7986, %v7999
    %v8001 = vcombine.low %v7993, %v8000
    %v8002 = vcombine.high %v7993, %v8000
    %v8003 = vcombine.low %v7592, %v7600
    %v8004 = vcombine.low %v7608, %v7616
    %v8006 = vunpack.c.l.s4 1983009808
    %v8007 = vunpack.c.0.s8 %v8006
    %v8008 = vlaneseq
    %v8009 = vshrl.u32 %v8008, 7
    %v8010 = vsub.s32 %v8007, %v8009
    %v8011 = vrot.slane %v8003, %v8010
    %v8013 = vunpack.c.l.s4 1983009808
    %v8014 = vunpack.c.0.s8 %v8013
    %v8015 = vlaneseq
    %v8016 = vshrl.u32 %v8015, 7
    %v8017 = vsub.s32 %v8014, %v8016
    %v8018 = vrot.slane %v8004, %v8017
    %v8019 = vcombine.low %v8011, %v8018
    %v8020 = vcombine.high %v8011, %v8018
    %v8021 = vcombine.low %v7624, %v7632
    %v8022 = vcombine.low %v7640, %v7648
    %v8024 = vunpack.c.l.s4 1983009808
    %v8025 = vunpack.c.0.s8 %v8024
    %v8026 = vlaneseq
    %v8027 = vshrl.u32 %v8026, 7
    %v8028 = vsub.s32 %v8025, %v8027
    %v8029 = vrot.slane %v8021, %v8028
    %v8031 = vunpack.c.l.s4 1983009808
    %v8032 = vunpack.c.0.s8 %v8031
    %v8033 = vlaneseq
    %v8034 = vshrl.u32 %v8033, 7
    %v8035 = vsub.s32 %v8032, %v8034
    %v8036 = vrot.slane %v8022, %v8035
    %v8037 = vcombine.low %v8029, %v8036
    %v8038 = vcombine.high %v8029, %v8036
    %v8039 = vcombine.low %v7656, %v7664
    %v8040 = vcombine.low %v7672, %v7680
    %v8042 = vunpack.c.l.s4 1983009808
    %v8043 = vunpack.c.0.s8 %v8042
    %v8044 = vlaneseq
    %v8045 = vshrl.u32 %v8044, 7
    %v8046 = vsub.s32 %v8043, %v8045
    %v8047 = vrot.slane %v8039, %v8046
    %v8049 = vunpack.c.l.s4 1983009808
    %v8050 = vunpack.c.0.s8 %v8049
    %v8051 = vlaneseq
    %v8052 = vshrl.u32 %v8051, 7
    %v8053 = vsub.s32 %v8050, %v8052
    %v8054 = vrot.slane %v8040, %v8053
    %v8055 = vcombine.low %v8047, %v8054
    %v8056 = vcombine.high %v8047, %v8054
    %v8057 = vcombine.low %v7688, %v7696
    %v8058 = vcombine.low %v7704, %v7712
    %v8060 = vunpack.c.l.s4 1983009808
    %v8061 = vunpack.c.0.s8 %v8060
    %v8062 = vlaneseq
    %v8063 = vshrl.u32 %v8062, 7
    %v8064 = vsub.s32 %v8061, %v8063
    %v8065 = vrot.slane %v8057, %v8064
    %v8067 = vunpack.c.l.s4 1983009808
    %v8068 = vunpack.c.0.s8 %v8067
    %v8069 = vlaneseq
    %v8070 = vshrl.u32 %v8069, 7
    %v8071 = vsub.s32 %v8068, %v8070
    %v8072 = vrot.slane %v8058, %v8071
    %v8073 = vcombine.low %v8065, %v8072
    %v8074 = vcombine.high %v8065, %v8072
    %v8075 = vcombine.low %v7720, %v7728
    %v8076 = vcombine.low %v7736, %v7744
    %v8078 = vunpack.c.l.s4 1983009808
    %v8079 = vunpack.c.0.s8 %v8078
    %v8080 = vlaneseq
    %v8081 = vshrl.u32 %v8080, 7
    %v8082 = vsub.s32 %v8079, %v8081
    %v8083 = vrot.slane %v8075, %v8082
    %v8085 = vunpack.c.l.s4 1983009808
    %v8086 = vunpack.c.0.s8 %v8085
    %v8087 = vlaneseq
    %v8088 = vshrl.u32 %v8087, 7
    %v8089 = vsub.s32 %v8086, %v8088
    %v8090 = vrot.slane %v8076, %v8089
    %v8091 = vcombine.low %v8083, %v8090
    %v8092 = vcombine.high %v8083, %v8090
    %v8093 = vcombine.low %v7752, %v7760
    %v8094 = vcombine.low %v7768, %v7776
    %v8096 = vunpack.c.l.s4 1983009808
    %v8097 = vunpack.c.0.s8 %v8096
    %v8098 = vlaneseq
    %v8099 = vshrl.u32 %v8098, 7
    %v8100 = vsub.s32 %v8097, %v8099
    %v8101 = vrot.slane %v8093, %v8100
    %v8103 = vunpack.c.l.s4 1983009808
    %v8104 = vunpack.c.0.s8 %v8103
    %v8105 = vlaneseq
    %v8106 = vshrl.u32 %v8105, 7
    %v8107 = vsub.s32 %v8104, %v8106
    %v8108 = vrot.slane %v8094, %v8107
    %v8109 = vcombine.low %v8101, %v8108
    %v8110 = vcombine.high %v8101, %v8108
    %v8111 = vcombine.low %v7784, %v7792
    %v8112 = vcombine.low %v7800, %v7808
    %v8114 = vunpack.c.l.s4 1983009808
    %v8115 = vunpack.c.0.s8 %v8114
    %v8116 = vlaneseq
    %v8117 = vshrl.u32 %v8116, 7
    %v8118 = vsub.s32 %v8115, %v8117
    %v8119 = vrot.slane %v8111, %v8118
    %v8121 = vunpack.c.l.s4 1983009808
    %v8122 = vunpack.c.0.s8 %v8121
    %v8123 = vlaneseq
    %v8124 = vshrl.u32 %v8123, 7
    %v8125 = vsub.s32 %v8122, %v8124
    %v8126 = vrot.slane %v8112, %v8125
    %v8127 = vcombine.low %v8119, %v8126
    %v8128 = vcombine.high %v8119, %v8126
    %v8129 = vcombine.low %v7816, %v7824
    %v8130 = vcombine.low %v7832, %v7840
    %v8132 = vunpack.c.l.s4 1983009808
    %v8133 = vunpack.c.0.s8 %v8132
    %v8134 = vlaneseq
    %v8135 = vshrl.u32 %v8134, 7
    %v8136 = vsub.s32 %v8133, %v8135
    %v8137 = vrot.slane %v8129, %v8136
    %v8139 = vunpack.c.l.s4 1983009808
    %v8140 = vunpack.c.0.s8 %v8139
    %v8141 = vlaneseq
    %v8142 = vshrl.u32 %v8141, 7
    %v8143 = vsub.s32 %v8140, %v8142
    %v8144 = vrot.slane %v8130, %v8143
    %v8145 = vcombine.low %v8137, %v8144
    %v8146 = vcombine.high %v8137, %v8144
    %v8147 = vcombine.low %v7848, %v7856
    %v8148 = vcombine.low %v7864, %v7872
    %v8150 = vunpack.c.l.s4 1983009808
    %v8151 = vunpack.c.0.s8 %v8150
    %v8152 = vlaneseq
    %v8153 = vshrl.u32 %v8152, 7
    %v8154 = vsub.s32 %v8151, %v8153
    %v8155 = vrot.slane %v8147, %v8154
    %v8157 = vunpack.c.l.s4 1983009808
    %v8158 = vunpack.c.0.s8 %v8157
    %v8159 = vlaneseq
    %v8160 = vshrl.u32 %v8159, 7
    %v8161 = vsub.s32 %v8158, %v8160
    %v8162 = vrot.slane %v8148, %v8161
    %v8163 = vcombine.low %v8155, %v8162
    %v8164 = vcombine.high %v8155, %v8162
    %v8165 = vrot.slane %v7893, 7
    %v8166 = vrot.slane %v7894, 7
    %v8167 = vrot.slane %v7911, 7
    %v8168 = vsel %vm816, %v8165, %v8167
    %v8169 = vrot.slane %v7912, 7
    %v8170 = vsel %vm816, %v8166, %v8169
    %v8171 = vrot.slane %v7929, 7
    %v8172 = vsel %vm816, %v8167, %v8171
    %v8173 = vrot.slane %v7930, 7
    %v8174 = vsel %vm816, %v8169, %v8173
    %v8175 = vrot.slane %v7947, 7
    %v8176 = vsel %vm816, %v8171, %v8175
    %v8177 = vrot.slane %v7948, 7
    %v8178 = vsel %vm816, %v8173, %v8177
    %v8179 = vrot.slane %v7965, 7
    %v8180 = vsel %vm816, %v8175, %v8179
    %v8181 = vrot.slane %v7966, 7
    %v8182 = vsel %vm816, %v8177, %v8181
    %v8183 = vrot.slane %v7983, 7
    %v8184 = vsel %vm816, %v8179, %v8183
    %v8185 = vrot.slane %v7984, 7
    %v8186 = vsel %vm816, %v8181, %v8185
    %v8187 = vrot.slane %v8001, 7
    %v8188 = vsel %vm816, %v8183, %v8187
    %v8189 = vrot.slane %v8002, 7
    %v8190 = vsel %vm816, %v8185, %v8189
    %v8191 = vrot.slane %v8019, 7
    %v8192 = vsel %vm816, %v8187, %v8191
    %v8193 = vrot.slane %v8020, 7
    %v8194 = vsel %vm816, %v8189, %v8193
    %v8195 = vrot.slane %v8037, 7
    %v8196 = vrot.slane %v8038, 7
    %v8197 = vrot.slane %v8055, 7
    %v8198 = vsel %vm816, %v8195, %v8197
    %v8199 = vrot.slane %v8056, 7
    %v8200 = vsel %vm816, %v8196, %v8199
    %v8201 = vrot.slane %v8073, 7
    %v8202 = vsel %vm816, %v8197, %v8201
    %v8203 = vrot.slane %v8074, 7
    %v8204 = vsel %vm816, %v8199, %v8203
    %v8205 = vrot.slane %v8091, 7
    %v8206 = vsel %vm816, %v8201, %v8205
    %v8207 = vrot.slane %v8092, 7
    %v8208 = vsel %vm816, %v8203, %v8207
    %v8209 = vrot.slane %v8109, 7
    %v8210 = vsel %vm816, %v8205, %v8209
    %v8211 = vrot.slane %v8110, 7
    %v8212 = vsel %vm816, %v8207, %v8211
    %v8213 = vrot.slane %v8127, 7
    %v8214 = vsel %vm816, %v8209, %v8213
    %v8215 = vrot.slane %v8128, 7
    %v8216 = vsel %vm816, %v8211, %v8215
    %v8217 = vrot.slane %v8145, 7
    %v8218 = vsel %vm816, %v8213, %v8217
    %v8219 = vrot.slane %v8146, 7
    %v8220 = vsel %vm816, %v8215, %v8219
    %v8221 = vrot.slane %v8163, 7
    %v8222 = vsel %vm816, %v8217, %v8221
    %v8223 = vrot.slane %v8164, 7
    %v8224 = vsel %vm816, %v8219, %v8223
    %8261 = vst [vmem:[#allocation2] sm:$0xfe] %v8165
    %8262 = vst [vmem:[#allocation2 + $0x8] sm:$0xfe] %v8166
    %8263 = vst [vmem:[#allocation2 + $0x10] sm:$0xff] %v8168
    %8264 = vst [vmem:[#allocation2 + $0x18] sm:$0xff] %v8170
    %8265 = vst [vmem:[#allocation2 + $0x20] sm:$0xff] %v8172
    %8266 = vst [vmem:[#allocation2 + $0x28] sm:$0xff] %v8174
    %8267 = vst [vmem:[#allocation2 + $0x30] sm:$0xff] %v8176
    %8268 = vst [vmem:[#allocation2 + $0x38] sm:$0xff] %v8178
    %8269 = vst [vmem:[#allocation2 + $0x40] sm:$0xff] %v8180
    %8270 = vst [vmem:[#allocation2 + $0x48] sm:$0xff] %v8182
    %8271 = vst [vmem:[#allocation2 + $0x50] sm:$0xff] %v8184
    %8272 = vst [vmem:[#allocation2 + $0x58] sm:$0xff] %v8186
    %8273 = vst [vmem:[#allocation2 + $0x60] sm:$0xff] %v8188
    %8274 = vst [vmem:[#allocation2 + $0x68] sm:$0xff] %v8190
    %8275 = vst [vmem:[#allocation2 + $0x70] sm:$0xff] %v8192
    %8276 = vst [vmem:[#allocation2 + $0x78] sm:$0xff] %v8194
    %8277 = vst [vmem:[#allocation2 + $0x80] sm:$0x1] %v8191
    %8278 = vst [vmem:[#allocation2 + $0x88] sm:$0x1] %v8193
    %8279 = vst [vmem:[#allocation2 + $0x90] sm:$0xfe] %v8195
    %8280 = vst [vmem:[#allocation2 + $0x98] sm:$0xfe] %v8196
    %8281 = vst [vmem:[#allocation2 + $0xa0] sm:$0xff] %v8198
    %8282 = vst [vmem:[#allocation2 + $0xa8] sm:$0xff] %v8200
    %8283 = vst [vmem:[#allocation2 + $0xb0] sm:$0xff] %v8202
    %8284 = vst [vmem:[#allocation2 + $0xb8] sm:$0xff] %v8204
    %8285 = vst [vmem:[#allocation2 + $0xc0] sm:$0xff] %v8206
    %8286 = vst [vmem:[#allocation2 + $0xc8] sm:$0xff] %v8208
    %8287 = vst [vmem:[#allocation2 + $0xd0] sm:$0xff] %v8210
    %8288 = vst [vmem:[#allocation2 + $0xd8] sm:$0xff] %v8212
    %8289 = vst [vmem:[#allocation2 + $0xe0] sm:$0xff] %v8214
    %8290 = vst [vmem:[#allocation2 + $0xe8] sm:$0xff] %v8216
    %8291 = vst [vmem:[#allocation2 + $0xf0] sm:$0xff] %v8218
    %8292 = vst [vmem:[#allocation2 + $0xf8] sm:$0xff] %v8220
    %8293 = vst [vmem:[#allocation2 + $0x100] sm:$0xff] %v8222
    %8294 = vst [vmem:[#allocation2 + $0x108] sm:$0xff] %v8224
    %8295 = vst [vmem:[#allocation2 + $0x110] sm:$0x1] %v8221
    %8296 = vst [vmem:[#allocation2 + $0x118] sm:$0x1] %v8223
    %s8297 = scalar_lea.vmem [#allocation2], 129
    %8298 = vst.msk [vmem:[%s8297] ss:$8 sm:$0x3] %vm988, 0.0
    %8299 = vst.msk [vmem:[%s8297] ss:$8 sm:$0x0] %vm988, 0.0
    %s8300 = scalar_lea.vmem [#allocation2], 273
    %8301 = vst.msk [vmem:[%s8300] ss:$8 sm:$0x3] %vm988, 0.0
    %8302 = vst.msk [vmem:[%s8300] ss:$8 sm:$0x0] %vm988, 0.0
    %v8303 = vld [vmem:[#allocation2] sm:$0xff]
    %v8304 = vld [vmem:[#allocation2 + $0x8] sm:$0xff]
    %v8305 = vld [vmem:[#allocation2 + $0x10] sm:$0xff]
    %v8306 = vld [vmem:[#allocation2 + $0x18] sm:$0xff]
    %v8307 = vld [vmem:[#allocation2 + $0x20] sm:$0xff]
    %v8308 = vld [vmem:[#allocation2 + $0x28] sm:$0xff]
    %v8309 = vld [vmem:[#allocation2 + $0x30] sm:$0xff]
    %v8310 = vld [vmem:[#allocation2 + $0x38] sm:$0xff]
    %v8311 = vld [vmem:[#allocation2 + $0x40] sm:$0xff]
    %v8312 = vld [vmem:[#allocation2 + $0x48] sm:$0xff]
    %v8313 = vld [vmem:[#allocation2 + $0x50] sm:$0xff]
    %v8314 = vld [vmem:[#allocation2 + $0x58] sm:$0xff]
    %v8315 = vld [vmem:[#allocation2 + $0x60] sm:$0xff]
    %v8316 = vld [vmem:[#allocation2 + $0x68] sm:$0xff]
    %v8317 = vld [vmem:[#allocation2 + $0x70] sm:$0xff]
    %v8318 = vld [vmem:[#allocation2 + $0x78] sm:$0xff]
    %v8319 = vld [vmem:[#allocation2 + $0x90] sm:$0xff]
    %v8320 = vld [vmem:[#allocation2 + $0x98] sm:$0xff]
    %v8321 = vld [vmem:[#allocation2 + $0xa0] sm:$0xff]
    %v8322 = vld [vmem:[#allocation2 + $0xa8] sm:$0xff]
    %v8323 = vld [vmem:[#allocation2 + $0xb0] sm:$0xff]
    %v8324 = vld [vmem:[#allocation2 + $0xb8] sm:$0xff]
    %v8325 = vld [vmem:[#allocation2 + $0xc0] sm:$0xff]
    %v8326 = vld [vmem:[#allocation2 + $0xc8] sm:$0xff]
    %v8327 = vld [vmem:[#allocation2 + $0xd0] sm:$0xff]
    %v8328 = vld [vmem:[#allocation2 + $0xd8] sm:$0xff]
    %v8329 = vld [vmem:[#allocation2 + $0xe0] sm:$0xff]
    %v8330 = vld [vmem:[#allocation2 + $0xe8] sm:$0xff]
    %v8331 = vld [vmem:[#allocation2 + $0xf0] sm:$0xff]
    %v8332 = vld [vmem:[#allocation2 + $0xf8] sm:$0xff]
    %v8333 = vld [vmem:[#allocation2 + $0x100] sm:$0xff]
    %v8334 = vld [vmem:[#allocation2 + $0x108] sm:$0xff]
    %v8335 = vld [vmem:[#allocation2] sm:$0xfe]
    %v8336 = vld [vmem:[#allocation2 + $0x8] sm:$0xfe]
    %v8337 = vld [vmem:[#allocation2 + $0x80] sm:$0x1]
    %v8338 = vld [vmem:[#allocation2 + $0x88] sm:$0x1]
    %v8339 = vld [vmem:[#allocation2 + $0x90] sm:$0xfe]
    %v8340 = vld [vmem:[#allocation2 + $0x98] sm:$0xfe]
    %v8341 = vld [vmem:[#allocation2 + $0x110] sm:$0x1]
    %v8342 = vld [vmem:[#allocation2 + $0x118] sm:$0x1]
    %v8343 = vld [vmem:[#allocation2] sm:$0xfc]
    %v8344 = vld [vmem:[#allocation2 + $0x8] sm:$0xfc]
    %v8345 = vld [vmem:[#allocation2 + $0x80] sm:$0x3]
    %v8346 = vld [vmem:[#allocation2 + $0x88] sm:$0x3]
    %v8347 = vld [vmem:[#allocation2 + $0x90] sm:$0xfc]
    %v8348 = vld [vmem:[#allocation2 + $0x98] sm:$0xfc]
    %v8349 = vld [vmem:[#allocation2 + $0x110] sm:$0x3]
    %v8350 = vld [vmem:[#allocation2 + $0x118] sm:$0x3]
    %v8387 = vrot.slane %v8335, 1
    %v8388 = vrot.slane %v8305, 1
    %v8389 = vsel %vm1080, %v8387, %v8388
    %v8390 = vrot.slane %v8336, 1
    %v8391 = vrot.slane %v8306, 1
    %v8392 = vsel %vm1080, %v8390, %v8391
    %v8393 = vrot.slane %v8307, 1
    %v8394 = vsel %vm1080, %v8388, %v8393
    %v8395 = vrot.slane %v8308, 1
    %v8396 = vsel %vm1080, %v8391, %v8395
    %v8397 = vrot.slane %v8309, 1
    %v8398 = vsel %vm1080, %v8393, %v8397
    %v8399 = vrot.slane %v8310, 1
    %v8400 = vsel %vm1080, %v8395, %v8399
    %v8401 = vrot.slane %v8311, 1
    %v8402 = vsel %vm1080, %v8397, %v8401
    %v8403 = vrot.slane %v8312, 1
    %v8404 = vsel %vm1080, %v8399, %v8403
    %v8405 = vrot.slane %v8313, 1
    %v8406 = vsel %vm1080, %v8401, %v8405
    %v8407 = vrot.slane %v8314, 1
    %v8408 = vsel %vm1080, %v8403, %v8407
    %v8409 = vrot.slane %v8315, 1
    %v8410 = vsel %vm1080, %v8405, %v8409
    %v8411 = vrot.slane %v8316, 1
    %v8412 = vsel %vm1080, %v8407, %v8411
    %v8413 = vrot.slane %v8317, 1
    %v8414 = vsel %vm1080, %v8409, %v8413
    %v8415 = vrot.slane %v8318, 1
    %v8416 = vsel %vm1080, %v8411, %v8415
    %v8417 = vrot.slane %v8337, 1
    %v8418 = vsel %vm1080, %v8413, %v8417
    %v8419 = vrot.slane %v8338, 1
    %v8420 = vsel %vm1080, %v8415, %v8419
    %v8421 = vrot.slane %v8339, 1
    %v8422 = vrot.slane %v8321, 1
    %v8423 = vsel %vm1080, %v8421, %v8422
    %v8424 = vrot.slane %v8340, 1
    %v8425 = vrot.slane %v8322, 1
    %v8426 = vsel %vm1080, %v8424, %v8425
    %v8427 = vrot.slane %v8323, 1
    %v8428 = vsel %vm1080, %v8422, %v8427
    %v8429 = vrot.slane %v8324, 1
    %v8430 = vsel %vm1080, %v8425, %v8429
    %v8431 = vrot.slane %v8325, 1
    %v8432 = vsel %vm1080, %v8427, %v8431
    %v8433 = vrot.slane %v8326, 1
    %v8434 = vsel %vm1080, %v8429, %v8433
    %v8435 = vrot.slane %v8327, 1
    %v8436 = vsel %vm1080, %v8431, %v8435
    %v8437 = vrot.slane %v8328, 1
    %v8438 = vsel %vm1080, %v8433, %v8437
    %v8439 = vrot.slane %v8329, 1
    %v8440 = vsel %vm1080, %v8435, %v8439
    %v8441 = vrot.slane %v8330, 1
    %v8442 = vsel %vm1080, %v8437, %v8441
    %v8443 = vrot.slane %v8331, 1
    %v8444 = vsel %vm1080, %v8439, %v8443
    %v8445 = vrot.slane %v8332, 1
    %v8446 = vsel %vm1080, %v8441, %v8445
    %v8447 = vrot.slane %v8333, 1
    %v8448 = vsel %vm1080, %v8443, %v8447
    %v8449 = vrot.slane %v8334, 1
    %v8450 = vsel %vm1080, %v8445, %v8449
    %v8451 = vrot.slane %v8341, 1
    %v8452 = vsel %vm1080, %v8447, %v8451
    %v8453 = vrot.slane %v8342, 1
    %v8454 = vsel %vm1080, %v8449, %v8453
    %v8495 = vrot.slane %v8343, 2
    %v8496 = vrot.slane %v8305, 2
    %v8497 = vsel %vm1105, %v8495, %v8496
    %v8498 = vrot.slane %v8344, 2
    %v8499 = vrot.slane %v8306, 2
    %v8500 = vsel %vm1105, %v8498, %v8499
    %v8501 = vrot.slane %v8307, 2
    %v8502 = vsel %vm1105, %v8496, %v8501
    %v8503 = vrot.slane %v8308, 2
    %v8504 = vsel %vm1105, %v8499, %v8503
    %v8505 = vrot.slane %v8309, 2
    %v8506 = vsel %vm1105, %v8501, %v8505
    %v8507 = vrot.slane %v8310, 2
    %v8508 = vsel %vm1105, %v8503, %v8507
    %v8509 = vrot.slane %v8311, 2
    %v8510 = vsel %vm1105, %v8505, %v8509
    %v8511 = vrot.slane %v8312, 2
    %v8512 = vsel %vm1105, %v8507, %v8511
    %v8513 = vrot.slane %v8313, 2
    %v8514 = vsel %vm1105, %v8509, %v8513
    %v8515 = vrot.slane %v8314, 2
    %v8516 = vsel %vm1105, %v8511, %v8515
    %v8517 = vrot.slane %v8315, 2
    %v8518 = vsel %vm1105, %v8513, %v8517
    %v8519 = vrot.slane %v8316, 2
    %v8520 = vsel %vm1105, %v8515, %v8519
    %v8521 = vrot.slane %v8317, 2
    %v8522 = vsel %vm1105, %v8517, %v8521
    %v8523 = vrot.slane %v8318, 2
    %v8524 = vsel %vm1105, %v8519, %v8523
    %v8525 = vrot.slane %v8345, 2
    %v8526 = vsel %vm1105, %v8521, %v8525
    %v8527 = vrot.slane %v8346, 2
    %v8528 = vsel %vm1105, %v8523, %v8527
    %v8529 = vrot.slane %v8347, 2
    %v8530 = vrot.slane %v8321, 2
    %v8531 = vsel %vm1105, %v8529, %v8530
    %v8532 = vrot.slane %v8348, 2
    %v8533 = vrot.slane %v8322, 2
    %v8534 = vsel %vm1105, %v8532, %v8533
    %v8535 = vrot.slane %v8323, 2
    %v8536 = vsel %vm1105, %v8530, %v8535
    %v8537 = vrot.slane %v8324, 2
    %v8538 = vsel %vm1105, %v8533, %v8537
    %v8539 = vrot.slane %v8325, 2
    %v8540 = vsel %vm1105, %v8535, %v8539
    %v8541 = vrot.slane %v8326, 2
    %v8542 = vsel %vm1105, %v8537, %v8541
    %v8543 = vrot.slane %v8327, 2
    %v8544 = vsel %vm1105, %v8539, %v8543
    %v8545 = vrot.slane %v8328, 2
    %v8546 = vsel %vm1105, %v8541, %v8545
    %v8547 = vrot.slane %v8329, 2
    %v8548 = vsel %vm1105, %v8543, %v8547
    %v8549 = vrot.slane %v8330, 2
    %v8550 = vsel %vm1105, %v8545, %v8549
    %v8551 = vrot.slane %v8331, 2
    %v8552 = vsel %vm1105, %v8547, %v8551
    %v8553 = vrot.slane %v8332, 2
    %v8554 = vsel %vm1105, %v8549, %v8553
    %v8555 = vrot.slane %v8333, 2
    %v8556 = vsel %vm1105, %v8551, %v8555
    %v8557 = vrot.slane %v8334, 2
    %v8558 = vsel %vm1105, %v8553, %v8557
    %v8559 = vrot.slane %v8349, 2
    %v8560 = vsel %vm1105, %v8555, %v8559
    %v8561 = vrot.slane %v8350, 2
    %v8562 = vsel %vm1105, %v8557, %v8561
    %v8595 = vpack.c.bf16 %v8305, %v8303
    %v8596 = vpack.c.bf16 %v8306, %v8304
    %v8597 = vpack.c.bf16 %v8394, %v8389
    %v8598 = vpack.c.bf16 %v8396, %v8392
    %v8599 = vpack.c.bf16 %v8502, %v8497
    %v8600 = vpack.c.bf16 %v8504, %v8500
    %v8601 = vpack.c.bf16 %v8309, %v8307
    %v8602 = vpack.c.bf16 %v8310, %v8308
    %v8603 = vpack.c.bf16 %v8402, %v8398
    %v8604 = vpack.c.bf16 %v8404, %v8400
    %v8605 = vpack.c.bf16 %v8510, %v8506
    %v8606 = vpack.c.bf16 %v8512, %v8508
    %v8607 = vpack.c.bf16 %v8313, %v8311
    %v8608 = vpack.c.bf16 %v8314, %v8312
    %v8609 = vpack.c.bf16 %v8410, %v8406
    %v8610 = vpack.c.bf16 %v8412, %v8408
    %v8611 = vpack.c.bf16 %v8518, %v8514
    %v8612 = vpack.c.bf16 %v8520, %v8516
    %v8613 = vpack.c.bf16 %v8317, %v8315
    %v8614 = vpack.c.bf16 %v8318, %v8316
    %v8615 = vpack.c.bf16 %v8418, %v8414
    %v8616 = vpack.c.bf16 %v8420, %v8416
    %v8617 = vpack.c.bf16 %v8526, %v8522
    %v8618 = vpack.c.bf16 %v8528, %v8524
    %v8619 = vpack.c.bf16 %v8321, %v8319
    %v8620 = vpack.c.bf16 %v8322, %v8320
    %v8621 = vpack.c.bf16 %v8428, %v8423
    %v8622 = vpack.c.bf16 %v8430, %v8426
    %v8623 = vpack.c.bf16 %v8536, %v8531
    %v8624 = vpack.c.bf16 %v8538, %v8534
    %v8625 = vpack.c.bf16 %v8325, %v8323
    %v8626 = vpack.c.bf16 %v8326, %v8324
    %v8627 = vpack.c.bf16 %v8436, %v8432
    %v8628 = vpack.c.bf16 %v8438, %v8434
    %v8629 = vpack.c.bf16 %v8544, %v8540
    %v8630 = vpack.c.bf16 %v8546, %v8542
    %v8631 = vpack.c.bf16 %v8329, %v8327
    %v8632 = vpack.c.bf16 %v8330, %v8328
    %v8633 = vpack.c.bf16 %v8444, %v8440
    %v8634 = vpack.c.bf16 %v8446, %v8442
    %v8635 = vpack.c.bf16 %v8552, %v8548
    %v8636 = vpack.c.bf16 %v8554, %v8550
    %v8637 = vpack.c.bf16 %v8333, %v8331
    %v8638 = vpack.c.bf16 %v8334, %v8332
    %v8639 = vpack.c.bf16 %v8452, %v8448
    %v8640 = vpack.c.bf16 %v8454, %v8450
    %v8641 = vpack.c.bf16 %v8560, %v8556
    %v8642 = vpack.c.bf16 %v8562, %v8558
    %s8643 = scalar_lea.vmem [#allocation14], 2304
    %v8644 = vld [vmem:[%s8643] sm:$0xff]
    %v8645 = vld [vmem:[%s8643 + $0x8] sm:$0xff]
    %v8646 = vld [vmem:[%s8643 + $0x10] sm:$0xff]
    %v8647 = vld [vmem:[%s8643 + $0x18] sm:$0xff]
    %v8648 = vld [vmem:[%s8643 + $0x20] sm:$0xff]
    %v8649 = vld [vmem:[%s8643 + $0x28] sm:$0xff]
    %v8650 = vld [vmem:[%s8643 + $0x30] sm:$0xff]
    %v8651 = vld [vmem:[%s8643 + $0x38] sm:$0xff]
    %v8652 = vld [vmem:[%s8643 + $0x40] sm:$0xff]
    %v8653 = vld [vmem:[%s8643 + $0x48] sm:$0xff]
    %v8654 = vld [vmem:[%s8643 + $0x50] sm:$0xff]
    %v8655 = vld [vmem:[%s8643 + $0x58] sm:$0xff]
    %v8656 = vld [vmem:[%s8643 + $0x60] sm:$0xff]
    %v8657 = vld [vmem:[%s8643 + $0x68] sm:$0xff]
    %v8658 = vld [vmem:[%s8643 + $0x70] sm:$0xff]
    %v8659 = vld [vmem:[%s8643 + $0x78] sm:$0xff]
    %v8660 = vld [vmem:[%s8643 + $0x80] sm:$0xff]
    %v8661 = vld [vmem:[%s8643 + $0x88] sm:$0xff]
    %v8662 = vld [vmem:[%s8643 + $0x90] sm:$0xff]
    %v8663 = vld [vmem:[%s8643 + $0x98] sm:$0xff]
    %v8664 = vld [vmem:[%s8643 + $0xa0] sm:$0xff]
    %v8665 = vld [vmem:[%s8643 + $0xa8] sm:$0xff]
    %v8666 = vld [vmem:[%s8643 + $0xb0] sm:$0xff]
    %v8667 = vld [vmem:[%s8643 + $0xb8] sm:$0xff]
    %v8668 = vld [vmem:[%s8643 + $0xc0] sm:$0xff]
    %v8669 = vld [vmem:[%s8643 + $0xc8] sm:$0xff]
    %v8670 = vld [vmem:[%s8643 + $0xd0] sm:$0xff]
    %v8671 = vld [vmem:[%s8643 + $0xd8] sm:$0xff]
    %v8672 = vld [vmem:[%s8643 + $0xe0] sm:$0xff]
    %v8673 = vld [vmem:[%s8643 + $0xe8] sm:$0xff]
    %v8674 = vld [vmem:[%s8643 + $0xf0] sm:$0xff]
    %v8675 = vld [vmem:[%s8643 + $0xf8] sm:$0xff]
    %v8676 = vld [vmem:[%s8643 + $0x100] sm:$0xff]
    %v8677 = vld [vmem:[%s8643 + $0x108] sm:$0xff]
    %v8678 = vld [vmem:[%s8643 + $0x110] sm:$0xff]
    %v8679 = vld [vmem:[%s8643 + $0x118] sm:$0xff]
    %v8680 = vld [vmem:[%s8643 + $0x120] sm:$0xff]
    %v8681 = vld [vmem:[%s8643 + $0x128] sm:$0xff]
    %v8682 = vld [vmem:[%s8643 + $0x130] sm:$0xff]
    %v8683 = vld [vmem:[%s8643 + $0x138] sm:$0xff]
    %v8684 = vld [vmem:[%s8643 + $0x140] sm:$0xff]
    %v8685 = vld [vmem:[%s8643 + $0x148] sm:$0xff]
    %v8686 = vld [vmem:[%s8643 + $0x150] sm:$0xff]
    %v8687 = vld [vmem:[%s8643 + $0x158] sm:$0xff]
    %v8688 = vld [vmem:[%s8643 + $0x160] sm:$0xff]
    %v8689 = vld [vmem:[%s8643 + $0x168] sm:$0xff]
    %v8690 = vld [vmem:[%s8643 + $0x170] sm:$0xff]
    %v8691 = vld [vmem:[%s8643 + $0x178] sm:$0xff]
    %v8692 = vld [vmem:[%s8643 + $0x180] sm:$0xff]
    %v8693 = vld [vmem:[%s8643 + $0x188] sm:$0xff]
    %v8694 = vld [vmem:[%s8643 + $0x190] sm:$0xff]
    %v8695 = vld [vmem:[%s8643 + $0x198] sm:$0xff]
    %v8696 = vld [vmem:[%s8643 + $0x1a0] sm:$0xff]
    %v8697 = vld [vmem:[%s8643 + $0x1a8] sm:$0xff]
    %v8698 = vld [vmem:[%s8643 + $0x1b0] sm:$0xff]
    %v8699 = vld [vmem:[%s8643 + $0x1b8] sm:$0xff]
    %v8700 = vld [vmem:[%s8643 + $0x1c0] sm:$0xff]
    %v8701 = vld [vmem:[%s8643 + $0x1c8] sm:$0xff]
    %v8702 = vld [vmem:[%s8643 + $0x1d0] sm:$0xff]
    %v8703 = vld [vmem:[%s8643 + $0x1d8] sm:$0xff]
    %v8704 = vld [vmem:[%s8643 + $0x1e0] sm:$0xff]
    %v8705 = vld [vmem:[%s8643 + $0x1e8] sm:$0xff]
    %v8706 = vld [vmem:[%s8643 + $0x1f0] sm:$0xff]
    %v8707 = vld [vmem:[%s8643 + $0x1f8] sm:$0xff]
    %v8708 = vld [vmem:[%s8643 + $0x200] sm:$0xff]
    %v8709 = vld [vmem:[%s8643 + $0x208] sm:$0xff]
    %v8710 = vld [vmem:[%s8643 + $0x210] sm:$0xff]
    %v8711 = vld [vmem:[%s8643 + $0x218] sm:$0xff]
    %v8712 = vld [vmem:[%s8643 + $0x220] sm:$0xff]
    %v8713 = vld [vmem:[%s8643 + $0x228] sm:$0xff]
    %v8714 = vld [vmem:[%s8643 + $0x230] sm:$0xff]
    %v8715 = vld [vmem:[%s8643 + $0x238] sm:$0xff]
    %v8716 = vld [vmem:[%s8643 + $0x240] sm:$0xff]
    %v8717 = vld [vmem:[%s8643 + $0x248] sm:$0xff]
    %v8718 = vld [vmem:[%s8643 + $0x250] sm:$0xff]
    %v8719 = vld [vmem:[%s8643 + $0x258] sm:$0xff]
    %v8720 = vld [vmem:[%s8643 + $0x260] sm:$0xff]
    %v8721 = vld [vmem:[%s8643 + $0x268] sm:$0xff]
    %v8722 = vld [vmem:[%s8643 + $0x270] sm:$0xff]
    %v8723 = vld [vmem:[%s8643 + $0x278] sm:$0xff]
    %v8724 = vld [vmem:[%s8643 + $0x280] sm:$0xff]
    %v8725 = vld [vmem:[%s8643 + $0x288] sm:$0xff]
    %v8726 = vld [vmem:[%s8643 + $0x290] sm:$0xff]
    %v8727 = vld [vmem:[%s8643 + $0x298] sm:$0xff]
    %v8728 = vld [vmem:[%s8643 + $0x2a0] sm:$0xff]
    %v8729 = vld [vmem:[%s8643 + $0x2a8] sm:$0xff]
    %v8730 = vld [vmem:[%s8643 + $0x2b0] sm:$0xff]
    %v8731 = vld [vmem:[%s8643 + $0x2b8] sm:$0xff]
    %v8732 = vld [vmem:[%s8643 + $0x2c0] sm:$0xff]
    %v8733 = vld [vmem:[%s8643 + $0x2c8] sm:$0xff]
    %v8734 = vld [vmem:[%s8643 + $0x2d0] sm:$0xff]
    %v8735 = vld [vmem:[%s8643 + $0x2d8] sm:$0xff]
    %v8736 = vld [vmem:[%s8643 + $0x2e0] sm:$0xff]
    %v8737 = vld [vmem:[%s8643 + $0x2e8] sm:$0xff]
    %v8738 = vld [vmem:[%s8643 + $0x2f0] sm:$0xff]
    %v8739 = vld [vmem:[%s8643 + $0x2f8] sm:$0xff]
    %v8836 = vunpack.c.l.b16 %v8644
    %v8837 = vunpack.c.h.b16 %v8644
    %v8838 = vunpack.c.l.b16 %v8645
    %v8839 = vunpack.c.h.b16 %v8645
    %v8840 = vunpack.c.l.b16 %v8646
    %v8841 = vunpack.c.h.b16 %v8646
    %v8842 = vunpack.c.l.b16 %v8647
    %v8843 = vunpack.c.h.b16 %v8647
    %v8844 = vunpack.c.l.b16 %v8648
    %v8845 = vunpack.c.h.b16 %v8648
    %v8846 = vunpack.c.l.b16 %v8649
    %v8847 = vunpack.c.h.b16 %v8649
    %v8848 = vunpack.c.l.b16 %v8650
    %v8849 = vunpack.c.h.b16 %v8650
    %v8850 = vunpack.c.l.b16 %v8651
    %v8851 = vunpack.c.h.b16 %v8651
    %v8852 = vunpack.c.l.b16 %v8652
    %v8853 = vunpack.c.h.b16 %v8652
    %v8854 = vunpack.c.l.b16 %v8653
    %v8855 = vunpack.c.h.b16 %v8653
    %v8856 = vunpack.c.l.b16 %v8654
    %v8857 = vunpack.c.h.b16 %v8654
    %v8858 = vunpack.c.l.b16 %v8655
    %v8859 = vunpack.c.h.b16 %v8655
    %v8860 = vunpack.c.l.b16 %v8656
    %v8861 = vunpack.c.h.b16 %v8656
    %v8862 = vunpack.c.l.b16 %v8657
    %v8863 = vunpack.c.h.b16 %v8657
    %v8864 = vunpack.c.l.b16 %v8658
    %v8865 = vunpack.c.h.b16 %v8658
    %v8866 = vunpack.c.l.b16 %v8659
    %v8867 = vunpack.c.h.b16 %v8659
    %v8868 = vunpack.c.l.b16 %v8660
    %v8869 = vunpack.c.h.b16 %v8660
    %v8870 = vunpack.c.l.b16 %v8661
    %v8871 = vunpack.c.h.b16 %v8661
    %v8872 = vunpack.c.l.b16 %v8662
    %v8873 = vunpack.c.h.b16 %v8662
    %v8874 = vunpack.c.l.b16 %v8663
    %v8875 = vunpack.c.h.b16 %v8663
    %v8876 = vunpack.c.l.b16 %v8664
    %v8877 = vunpack.c.h.b16 %v8664
    %v8878 = vunpack.c.l.b16 %v8665
    %v8879 = vunpack.c.h.b16 %v8665
    %v8880 = vunpack.c.l.b16 %v8666
    %v8881 = vunpack.c.h.b16 %v8666
    %v8882 = vunpack.c.l.b16 %v8667
    %v8883 = vunpack.c.h.b16 %v8667
    %v8884 = vunpack.c.l.b16 %v8668
    %v8885 = vunpack.c.h.b16 %v8668
    %v8886 = vunpack.c.l.b16 %v8669
    %v8887 = vunpack.c.h.b16 %v8669
    %v8888 = vunpack.c.l.b16 %v8670
    %v8889 = vunpack.c.h.b16 %v8670
    %v8890 = vunpack.c.l.b16 %v8671
    %v8891 = vunpack.c.h.b16 %v8671
    %v8892 = vunpack.c.l.b16 %v8672
    %v8893 = vunpack.c.h.b16 %v8672
    %v8894 = vunpack.c.l.b16 %v8673
    %v8895 = vunpack.c.h.b16 %v8673
    %v8896 = vunpack.c.l.b16 %v8674
    %v8897 = vunpack.c.h.b16 %v8674
    %v8898 = vunpack.c.l.b16 %v8675
    %v8899 = vunpack.c.h.b16 %v8675
    %v8900 = vunpack.c.l.b16 %v8676
    %v8901 = vunpack.c.h.b16 %v8676
    %v8902 = vunpack.c.l.b16 %v8677
    %v8903 = vunpack.c.h.b16 %v8677
    %v8904 = vunpack.c.l.b16 %v8678
    %v8905 = vunpack.c.h.b16 %v8678
    %v8906 = vunpack.c.l.b16 %v8679
    %v8907 = vunpack.c.h.b16 %v8679
    %v8908 = vunpack.c.l.b16 %v8680
    %v8909 = vunpack.c.h.b16 %v8680
    %v8910 = vunpack.c.l.b16 %v8681
    %v8911 = vunpack.c.h.b16 %v8681
    %v8912 = vunpack.c.l.b16 %v8682
    %v8913 = vunpack.c.h.b16 %v8682
    %v8914 = vunpack.c.l.b16 %v8683
    %v8915 = vunpack.c.h.b16 %v8683
    %v8916 = vunpack.c.l.b16 %v8684
    %v8917 = vunpack.c.h.b16 %v8684
    %v8918 = vunpack.c.l.b16 %v8685
    %v8919 = vunpack.c.h.b16 %v8685
    %v8920 = vunpack.c.l.b16 %v8686
    %v8921 = vunpack.c.h.b16 %v8686
    %v8922 = vunpack.c.l.b16 %v8687
    %v8923 = vunpack.c.h.b16 %v8687
    %v8924 = vunpack.c.l.b16 %v8688
    %v8925 = vunpack.c.h.b16 %v8688
    %v8926 = vunpack.c.l.b16 %v8689
    %v8927 = vunpack.c.h.b16 %v8689
    %v8928 = vunpack.c.l.b16 %v8690
    %v8929 = vunpack.c.h.b16 %v8690
    %v8930 = vunpack.c.l.b16 %v8691
    %v8931 = vunpack.c.h.b16 %v8691
    %v8932 = vunpack.c.l.b16 %v8692
    %v8933 = vunpack.c.h.b16 %v8692
    %v8934 = vunpack.c.l.b16 %v8693
    %v8935 = vunpack.c.h.b16 %v8693
    %v8936 = vunpack.c.l.b16 %v8694
    %v8937 = vunpack.c.h.b16 %v8694
    %v8938 = vunpack.c.l.b16 %v8695
    %v8939 = vunpack.c.h.b16 %v8695
    %v8940 = vunpack.c.l.b16 %v8696
    %v8941 = vunpack.c.h.b16 %v8696
    %v8942 = vunpack.c.l.b16 %v8697
    %v8943 = vunpack.c.h.b16 %v8697
    %v8944 = vunpack.c.l.b16 %v8698
    %v8945 = vunpack.c.h.b16 %v8698
    %v8946 = vunpack.c.l.b16 %v8699
    %v8947 = vunpack.c.h.b16 %v8699
    %v8948 = vunpack.c.l.b16 %v8700
    %v8949 = vunpack.c.h.b16 %v8700
    %v8950 = vunpack.c.l.b16 %v8701
    %v8951 = vunpack.c.h.b16 %v8701
    %v8952 = vunpack.c.l.b16 %v8702
    %v8953 = vunpack.c.h.b16 %v8702
    %v8954 = vunpack.c.l.b16 %v8703
    %v8955 = vunpack.c.h.b16 %v8703
    %v8956 = vunpack.c.l.b16 %v8704
    %v8957 = vunpack.c.h.b16 %v8704
    %v8958 = vunpack.c.l.b16 %v8705
    %v8959 = vunpack.c.h.b16 %v8705
    %v8960 = vunpack.c.l.b16 %v8706
    %v8961 = vunpack.c.h.b16 %v8706
    %v8962 = vunpack.c.l.b16 %v8707
    %v8963 = vunpack.c.h.b16 %v8707
    %v8964 = vunpack.c.l.b16 %v8708
    %v8965 = vunpack.c.h.b16 %v8708
    %v8966 = vunpack.c.l.b16 %v8709
    %v8967 = vunpack.c.h.b16 %v8709
    %v8968 = vunpack.c.l.b16 %v8710
    %v8969 = vunpack.c.h.b16 %v8710
    %v8970 = vunpack.c.l.b16 %v8711
    %v8971 = vunpack.c.h.b16 %v8711
    %v8972 = vunpack.c.l.b16 %v8712
    %v8973 = vunpack.c.h.b16 %v8712
    %v8974 = vunpack.c.l.b16 %v8713
    %v8975 = vunpack.c.h.b16 %v8713
    %v8976 = vunpack.c.l.b16 %v8714
    %v8977 = vunpack.c.h.b16 %v8714
    %v8978 = vunpack.c.l.b16 %v8715
    %v8979 = vunpack.c.h.b16 %v8715
    %v8980 = vunpack.c.l.b16 %v8716
    %v8981 = vunpack.c.h.b16 %v8716
    %v8982 = vunpack.c.l.b16 %v8717
    %v8983 = vunpack.c.h.b16 %v8717
    %v8984 = vunpack.c.l.b16 %v8718
    %v8985 = vunpack.c.h.b16 %v8718
    %v8986 = vunpack.c.l.b16 %v8719
    %v8987 = vunpack.c.h.b16 %v8719
    %v8988 = vunpack.c.l.b16 %v8720
    %v8989 = vunpack.c.h.b16 %v8720
    %v8990 = vunpack.c.l.b16 %v8721
    %v8991 = vunpack.c.h.b16 %v8721
    %v8992 = vunpack.c.l.b16 %v8722
    %v8993 = vunpack.c.h.b16 %v8722
    %v8994 = vunpack.c.l.b16 %v8723
    %v8995 = vunpack.c.h.b16 %v8723
    %v8996 = vunpack.c.l.b16 %v8724
    %v8997 = vunpack.c.h.b16 %v8724
    %v8998 = vunpack.c.l.b16 %v8725
    %v8999 = vunpack.c.h.b16 %v8725
    %v9000 = vunpack.c.l.b16 %v8726
    %v9001 = vunpack.c.h.b16 %v8726
    %v9002 = vunpack.c.l.b16 %v8727
    %v9003 = vunpack.c.h.b16 %v8727
    %v9004 = vunpack.c.l.b16 %v8728
    %v9005 = vunpack.c.h.b16 %v8728
    %v9006 = vunpack.c.l.b16 %v8729
    %v9007 = vunpack.c.h.b16 %v8729
    %v9008 = vunpack.c.l.b16 %v8730
    %v9009 = vunpack.c.h.b16 %v8730
    %v9010 = vunpack.c.l.b16 %v8731
    %v9011 = vunpack.c.h.b16 %v8731
    %v9012 = vunpack.c.l.b16 %v8732
    %v9013 = vunpack.c.h.b16 %v8732
    %v9014 = vunpack.c.l.b16 %v8733
    %v9015 = vunpack.c.h.b16 %v8733
    %v9016 = vunpack.c.l.b16 %v8734
    %v9017 = vunpack.c.h.b16 %v8734
    %v9018 = vunpack.c.l.b16 %v8735
    %v9019 = vunpack.c.h.b16 %v8735
    %v9020 = vunpack.c.l.b16 %v8736
    %v9021 = vunpack.c.h.b16 %v8736
    %v9022 = vunpack.c.l.b16 %v8737
    %v9023 = vunpack.c.h.b16 %v8737
    %v9024 = vunpack.c.l.b16 %v8738
    %v9025 = vunpack.c.h.b16 %v8738
    %v9026 = vunpack.c.l.b16 %v8739
    %v9027 = vunpack.c.h.b16 %v8739
    %v9028 = vpack.c.b16 %v8838, %v8836
    %v9029 = vpack.c.b16 %v8839, %v8837
    %v9030 = vpack.c.b16 %v8842, %v8840
    %v9031 = vpack.c.b16 %v8843, %v8841
    %v9032 = vpack.c.b16 %v8846, %v8844
    %v9033 = vpack.c.b16 %v8847, %v8845
    %v9034 = vpack.c.b16 %v8850, %v8848
    %v9035 = vpack.c.b16 %v8851, %v8849
    %v9036 = vpack.c.b16 %v8854, %v8852
    %v9037 = vpack.c.b16 %v8855, %v8853
    %v9038 = vpack.c.b16 %v8858, %v8856
    %v9039 = vpack.c.b16 %v8859, %v8857
    %v9040 = vpack.c.b16 %v8862, %v8860
    %v9041 = vpack.c.b16 %v8863, %v8861
    %v9042 = vpack.c.b16 %v8866, %v8864
    %v9043 = vpack.c.b16 %v8867, %v8865
    %v9044 = vpack.c.b16 %v8870, %v8868
    %v9045 = vpack.c.b16 %v8871, %v8869
    %v9046 = vpack.c.b16 %v8874, %v8872
    %v9047 = vpack.c.b16 %v8875, %v8873
    %v9048 = vpack.c.b16 %v8878, %v8876
    %v9049 = vpack.c.b16 %v8879, %v8877
    %v9050 = vpack.c.b16 %v8882, %v8880
    %v9051 = vpack.c.b16 %v8883, %v8881
    %v9052 = vpack.c.b16 %v8886, %v8884
    %v9053 = vpack.c.b16 %v8887, %v8885
    %v9054 = vpack.c.b16 %v8890, %v8888
    %v9055 = vpack.c.b16 %v8891, %v8889
    %v9056 = vpack.c.b16 %v8894, %v8892
    %v9057 = vpack.c.b16 %v8895, %v8893
    %v9058 = vpack.c.b16 %v8898, %v8896
    %v9059 = vpack.c.b16 %v8899, %v8897
    %v9060 = vpack.c.b16 %v8902, %v8900
    %v9061 = vpack.c.b16 %v8903, %v8901
    %v9062 = vpack.c.b16 %v8906, %v8904
    %v9063 = vpack.c.b16 %v8907, %v8905
    %v9064 = vpack.c.b16 %v8910, %v8908
    %v9065 = vpack.c.b16 %v8911, %v8909
    %v9066 = vpack.c.b16 %v8914, %v8912
    %v9067 = vpack.c.b16 %v8915, %v8913
    %v9068 = vpack.c.b16 %v8918, %v8916
    %v9069 = vpack.c.b16 %v8919, %v8917
    %v9070 = vpack.c.b16 %v8922, %v8920
    %v9071 = vpack.c.b16 %v8923, %v8921
    %v9072 = vpack.c.b16 %v8926, %v8924
    %v9073 = vpack.c.b16 %v8927, %v8925
    %v9074 = vpack.c.b16 %v8930, %v8928
    %v9075 = vpack.c.b16 %v8931, %v8929
    %v9076 = vpack.c.b16 %v8934, %v8932
    %v9077 = vpack.c.b16 %v8935, %v8933
    %v9078 = vpack.c.b16 %v8938, %v8936
    %v9079 = vpack.c.b16 %v8939, %v8937
    %v9080 = vpack.c.b16 %v8942, %v8940
    %v9081 = vpack.c.b16 %v8943, %v8941
    %v9082 = vpack.c.b16 %v8946, %v8944
    %v9083 = vpack.c.b16 %v8947, %v8945
    %v9084 = vpack.c.b16 %v8950, %v8948
    %v9085 = vpack.c.b16 %v8951, %v8949
    %v9086 = vpack.c.b16 %v8954, %v8952
    %v9087 = vpack.c.b16 %v8955, %v8953
    %v9088 = vpack.c.b16 %v8958, %v8956
    %v9089 = vpack.c.b16 %v8959, %v8957
    %v9090 = vpack.c.b16 %v8962, %v8960
    %v9091 = vpack.c.b16 %v8963, %v8961
    %v9092 = vpack.c.b16 %v8966, %v8964
    %v9093 = vpack.c.b16 %v8967, %v8965
    %v9094 = vpack.c.b16 %v8970, %v8968
    %v9095 = vpack.c.b16 %v8971, %v8969
    %v9096 = vpack.c.b16 %v8974, %v8972
    %v9097 = vpack.c.b16 %v8975, %v8973
    %v9098 = vpack.c.b16 %v8978, %v8976
    %v9099 = vpack.c.b16 %v8979, %v8977
    %v9100 = vpack.c.b16 %v8982, %v8980
    %v9101 = vpack.c.b16 %v8983, %v8981
    %v9102 = vpack.c.b16 %v8986, %v8984
    %v9103 = vpack.c.b16 %v8987, %v8985
    %v9104 = vpack.c.b16 %v8990, %v8988
    %v9105 = vpack.c.b16 %v8991, %v8989
    %v9106 = vpack.c.b16 %v8994, %v8992
    %v9107 = vpack.c.b16 %v8995, %v8993
    %v9108 = vpack.c.b16 %v8998, %v8996
    %v9109 = vpack.c.b16 %v8999, %v8997
    %v9110 = vpack.c.b16 %v9002, %v9000
    %v9111 = vpack.c.b16 %v9003, %v9001
    %v9112 = vpack.c.b16 %v9006, %v9004
    %v9113 = vpack.c.b16 %v9007, %v9005
    %v9114 = vpack.c.b16 %v9010, %v9008
    %v9115 = vpack.c.b16 %v9011, %v9009
    %v9116 = vpack.c.b16 %v9014, %v9012
    %v9117 = vpack.c.b16 %v9015, %v9013
    %v9118 = vpack.c.b16 %v9018, %v9016
    %v9119 = vpack.c.b16 %v9019, %v9017
    %v9120 = vpack.c.b16 %v9022, %v9020
    %v9121 = vpack.c.b16 %v9023, %v9021
    %v9122 = vpack.c.b16 %v9026, %v9024
    %v9123 = vpack.c.b16 %v9027, %v9025
    %9220 = vmatprep.subr.bf16.mxu0 %v9029
    %9221 = vmatpush1.bf16.msra.mxu0 %v9028
    %9222 = vmatprep.subr.bf16.mxu0 %v9031
    %9223 = vmatpush1.bf16.msra.mxu0 %v9030
    %9224 = vmatprep.subr.bf16.mxu0 %v9033
    %9225 = vmatpush1.bf16.msra.mxu0 %v9032
    %9226 = vmatprep.subr.bf16.mxu0 %v9035
    %9227 = vmatpush1.bf16.msra.mxu0 %v9034
    %9228 = vmatprep.subr.bf16.mxu0 %v9037
    %9229 = vmatpush1.bf16.msra.mxu0 %v9036
    %9230 = vmatprep.subr.bf16.mxu0 %v9039
    %9231 = vmatpush1.bf16.msra.mxu0 %v9038
    %9232 = vmatprep.subr.bf16.mxu0 %v9041
    %9233 = vmatpush1.bf16.msra.mxu0 %v9040
    %9234 = vmatprep.subr.bf16.mxu0 %v9043
    %9235 = vmatpush1.bf16.msra.mxu0 %v9042
    %9236 = vmatprep.subr.bf16.mxu0 %v9045
    %9237 = vmatpush1.bf16.msra.mxu0 %v9044
    %9238 = vmatprep.subr.bf16.mxu0 %v9047
    %9239 = vmatpush1.bf16.msra.mxu0 %v9046
    %9240 = vmatprep.subr.bf16.mxu0 %v9049
    %9241 = vmatpush1.bf16.msra.mxu0 %v9048
    %9242 = vmatprep.subr.bf16.mxu0 %v9051
    %9243 = vmatpush1.bf16.msra.mxu0 %v9050
    %9244 = vmatprep.subr.bf16.mxu0 %v9053
    %9245 = vmatpush1.bf16.msra.mxu0 %v9052
    %9246 = vmatprep.subr.bf16.mxu0 %v9055
    %9247 = vmatpush1.bf16.msra.mxu0 %v9054
    %9248 = vmatprep.subr.bf16.mxu0 %v9057
    %9249 = vmatpush1.bf16.msra.mxu0 %v9056
    %9250 = vmatprep.subr.bf16.mxu0 %v9059
    %9251 = vmatpush1.bf16.msra.mxu0 %v9058
    %9252 = vmatprep.mubr.bf16.mxu0 %v8596
    %9253 = vmatmul.mubr.bf16.gmra.mrb[0].mxu0 %v8595
    %v9254 = vpop.f32.mrb[0].mxu0
    %v9255 = vadd.f32 0.0, %v9254
    %v9256 = vpop.f32.mrb[0].mxu0
    %v9257 = vadd.f32 0.0, %v9256
    %v9258 = vpop.f32.mrb[0].mxu0
    %v9259 = vadd.f32 0.0, %v9258
    %v9260 = vpop.f32.mrb[0].mxu0
    %v9261 = vadd.f32 0.0, %v9260
    %9262 = vmatprep.mubr.bf16.mxu0 %v8602
    %9263 = vmatmul.mubr.bf16.gmra.mrb[0].mxu0 %v8601
    %v9264 = vpop.f32.mrb[0].mxu0
    %v9265 = vadd.f32 0.0, %v9264
    %v9266 = vpop.f32.mrb[0].mxu0
    %v9267 = vadd.f32 0.0, %v9266
    %v9268 = vpop.f32.mrb[0].mxu0
    %v9269 = vadd.f32 0.0, %v9268
    %v9270 = vpop.f32.mrb[0].mxu0
    %v9271 = vadd.f32 0.0, %v9270
    %9272 = vmatprep.mubr.bf16.mxu0 %v8608
    %9273 = vmatmul.mubr.bf16.gmra.mrb[0].mxu0 %v8607
    %v9274 = vpop.f32.mrb[0].mxu0
    %v9275 = vadd.f32 0.0, %v9274
    %v9276 = vpop.f32.mrb[0].mxu0
    %v9277 = vadd.f32 0.0, %v9276
    %v9278 = vpop.f32.mrb[0].mxu0
    %v9279 = vadd.f32 0.0, %v9278
    %v9280 = vpop.f32.mrb[0].mxu0
    %v9281 = vadd.f32 0.0, %v9280
    %9282 = vmatprep.mubr.bf16.mxu0 %v8614
    %9283 = vmatmul.mubr.bf16.gmra.mrb[0].mxu0 %v8613
    %v9284 = vpop.f32.mrb[0].mxu0
    %v9285 = vadd.f32 0.0, %v9284
    %v9286 = vpop.f32.mrb[0].mxu0
    %v9287 = vadd.f32 0.0, %v9286
    %v9288 = vpop.f32.mrb[0].mxu0
    %v9289 = vadd.f32 0.0, %v9288
    %v9290 = vpop.f32.mrb[0].mxu0
    %v9291 = vadd.f32 0.0, %v9290
    %9292 = vmatprep.mubr.bf16.mxu0 %v8620
    %9293 = vmatmul.mubr.bf16.gmra.mrb[0].mxu0 %v8619
    %v9294 = vpop.f32.mrb[0].mxu0
    %v9295 = vadd.f32 0.0, %v9294
    %v9296 = vpop.f32.mrb[0].mxu0
    %v9297 = vadd.f32 0.0, %v9296
    %v9298 = vpop.f32.mrb[0].mxu0
    %v9299 = vadd.f32 0.0, %v9298
    %v9300 = vpop.f32.mrb[0].mxu0
    %v9301 = vadd.f32 0.0, %v9300
    %9302 = vmatprep.mubr.bf16.mxu0 %v8626
    %9303 = vmatmul.mubr.bf16.gmra.mrb[0].mxu0 %v8625
    %v9304 = vpop.f32.mrb[0].mxu0
    %v9305 = vadd.f32 0.0, %v9304
    %v9306 = vpop.f32.mrb[0].mxu0
    %v9307 = vadd.f32 0.0, %v9306
    %v9308 = vpop.f32.mrb[0].mxu0
    %v9309 = vadd.f32 0.0, %v9308
    %v9310 = vpop.f32.mrb[0].mxu0
    %v9311 = vadd.f32 0.0, %v9310
    %9312 = vmatprep.mubr.bf16.mxu0 %v8632
    %9313 = vmatmul.mubr.bf16.gmra.mrb[0].mxu0 %v8631
    %v9314 = vpop.f32.mrb[0].mxu0
    %v9315 = vadd.f32 0.0, %v9314
    %v9316 = vpop.f32.mrb[0].mxu0
    %v9317 = vadd.f32 0.0, %v9316
    %v9318 = vpop.f32.mrb[0].mxu0
    %v9319 = vadd.f32 0.0, %v9318
    %v9320 = vpop.f32.mrb[0].mxu0
    %v9321 = vadd.f32 0.0, %v9320
    %9322 = vmatprep.mubr.bf16.mxu0 %v8638
    %9323 = vmatmul.mubr.bf16.gmra.mrb[0].mxu0 %v8637
    %v9324 = vpop.f32.mrb[0].mxu0
    %v9325 = vadd.f32 0.0, %v9324
    %v9326 = vpop.f32.mrb[0].mxu0
    %v9327 = vadd.f32 0.0, %v9326
    %v9328 = vpop.f32.mrb[0].mxu0
    %v9329 = vadd.f32 0.0, %v9328
    %v9330 = vpop.f32.mrb[0].mxu0
    %v9331 = vadd.f32 0.0, %v9330
    %9332 = vdwg.mxu0
    %9333 = vmatprep.subr.bf16.mxu0 %v9061
    %9334 = vmatpush1.bf16.msra.mxu0 %v9060
    %9335 = vmatprep.subr.bf16.mxu0 %v9063
    %9336 = vmatpush1.bf16.msra.mxu0 %v9062
    %9337 = vmatprep.subr.bf16.mxu0 %v9065
    %9338 = vmatpush1.bf16.msra.mxu0 %v9064
    %9339 = vmatprep.subr.bf16.mxu0 %v9067
    %9340 = vmatpush1.bf16.msra.mxu0 %v9066
    %9341 = vmatprep.subr.bf16.mxu0 %v9069
    %9342 = vmatpush1.bf16.msra.mxu0 %v9068
    %9343 = vmatprep.subr.bf16.mxu0 %v9071
    %9344 = vmatpush1.bf16.msra.mxu0 %v9070
    %9345 = vmatprep.subr.bf16.mxu0 %v9073
    %9346 = vmatpush1.bf16.msra.mxu0 %v9072
    %9347 = vmatprep.subr.bf16.mxu0 %v9075
    %9348 = vmatpush1.bf16.msra.mxu0 %v9074
    %9349 = vmatprep.subr.bf16.mxu0 %v9077
    %9350 = vmatpush1.bf16.msra.mxu0 %v9076
    %9351 = vmatprep.subr.bf16.mxu0 %v9079
    %9352 = vmatpush1.bf16.msra.mxu0 %v9078
    %9353 = vmatprep.subr.bf16.mxu0 %v9081
    %9354 = vmatpush1.bf16.msra.mxu0 %v9080
    %9355 = vmatprep.subr.bf16.mxu0 %v9083
    %9356 = vmatpush1.bf16.msra.mxu0 %v9082
    %9357 = vmatprep.subr.bf16.mxu0 %v9085
    %9358 = vmatpush1.bf16.msra.mxu0 %v9084
    %9359 = vmatprep.subr.bf16.mxu0 %v9087
    %9360 = vmatpush1.bf16.msra.mxu0 %v9086
    %9361 = vmatprep.subr.bf16.mxu0 %v9089
    %9362 = vmatpush1.bf16.msra.mxu0 %v9088
    %9363 = vmatprep.subr.bf16.mxu0 %v9091
    %9364 = vmatpush1.bf16.msra.mxu0 %v9090
    %9365 = vmatprep.mubr.bf16.mxu0 %v8598
    %9366 = vmatmul.mubr.bf16.gmra.mrb[0].mxu0 %v8597
    %v9367 = vpop.f32.mrb[0].mxu0
    %v9368 = vadd.f32 %v9255, %v9367
    %v9369 = vpop.f32.mrb[0].mxu0
    %v9370 = vadd.f32 %v9257, %v9369
    %v9371 = vpop.f32.mrb[0].mxu0
    %v9372 = vadd.f32 %v9259, %v9371
    %v9373 = vpop.f32.mrb[0].mxu0
    %v9374 = vadd.f32 %v9261, %v9373
    %9375 = vmatprep.mubr.bf16.mxu0 %v8604
    %9376 = vmatmul.mubr.bf16.gmra.mrb[0].mxu0 %v8603
    %v9377 = vpop.f32.mrb[0].mxu0
    %v9378 = vadd.f32 %v9265, %v9377
    %v9379 = vpop.f32.mrb[0].mxu0
    %v9380 = vadd.f32 %v9267, %v9379
    %v9381 = vpop.f32.mrb[0].mxu0
    %v9382 = vadd.f32 %v9269, %v9381
    %v9383 = vpop.f32.mrb[0].mxu0
    %v9384 = vadd.f32 %v9271, %v9383
    %9385 = vmatprep.mubr.bf16.mxu0 %v8610
    %9386 = vmatmul.mubr.bf16.gmra.mrb[0].mxu0 %v8609
    %v9387 = vpop.f32.mrb[0].mxu0
    %v9388 = vadd.f32 %v9275, %v9387
    %v9389 = vpop.f32.mrb[0].mxu0
    %v9390 = vadd.f32 %v9277, %v9389
    %v9391 = vpop.f32.mrb[0].mxu0
    %v9392 = vadd.f32 %v9279, %v9391
    %v9393 = vpop.f32.mrb[0].mxu0
    %v9394 = vadd.f32 %v9281, %v9393
    %9395 = vmatprep.mubr.bf16.mxu0 %v8616
    %9396 = vmatmul.mubr.bf16.gmra.mrb[0].mxu0 %v8615
    %v9397 = vpop.f32.mrb[0].mxu0
    %v9398 = vadd.f32 %v9285, %v9397
    %v9399 = vpop.f32.mrb[0].mxu0
    %v9400 = vadd.f32 %v9287, %v9399
    %v9401 = vpop.f32.mrb[0].mxu0
    %v9402 = vadd.f32 %v9289, %v9401
    %v9403 = vpop.f32.mrb[0].mxu0
    %v9404 = vadd.f32 %v9291, %v9403
    %9405 = vmatprep.mubr.bf16.mxu0 %v8622
    %9406 = vmatmul.mubr.bf16.gmra.mrb[0].mxu0 %v8621
    %v9407 = vpop.f32.mrb[0].mxu0
    %v9408 = vadd.f32 %v9295, %v9407
    %v9409 = vpop.f32.mrb[0].mxu0
    %v9410 = vadd.f32 %v9297, %v9409
    %v9411 = vpop.f32.mrb[0].mxu0
    %v9412 = vadd.f32 %v9299, %v9411
    %v9413 = vpop.f32.mrb[0].mxu0
    %v9414 = vadd.f32 %v9301, %v9413
    %9415 = vmatprep.mubr.bf16.mxu0 %v8628
    %9416 = vmatmul.mubr.bf16.gmra.mrb[0].mxu0 %v8627
    %v9417 = vpop.f32.mrb[0].mxu0
    %v9418 = vadd.f32 %v9305, %v9417
    %v9419 = vpop.f32.mrb[0].mxu0
    %v9420 = vadd.f32 %v9307, %v9419
    %v9421 = vpop.f32.mrb[0].mxu0
    %v9422 = vadd.f32 %v9309, %v9421
    %v9423 = vpop.f32.mrb[0].mxu0
    %v9424 = vadd.f32 %v9311, %v9423
    %9425 = vmatprep.mubr.bf16.mxu0 %v8634
    %9426 = vmatmul.mubr.bf16.gmra.mrb[0].mxu0 %v8633
    %v9427 = vpop.f32.mrb[0].mxu0
    %v9428 = vadd.f32 %v9315, %v9427
    %v9429 = vpop.f32.mrb[0].mxu0
    %v9430 = vadd.f32 %v9317, %v9429
    %v9431 = vpop.f32.mrb[0].mxu0
    %v9432 = vadd.f32 %v9319, %v9431
    %v9433 = vpop.f32.mrb[0].mxu0
    %v9434 = vadd.f32 %v9321, %v9433
    %9435 = vmatprep.mubr.bf16.mxu0 %v8640
    %9436 = vmatmul.mubr.bf16.gmra.mrb[0].mxu0 %v8639
    %v9437 = vpop.f32.mrb[0].mxu0
    %v9438 = vadd.f32 %v9325, %v9437
    %v9439 = vpop.f32.mrb[0].mxu0
    %v9440 = vadd.f32 %v9327, %v9439
    %v9441 = vpop.f32.mrb[0].mxu0
    %v9442 = vadd.f32 %v9329, %v9441
    %v9443 = vpop.f32.mrb[0].mxu0
    %v9444 = vadd.f32 %v9331, %v9443
    %9445 = vdwg.mxu0
    %9446 = vmatprep.subr.bf16.mxu0 %v9093
    %9447 = vmatpush1.bf16.msra.mxu0 %v9092
    %9448 = vmatprep.subr.bf16.mxu0 %v9095
    %9449 = vmatpush1.bf16.msra.mxu0 %v9094
    %9450 = vmatprep.subr.bf16.mxu0 %v9097
    %9451 = vmatpush1.bf16.msra.mxu0 %v9096
    %9452 = vmatprep.subr.bf16.mxu0 %v9099
    %9453 = vmatpush1.bf16.msra.mxu0 %v9098
    %9454 = vmatprep.subr.bf16.mxu0 %v9101
    %9455 = vmatpush1.bf16.msra.mxu0 %v9100
    %9456 = vmatprep.subr.bf16.mxu0 %v9103
    %9457 = vmatpush1.bf16.msra.mxu0 %v9102
    %9458 = vmatprep.subr.bf16.mxu0 %v9105
    %9459 = vmatpush1.bf16.msra.mxu0 %v9104
    %9460 = vmatprep.subr.bf16.mxu0 %v9107
    %9461 = vmatpush1.bf16.msra.mxu0 %v9106
    %9462 = vmatprep.subr.bf16.mxu0 %v9109
    %9463 = vmatpush1.bf16.msra.mxu0 %v9108
    %9464 = vmatprep.subr.bf16.mxu0 %v9111
    %9465 = vmatpush1.bf16.msra.mxu0 %v9110
    %9466 = vmatprep.subr.bf16.mxu0 %v9113
    %9467 = vmatpush1.bf16.msra.mxu0 %v9112
    %9468 = vmatprep.subr.bf16.mxu0 %v9115
    %9469 = vmatpush1.bf16.msra.mxu0 %v9114
    %9470 = vmatprep.subr.bf16.mxu0 %v9117
    %9471 = vmatpush1.bf16.msra.mxu0 %v9116
    %9472 = vmatprep.subr.bf16.mxu0 %v9119
    %9473 = vmatpush1.bf16.msra.mxu0 %v9118
    %9474 = vmatprep.subr.bf16.mxu0 %v9121
    %9475 = vmatpush1.bf16.msra.mxu0 %v9120
    %9476 = vmatprep.subr.bf16.mxu0 %v9123
    %9477 = vmatpush1.bf16.msra.mxu0 %v9122
    %9478 = vmatprep.mubr.bf16.mxu0 %v8600
    %9479 = vmatmul.mubr.bf16.gmra.mrb[0].mxu0 %v8599
    %v9480 = vpop.f32.mrb[0].mxu0
    %v9481 = vadd.f32 %v9368, %v9480
    %v9482 = vpop.f32.mrb[0].mxu0
    %v9483 = vadd.f32 %v9370, %v9482
    %v9484 = vpop.f32.mrb[0].mxu0
    %v9485 = vadd.f32 %v9372, %v9484
    %v9486 = vpop.f32.mrb[0].mxu0
    %v9487 = vadd.f32 %v9374, %v9486
    %9488 = vmatprep.mubr.bf16.mxu0 %v8606
    %9489 = vmatmul.mubr.bf16.gmra.mrb[0].mxu0 %v8605
    %v9490 = vpop.f32.mrb[0].mxu0
    %v9491 = vadd.f32 %v9378, %v9490
    %v9492 = vpop.f32.mrb[0].mxu0
    %v9493 = vadd.f32 %v9380, %v9492
    %v9494 = vpop.f32.mrb[0].mxu0
    %v9495 = vadd.f32 %v9382, %v9494
    %v9496 = vpop.f32.mrb[0].mxu0
    %v9497 = vadd.f32 %v9384, %v9496
    %9498 = vmatprep.mubr.bf16.mxu0 %v8612
    %9499 = vmatmul.mubr.bf16.gmra.mrb[0].mxu0 %v8611
    %v9500 = vpop.f32.mrb[0].mxu0
    %v9501 = vadd.f32 %v9388, %v9500
    %v9502 = vpop.f32.mrb[0].mxu0
    %v9503 = vadd.f32 %v9390, %v9502
    %v9504 = vpop.f32.mrb[0].mxu0
    %v9505 = vadd.f32 %v9392, %v9504
    %v9506 = vpop.f32.mrb[0].mxu0
    %v9507 = vadd.f32 %v9394, %v9506
    %9508 = vmatprep.mubr.bf16.mxu0 %v8618
    %9509 = vmatmul.mubr.bf16.gmra.mrb[0].mxu0 %v8617
    %v9510 = vpop.f32.mrb[0].mxu0
    %v9511 = vadd.f32 %v9398, %v9510
    %v9512 = vpop.f32.mrb[0].mxu0
    %v9513 = vadd.f32 %v9400, %v9512
    %v9514 = vpop.f32.mrb[0].mxu0
    %v9515 = vadd.f32 %v9402, %v9514
    %v9516 = vpop.f32.mrb[0].mxu0
    %v9517 = vadd.f32 %v9404, %v9516
    %9518 = vmatprep.mubr.bf16.mxu0 %v8624
    %9519 = vmatmul.mubr.bf16.gmra.mrb[0].mxu0 %v8623
    %v9520 = vpop.f32.mrb[0].mxu0
    %v9521 = vadd.f32 %v9408, %v9520
    %v9522 = vpop.f32.mrb[0].mxu0
    %v9523 = vadd.f32 %v9410, %v9522
    %v9524 = vpop.f32.mrb[0].mxu0
    %v9525 = vadd.f32 %v9412, %v9524
    %v9526 = vpop.f32.mrb[0].mxu0
    %v9527 = vadd.f32 %v9414, %v9526
    %9528 = vmatprep.mubr.bf16.mxu0 %v8630
    %9529 = vmatmul.mubr.bf16.gmra.mrb[0].mxu0 %v8629
    %v9530 = vpop.f32.mrb[0].mxu0
    %v9531 = vadd.f32 %v9418, %v9530
    %v9532 = vpop.f32.mrb[0].mxu0
    %v9533 = vadd.f32 %v9420, %v9532
    %v9534 = vpop.f32.mrb[0].mxu0
    %v9535 = vadd.f32 %v9422, %v9534
    %v9536 = vpop.f32.mrb[0].mxu0
    %v9537 = vadd.f32 %v9424, %v9536
    %9538 = vmatprep.mubr.bf16.mxu0 %v8636
    %9539 = vmatmul.mubr.bf16.gmra.mrb[0].mxu0 %v8635
    %v9540 = vpop.f32.mrb[0].mxu0
    %v9541 = vadd.f32 %v9428, %v9540
    %v9542 = vpop.f32.mrb[0].mxu0
    %v9543 = vadd.f32 %v9430, %v9542
    %v9544 = vpop.f32.mrb[0].mxu0
    %v9545 = vadd.f32 %v9432, %v9544
    %v9546 = vpop.f32.mrb[0].mxu0
    %v9547 = vadd.f32 %v9434, %v9546
    %9548 = vmatprep.mubr.bf16.mxu0 %v8642
    %9549 = vmatmul.mubr.bf16.gmra.mrb[0].mxu0 %v8641
    %v9550 = vpop.f32.mrb[0].mxu0
    %v9551 = vadd.f32 %v9438, %v9550
    %v9552 = vpop.f32.mrb[0].mxu0
    %v9553 = vadd.f32 %v9440, %v9552
    %v9554 = vpop.f32.mrb[0].mxu0
    %v9555 = vadd.f32 %v9442, %v9554
    %v9556 = vpop.f32.mrb[0].mxu0
    %v9557 = vadd.f32 %v9444, %v9556
    %9558 = vdwg.mxu0
    %v9559 = vadd.f32 %v9481, %v9485
    %v9560 = vadd.f32 %v9559, %v9491
    %v9561 = vadd.f32 %v9560, %v9495
    %v9562 = vadd.f32 %v9561, %v9501
    %v9563 = vadd.f32 %v9562, %v9505
    %v9564 = vadd.f32 %v9563, %v9511
    %v9565 = vadd.f32 %v9564, %v9515
    %v9566 = vadd.f32 %v9565, %v9521
    %v9567 = vadd.f32 %v9566, %v9525
    %v9568 = vadd.f32 %v9567, %v9531
    %v9569 = vadd.f32 %v9568, %v9535
    %v9570 = vadd.f32 %v9569, %v9541
    %v9571 = vadd.f32 %v9570, %v9545
    %v9572 = vadd.f32 %v9571, %v9551
    %v9573 = vadd.f32 %v9572, %v9555
    %v9574 = vrot.slane %v9573, 4
    %v9575 = vadd.f32 %v9573, %v9574
    %v9576 = vrot.slane %v9575, 2
    %v9577 = vadd.f32 %v9575, %v9576
    %v9578 = vrot.slane %v9577, 1
    %v9579 = vadd.f32 %v9577, %v9578
    %v9580 = vadd.f32 %v9483, %v9487
    %v9581 = vadd.f32 %v9580, %v9493
    %v9582 = vadd.f32 %v9581, %v9497
    %v9583 = vadd.f32 %v9582, %v9503
    %v9584 = vadd.f32 %v9583, %v9507
    %v9585 = vadd.f32 %v9584, %v9513
    %v9586 = vadd.f32 %v9585, %v9517
    %v9587 = vadd.f32 %v9586, %v9523
    %v9588 = vadd.f32 %v9587, %v9527
    %v9589 = vadd.f32 %v9588, %v9533
    %v9590 = vadd.f32 %v9589, %v9537
    %v9591 = vadd.f32 %v9590, %v9543
    %v9592 = vadd.f32 %v9591, %v9547
    %v9593 = vadd.f32 %v9592, %v9553
    %v9594 = vadd.f32 %v9593, %v9557
    %v9595 = vrot.slane %v9594, 4
    %v9596 = vadd.f32 %v9594, %v9595
    %v9597 = vrot.slane %v9596, 2
    %v9598 = vadd.f32 %v9596, %v9597
    %v9599 = vrot.slane %v9598, 1
    %v9600 = vadd.f32 %v9598, %v9599
    %v9601 = vmul.f32 %v9481, %v9481
    %v9602 = vmul.f32 %v9483, %v9483
    %v9603 = vmul.f32 %v9485, %v9485
    %v9604 = vmul.f32 %v9487, %v9487
    %v9605 = vmul.f32 %v9491, %v9491
    %v9606 = vmul.f32 %v9493, %v9493
    %v9607 = vmul.f32 %v9495, %v9495
    %v9608 = vmul.f32 %v9497, %v9497
    %v9609 = vmul.f32 %v9501, %v9501
    %v9610 = vmul.f32 %v9503, %v9503
    %v9611 = vmul.f32 %v9505, %v9505
    %v9612 = vmul.f32 %v9507, %v9507
    %v9613 = vmul.f32 %v9511, %v9511
    %v9614 = vmul.f32 %v9513, %v9513
    %v9615 = vmul.f32 %v9515, %v9515
    %v9616 = vmul.f32 %v9517, %v9517
    %v9617 = vmul.f32 %v9521, %v9521
    %v9618 = vmul.f32 %v9523, %v9523
    %v9619 = vmul.f32 %v9525, %v9525
    %v9620 = vmul.f32 %v9527, %v9527
    %v9621 = vmul.f32 %v9531, %v9531
    %v9622 = vmul.f32 %v9533, %v9533
    %v9623 = vmul.f32 %v9535, %v9535
    %v9624 = vmul.f32 %v9537, %v9537
    %v9625 = vmul.f32 %v9541, %v9541
    %v9626 = vmul.f32 %v9543, %v9543
    %v9627 = vmul.f32 %v9545, %v9545
    %v9628 = vmul.f32 %v9547, %v9547
    %v9629 = vmul.f32 %v9551, %v9551
    %v9630 = vmul.f32 %v9553, %v9553
    %v9631 = vmul.f32 %v9555, %v9555
    %v9632 = vmul.f32 %v9557, %v9557
    %v9633 = vadd.f32 %v9601, %v9603
    %v9634 = vadd.f32 %v9633, %v9605
    %v9635 = vadd.f32 %v9634, %v9607
    %v9636 = vadd.f32 %v9635, %v9609
    %v9637 = vadd.f32 %v9636, %v9611
    %v9638 = vadd.f32 %v9637, %v9613
    %v9639 = vadd.f32 %v9638, %v9615
    %v9640 = vadd.f32 %v9639, %v9617
    %v9641 = vadd.f32 %v9640, %v9619
    %v9642 = vadd.f32 %v9641, %v9621
    %v9643 = vadd.f32 %v9642, %v9623
    %v9644 = vadd.f32 %v9643, %v9625
    %v9645 = vadd.f32 %v9644, %v9627
    %v9646 = vadd.f32 %v9645, %v9629
    %v9647 = vadd.f32 %v9646, %v9631
    %v9648 = vrot.slane %v9647, 4
    %v9649 = vadd.f32 %v9647, %v9648
    %v9650 = vrot.slane %v9649, 2
    %v9651 = vadd.f32 %v9649, %v9650
    %v9652 = vrot.slane %v9651, 1
    %v9653 = vadd.f32 %v9651, %v9652
    %v9654 = vadd.f32 %v9602, %v9604
    %v9655 = vadd.f32 %v9654, %v9606
    %v9656 = vadd.f32 %v9655, %v9608
    %v9657 = vadd.f32 %v9656, %v9610
    %v9658 = vadd.f32 %v9657, %v9612
    %v9659 = vadd.f32 %v9658, %v9614
    %v9660 = vadd.f32 %v9659, %v9616
    %v9661 = vadd.f32 %v9660, %v9618
    %v9662 = vadd.f32 %v9661, %v9620
    %v9663 = vadd.f32 %v9662, %v9622
    %v9664 = vadd.f32 %v9663, %v9624
    %v9665 = vadd.f32 %v9664, %v9626
    %v9666 = vadd.f32 %v9665, %v9628
    %v9667 = vadd.f32 %v9666, %v9630
    %v9668 = vadd.f32 %v9667, %v9632
    %v9669 = vrot.slane %v9668, 4
    %v9670 = vadd.f32 %v9668, %v9669
    %v9671 = vrot.slane %v9670, 2
    %v9672 = vadd.f32 %v9670, %v9671
    %v9673 = vrot.slane %v9672, 1
    %v9674 = vadd.f32 %v9672, %v9673
    %v9675 = vsel %vm816, %v9579, %v9653
    %v9676 = vsel %vm816, %v9600, %v9674
    %s9677 = scalar_lea.vmem %s8, 768
    %v9678 = vld [vmem:[%s9677] sm:$0xff]
    %v9679 = vld [vmem:[%s9677 + $0x8] sm:$0xff]
    %v9680 = vld [vmem:[%s9677 + $0x10] sm:$0xff]
    %v9681 = vld [vmem:[%s9677 + $0x18] sm:$0xff]
    %v9682 = vld [vmem:[%s9677 + $0x20] sm:$0xff]
    %v9683 = vld [vmem:[%s9677 + $0x28] sm:$0xff]
    %v9684 = vld [vmem:[%s9677 + $0x30] sm:$0xff]
    %v9685 = vld [vmem:[%s9677 + $0x38] sm:$0xff]
    %v9686 = vld [vmem:[%s9677 + $0x40] sm:$0xff]
    %v9687 = vld [vmem:[%s9677 + $0x48] sm:$0xff]
    %v9688 = vld [vmem:[%s9677 + $0x50] sm:$0xff]
    %v9689 = vld [vmem:[%s9677 + $0x58] sm:$0xff]
    %v9690 = vld [vmem:[%s9677 + $0x60] sm:$0xff]
    %v9691 = vld [vmem:[%s9677 + $0x68] sm:$0xff]
    %v9692 = vld [vmem:[%s9677 + $0x70] sm:$0xff]
    %v9693 = vld [vmem:[%s9677 + $0x78] sm:$0xff]
    %v9694 = vld [vmem:[%s9677 + $0x80] sm:$0xff]
    %v9695 = vld [vmem:[%s9677 + $0x88] sm:$0xff]
    %v9696 = vld [vmem:[%s9677 + $0x90] sm:$0xff]
    %v9697 = vld [vmem:[%s9677 + $0x98] sm:$0xff]
    %v9698 = vld [vmem:[%s9677 + $0xa0] sm:$0xff]
    %v9699 = vld [vmem:[%s9677 + $0xa8] sm:$0xff]
    %v9700 = vld [vmem:[%s9677 + $0xb0] sm:$0xff]
    %v9701 = vld [vmem:[%s9677 + $0xb8] sm:$0xff]
    %v9702 = vld [vmem:[%s9677 + $0xc0] sm:$0xff]
    %v9703 = vld [vmem:[%s9677 + $0xc8] sm:$0xff]
    %v9704 = vld [vmem:[%s9677 + $0xd0] sm:$0xff]
    %v9705 = vld [vmem:[%s9677 + $0xd8] sm:$0xff]
    %v9706 = vld [vmem:[%s9677 + $0xe0] sm:$0xff]
    %v9707 = vld [vmem:[%s9677 + $0xe8] sm:$0xff]
    %v9708 = vld [vmem:[%s9677 + $0xf0] sm:$0xff]
    %v9709 = vld [vmem:[%s9677 + $0xf8] sm:$0xff]
    %9710 = vmatprep.subr.mxu0 0.0
    %9711 = vmatpush1.msra.mxu0 %v9678
    %9712 = vmatprep.subr.mxu0 0.0
    %9713 = vmatpush1.msra.mxu0 %v9679
    %9714 = vmatprep.subr.mxu0 0.0
    %9715 = vmatpush1.msra.mxu0 %v9680
    %9716 = vmatprep.subr.mxu0 0.0
    %9717 = vmatpush1.msra.mxu0 %v9681
    %9718 = vmatprep.subr.mxu0 0.0
    %9719 = vmatpush1.msra.mxu0 %v9682
    %9720 = vmatprep.subr.mxu0 0.0
    %9721 = vmatpush1.msra.mxu0 %v9683
    %9722 = vmatprep.subr.mxu0 0.0
    %9723 = vmatpush1.msra.mxu0 %v9684
    %9724 = vmatprep.subr.mxu0 0.0
    %9725 = vmatpush1.msra.mxu0 %v9685
    %9726 = vmatprep.subr.mxu0 0.0
    %9727 = vmatpush1.msra.mxu0 %v9686
    %9728 = vmatprep.subr.mxu0 0.0
    %9729 = vmatpush1.msra.mxu0 %v9687
    %9730 = vmatprep.subr.mxu0 0.0
    %9731 = vmatpush1.msra.mxu0 %v9688
    %9732 = vmatprep.subr.mxu0 0.0
    %9733 = vmatpush1.msra.mxu0 %v9689
    %9734 = vmatprep.subr.mxu0 0.0
    %9735 = vmatpush1.msra.mxu0 %v9690
    %9736 = vmatprep.subr.mxu0 0.0
    %9737 = vmatpush1.msra.mxu0 %v9691
    %9738 = vmatprep.subr.mxu0 0.0
    %9739 = vmatpush1.msra.mxu0 %v9692
    %9740 = vmatprep.subr.mxu0 0.0
    %9741 = vmatpush1.msra.mxu0 %v9693
    %9742 = vmatprep.subr.mxu0 0.0
    %9743 = vmatpush1.msra.mxu0 %v9694
    %9744 = vmatprep.subr.mxu0 0.0
    %9745 = vmatpush1.msra.mxu0 %v9695
    %9746 = vmatprep.subr.mxu0 0.0
    %9747 = vmatpush1.msra.mxu0 %v9696
    %9748 = vmatprep.subr.mxu0 0.0
    %9749 = vmatpush1.msra.mxu0 %v9697
    %9750 = vmatprep.subr.mxu0 0.0
    %9751 = vmatpush1.msra.mxu0 %v9698
    %9752 = vmatprep.subr.mxu0 0.0
    %9753 = vmatpush1.msra.mxu0 %v9699
    %9754 = vmatprep.subr.mxu0 0.0
    %9755 = vmatpush1.msra.mxu0 %v9700
    %9756 = vmatprep.subr.mxu0 0.0
    %9757 = vmatpush1.msra.mxu0 %v9701
    %9758 = vmatprep.subr.mxu0 0.0
    %9759 = vmatpush1.msra.mxu0 %v9702
    %9760 = vmatprep.subr.mxu0 0.0
    %9761 = vmatpush1.msra.mxu0 %v9703
    %9762 = vmatprep.subr.mxu0 0.0
    %9763 = vmatpush1.msra.mxu0 %v9704
    %9764 = vmatprep.subr.mxu0 0.0
    %9765 = vmatpush1.msra.mxu0 %v9705
    %9766 = vmatprep.subr.mxu0 0.0
    %9767 = vmatpush1.msra.mxu0 %v9706
    %9768 = vmatprep.subr.mxu0 0.0
    %9769 = vmatpush1.msra.mxu0 %v9707
    %9770 = vmatprep.subr.mxu0 0.0
    %9771 = vmatpush1.msra.mxu0 %v9708
    %9772 = vmatprep.subr.mxu0 0.0
    %9773 = vmatpush1.msra.mxu0 %v9709
    %9774 = vmatprep.mubr.f32.mxu0 %v9676
    %9775 = vmatmul.mubr.f32.gmra.mrb[0].mxu0 %v9675
    %v9776 = vpop.f32.mrb[0].mxu0
    %v9777 = vadd.f32 0.0, %v9776
    %v9778 = vpop.f32.mrb[0].mxu0
    %9779 = vdwg.mxu0
    %v9780 = vmul.f32 %v9777, 0.00012207031
    %v9781 = vmul.f32 %v9780, %v9780
    %v9783 = vrot.slane %v9781, 7
    %v9785 = vsub.f32 %v9780, %v9783
    %v9786 = vmax.f32 %v9785, 0.0
    %s9787 = scalar_lea.vmem [#allocation17], 6
    %v9788 = vld [vmem:[%s9787] sm:$0x3]
    %v9789 = vadd.f32 %v9786, 1e-05
    %v9790 = vrsqrt.pop %v9789
    %v9792 = vrot.slane %v9790, 1
    %v9794 = vmul.f32 %v9788, %v9792
    %v9795 = vmul.f32 %v9780, %v9794
    %v9797 = vrot.slane %v9795, 7
    %v9799 = vsub.f32 %v9788, %v9797
    %v9800 = vsel %vm816, %v9794, %v9799
    %s9801 = scalar_lea.vmem [#allocation16], 192
    %v9802 = vld [vmem:[%s9801] sm:$0xff]
    %v9803 = vld [vmem:[%s9801 + $0x8] sm:$0xff]
    %v9804 = vld [vmem:[%s9801 + $0x10] sm:$0xff]
    %v9805 = vld [vmem:[%s9801 + $0x18] sm:$0xff]
    %v9806 = vld [vmem:[%s9801 + $0x20] sm:$0xff]
    %v9807 = vld [vmem:[%s9801 + $0x28] sm:$0xff]
    %v9808 = vld [vmem:[%s9801 + $0x30] sm:$0xff]
    %v9809 = vld [vmem:[%s9801 + $0x38] sm:$0xff]
    %v9811 = vsel %vm179, %v9800, 0
    %9813 = vmatprep.subr.mxu0 %v9803
    %9814 = vmatpush1.msra.mxu0 %v9802
    %9815 = vmatprep.subr.mxu0 %v9805
    %9816 = vmatpush1.msra.mxu0 %v9804
    %9817 = vmatprep.subr.mxu0 %v9807
    %9818 = vmatpush1.msra.mxu0 %v9806
    %9819 = vmatprep.subr.mxu0 %v9809
    %9820 = vmatpush1.msra.mxu0 %v9808
    %9821 = vmatprep.subr.mxu0 0.0
    %9822 = vmatpush1.msra.mxu0 0.0
    %9823 = vmatprep.subr.mxu0 0.0
    %9824 = vmatpush1.msra.mxu0 0.0
    %9825 = vmatprep.subr.mxu0 0.0
    %9826 = vmatpush1.msra.mxu0 0.0
    %9827 = vmatprep.subr.mxu0 0.0
    %9828 = vmatpush1.msra.mxu0 0.0
    %9829 = vmatprep.subr.mxu0 0.0
    %9830 = vmatpush1.msra.mxu0 0.0
    %9831 = vmatprep.subr.mxu0 0.0
    %9832 = vmatpush1.msra.mxu0 0.0
    %9833 = vmatprep.subr.mxu0 0.0
    %9834 = vmatpush1.msra.mxu0 0.0
    %9835 = vmatprep.subr.mxu0 0.0
    %9836 = vmatpush1.msra.mxu0 0.0
    %9837 = vmatprep.subr.mxu0 0.0
    %9838 = vmatpush1.msra.mxu0 0.0
    %9839 = vmatprep.subr.mxu0 0.0
    %9840 = vmatpush1.msra.mxu0 0.0
    %9841 = vmatprep.subr.mxu0 0.0
    %9842 = vmatpush1.msra.mxu0 0.0
    %9843 = vmatprep.subr.mxu0 0.0
    %9844 = vmatpush1.msra.mxu0 0.0
    %9845 = vmatprep.subr.mxu0 0.0
    %9846 = vmatpush1.msra.mxu0 0.0
    %9847 = vmatprep.subr.mxu0 0.0
    %9848 = vmatpush1.msra.mxu0 0.0
    %9849 = vmatprep.subr.mxu0 0.0
    %9850 = vmatpush1.msra.mxu0 0.0
    %9851 = vmatprep.subr.mxu0 0.0
    %9852 = vmatpush1.msra.mxu0 0.0
    %9853 = vmatprep.subr.mxu0 0.0
    %9854 = vmatpush1.msra.mxu0 0.0
    %9855 = vmatprep.subr.mxu0 0.0
    %9856 = vmatpush1.msra.mxu0 0.0
    %9857 = vmatprep.subr.mxu0 0.0
    %9858 = vmatpush1.msra.mxu0 0.0
    %9859 = vmatprep.subr.mxu0 0.0
    %9860 = vmatpush1.msra.mxu0 0.0
    %9861 = vmatprep.subr.mxu0 0.0
    %9862 = vmatpush1.msra.mxu0 0.0
    %9863 = vmatprep.subr.mxu0 0.0
    %9864 = vmatpush1.msra.mxu0 0.0
    %9865 = vmatprep.subr.mxu0 0.0
    %9866 = vmatpush1.msra.mxu0 0.0
    %9867 = vmatprep.subr.mxu0 0.0
    %9868 = vmatpush1.msra.mxu0 0.0
    %9869 = vmatprep.subr.mxu0 0.0
    %9870 = vmatpush1.msra.mxu0 0.0
    %9871 = vmatprep.subr.mxu0 0.0
    %9872 = vmatpush1.msra.mxu0 0.0
    %9873 = vmatprep.subr.mxu0 0.0
    %9874 = vmatpush1.msra.mxu0 0.0
    %9875 = vmatprep.subr.mxu0 0.0
    %9876 = vmatpush1.msra.mxu0 0.0
    %9877 = vmatprep.mubr.f32.mxu0 0.0
    %9878 = vmatmul.mubr.f32.gmra.mrb[0].mxu0 %v9811
    %v9879 = vpop.f32.mrb[0].mxu0
    %v9880 = vadd.f32 0.0, %v9879
    %v9881 = vpop.f32.mrb[0].mxu0
    %v9882 = vadd.f32 0.0, %v9881
    %9883 = vdwg.mxu0
    %v9884 = vlaneseq
    %v9885 = vshrl.u32 %v9884, 7
    %v9886 = vsub.s32 0, %v9885
    %v9887 = vrot.slane %v9880, %v9886
    %v9888 = vlaneseq
    %v9889 = vshrl.u32 %v9888, 7
    %v9890 = vsub.s32 0, %v9889
    %v9891 = vrot.slane %v9882, %v9890
    %v9892 = vmul.f32 %v9481, %v9887
    %v9893 = vmul.f32 %v9483, %v9891
    %v9894 = vmul.f32 %v9485, %v9887
    %v9895 = vmul.f32 %v9487, %v9891
    %v9896 = vmul.f32 %v9491, %v9887
    %v9897 = vmul.f32 %v9493, %v9891
    %v9898 = vmul.f32 %v9495, %v9887
    %v9899 = vmul.f32 %v9497, %v9891
    %v9900 = vmul.f32 %v9501, %v9887
    %v9901 = vmul.f32 %v9503, %v9891
    %v9902 = vmul.f32 %v9505, %v9887
    %v9903 = vmul.f32 %v9507, %v9891
    %v9904 = vmul.f32 %v9511, %v9887
    %v9905 = vmul.f32 %v9513, %v9891
    %v9906 = vmul.f32 %v9515, %v9887
    %v9907 = vmul.f32 %v9517, %v9891
    %v9908 = vmul.f32 %v9521, %v9887
    %v9909 = vmul.f32 %v9523, %v9891
    %v9910 = vmul.f32 %v9525, %v9887
    %v9911 = vmul.f32 %v9527, %v9891
    %v9912 = vmul.f32 %v9531, %v9887
    %v9913 = vmul.f32 %v9533, %v9891
    %v9914 = vmul.f32 %v9535, %v9887
    %v9915 = vmul.f32 %v9537, %v9891
    %v9916 = vmul.f32 %v9541, %v9887
    %v9917 = vmul.f32 %v9543, %v9891
    %v9918 = vmul.f32 %v9545, %v9887
    %v9919 = vmul.f32 %v9547, %v9891
    %v9920 = vmul.f32 %v9551, %v9887
    %v9921 = vmul.f32 %v9553, %v9891
    %v9922 = vmul.f32 %v9555, %v9887
    %v9923 = vmul.f32 %v9557, %v9891
    %v9924 = vlaneseq
    %v9925 = vshrl.u32 %v9924, 7
    %v9926 = vsub.s32 1, %v9925
    %v9927 = vrot.slane %v9880, %v9926
    %v9928 = vlaneseq
    %v9929 = vshrl.u32 %v9928, 7
    %v9930 = vsub.s32 1, %v9929
    %v9931 = vrot.slane %v9882, %v9930
    %v9932 = vadd.f32 %v9892, %v9927
    %v9933 = vadd.f32 %v9893, %v9931
    %v9934 = vadd.f32 %v9894, %v9927
    %v9935 = vadd.f32 %v9895, %v9931
    %v9936 = vadd.f32 %v9896, %v9927
    %v9937 = vadd.f32 %v9897, %v9931
    %v9938 = vadd.f32 %v9898, %v9927
    %v9939 = vadd.f32 %v9899, %v9931
    %v9940 = vadd.f32 %v9900, %v9927
    %v9941 = vadd.f32 %v9901, %v9931
    %v9942 = vadd.f32 %v9902, %v9927
    %v9943 = vadd.f32 %v9903, %v9931
    %v9944 = vadd.f32 %v9904, %v9927
    %v9945 = vadd.f32 %v9905, %v9931
    %v9946 = vadd.f32 %v9906, %v9927
    %v9947 = vadd.f32 %v9907, %v9931
    %v9948 = vadd.f32 %v9908, %v9927
    %v9949 = vadd.f32 %v9909, %v9931
    %v9950 = vadd.f32 %v9910, %v9927
    %v9951 = vadd.f32 %v9911, %v9931
    %v9952 = vadd.f32 %v9912, %v9927
    %v9953 = vadd.f32 %v9913, %v9931
    %v9954 = vadd.f32 %v9914, %v9927
    %v9955 = vadd.f32 %v9915, %v9931
    %v9956 = vadd.f32 %v9916, %v9927
    %v9957 = vadd.f32 %v9917, %v9931
    %v9958 = vadd.f32 %v9918, %v9927
    %v9959 = vadd.f32 %v9919, %v9931
    %v9960 = vadd.f32 %v9920, %v9927
    %v9961 = vadd.f32 %v9921, %v9931
    %v9962 = vadd.f32 %v9922, %v9927
    %v9963 = vadd.f32 %v9923, %v9931
    %v9964 = vmax.f32 %v9932, 0.0
    %v9965 = vmax.f32 %v9933, 0.0
    %v9966 = vmax.f32 %v9934, 0.0
    %v9967 = vmax.f32 %v9935, 0.0
    %v9968 = vmax.f32 %v9936, 0.0
    %v9969 = vmax.f32 %v9937, 0.0
    %v9970 = vmax.f32 %v9938, 0.0
    %v9971 = vmax.f32 %v9939, 0.0
    %v9972 = vmax.f32 %v9940, 0.0
    %v9973 = vmax.f32 %v9941, 0.0
    %v9974 = vmax.f32 %v9942, 0.0
    %v9975 = vmax.f32 %v9943, 0.0
    %v9976 = vmax.f32 %v9944, 0.0
    %v9977 = vmax.f32 %v9945, 0.0
    %v9978 = vmax.f32 %v9946, 0.0
    %v9979 = vmax.f32 %v9947, 0.0
    %v9980 = vmax.f32 %v9948, 0.0
    %v9981 = vmax.f32 %v9949, 0.0
    %v9982 = vmax.f32 %v9950, 0.0
    %v9983 = vmax.f32 %v9951, 0.0
    %v9984 = vmax.f32 %v9952, 0.0
    %v9985 = vmax.f32 %v9953, 0.0
    %v9986 = vmax.f32 %v9954, 0.0
    %v9987 = vmax.f32 %v9955, 0.0
    %v9988 = vmax.f32 %v9956, 0.0
    %v9989 = vmax.f32 %v9957, 0.0
    %v9990 = vmax.f32 %v9958, 0.0
    %v9991 = vmax.f32 %v9959, 0.0
    %v9992 = vmax.f32 %v9960, 0.0
    %v9993 = vmax.f32 %v9961, 0.0
    %v9994 = vmax.f32 %v9962, 0.0
    %v9995 = vmax.f32 %v9963, 0.0
    %9996 = vst.msk [vmem:[#allocation2] ss:$8 sm:$0x3] %vm988, 0.0
    %9997 = vst.msk [vmem:[#allocation2] ss:$8 sm:$0x0] %vm988, 0.0
    %9998 = vst.msk [vmem:[%s991] ss:$8 sm:$0x3] %vm988, 0.0
    %9999 = vst.msk [vmem:[%s991] ss:$8 sm:$0x0] %vm988, 0.0
    %v10032 = vrot.slane %v9964, 7
    %v10033 = vrot.slane %v9965, 7
    %v10034 = vrot.slane %v9966, 7
    %v10035 = vsel %vm816, %v10032, %v10034
    %v10036 = vrot.slane %v9967, 7
    %v10037 = vsel %vm816, %v10033, %v10036
    %v10038 = vrot.slane %v9968, 7
    %v10039 = vsel %vm816, %v10034, %v10038
    %v10040 = vrot.slane %v9969, 7
    %v10041 = vsel %vm816, %v10036, %v10040
    %v10042 = vrot.slane %v9970, 7
    %v10043 = vsel %vm816, %v10038, %v10042
    %v10044 = vrot.slane %v9971, 7
    %v10045 = vsel %vm816, %v10040, %v10044
    %v10046 = vrot.slane %v9972, 7
    %v10047 = vsel %vm816, %v10042, %v10046
    %v10048 = vrot.slane %v9973, 7
    %v10049 = vsel %vm816, %v10044, %v10048
    %v10050 = vrot.slane %v9974, 7
    %v10051 = vsel %vm816, %v10046, %v10050
    %v10052 = vrot.slane %v9975, 7
    %v10053 = vsel %vm816, %v10048, %v10052
    %v10054 = vrot.slane %v9976, 7
    %v10055 = vsel %vm816, %v10050, %v10054
    %v10056 = vrot.slane %v9977, 7
    %v10057 = vsel %vm816, %v10052, %v10056
    %v10058 = vrot.slane %v9978, 7
    %v10059 = vsel %vm816, %v10054, %v10058
    %v10060 = vrot.slane %v9979, 7
    %v10061 = vsel %vm816, %v10056, %v10060
    %v10062 = vrot.slane %v9980, 7
    %v10063 = vrot.slane %v9981, 7
    %v10064 = vrot.slane %v9982, 7
    %v10065 = vsel %vm816, %v10062, %v10064
    %v10066 = vrot.slane %v9983, 7
    %v10067 = vsel %vm816, %v10063, %v10066
    %v10068 = vrot.slane %v9984, 7
    %v10069 = vsel %vm816, %v10064, %v10068
    %v10070 = vrot.slane %v9985, 7
    %v10071 = vsel %vm816, %v10066, %v10070
    %v10072 = vrot.slane %v9986, 7
    %v10073 = vsel %vm816, %v10068, %v10072
    %v10074 = vrot.slane %v9987, 7
    %v10075 = vsel %vm816, %v10070, %v10074
    %v10076 = vrot.slane %v9988, 7
    %v10077 = vsel %vm816, %v10072, %v10076
    %v10078 = vrot.slane %v9989, 7
    %v10079 = vsel %vm816, %v10074, %v10078
    %v10080 = vrot.slane %v9990, 7
    %v10081 = vsel %vm816, %v10076, %v10080
    %v10082 = vrot.slane %v9991, 7
    %v10083 = vsel %vm816, %v10078, %v10082
    %v10084 = vrot.slane %v9992, 7
    %v10085 = vsel %vm816, %v10080, %v10084
    %v10086 = vrot.slane %v9993, 7
    %v10087 = vsel %vm816, %v10082, %v10086
    %v10088 = vrot.slane %v9994, 7
    %v10089 = vsel %vm816, %v10084, %v10088
    %v10090 = vrot.slane %v9995, 7
    %v10091 = vsel %vm816, %v10086, %v10090
    %10128 = vst [vmem:[#allocation2] sm:$0xfe] %v10032
    %10129 = vst [vmem:[#allocation2 + $0x8] sm:$0xfe] %v10033
    %10130 = vst [vmem:[#allocation2 + $0x10] sm:$0xff] %v10035
    %10131 = vst [vmem:[#allocation2 + $0x18] sm:$0xff] %v10037
    %10132 = vst [vmem:[#allocation2 + $0x20] sm:$0xff] %v10039
    %10133 = vst [vmem:[#allocation2 + $0x28] sm:$0xff] %v10041
    %10134 = vst [vmem:[#allocation2 + $0x30] sm:$0xff] %v10043
    %10135 = vst [vmem:[#allocation2 + $0x38] sm:$0xff] %v10045
    %10136 = vst [vmem:[#allocation2 + $0x40] sm:$0xff] %v10047
    %10137 = vst [vmem:[#allocation2 + $0x48] sm:$0xff] %v10049
    %10138 = vst [vmem:[#allocation2 + $0x50] sm:$0xff] %v10051
    %10139 = vst [vmem:[#allocation2 + $0x58] sm:$0xff] %v10053
    %10140 = vst [vmem:[#allocation2 + $0x60] sm:$0xff] %v10055
    %10141 = vst [vmem:[#allocation2 + $0x68] sm:$0xff] %v10057
    %10142 = vst [vmem:[#allocation2 + $0x70] sm:$0xff] %v10059
    %10143 = vst [vmem:[#allocation2 + $0x78] sm:$0xff] %v10061
    %10144 = vst [vmem:[#allocation2 + $0x80] sm:$0x1] %v10058
    %10145 = vst [vmem:[#allocation2 + $0x88] sm:$0x1] %v10060
    %10146 = vst [vmem:[#allocation2 + $0x90] sm:$0xfe] %v10062
    %10147 = vst [vmem:[#allocation2 + $0x98] sm:$0xfe] %v10063
    %10148 = vst [vmem:[#allocation2 + $0xa0] sm:$0xff] %v10065
    %10149 = vst [vmem:[#allocation2 + $0xa8] sm:$0xff] %v10067
    %10150 = vst [vmem:[#allocation2 + $0xb0] sm:$0xff] %v10069
    %10151 = vst [vmem:[#allocation2 + $0xb8] sm:$0xff] %v10071
    %10152 = vst [vmem:[#allocation2 + $0xc0] sm:$0xff] %v10073
    %10153 = vst [vmem:[#allocation2 + $0xc8] sm:$0xff] %v10075
    %10154 = vst [vmem:[#allocation2 + $0xd0] sm:$0xff] %v10077
    %10155 = vst [vmem:[#allocation2 + $0xd8] sm:$0xff] %v10079
    %10156 = vst [vmem:[#allocation2 + $0xe0] sm:$0xff] %v10081
    %10157 = vst [vmem:[#allocation2 + $0xe8] sm:$0xff] %v10083
    %10158 = vst [vmem:[#allocation2 + $0xf0] sm:$0xff] %v10085
    %10159 = vst [vmem:[#allocation2 + $0xf8] sm:$0xff] %v10087
    %10160 = vst [vmem:[#allocation2 + $0x100] sm:$0xff] %v10089
    %10161 = vst [vmem:[#allocation2 + $0x108] sm:$0xff] %v10091
    %10162 = vst [vmem:[#allocation2 + $0x110] sm:$0x1] %v10088
    %10163 = vst [vmem:[#allocation2 + $0x118] sm:$0x1] %v10090
    %10164 = vst.msk [vmem:[%s8297] ss:$8 sm:$0x3] %vm988, 0.0
    %10165 = vst.msk [vmem:[%s8297] ss:$8 sm:$0x0] %vm988, 0.0
    %10166 = vst.msk [vmem:[%s8300] ss:$8 sm:$0x3] %vm988, 0.0
    %10167 = vst.msk [vmem:[%s8300] ss:$8 sm:$0x0] %vm988, 0.0
    %v10168 = vld [vmem:[#allocation2] sm:$0xff]
    %v10169 = vld [vmem:[#allocation2 + $0x8] sm:$0xff]
    %v10170 = vld [vmem:[#allocation2 + $0x10] sm:$0xff]
    %v10171 = vld [vmem:[#allocation2 + $0x18] sm:$0xff]
    %v10172 = vld [vmem:[#allocation2 + $0x20] sm:$0xff]
    %v10173 = vld [vmem:[#allocation2 + $0x28] sm:$0xff]
    %v10174 = vld [vmem:[#allocation2 + $0x30] sm:$0xff]
    %v10175 = vld [vmem:[#allocation2 + $0x38] sm:$0xff]
    %v10176 = vld [vmem:[#allocation2 + $0x40] sm:$0xff]
    %v10177 = vld [vmem:[#allocation2 + $0x48] sm:$0xff]
    %v10178 = vld [vmem:[#allocation2 + $0x50] sm:$0xff]
    %v10179 = vld [vmem:[#allocation2 + $0x58] sm:$0xff]
    %v10180 = vld [vmem:[#allocation2 + $0x60] sm:$0xff]
    %v10181 = vld [vmem:[#allocation2 + $0x68] sm:$0xff]
    %v10182 = vld [vmem:[#allocation2 + $0x70] sm:$0xff]
    %v10183 = vld [vmem:[#allocation2 + $0x78] sm:$0xff]
    %v10184 = vld [vmem:[#allocation2 + $0x90] sm:$0xff]
    %v10185 = vld [vmem:[#allocation2 + $0x98] sm:$0xff]
    %v10186 = vld [vmem:[#allocation2 + $0xa0] sm:$0xff]
    %v10187 = vld [vmem:[#allocation2 + $0xa8] sm:$0xff]
    %v10188 = vld [vmem:[#allocation2 + $0xb0] sm:$0xff]
    %v10189 = vld [vmem:[#allocation2 + $0xb8] sm:$0xff]
    %v10190 = vld [vmem:[#allocation2 + $0xc0] sm:$0xff]
    %v10191 = vld [vmem:[#allocation2 + $0xc8] sm:$0xff]
    %v10192 = vld [vmem:[#allocation2 + $0xd0] sm:$0xff]
    %v10193 = vld [vmem:[#allocation2 + $0xd8] sm:$0xff]
    %v10194 = vld [vmem:[#allocation2 + $0xe0] sm:$0xff]
    %v10195 = vld [vmem:[#allocation2 + $0xe8] sm:$0xff]
    %v10196 = vld [vmem:[#allocation2 + $0xf0] sm:$0xff]
    %v10197 = vld [vmem:[#allocation2 + $0xf8] sm:$0xff]
    %v10198 = vld [vmem:[#allocation2 + $0x100] sm:$0xff]
    %v10199 = vld [vmem:[#allocation2 + $0x108] sm:$0xff]
    %v10200 = vld [vmem:[#allocation2] sm:$0xfe]
    %v10201 = vld [vmem:[#allocation2 + $0x8] sm:$0xfe]
    %v10202 = vld [vmem:[#allocation2 + $0x80] sm:$0x1]
    %v10203 = vld [vmem:[#allocation2 + $0x88] sm:$0x1]
    %v10204 = vld [vmem:[#allocation2 + $0x90] sm:$0xfe]
    %v10205 = vld [vmem:[#allocation2 + $0x98] sm:$0xfe]
    %v10206 = vld [vmem:[#allocation2 + $0x110] sm:$0x1]
    %v10207 = vld [vmem:[#allocation2 + $0x118] sm:$0x1]
    %v10208 = vld [vmem:[#allocation2] sm:$0xfc]
    %v10209 = vld [vmem:[#allocation2 + $0x8] sm:$0xfc]
    %v10210 = vld [vmem:[#allocation2 + $0x80] sm:$0x3]
    %v10211 = vld [vmem:[#allocation2 + $0x88] sm:$0x3]
    %v10212 = vld [vmem:[#allocation2 + $0x90] sm:$0xfc]
    %v10213 = vld [vmem:[#allocation2 + $0x98] sm:$0xfc]
    %v10214 = vld [vmem:[#allocation2 + $0x110] sm:$0x3]
    %v10215 = vld [vmem:[#allocation2 + $0x118] sm:$0x3]
    %v10252 = vrot.slane %v10200, 1
    %v10253 = vrot.slane %v10170, 1
    %v10254 = vsel %vm1080, %v10252, %v10253
    %v10255 = vrot.slane %v10201, 1
    %v10256 = vrot.slane %v10171, 1
    %v10257 = vsel %vm1080, %v10255, %v10256
    %v10258 = vrot.slane %v10172, 1
    %v10259 = vsel %vm1080, %v10253, %v10258
    %v10260 = vrot.slane %v10173, 1
    %v10261 = vsel %vm1080, %v10256, %v10260
    %v10262 = vrot.slane %v10174, 1
    %v10263 = vsel %vm1080, %v10258, %v10262
    %v10264 = vrot.slane %v10175, 1
    %v10265 = vsel %vm1080, %v10260, %v10264
    %v10266 = vrot.slane %v10176, 1
    %v10267 = vsel %vm1080, %v10262, %v10266
    %v10268 = vrot.slane %v10177, 1
    %v10269 = vsel %vm1080, %v10264, %v10268
    %v10270 = vrot.slane %v10178, 1
    %v10271 = vsel %vm1080, %v10266, %v10270
    %v10272 = vrot.slane %v10179, 1
    %v10273 = vsel %vm1080, %v10268, %v10272
    %v10274 = vrot.slane %v10180, 1
    %v10275 = vsel %vm1080, %v10270, %v10274
    %v10276 = vrot.slane %v10181, 1
    %v10277 = vsel %vm1080, %v10272, %v10276
    %v10278 = vrot.slane %v10182, 1
    %v10279 = vsel %vm1080, %v10274, %v10278
    %v10280 = vrot.slane %v10183, 1
    %v10281 = vsel %vm1080, %v10276, %v10280
    %v10282 = vrot.slane %v10202, 1
    %v10283 = vsel %vm1080, %v10278, %v10282
    %v10284 = vrot.slane %v10203, 1
    %v10285 = vsel %vm1080, %v10280, %v10284
    %v10286 = vrot.slane %v10204, 1
    %v10287 = vrot.slane %v10186, 1
    %v10288 = vsel %vm1080, %v10286, %v10287
    %v10289 = vrot.slane %v10205, 1
    %v10290 = vrot.slane %v10187, 1
    %v10291 = vsel %vm1080, %v10289, %v10290
    %v10292 = vrot.slane %v10188, 1
    %v10293 = vsel %vm1080, %v10287, %v10292
    %v10294 = vrot.slane %v10189, 1
    %v10295 = vsel %vm1080, %v10290, %v10294
    %v10296 = vrot.slane %v10190, 1
    %v10297 = vsel %vm1080, %v10292, %v10296
    %v10298 = vrot.slane %v10191, 1
    %v10299 = vsel %vm1080, %v10294, %v10298
    %v10300 = vrot.slane %v10192, 1
    %v10301 = vsel %vm1080, %v10296, %v10300
    %v10302 = vrot.slane %v10193, 1
    %v10303 = vsel %vm1080, %v10298, %v10302
    %v10304 = vrot.slane %v10194, 1
    %v10305 = vsel %vm1080, %v10300, %v10304
    %v10306 = vrot.slane %v10195, 1
    %v10307 = vsel %vm1080, %v10302, %v10306
    %v10308 = vrot.slane %v10196, 1
    %v10309 = vsel %vm1080, %v10304, %v10308
    %v10310 = vrot.slane %v10197, 1
    %v10311 = vsel %vm1080, %v10306, %v10310
    %v10312 = vrot.slane %v10198, 1
    %v10313 = vsel %vm1080, %v10308, %v10312
    %v10314 = vrot.slane %v10199, 1
    %v10315 = vsel %vm1080, %v10310, %v10314
    %v10316 = vrot.slane %v10206, 1
    %v10317 = vsel %vm1080, %v10312, %v10316
    %v10318 = vrot.slane %v10207, 1
    %v10319 = vsel %vm1080, %v10314, %v10318
    %v10360 = vrot.slane %v10208, 2
    %v10361 = vrot.slane %v10170, 2
    %v10362 = vsel %vm1105, %v10360, %v10361
    %v10363 = vrot.slane %v10209, 2
    %v10364 = vrot.slane %v10171, 2
    %v10365 = vsel %vm1105, %v10363, %v10364
    %v10366 = vrot.slane %v10172, 2
    %v10367 = vsel %vm1105, %v10361, %v10366
    %v10368 = vrot.slane %v10173, 2
    %v10369 = vsel %vm1105, %v10364, %v10368
    %v10370 = vrot.slane %v10174, 2
    %v10371 = vsel %vm1105, %v10366, %v10370
    %v10372 = vrot.slane %v10175, 2
    %v10373 = vsel %vm1105, %v10368, %v10372
    %v10374 = vrot.slane %v10176, 2
    %v10375 = vsel %vm1105, %v10370, %v10374
    %v10376 = vrot.slane %v10177, 2
    %v10377 = vsel %vm1105, %v10372, %v10376
    %v10378 = vrot.slane %v10178, 2
    %v10379 = vsel %vm1105, %v10374, %v10378
    %v10380 = vrot.slane %v10179, 2
    %v10381 = vsel %vm1105, %v10376, %v10380
    %v10382 = vrot.slane %v10180, 2
    %v10383 = vsel %vm1105, %v10378, %v10382
    %v10384 = vrot.slane %v10181, 2
    %v10385 = vsel %vm1105, %v10380, %v10384
    %v10386 = vrot.slane %v10182, 2
    %v10387 = vsel %vm1105, %v10382, %v10386
    %v10388 = vrot.slane %v10183, 2
    %v10389 = vsel %vm1105, %v10384, %v10388
    %v10390 = vrot.slane %v10210, 2
    %v10391 = vsel %vm1105, %v10386, %v10390
    %v10392 = vrot.slane %v10211, 2
    %v10393 = vsel %vm1105, %v10388, %v10392
    %v10394 = vrot.slane %v10212, 2
    %v10395 = vrot.slane %v10186, 2
    %v10396 = vsel %vm1105, %v10394, %v10395
    %v10397 = vrot.slane %v10213, 2
    %v10398 = vrot.slane %v10187, 2
    %v10399 = vsel %vm1105, %v10397, %v10398
    %v10400 = vrot.slane %v10188, 2
    %v10401 = vsel %vm1105, %v10395, %v10400
    %v10402 = vrot.slane %v10189, 2
    %v10403 = vsel %vm1105, %v10398, %v10402
    %v10404 = vrot.slane %v10190, 2
    %v10405 = vsel %vm1105, %v10400, %v10404
    %v10406 = vrot.slane %v10191, 2
    %v10407 = vsel %vm1105, %v10402, %v10406
    %v10408 = vrot.slane %v10192, 2
    %v10409 = vsel %vm1105, %v10404, %v10408
    %v10410 = vrot.slane %v10193, 2
    %v10411 = vsel %vm1105, %v10406, %v10410
    %v10412 = vrot.slane %v10194, 2
    %v10413 = vsel %vm1105, %v10408, %v10412
    %v10414 = vrot.slane %v10195, 2
    %v10415 = vsel %vm1105, %v10410, %v10414
    %v10416 = vrot.slane %v10196, 2
    %v10417 = vsel %vm1105, %v10412, %v10416
    %v10418 = vrot.slane %v10197, 2
    %v10419 = vsel %vm1105, %v10414, %v10418
    %v10420 = vrot.slane %v10198, 2
    %v10421 = vsel %vm1105, %v10416, %v10420
    %v10422 = vrot.slane %v10199, 2
    %v10423 = vsel %vm1105, %v10418, %v10422
    %v10424 = vrot.slane %v10214, 2
    %v10425 = vsel %vm1105, %v10420, %v10424
    %v10426 = vrot.slane %v10215, 2
    %v10427 = vsel %vm1105, %v10422, %v10426
    %v10460 = vpack.c.bf16 %v10170, %v10168
    %v10461 = vpack.c.bf16 %v10171, %v10169
    %v10462 = vpack.c.bf16 %v10259, %v10254
    %v10463 = vpack.c.bf16 %v10261, %v10257
    %v10464 = vpack.c.bf16 %v10367, %v10362
    %v10465 = vpack.c.bf16 %v10369, %v10365
    %v10466 = vpack.c.bf16 %v10174, %v10172
    %v10467 = vpack.c.bf16 %v10175, %v10173
    %v10468 = vpack.c.bf16 %v10267, %v10263
    %v10469 = vpack.c.bf16 %v10269, %v10265
    %v10470 = vpack.c.bf16 %v10375, %v10371
    %v10471 = vpack.c.bf16 %v10377, %v10373
    %v10472 = vpack.c.bf16 %v10178, %v10176
    %v10473 = vpack.c.bf16 %v10179, %v10177
    %v10474 = vpack.c.bf16 %v10275, %v10271
    %v10475 = vpack.c.bf16 %v10277, %v10273
    %v10476 = vpack.c.bf16 %v10383, %v10379
    %v10477 = vpack.c.bf16 %v10385, %v10381
    %v10478 = vpack.c.bf16 %v10182, %v10180
    %v10479 = vpack.c.bf16 %v10183, %v10181
    %v10480 = vpack.c.bf16 %v10283, %v10279
    %v10481 = vpack.c.bf16 %v10285, %v10281
    %v10482 = vpack.c.bf16 %v10391, %v10387
    %v10483 = vpack.c.bf16 %v10393, %v10389
    %v10484 = vpack.c.bf16 %v10186, %v10184
    %v10485 = vpack.c.bf16 %v10187, %v10185
    %v10486 = vpack.c.bf16 %v10293, %v10288
    %v10487 = vpack.c.bf16 %v10295, %v10291
    %v10488 = vpack.c.bf16 %v10401, %v10396
    %v10489 = vpack.c.bf16 %v10403, %v10399
    %v10490 = vpack.c.bf16 %v10190, %v10188
    %v10491 = vpack.c.bf16 %v10191, %v10189
    %v10492 = vpack.c.bf16 %v10301, %v10297
    %v10493 = vpack.c.bf16 %v10303, %v10299
    %v10494 = vpack.c.bf16 %v10409, %v10405
    %v10495 = vpack.c.bf16 %v10411, %v10407
    %v10496 = vpack.c.bf16 %v10194, %v10192
    %v10497 = vpack.c.bf16 %v10195, %v10193
    %v10498 = vpack.c.bf16 %v10309, %v10305
    %v10499 = vpack.c.bf16 %v10311, %v10307
    %v10500 = vpack.c.bf16 %v10417, %v10413
    %v10501 = vpack.c.bf16 %v10419, %v10415
    %v10502 = vpack.c.bf16 %v10198, %v10196
    %v10503 = vpack.c.bf16 %v10199, %v10197
    %v10504 = vpack.c.bf16 %v10317, %v10313
    %v10505 = vpack.c.bf16 %v10319, %v10315
    %v10506 = vpack.c.bf16 %v10425, %v10421
    %v10507 = vpack.c.bf16 %v10427, %v10423
    %s10508 = scalar_lea.vmem [#allocation14], 3072
    %v10509 = vld [vmem:[%s10508] sm:$0xff]
    %v10510 = vld [vmem:[%s10508 + $0x8] sm:$0xff]
    %v10511 = vld [vmem:[%s10508 + $0x10] sm:$0xff]
    %v10512 = vld [vmem:[%s10508 + $0x18] sm:$0xff]
    %v10513 = vld [vmem:[%s10508 + $0x20] sm:$0xff]
    %v10514 = vld [vmem:[%s10508 + $0x28] sm:$0xff]
    %v10515 = vld [vmem:[%s10508 + $0x30] sm:$0xff]
    %v10516 = vld [vmem:[%s10508 + $0x38] sm:$0xff]
    %v10517 = vld [vmem:[%s10508 + $0x40] sm:$0xff]
    %v10518 = vld [vmem:[%s10508 + $0x48] sm:$0xff]
    %v10519 = vld [vmem:[%s10508 + $0x50] sm:$0xff]
    %v10520 = vld [vmem:[%s10508 + $0x58] sm:$0xff]
    %v10521 = vld [vmem:[%s10508 + $0x60] sm:$0xff]
    %v10522 = vld [vmem:[%s10508 + $0x68] sm:$0xff]
    %v10523 = vld [vmem:[%s10508 + $0x70] sm:$0xff]
    %v10524 = vld [vmem:[%s10508 + $0x78] sm:$0xff]
    %v10525 = vld [vmem:[%s10508 + $0x80] sm:$0xff]
    %v10526 = vld [vmem:[%s10508 + $0x88] sm:$0xff]
    %v10527 = vld [vmem:[%s10508 + $0x90] sm:$0xff]
    %v10528 = vld [vmem:[%s10508 + $0x98] sm:$0xff]
    %v10529 = vld [vmem:[%s10508 + $0xa0] sm:$0xff]
    %v10530 = vld [vmem:[%s10508 + $0xa8] sm:$0xff]
    %v10531 = vld [vmem:[%s10508 + $0xb0] sm:$0xff]
    %v10532 = vld [vmem:[%s10508 + $0xb8] sm:$0xff]
    %v10533 = vld [vmem:[%s10508 + $0xc0] sm:$0xff]
    %v10534 = vld [vmem:[%s10508 + $0xc8] sm:$0xff]
    %v10535 = vld [vmem:[%s10508 + $0xd0] sm:$0xff]
    %v10536 = vld [vmem:[%s10508 + $0xd8] sm:$0xff]
    %v10537 = vld [vmem:[%s10508 + $0xe0] sm:$0xff]
    %v10538 = vld [vmem:[%s10508 + $0xe8] sm:$0xff]
    %v10539 = vld [vmem:[%s10508 + $0xf0] sm:$0xff]
    %v10540 = vld [vmem:[%s10508 + $0xf8] sm:$0xff]
    %v10541 = vld [vmem:[%s10508 + $0x100] sm:$0xff]
    %v10542 = vld [vmem:[%s10508 + $0x108] sm:$0xff]
    %v10543 = vld [vmem:[%s10508 + $0x110] sm:$0xff]
    %v10544 = vld [vmem:[%s10508 + $0x118] sm:$0xff]
    %v10545 = vld [vmem:[%s10508 + $0x120] sm:$0xff]
    %v10546 = vld [vmem:[%s10508 + $0x128] sm:$0xff]
    %v10547 = vld [vmem:[%s10508 + $0x130] sm:$0xff]
    %v10548 = vld [vmem:[%s10508 + $0x138] sm:$0xff]
    %v10549 = vld [vmem:[%s10508 + $0x140] sm:$0xff]
    %v10550 = vld [vmem:[%s10508 + $0x148] sm:$0xff]
    %v10551 = vld [vmem:[%s10508 + $0x150] sm:$0xff]
    %v10552 = vld [vmem:[%s10508 + $0x158] sm:$0xff]
    %v10553 = vld [vmem:[%s10508 + $0x160] sm:$0xff]
    %v10554 = vld [vmem:[%s10508 + $0x168] sm:$0xff]
    %v10555 = vld [vmem:[%s10508 + $0x170] sm:$0xff]
    %v10556 = vld [vmem:[%s10508 + $0x178] sm:$0xff]
    %v10557 = vld [vmem:[%s10508 + $0x180] sm:$0xff]
    %v10558 = vld [vmem:[%s10508 + $0x188] sm:$0xff]
    %v10559 = vld [vmem:[%s10508 + $0x190] sm:$0xff]
    %v10560 = vld [vmem:[%s10508 + $0x198] sm:$0xff]
    %v10561 = vld [vmem:[%s10508 + $0x1a0] sm:$0xff]
    %v10562 = vld [vmem:[%s10508 + $0x1a8] sm:$0xff]
    %v10563 = vld [vmem:[%s10508 + $0x1b0] sm:$0xff]
    %v10564 = vld [vmem:[%s10508 + $0x1b8] sm:$0xff]
    %v10565 = vld [vmem:[%s10508 + $0x1c0] sm:$0xff]
    %v10566 = vld [vmem:[%s10508 + $0x1c8] sm:$0xff]
    %v10567 = vld [vmem:[%s10508 + $0x1d0] sm:$0xff]
    %v10568 = vld [vmem:[%s10508 + $0x1d8] sm:$0xff]
    %v10569 = vld [vmem:[%s10508 + $0x1e0] sm:$0xff]
    %v10570 = vld [vmem:[%s10508 + $0x1e8] sm:$0xff]
    %v10571 = vld [vmem:[%s10508 + $0x1f0] sm:$0xff]
    %v10572 = vld [vmem:[%s10508 + $0x1f8] sm:$0xff]
    %v10573 = vld [vmem:[%s10508 + $0x200] sm:$0xff]
    %v10574 = vld [vmem:[%s10508 + $0x208] sm:$0xff]
    %v10575 = vld [vmem:[%s10508 + $0x210] sm:$0xff]
    %v10576 = vld [vmem:[%s10508 + $0x218] sm:$0xff]
    %v10577 = vld [vmem:[%s10508 + $0x220] sm:$0xff]
    %v10578 = vld [vmem:[%s10508 + $0x228] sm:$0xff]
    %v10579 = vld [vmem:[%s10508 + $0x230] sm:$0xff]
    %v10580 = vld [vmem:[%s10508 + $0x238] sm:$0xff]
    %v10581 = vld [vmem:[%s10508 + $0x240] sm:$0xff]
    %v10582 = vld [vmem:[%s10508 + $0x248] sm:$0xff]
    %v10583 = vld [vmem:[%s10508 + $0x250] sm:$0xff]
    %v10584 = vld [vmem:[%s10508 + $0x258] sm:$0xff]
    %v10585 = vld [vmem:[%s10508 + $0x260] sm:$0xff]
    %v10586 = vld [vmem:[%s10508 + $0x268] sm:$0xff]
    %v10587 = vld [vmem:[%s10508 + $0x270] sm:$0xff]
    %v10588 = vld [vmem:[%s10508 + $0x278] sm:$0xff]
    %v10589 = vld [vmem:[%s10508 + $0x280] sm:$0xff]
    %v10590 = vld [vmem:[%s10508 + $0x288] sm:$0xff]
    %v10591 = vld [vmem:[%s10508 + $0x290] sm:$0xff]
    %v10592 = vld [vmem:[%s10508 + $0x298] sm:$0xff]
    %v10593 = vld [vmem:[%s10508 + $0x2a0] sm:$0xff]
    %v10594 = vld [vmem:[%s10508 + $0x2a8] sm:$0xff]
    %v10595 = vld [vmem:[%s10508 + $0x2b0] sm:$0xff]
    %v10596 = vld [vmem:[%s10508 + $0x2b8] sm:$0xff]
    %v10597 = vld [vmem:[%s10508 + $0x2c0] sm:$0xff]
    %v10598 = vld [vmem:[%s10508 + $0x2c8] sm:$0xff]
    %v10599 = vld [vmem:[%s10508 + $0x2d0] sm:$0xff]
    %v10600 = vld [vmem:[%s10508 + $0x2d8] sm:$0xff]
    %v10601 = vld [vmem:[%s10508 + $0x2e0] sm:$0xff]
    %v10602 = vld [vmem:[%s10508 + $0x2e8] sm:$0xff]
    %v10603 = vld [vmem:[%s10508 + $0x2f0] sm:$0xff]
    %v10604 = vld [vmem:[%s10508 + $0x2f8] sm:$0xff]
    %v10701 = vunpack.c.l.b16 %v10509
    %v10702 = vunpack.c.h.b16 %v10509
    %v10703 = vunpack.c.l.b16 %v10510
    %v10704 = vunpack.c.h.b16 %v10510
    %v10705 = vunpack.c.l.b16 %v10511
    %v10706 = vunpack.c.h.b16 %v10511
    %v10707 = vunpack.c.l.b16 %v10512
    %v10708 = vunpack.c.h.b16 %v10512
    %v10709 = vunpack.c.l.b16 %v10513
    %v10710 = vunpack.c.h.b16 %v10513
    %v10711 = vunpack.c.l.b16 %v10514
    %v10712 = vunpack.c.h.b16 %v10514
    %v10713 = vunpack.c.l.b16 %v10515
    %v10714 = vunpack.c.h.b16 %v10515
    %v10715 = vunpack.c.l.b16 %v10516
    %v10716 = vunpack.c.h.b16 %v10516
    %v10717 = vunpack.c.l.b16 %v10517
    %v10718 = vunpack.c.h.b16 %v10517
    %v10719 = vunpack.c.l.b16 %v10518
    %v10720 = vunpack.c.h.b16 %v10518
    %v10721 = vunpack.c.l.b16 %v10519
    %v10722 = vunpack.c.h.b16 %v10519
    %v10723 = vunpack.c.l.b16 %v10520
    %v10724 = vunpack.c.h.b16 %v10520
    %v10725 = vunpack.c.l.b16 %v10521
    %v10726 = vunpack.c.h.b16 %v10521
    %v10727 = vunpack.c.l.b16 %v10522
    %v10728 = vunpack.c.h.b16 %v10522
    %v10729 = vunpack.c.l.b16 %v10523
    %v10730 = vunpack.c.h.b16 %v10523
    %v10731 = vunpack.c.l.b16 %v10524
    %v10732 = vunpack.c.h.b16 %v10524
    %v10733 = vunpack.c.l.b16 %v10525
    %v10734 = vunpack.c.h.b16 %v10525
    %v10735 = vunpack.c.l.b16 %v10526
    %v10736 = vunpack.c.h.b16 %v10526
    %v10737 = vunpack.c.l.b16 %v10527
    %v10738 = vunpack.c.h.b16 %v10527
    %v10739 = vunpack.c.l.b16 %v10528
    %v10740 = vunpack.c.h.b16 %v10528
    %v10741 = vunpack.c.l.b16 %v10529
    %v10742 = vunpack.c.h.b16 %v10529
    %v10743 = vunpack.c.l.b16 %v10530
    %v10744 = vunpack.c.h.b16 %v10530
    %v10745 = vunpack.c.l.b16 %v10531
    %v10746 = vunpack.c.h.b16 %v10531
    %v10747 = vunpack.c.l.b16 %v10532
    %v10748 = vunpack.c.h.b16 %v10532
    %v10749 = vunpack.c.l.b16 %v10533
    %v10750 = vunpack.c.h.b16 %v10533
    %v10751 = vunpack.c.l.b16 %v10534
    %v10752 = vunpack.c.h.b16 %v10534
    %v10753 = vunpack.c.l.b16 %v10535
    %v10754 = vunpack.c.h.b16 %v10535
    %v10755 = vunpack.c.l.b16 %v10536
    %v10756 = vunpack.c.h.b16 %v10536
    %v10757 = vunpack.c.l.b16 %v10537
    %v10758 = vunpack.c.h.b16 %v10537
    %v10759 = vunpack.c.l.b16 %v10538
    %v10760 = vunpack.c.h.b16 %v10538
    %v10761 = vunpack.c.l.b16 %v10539
    %v10762 = vunpack.c.h.b16 %v10539
    %v10763 = vunpack.c.l.b16 %v10540
    %v10764 = vunpack.c.h.b16 %v10540
    %v10765 = vunpack.c.l.b16 %v10541
    %v10766 = vunpack.c.h.b16 %v10541
    %v10767 = vunpack.c.l.b16 %v10542
    %v10768 = vunpack.c.h.b16 %v10542
    %v10769 = vunpack.c.l.b16 %v10543
    %v10770 = vunpack.c.h.b16 %v10543
    %v10771 = vunpack.c.l.b16 %v10544
    %v10772 = vunpack.c.h.b16 %v10544
    %v10773 = vunpack.c.l.b16 %v10545
    %v10774 = vunpack.c.h.b16 %v10545
    %v10775 = vunpack.c.l.b16 %v10546
    %v10776 = vunpack.c.h.b16 %v10546
    %v10777 = vunpack.c.l.b16 %v10547
    %v10778 = vunpack.c.h.b16 %v10547
    %v10779 = vunpack.c.l.b16 %v10548
    %v10780 = vunpack.c.h.b16 %v10548
    %v10781 = vunpack.c.l.b16 %v10549
    %v10782 = vunpack.c.h.b16 %v10549
    %v10783 = vunpack.c.l.b16 %v10550
    %v10784 = vunpack.c.h.b16 %v10550
    %v10785 = vunpack.c.l.b16 %v10551
    %v10786 = vunpack.c.h.b16 %v10551
    %v10787 = vunpack.c.l.b16 %v10552
    %v10788 = vunpack.c.h.b16 %v10552
    %v10789 = vunpack.c.l.b16 %v10553
    %v10790 = vunpack.c.h.b16 %v10553
    %v10791 = vunpack.c.l.b16 %v10554
    %v10792 = vunpack.c.h.b16 %v10554
    %v10793 = vunpack.c.l.b16 %v10555
    %v10794 = vunpack.c.h.b16 %v10555
    %v10795 = vunpack.c.l.b16 %v10556
    %v10796 = vunpack.c.h.b16 %v10556
    %v10797 = vunpack.c.l.b16 %v10557
    %v10798 = vunpack.c.h.b16 %v10557
    %v10799 = vunpack.c.l.b16 %v10558
    %v10800 = vunpack.c.h.b16 %v10558
    %v10801 = vunpack.c.l.b16 %v10559
    %v10802 = vunpack.c.h.b16 %v10559
    %v10803 = vunpack.c.l.b16 %v10560
    %v10804 = vunpack.c.h.b16 %v10560
    %v10805 = vunpack.c.l.b16 %v10561
    %v10806 = vunpack.c.h.b16 %v10561
    %v10807 = vunpack.c.l.b16 %v10562
    %v10808 = vunpack.c.h.b16 %v10562
    %v10809 = vunpack.c.l.b16 %v10563
    %v10810 = vunpack.c.h.b16 %v10563
    %v10811 = vunpack.c.l.b16 %v10564
    %v10812 = vunpack.c.h.b16 %v10564
    %v10813 = vunpack.c.l.b16 %v10565
    %v10814 = vunpack.c.h.b16 %v10565
    %v10815 = vunpack.c.l.b16 %v10566
    %v10816 = vunpack.c.h.b16 %v10566
    %v10817 = vunpack.c.l.b16 %v10567
    %v10818 = vunpack.c.h.b16 %v10567
    %v10819 = vunpack.c.l.b16 %v10568
    %v10820 = vunpack.c.h.b16 %v10568
    %v10821 = vunpack.c.l.b16 %v10569
    %v10822 = vunpack.c.h.b16 %v10569
    %v10823 = vunpack.c.l.b16 %v10570
    %v10824 = vunpack.c.h.b16 %v10570
    %v10825 = vunpack.c.l.b16 %v10571
    %v10826 = vunpack.c.h.b16 %v10571
    %v10827 = vunpack.c.l.b16 %v10572
    %v10828 = vunpack.c.h.b16 %v10572
    %v10829 = vunpack.c.l.b16 %v10573
    %v10830 = vunpack.c.h.b16 %v10573
    %v10831 = vunpack.c.l.b16 %v10574
    %v10832 = vunpack.c.h.b16 %v10574
    %v10833 = vunpack.c.l.b16 %v10575
    %v10834 = vunpack.c.h.b16 %v10575
    %v10835 = vunpack.c.l.b16 %v10576
    %v10836 = vunpack.c.h.b16 %v10576
    %v10837 = vunpack.c.l.b16 %v10577
    %v10838 = vunpack.c.h.b16 %v10577
    %v10839 = vunpack.c.l.b16 %v10578
    %v10840 = vunpack.c.h.b16 %v10578
    %v10841 = vunpack.c.l.b16 %v10579
    %v10842 = vunpack.c.h.b16 %v10579
    %v10843 = vunpack.c.l.b16 %v10580
    %v10844 = vunpack.c.h.b16 %v10580
    %v10845 = vunpack.c.l.b16 %v10581
    %v10846 = vunpack.c.h.b16 %v10581
    %v10847 = vunpack.c.l.b16 %v10582
    %v10848 = vunpack.c.h.b16 %v10582
    %v10849 = vunpack.c.l.b16 %v10583
    %v10850 = vunpack.c.h.b16 %v10583
    %v10851 = vunpack.c.l.b16 %v10584
    %v10852 = vunpack.c.h.b16 %v10584
    %v10853 = vunpack.c.l.b16 %v10585
    %v10854 = vunpack.c.h.b16 %v10585
    %v10855 = vunpack.c.l.b16 %v10586
    %v10856 = vunpack.c.h.b16 %v10586
    %v10857 = vunpack.c.l.b16 %v10587
    %v10858 = vunpack.c.h.b16 %v10587
    %v10859 = vunpack.c.l.b16 %v10588
    %v10860 = vunpack.c.h.b16 %v10588
    %v10861 = vunpack.c.l.b16 %v10589
    %v10862 = vunpack.c.h.b16 %v10589
    %v10863 = vunpack.c.l.b16 %v10590
    %v10864 = vunpack.c.h.b16 %v10590
    %v10865 = vunpack.c.l.b16 %v10591
    %v10866 = vunpack.c.h.b16 %v10591
    %v10867 = vunpack.c.l.b16 %v10592
    %v10868 = vunpack.c.h.b16 %v10592
    %v10869 = vunpack.c.l.b16 %v10593
    %v10870 = vunpack.c.h.b16 %v10593
    %v10871 = vunpack.c.l.b16 %v10594
    %v10872 = vunpack.c.h.b16 %v10594
    %v10873 = vunpack.c.l.b16 %v10595
    %v10874 = vunpack.c.h.b16 %v10595
    %v10875 = vunpack.c.l.b16 %v10596
    %v10876 = vunpack.c.h.b16 %v10596
    %v10877 = vunpack.c.l.b16 %v10597
    %v10878 = vunpack.c.h.b16 %v10597
    %v10879 = vunpack.c.l.b16 %v10598
    %v10880 = vunpack.c.h.b16 %v10598
    %v10881 = vunpack.c.l.b16 %v10599
    %v10882 = vunpack.c.h.b16 %v10599
    %v10883 = vunpack.c.l.b16 %v10600
    %v10884 = vunpack.c.h.b16 %v10600
    %v10885 = vunpack.c.l.b16 %v10601
    %v10886 = vunpack.c.h.b16 %v10601
    %v10887 = vunpack.c.l.b16 %v10602
    %v10888 = vunpack.c.h.b16 %v10602
    %v10889 = vunpack.c.l.b16 %v10603
    %v10890 = vunpack.c.h.b16 %v10603
    %v10891 = vunpack.c.l.b16 %v10604
    %v10892 = vunpack.c.h.b16 %v10604
    %v10893 = vpack.c.b16 %v10703, %v10701
    %v10894 = vpack.c.b16 %v10704, %v10702
    %v10895 = vpack.c.b16 %v10707, %v10705
    %v10896 = vpack.c.b16 %v10708, %v10706
    %v10897 = vpack.c.b16 %v10711, %v10709
    %v10898 = vpack.c.b16 %v10712, %v10710
    %v10899 = vpack.c.b16 %v10715, %v10713
    %v10900 = vpack.c.b16 %v10716, %v10714
    %v10901 = vpack.c.b16 %v10719, %v10717
    %v10902 = vpack.c.b16 %v10720, %v10718
    %v10903 = vpack.c.b16 %v10723, %v10721
    %v10904 = vpack.c.b16 %v10724, %v10722
    %v10905 = vpack.c.b16 %v10727, %v10725
    %v10906 = vpack.c.b16 %v10728, %v10726
    %v10907 = vpack.c.b16 %v10731, %v10729
    %v10908 = vpack.c.b16 %v10732, %v10730
    %v10909 = vpack.c.b16 %v10735, %v10733
    %v10910 = vpack.c.b16 %v10736, %v10734
    %v10911 = vpack.c.b16 %v10739, %v10737
    %v10912 = vpack.c.b16 %v10740, %v10738
    %v10913 = vpack.c.b16 %v10743, %v10741
    %v10914 = vpack.c.b16 %v10744, %v10742
    %v10915 = vpack.c.b16 %v10747, %v10745
    %v10916 = vpack.c.b16 %v10748, %v10746
    %v10917 = vpack.c.b16 %v10751, %v10749
    %v10918 = vpack.c.b16 %v10752, %v10750
    %v10919 = vpack.c.b16 %v10755, %v10753
    %v10920 = vpack.c.b16 %v10756, %v10754
    %v10921 = vpack.c.b16 %v10759, %v10757
    %v10922 = vpack.c.b16 %v10760, %v10758
    %v10923 = vpack.c.b16 %v10763, %v10761
    %v10924 = vpack.c.b16 %v10764, %v10762
    %v10925 = vpack.c.b16 %v10767, %v10765
    %v10926 = vpack.c.b16 %v10768, %v10766
    %v10927 = vpack.c.b16 %v10771, %v10769
    %v10928 = vpack.c.b16 %v10772, %v10770
    %v10929 = vpack.c.b16 %v10775, %v10773
    %v10930 = vpack.c.b16 %v10776, %v10774
    %v10931 = vpack.c.b16 %v10779, %v10777
    %v10932 = vpack.c.b16 %v10780, %v10778
    %v10933 = vpack.c.b16 %v10783, %v10781
    %v10934 = vpack.c.b16 %v10784, %v10782
    %v10935 = vpack.c.b16 %v10787, %v10785
    %v10936 = vpack.c.b16 %v10788, %v10786
    %v10937 = vpack.c.b16 %v10791, %v10789
    %v10938 = vpack.c.b16 %v10792, %v10790
    %v10939 = vpack.c.b16 %v10795, %v10793
    %v10940 = vpack.c.b16 %v10796, %v10794
    %v10941 = vpack.c.b16 %v10799, %v10797
    %v10942 = vpack.c.b16 %v10800, %v10798
    %v10943 = vpack.c.b16 %v10803, %v10801
    %v10944 = vpack.c.b16 %v10804, %v10802
    %v10945 = vpack.c.b16 %v10807, %v10805
    %v10946 = vpack.c.b16 %v10808, %v10806
    %v10947 = vpack.c.b16 %v10811, %v10809
    %v10948 = vpack.c.b16 %v10812, %v10810
    %v10949 = vpack.c.b16 %v10815, %v10813
    %v10950 = vpack.c.b16 %v10816, %v10814
    %v10951 = vpack.c.b16 %v10819, %v10817
    %v10952 = vpack.c.b16 %v10820, %v10818
    %v10953 = vpack.c.b16 %v10823, %v10821
    %v10954 = vpack.c.b16 %v10824, %v10822
    %v10955 = vpack.c.b16 %v10827, %v10825
    %v10956 = vpack.c.b16 %v10828, %v10826
    %v10957 = vpack.c.b16 %v10831, %v10829
    %v10958 = vpack.c.b16 %v10832, %v10830
    %v10959 = vpack.c.b16 %v10835, %v10833
    %v10960 = vpack.c.b16 %v10836, %v10834
    %v10961 = vpack.c.b16 %v10839, %v10837
    %v10962 = vpack.c.b16 %v10840, %v10838
    %v10963 = vpack.c.b16 %v10843, %v10841
    %v10964 = vpack.c.b16 %v10844, %v10842
    %v10965 = vpack.c.b16 %v10847, %v10845
    %v10966 = vpack.c.b16 %v10848, %v10846
    %v10967 = vpack.c.b16 %v10851, %v10849
    %v10968 = vpack.c.b16 %v10852, %v10850
    %v10969 = vpack.c.b16 %v10855, %v10853
    %v10970 = vpack.c.b16 %v10856, %v10854
    %v10971 = vpack.c.b16 %v10859, %v10857
    %v10972 = vpack.c.b16 %v10860, %v10858
    %v10973 = vpack.c.b16 %v10863, %v10861
    %v10974 = vpack.c.b16 %v10864, %v10862
    %v10975 = vpack.c.b16 %v10867, %v10865
    %v10976 = vpack.c.b16 %v10868, %v10866
    %v10977 = vpack.c.b16 %v10871, %v10869
    %v10978 = vpack.c.b16 %v10872, %v10870
    %v10979 = vpack.c.b16 %v10875, %v10873
    %v10980 = vpack.c.b16 %v10876, %v10874
    %v10981 = vpack.c.b16 %v10879, %v10877
    %v10982 = vpack.c.b16 %v10880, %v10878
    %v10983 = vpack.c.b16 %v10883, %v10881
    %v10984 = vpack.c.b16 %v10884, %v10882
    %v10985 = vpack.c.b16 %v10887, %v10885
    %v10986 = vpack.c.b16 %v10888, %v10886
    %v10987 = vpack.c.b16 %v10891, %v10889
    %v10988 = vpack.c.b16 %v10892, %v10890
    %11085 = vmatprep.subr.bf16.mxu0 %v10894
    %11086 = vmatpush1.bf16.msra.mxu0 %v10893
    %11087 = vmatprep.subr.bf16.mxu0 %v10896
    %11088 = vmatpush1.bf16.msra.mxu0 %v10895
    %11089 = vmatprep.subr.bf16.mxu0 %v10898
    %11090 = vmatpush1.bf16.msra.mxu0 %v10897
    %11091 = vmatprep.subr.bf16.mxu0 %v10900
    %11092 = vmatpush1.bf16.msra.mxu0 %v10899
    %11093 = vmatprep.subr.bf16.mxu0 %v10902
    %11094 = vmatpush1.bf16.msra.mxu0 %v10901
    %11095 = vmatprep.subr.bf16.mxu0 %v10904
    %11096 = vmatpush1.bf16.msra.mxu0 %v10903
    %11097 = vmatprep.subr.bf16.mxu0 %v10906
    %11098 = vmatpush1.bf16.msra.mxu0 %v10905
    %11099 = vmatprep.subr.bf16.mxu0 %v10908
    %11100 = vmatpush1.bf16.msra.mxu0 %v10907
    %11101 = vmatprep.subr.bf16.mxu0 %v10910
    %11102 = vmatpush1.bf16.msra.mxu0 %v10909
    %11103 = vmatprep.subr.bf16.mxu0 %v10912
    %11104 = vmatpush1.bf16.msra.mxu0 %v10911
    %11105 = vmatprep.subr.bf16.mxu0 %v10914
    %11106 = vmatpush1.bf16.msra.mxu0 %v10913
    %11107 = vmatprep.subr.bf16.mxu0 %v10916
    %11108 = vmatpush1.bf16.msra.mxu0 %v10915
    %11109 = vmatprep.subr.bf16.mxu0 %v10918
    %11110 = vmatpush1.bf16.msra.mxu0 %v10917
    %11111 = vmatprep.subr.bf16.mxu0 %v10920
    %11112 = vmatpush1.bf16.msra.mxu0 %v10919
    %11113 = vmatprep.subr.bf16.mxu0 %v10922
    %11114 = vmatpush1.bf16.msra.mxu0 %v10921
    %11115 = vmatprep.subr.bf16.mxu0 %v10924
    %11116 = vmatpush1.bf16.msra.mxu0 %v10923
    %11117 = vmatprep.mubr.bf16.mxu0 %v10461
    %11118 = vmatmul.mubr.bf16.gmra.mrb[0].mxu0 %v10460
    %v11119 = vpop.f32.mrb[0].mxu0
    %v11120 = vadd.f32 0.0, %v11119
    %v11121 = vpop.f32.mrb[0].mxu0
    %v11122 = vadd.f32 0.0, %v11121
    %v11123 = vpop.f32.mrb[0].mxu0
    %v11124 = vadd.f32 0.0, %v11123
    %v11125 = vpop.f32.mrb[0].mxu0
    %v11126 = vadd.f32 0.0, %v11125
    %11127 = vmatprep.mubr.bf16.mxu0 %v10467
    %11128 = vmatmul.mubr.bf16.gmra.mrb[0].mxu0 %v10466
    %v11129 = vpop.f32.mrb[0].mxu0
    %v11130 = vadd.f32 0.0, %v11129
    %v11131 = vpop.f32.mrb[0].mxu0
    %v11132 = vadd.f32 0.0, %v11131
    %v11133 = vpop.f32.mrb[0].mxu0
    %v11134 = vadd.f32 0.0, %v11133
    %v11135 = vpop.f32.mrb[0].mxu0
    %v11136 = vadd.f32 0.0, %v11135
    %11137 = vmatprep.mubr.bf16.mxu0 %v10473
    %11138 = vmatmul.mubr.bf16.gmra.mrb[0].mxu0 %v10472
    %v11139 = vpop.f32.mrb[0].mxu0
    %v11140 = vadd.f32 0.0, %v11139
    %v11141 = vpop.f32.mrb[0].mxu0
    %v11142 = vadd.f32 0.0, %v11141
    %v11143 = vpop.f32.mrb[0].mxu0
    %v11144 = vadd.f32 0.0, %v11143
    %v11145 = vpop.f32.mrb[0].mxu0
    %v11146 = vadd.f32 0.0, %v11145
    %11147 = vmatprep.mubr.bf16.mxu0 %v10479
    %11148 = vmatmul.mubr.bf16.gmra.mrb[0].mxu0 %v10478
    %v11149 = vpop.f32.mrb[0].mxu0
    %v11150 = vadd.f32 0.0, %v11149
    %v11151 = vpop.f32.mrb[0].mxu0
    %v11152 = vadd.f32 0.0, %v11151
    %v11153 = vpop.f32.mrb[0].mxu0
    %v11154 = vadd.f32 0.0, %v11153
    %v11155 = vpop.f32.mrb[0].mxu0
    %v11156 = vadd.f32 0.0, %v11155
    %11157 = vmatprep.mubr.bf16.mxu0 %v10485
    %11158 = vmatmul.mubr.bf16.gmra.mrb[0].mxu0 %v10484
    %v11159 = vpop.f32.mrb[0].mxu0
    %v11160 = vadd.f32 0.0, %v11159
    %v11161 = vpop.f32.mrb[0].mxu0
    %v11162 = vadd.f32 0.0, %v11161
    %v11163 = vpop.f32.mrb[0].mxu0
    %v11164 = vadd.f32 0.0, %v11163
    %v11165 = vpop.f32.mrb[0].mxu0
    %v11166 = vadd.f32 0.0, %v11165
    %11167 = vmatprep.mubr.bf16.mxu0 %v10491
    %11168 = vmatmul.mubr.bf16.gmra.mrb[0].mxu0 %v10490
    %v11169 = vpop.f32.mrb[0].mxu0
    %v11170 = vadd.f32 0.0, %v11169
    %v11171 = vpop.f32.mrb[0].mxu0
    %v11172 = vadd.f32 0.0, %v11171
    %v11173 = vpop.f32.mrb[0].mxu0
    %v11174 = vadd.f32 0.0, %v11173
    %v11175 = vpop.f32.mrb[0].mxu0
    %v11176 = vadd.f32 0.0, %v11175
    %11177 = vmatprep.mubr.bf16.mxu0 %v10497
    %11178 = vmatmul.mubr.bf16.gmra.mrb[0].mxu0 %v10496
    %v11179 = vpop.f32.mrb[0].mxu0
    %v11180 = vadd.f32 0.0, %v11179
    %v11181 = vpop.f32.mrb[0].mxu0
    %v11182 = vadd.f32 0.0, %v11181
    %v11183 = vpop.f32.mrb[0].mxu0
    %v11184 = vadd.f32 0.0, %v11183
    %v11185 = vpop.f32.mrb[0].mxu0
    %v11186 = vadd.f32 0.0, %v11185
    %11187 = vmatprep.mubr.bf16.mxu0 %v10503
    %11188 = vmatmul.mubr.bf16.gmra.mrb[0].mxu0 %v10502
    %v11189 = vpop.f32.mrb[0].mxu0
    %v11190 = vadd.f32 0.0, %v11189
    %v11191 = vpop.f32.mrb[0].mxu0
    %v11192 = vadd.f32 0.0, %v11191
    %v11193 = vpop.f32.mrb[0].mxu0
    %v11194 = vadd.f32 0.0, %v11193
    %v11195 = vpop.f32.mrb[0].mxu0
    %v11196 = vadd.f32 0.0, %v11195
    %11197 = vdwg.mxu0
    %11198 = vmatprep.subr.bf16.mxu0 %v10926
    %11199 = vmatpush1.bf16.msra.mxu0 %v10925
    %11200 = vmatprep.subr.bf16.mxu0 %v10928
    %11201 = vmatpush1.bf16.msra.mxu0 %v10927
    %11202 = vmatprep.subr.bf16.mxu0 %v10930
    %11203 = vmatpush1.bf16.msra.mxu0 %v10929
    %11204 = vmatprep.subr.bf16.mxu0 %v10932
    %11205 = vmatpush1.bf16.msra.mxu0 %v10931
    %11206 = vmatprep.subr.bf16.mxu0 %v10934
    %11207 = vmatpush1.bf16.msra.mxu0 %v10933
    %11208 = vmatprep.subr.bf16.mxu0 %v10936
    %11209 = vmatpush1.bf16.msra.mxu0 %v10935
    %11210 = vmatprep.subr.bf16.mxu0 %v10938
    %11211 = vmatpush1.bf16.msra.mxu0 %v10937
    %11212 = vmatprep.subr.bf16.mxu0 %v10940
    %11213 = vmatpush1.bf16.msra.mxu0 %v10939
    %11214 = vmatprep.subr.bf16.mxu0 %v10942
    %11215 = vmatpush1.bf16.msra.mxu0 %v10941
    %11216 = vmatprep.subr.bf16.mxu0 %v10944
    %11217 = vmatpush1.bf16.msra.mxu0 %v10943
    %11218 = vmatprep.subr.bf16.mxu0 %v10946
    %11219 = vmatpush1.bf16.msra.mxu0 %v10945
    %11220 = vmatprep.subr.bf16.mxu0 %v10948
    %11221 = vmatpush1.bf16.msra.mxu0 %v10947
    %11222 = vmatprep.subr.bf16.mxu0 %v10950
    %11223 = vmatpush1.bf16.msra.mxu0 %v10949
    %11224 = vmatprep.subr.bf16.mxu0 %v10952
    %11225 = vmatpush1.bf16.msra.mxu0 %v10951
    %11226 = vmatprep.subr.bf16.mxu0 %v10954
    %11227 = vmatpush1.bf16.msra.mxu0 %v10953
    %11228 = vmatprep.subr.bf16.mxu0 %v10956
    %11229 = vmatpush1.bf16.msra.mxu0 %v10955
    %11230 = vmatprep.mubr.bf16.mxu0 %v10463
    %11231 = vmatmul.mubr.bf16.gmra.mrb[0].mxu0 %v10462
    %v11232 = vpop.f32.mrb[0].mxu0
    %v11233 = vadd.f32 %v11120, %v11232
    %v11234 = vpop.f32.mrb[0].mxu0
    %v11235 = vadd.f32 %v11122, %v11234
    %v11236 = vpop.f32.mrb[0].mxu0
    %v11237 = vadd.f32 %v11124, %v11236
    %v11238 = vpop.f32.mrb[0].mxu0
    %v11239 = vadd.f32 %v11126, %v11238
    %11240 = vmatprep.mubr.bf16.mxu0 %v10469
    %11241 = vmatmul.mubr.bf16.gmra.mrb[0].mxu0 %v10468
    %v11242 = vpop.f32.mrb[0].mxu0
    %v11243 = vadd.f32 %v11130, %v11242
    %v11244 = vpop.f32.mrb[0].mxu0
    %v11245 = vadd.f32 %v11132, %v11244
    %v11246 = vpop.f32.mrb[0].mxu0
    %v11247 = vadd.f32 %v11134, %v11246
    %v11248 = vpop.f32.mrb[0].mxu0
    %v11249 = vadd.f32 %v11136, %v11248
    %11250 = vmatprep.mubr.bf16.mxu0 %v10475
    %11251 = vmatmul.mubr.bf16.gmra.mrb[0].mxu0 %v10474
    %v11252 = vpop.f32.mrb[0].mxu0
    %v11253 = vadd.f32 %v11140, %v11252
    %v11254 = vpop.f32.mrb[0].mxu0
    %v11255 = vadd.f32 %v11142, %v11254
    %v11256 = vpop.f32.mrb[0].mxu0
    %v11257 = vadd.f32 %v11144, %v11256
    %v11258 = vpop.f32.mrb[0].mxu0
    %v11259 = vadd.f32 %v11146, %v11258
    %11260 = vmatprep.mubr.bf16.mxu0 %v10481
    %11261 = vmatmul.mubr.bf16.gmra.mrb[0].mxu0 %v10480
    %v11262 = vpop.f32.mrb[0].mxu0
    %v11263 = vadd.f32 %v11150, %v11262
    %v11264 = vpop.f32.mrb[0].mxu0
    %v11265 = vadd.f32 %v11152, %v11264
    %v11266 = vpop.f32.mrb[0].mxu0
    %v11267 = vadd.f32 %v11154, %v11266
    %v11268 = vpop.f32.mrb[0].mxu0
    %v11269 = vadd.f32 %v11156, %v11268
    %11270 = vmatprep.mubr.bf16.mxu0 %v10487
    %11271 = vmatmul.mubr.bf16.gmra.mrb[0].mxu0 %v10486
    %v11272 = vpop.f32.mrb[0].mxu0
    %v11273 = vadd.f32 %v11160, %v11272
    %v11274 = vpop.f32.mrb[0].mxu0
    %v11275 = vadd.f32 %v11162, %v11274
    %v11276 = vpop.f32.mrb[0].mxu0
    %v11277 = vadd.f32 %v11164, %v11276
    %v11278 = vpop.f32.mrb[0].mxu0
    %v11279 = vadd.f32 %v11166, %v11278
    %11280 = vmatprep.mubr.bf16.mxu0 %v10493
    %11281 = vmatmul.mubr.bf16.gmra.mrb[0].mxu0 %v10492
    %v11282 = vpop.f32.mrb[0].mxu0
    %v11283 = vadd.f32 %v11170, %v11282
    %v11284 = vpop.f32.mrb[0].mxu0
    %v11285 = vadd.f32 %v11172, %v11284
    %v11286 = vpop.f32.mrb[0].mxu0
    %v11287 = vadd.f32 %v11174, %v11286
    %v11288 = vpop.f32.mrb[0].mxu0
    %v11289 = vadd.f32 %v11176, %v11288
    %11290 = vmatprep.mubr.bf16.mxu0 %v10499
    %11291 = vmatmul.mubr.bf16.gmra.mrb[0].mxu0 %v10498
    %v11292 = vpop.f32.mrb[0].mxu0
    %v11293 = vadd.f32 %v11180, %v11292
    %v11294 = vpop.f32.mrb[0].mxu0
    %v11295 = vadd.f32 %v11182, %v11294
    %v11296 = vpop.f32.mrb[0].mxu0
    %v11297 = vadd.f32 %v11184, %v11296
    %v11298 = vpop.f32.mrb[0].mxu0
    %v11299 = vadd.f32 %v11186, %v11298
    %11300 = vmatprep.mubr.bf16.mxu0 %v10505
    %11301 = vmatmul.mubr.bf16.gmra.mrb[0].mxu0 %v10504
    %v11302 = vpop.f32.mrb[0].mxu0
    %v11303 = vadd.f32 %v11190, %v11302
    %v11304 = vpop.f32.mrb[0].mxu0
    %v11305 = vadd.f32 %v11192, %v11304
    %v11306 = vpop.f32.mrb[0].mxu0
    %v11307 = vadd.f32 %v11194, %v11306
    %v11308 = vpop.f32.mrb[0].mxu0
    %v11309 = vadd.f32 %v11196, %v11308
    %11310 = vdwg.mxu0
    %11311 = vmatprep.subr.bf16.mxu0 %v10958
    %11312 = vmatpush1.bf16.msra.mxu0 %v10957
    %11313 = vmatprep.subr.bf16.mxu0 %v10960
    %11314 = vmatpush1.bf16.msra.mxu0 %v10959
    %11315 = vmatprep.subr.bf16.mxu0 %v10962
    %11316 = vmatpush1.bf16.msra.mxu0 %v10961
    %11317 = vmatprep.subr.bf16.mxu0 %v10964
    %11318 = vmatpush1.bf16.msra.mxu0 %v10963
    %11319 = vmatprep.subr.bf16.mxu0 %v10966
    %11320 = vmatpush1.bf16.msra.mxu0 %v10965
    %11321 = vmatprep.subr.bf16.mxu0 %v10968
    %11322 = vmatpush1.bf16.msra.mxu0 %v10967
    %11323 = vmatprep.subr.bf16.mxu0 %v10970
    %11324 = vmatpush1.bf16.msra.mxu0 %v10969
    %11325 = vmatprep.subr.bf16.mxu0 %v10972
    %11326 = vmatpush1.bf16.msra.mxu0 %v10971
    %11327 = vmatprep.subr.bf16.mxu0 %v10974
    %11328 = vmatpush1.bf16.msra.mxu0 %v10973
    %11329 = vmatprep.subr.bf16.mxu0 %v10976
    %11330 = vmatpush1.bf16.msra.mxu0 %v10975
    %11331 = vmatprep.subr.bf16.mxu0 %v10978
    %11332 = vmatpush1.bf16.msra.mxu0 %v10977
    %11333 = vmatprep.subr.bf16.mxu0 %v10980
    %11334 = vmatpush1.bf16.msra.mxu0 %v10979
    %11335 = vmatprep.subr.bf16.mxu0 %v10982
    %11336 = vmatpush1.bf16.msra.mxu0 %v10981
    %11337 = vmatprep.subr.bf16.mxu0 %v10984
    %11338 = vmatpush1.bf16.msra.mxu0 %v10983
    %11339 = vmatprep.subr.bf16.mxu0 %v10986
    %11340 = vmatpush1.bf16.msra.mxu0 %v10985
    %11341 = vmatprep.subr.bf16.mxu0 %v10988
    %11342 = vmatpush1.bf16.msra.mxu0 %v10987
    %11343 = vmatprep.mubr.bf16.mxu0 %v10465
    %11344 = vmatmul.mubr.bf16.gmra.mrb[0].mxu0 %v10464
    %v11345 = vpop.f32.mrb[0].mxu0
    %v11346 = vadd.f32 %v11233, %v11345
    %v11347 = vpop.f32.mrb[0].mxu0
    %v11348 = vadd.f32 %v11235, %v11347
    %v11349 = vpop.f32.mrb[0].mxu0
    %v11350 = vadd.f32 %v11237, %v11349
    %v11351 = vpop.f32.mrb[0].mxu0
    %v11352 = vadd.f32 %v11239, %v11351
    %11353 = vmatprep.mubr.bf16.mxu0 %v10471
    %11354 = vmatmul.mubr.bf16.gmra.mrb[0].mxu0 %v10470
    %v11355 = vpop.f32.mrb[0].mxu0
    %v11356 = vadd.f32 %v11243, %v11355
    %v11357 = vpop.f32.mrb[0].mxu0
    %v11358 = vadd.f32 %v11245, %v11357
    %v11359 = vpop.f32.mrb[0].mxu0
    %v11360 = vadd.f32 %v11247, %v11359
    %v11361 = vpop.f32.mrb[0].mxu0
    %v11362 = vadd.f32 %v11249, %v11361
    %11363 = vmatprep.mubr.bf16.mxu0 %v10477
    %11364 = vmatmul.mubr.bf16.gmra.mrb[0].mxu0 %v10476
    %v11365 = vpop.f32.mrb[0].mxu0
    %v11366 = vadd.f32 %v11253, %v11365
    %v11367 = vpop.f32.mrb[0].mxu0
    %v11368 = vadd.f32 %v11255, %v11367
    %v11369 = vpop.f32.mrb[0].mxu0
    %v11370 = vadd.f32 %v11257, %v11369
    %v11371 = vpop.f32.mrb[0].mxu0
    %v11372 = vadd.f32 %v11259, %v11371
    %11373 = vmatprep.mubr.bf16.mxu0 %v10483
    %11374 = vmatmul.mubr.bf16.gmra.mrb[0].mxu0 %v10482
    %v11375 = vpop.f32.mrb[0].mxu0
    %v11376 = vadd.f32 %v11263, %v11375
    %v11377 = vpop.f32.mrb[0].mxu0
    %v11378 = vadd.f32 %v11265, %v11377
    %v11379 = vpop.f32.mrb[0].mxu0
    %v11380 = vadd.f32 %v11267, %v11379
    %v11381 = vpop.f32.mrb[0].mxu0
    %v11382 = vadd.f32 %v11269, %v11381
    %11383 = vmatprep.mubr.bf16.mxu0 %v10489
    %11384 = vmatmul.mubr.bf16.gmra.mrb[0].mxu0 %v10488
    %v11385 = vpop.f32.mrb[0].mxu0
    %v11386 = vadd.f32 %v11273, %v11385
    %v11387 = vpop.f32.mrb[0].mxu0
    %v11388 = vadd.f32 %v11275, %v11387
    %v11389 = vpop.f32.mrb[0].mxu0
    %v11390 = vadd.f32 %v11277, %v11389
    %v11391 = vpop.f32.mrb[0].mxu0
    %v11392 = vadd.f32 %v11279, %v11391
    %11393 = vmatprep.mubr.bf16.mxu0 %v10495
    %11394 = vmatmul.mubr.bf16.gmra.mrb[0].mxu0 %v10494
    %v11395 = vpop.f32.mrb[0].mxu0
    %v11396 = vadd.f32 %v11283, %v11395
    %v11397 = vpop.f32.mrb[0].mxu0
    %v11398 = vadd.f32 %v11285, %v11397
    %v11399 = vpop.f32.mrb[0].mxu0
    %v11400 = vadd.f32 %v11287, %v11399
    %v11401 = vpop.f32.mrb[0].mxu0
    %v11402 = vadd.f32 %v11289, %v11401
    %11403 = vmatprep.mubr.bf16.mxu0 %v10501
    %11404 = vmatmul.mubr.bf16.gmra.mrb[0].mxu0 %v10500
    %v11405 = vpop.f32.mrb[0].mxu0
    %v11406 = vadd.f32 %v11293, %v11405
    %v11407 = vpop.f32.mrb[0].mxu0
    %v11408 = vadd.f32 %v11295, %v11407
    %v11409 = vpop.f32.mrb[0].mxu0
    %v11410 = vadd.f32 %v11297, %v11409
    %v11411 = vpop.f32.mrb[0].mxu0
    %v11412 = vadd.f32 %v11299, %v11411
    %11413 = vmatprep.mubr.bf16.mxu0 %v10507
    %11414 = vmatmul.mubr.bf16.gmra.mrb[0].mxu0 %v10506
    %v11415 = vpop.f32.mrb[0].mxu0
    %v11416 = vadd.f32 %v11303, %v11415
    %v11417 = vpop.f32.mrb[0].mxu0
    %v11418 = vadd.f32 %v11305, %v11417
    %v11419 = vpop.f32.mrb[0].mxu0
    %v11420 = vadd.f32 %v11307, %v11419
    %v11421 = vpop.f32.mrb[0].mxu0
    %v11422 = vadd.f32 %v11309, %v11421
    %11423 = vdwg.mxu0
    %v11424 = vtanh.pop %v11346
    %v11425 = vtanh.pop %v11348
    %v11426 = vtanh.pop %v11350
    %v11427 = vtanh.pop %v11352
    %v11428 = vtanh.pop %v11356
    %v11429 = vtanh.pop %v11358
    %v11430 = vtanh.pop %v11360
    %v11431 = vtanh.pop %v11362
    %v11432 = vtanh.pop %v11366
    %v11433 = vtanh.pop %v11368
    %v11434 = vtanh.pop %v11370
    %v11435 = vtanh.pop %v11372
    %v11436 = vtanh.pop %v11376
    %v11437 = vtanh.pop %v11378
    %v11438 = vtanh.pop %v11380
    %v11439 = vtanh.pop %v11382
    %v11440 = vtanh.pop %v11386
    %v11441 = vtanh.pop %v11388
    %v11442 = vtanh.pop %v11390
    %v11443 = vtanh.pop %v11392
    %v11444 = vtanh.pop %v11396
    %v11445 = vtanh.pop %v11398
    %v11446 = vtanh.pop %v11400
    %v11447 = vtanh.pop %v11402
    %v11448 = vtanh.pop %v11406
    %v11449 = vtanh.pop %v11408
    %v11450 = vtanh.pop %v11410
    %v11451 = vtanh.pop %v11412
    %v11452 = vtanh.pop %v11416
    %v11453 = vtanh.pop %v11418
    %v11454 = vtanh.pop %v11420
    %v11455 = vtanh.pop %v11422
    %11456 = vst [vmem:[%s11] sm:$0xff] %v11424
    %11457 = vst [vmem:[%s11 + $0x8] sm:$0xff] %v11425
    %11458 = vst [vmem:[%s11 + $0x10] sm:$0xff] %v11426
    %11459 = vst [vmem:[%s11 + $0x18] sm:$0xff] %v11427
    %11460 = vst [vmem:[%s11 + $0x20] sm:$0xff] %v11428
    %11461 = vst [vmem:[%s11 + $0x28] sm:$0xff] %v11429
    %11462 = vst [vmem:[%s11 + $0x30] sm:$0xff] %v11430
    %11463 = vst [vmem:[%s11 + $0x38] sm:$0xff] %v11431
    %11464 = vst [vmem:[%s11 + $0x40] sm:$0xff] %v11432
    %11465 = vst [vmem:[%s11 + $0x48] sm:$0xff] %v11433
    %11466 = vst [vmem:[%s11 + $0x50] sm:$0xff] %v11434
    %11467 = vst [vmem:[%s11 + $0x58] sm:$0xff] %v11435
    %11468 = vst [vmem:[%s11 + $0x60] sm:$0xff] %v11436
    %11469 = vst [vmem:[%s11 + $0x68] sm:$0xff] %v11437
    %11470 = vst [vmem:[%s11 + $0x70] sm:$0xff] %v11438
    %11471 = vst [vmem:[%s11 + $0x78] sm:$0xff] %v11439
    %11472 = vst [vmem:[%s11 + $0x80] sm:$0xff] %v11440
    %11473 = vst [vmem:[%s11 + $0x88] sm:$0xff] %v11441
    %11474 = vst [vmem:[%s11 + $0x90] sm:$0xff] %v11442
    %11475 = vst [vmem:[%s11 + $0x98] sm:$0xff] %v11443
    %11476 = vst [vmem:[%s11 + $0xa0] sm:$0xff] %v11444
    %11477 = vst [vmem:[%s11 + $0xa8] sm:$0xff] %v11445
    %11478 = vst [vmem:[%s11 + $0xb0] sm:$0xff] %v11446
    %11479 = vst [vmem:[%s11 + $0xb8] sm:$0xff] %v11447
    %11480 = vst [vmem:[%s11 + $0xc0] sm:$0xff] %v11448
    %11481 = vst [vmem:[%s11 + $0xc8] sm:$0xff] %v11449
    %11482 = vst [vmem:[%s11 + $0xd0] sm:$0xff] %v11450
    %11483 = vst [vmem:[%s11 + $0xd8] sm:$0xff] %v11451
    %11484 = vst [vmem:[%s11 + $0xe0] sm:$0xff] %v11452
    %11485 = vst [vmem:[%s11 + $0xe8] sm:$0xff] %v11453
    %11486 = vst [vmem:[%s11 + $0xf0] sm:$0xff] %v11454
    %11487 = vst [vmem:[%s11 + $0xf8] sm:$0xff] %v11455
    // Predicated region
    $region86: #{stage1_g_forward.1} parent=1 // pred_check
      _
    $region87: #{stage1_g_forward.1} parent=1 // pred_check_branch
      %11489 = sbr.rel (0) target = $region89
    $region88: #{stage1_g_forward.1} parent=1 // pred_region
      _
    $region89: #{stage1_g_forward.1} parent=1 // pred_fallthru
      _
    // Predicated region
    $region90: #{stage1_g_forward.1} parent=1 // pred_check
      _
    $region91: #{stage1_g_forward.1} parent=1 // pred_check_branch
      %11491 = sbr.rel (0) target = $region93
    $region92: #{stage1_g_forward.1} parent=1 // pred_region
      _
    $region93: #{stage1_g_forward.1} parent=1 // pred_fallthru
      _
    // Predicated region
    $region94: #{stage1_g_forward.1} parent=1 // pred_check
      _
    $region95: #{stage1_g_forward.1} parent=1 // pred_check_branch
      %11493 = sbr.rel (0) target = $region97
    $region96: #{stage1_g_forward.1} parent=1 // pred_region
      _
    $region97: #{stage1_g_forward.1} parent=1 // pred_fallthru
      _
    // Predicated region
    $region98: #{stage1_g_forward.1} parent=1 // pred_check
      _
    $region99: #{stage1_g_forward.1} parent=1 // pred_check_branch
      %11495 = sbr.rel (0) target = $region101
    $region100: #{stage1_g_forward.1} parent=1 // pred_region
      _
    $region101: #{stage1_g_forward.1} parent=1 // pred_fallthru
      _
    %11496 = vsyncpa [#allocation4], 1
    %11497 = vsyncpa [#allocation6], 1
    %11498 = vsyncpa [#allocation9], 1
    %11499 = vsyncpa [#allocation12], 1
    %11500 = vsyncpa [#allocation15], 1
    %11501 = vsyncpa [#allocation18], 1

</llo_original>
